<compile_context>
chip_gen: v5e
topology: v5e:2x2
jax: 0.10.0
libtpu: 0.0.40
codegen_flags: <defaults>
</compile_context>

<pallas_src>
import functools

import jax
import jax.numpy as jnp
from jax.experimental import pallas as pl
from jax.experimental.pallas import tpu as pltpu

_EPS = 1e-5  # matches torch.nn.InstanceNorm2d default


# ----------------------------- Pallas kernels ------------------------------

def _conv3x3_in_relu_kernel(xp_ref, w_ref, b_ref, o_ref):
    """3x3 conv (+bias) + InstanceNorm + ReLU for one (sample, Cout-tile)."""
    _, ho, wo, tn = o_ref.shape
    cin = xp_ref.shape[-1]
    acc = jnp.zeros((ho * wo, tn), jnp.float32)
    # Fused im2col: accumulate the 9 kernel taps as bf16 GEMMs on the MXU,
    # reading shifted windows straight from the padded VMEM block.
    for di in range(3):
        for dj in range(3):
            a = xp_ref[0, pl.ds(di, ho), pl.ds(dj, wo), :].reshape(ho * wo, cin)
            acc = acc + jnp.dot(a, w_ref[di, dj],
                                preferred_element_type=jnp.float32)
    y = acc + b_ref[...]                                    # (H*W, tn) f32
    # Instance-norm statistics per channel over the full spatial extent (f32).
    mean = jnp.mean(y, axis=0, keepdims=True)
    yc = y - mean
    var = jnp.mean(yc * yc, axis=0, keepdims=True)
    o = jnp.maximum(yc * jax.lax.rsqrt(var + _EPS), 0.0)
    o_ref[...] = o.reshape(1, ho, wo, tn).astype(o_ref.dtype)


def _conv3x3_in_add_kernel(xp_ref, w_ref, b_ref, skip_ref, o_ref):
    """3x3 conv (+bias) + InstanceNorm + residual add (skip connection)."""
    _, ho, wo, tn = o_ref.shape
    cin = xp_ref.shape[-1]
    acc = jnp.zeros((ho * wo, tn), jnp.float32)
    for di in range(3):
        for dj in range(3):
            a = xp_ref[0, pl.ds(di, ho), pl.ds(dj, wo), :].reshape(ho * wo, cin)
            acc = acc + jnp.dot(a, w_ref[di, dj],
                                preferred_element_type=jnp.float32)
    y = acc + b_ref[...]
    mean = jnp.mean(y, axis=0, keepdims=True)
    yc = y - mean
    var = jnp.mean(yc * yc, axis=0, keepdims=True)
    o = (yc * jax.lax.rsqrt(var + _EPS)).reshape(1, ho, wo, tn)
    o_ref[...] = (o + skip_ref[...].astype(jnp.float32)).astype(o_ref.dtype)


# ------------------------------ layer wrapper -------------------------------

def _pick_cout_tile(cout):
    # Lane-dense channel tile: take the full Cout when it is not 128-divisible
    # (small configs), otherwise a 128-multiple tile that bounds the weight /
    # output block size per grid step.
    if cout % 128 != 0:
        return cout
    for cand in (256, 128):
        if cout % cand == 0:
            return cand
    return cout


_PAD_MODE = {"reflect": "reflect", "replicate": "edge", "zero": "constant"}


def conv3x3_instnorm(x_nhwc, w, b, *, padding_type, skip=None):
    """Fused pad->conv3x3->InstanceNorm->(ReLU | +skip).

    x_nhwc: (N, H, W, Cin);  w: (3, 3, Cin, Cout) bf16;  b: (1, Cout) f32.
    skip=None           -> conv + IN + ReLU, bf16 output.
    skip=(N,H,W,Cout)   -> conv + IN + residual add, f32 output.
    """
    n, hh, ww, cin = x_nhwc.shape
    cout = w.shape[-1]
    xp = jnp.pad(x_nhwc, ((0, 0), (1, 1), (1, 1), (0, 0)),
                 mode=_PAD_MODE[padding_type]).astype(jnp.bfloat16)
    hp, wp = hh + 2, ww + 2
    tn = _pick_cout_tile(cout)
    grid = (n, cout // tn)

    in_specs = [
        pl.BlockSpec((1, hp, wp, cin), lambda i, j: (i, 0, 0, 0)),   # padded x
        pl.BlockSpec((3, 3, cin, tn), lambda i, j: (0, 0, 0, j)),    # weights
        pl.BlockSpec((1, tn), lambda i, j: (0, j)),                  # bias
    ]
    args = [xp, w.astype(jnp.bfloat16), b.astype(jnp.float32)]
    if skip is None:
        kernel = _conv3x3_in_relu_kernel
        out_dtype = jnp.bfloat16
    else:
        in_specs.append(pl.BlockSpec((1, hh, ww, tn), lambda i, j: (i, 0, 0, j)))
        args.append(skip)
        kernel = _conv3x3_in_add_kernel
        out_dtype = jnp.float32

    return pl.pallas_call(
        kernel,
        out_shape=jax.ShapeDtypeStruct((n, hh, ww, cout), out_dtype),
        grid=grid,
        in_specs=in_specs,
        out_specs=pl.BlockSpec((1, hh, ww, tn), lambda i, j: (i, 0, 0, j)),
        compiler_params=pltpu.CompilerParams(
            dimension_semantics=("parallel", "parallel")),
    )(*args)


# -------------------------------- forward -----------------------------------

def resnet_block_forward(params, x, *, padding_type="reflect",
                         use_dropout=False):
    """ResnetBlock forward: out = x + conv_block(x).  x is (N, C, H, W)."""
    del use_dropout  # TODO(synk): training-mode nn.Dropout(0.5) not implemented (eval-mode identity).
    x_nhwc = jnp.transpose(x, (0, 2, 3, 1)).astype(jnp.float32)
    h1 = conv3x3_instnorm(x_nhwc, params["w1"], params["b1"],
                          padding_type=padding_type)                  # bf16
    out = conv3x3_instnorm(h1, params["w2"], params["b2"],
                           padding_type=padding_type, skip=x_nhwc)    # f32
    return jnp.transpose(out, (0, 3, 1, 2))


# ------------------------------ parameter init ------------------------------

def init_params(key, dim):
    k1, k2, k3, k4 = jax.random.split(key, 4)

    def to_kernel(w_pt):  # PyTorch (Cout, Cin, kh, kw) -> (kh, kw, Cin, Cout)
        return jnp.transpose(w_pt, (2, 3, 1, 0)).astype(jnp.bfloat16)

    w1 = 0.05 * jax.random.normal(k1, (dim, dim, 3, 3), jnp.float32)
    w2 = 0.05 * jax.random.normal(k3, (dim, dim, 3, 3), jnp.float32)
    return {
        "w1": to_kernel(w1),
        "b1": (0.01 * jax.random.normal(k2, (dim,), jnp.float32)).reshape(1, dim),
        "w2": to_kernel(w2),
        "b2": (0.01 * jax.random.normal(k4, (dim,), jnp.float32)).reshape(1, dim),
    }


# ---------------------------------- main -------------------------------------

if __name__ == "__main__":
    batch, dim, spatial = 2, 32, 16

    key = jax.random.PRNGKey(0)
    k_params, k_x = jax.random.split(key)
    params = init_params(k_params, dim)
    x = jax.random.normal(k_x, (batch, dim, spatial, spatial), jnp.float32)

    fwd = jax.jit(functools.partial(resnet_block_forward,
                                    padding_type="reflect"))
    out = jax.block_until_ready(fwd(params, x))

    assert out.shape == (batch, dim, spatial, spatial), out.shape
    assert bool(jnp.all(jnp.isfinite(out)))
    print("KERNEL_OK")
</pallas_src>

<mosaic_0001>
module attributes {stable_mosaic.version = 11 : i64} {
  func.func @_conv3x3_in_add_kernel(%arg0: i32, %arg1: i32, %arg2: memref<1x18x18x32xbf16, #tpu.memory_space<vmem>>, %arg3: memref<3x3x32x32xbf16, #tpu.memory_space<vmem>>, %arg4: memref<1x32xf32, #tpu.memory_space<vmem>>, %arg5: memref<1x16x16x32xf32, #tpu.memory_space<vmem>>, %arg6: memref<1x16x16x32xf32, #tpu.memory_space<vmem>>) attributes {dimension_semantics = [#tpu.dimension_semantics<parallel>, #tpu.dimension_semantics<parallel>], iteration_bounds = array<i64: 2, 1>, scalar_prefetch = 0 : i64, scratch_operands = 0 : i64, tpu.core_type = #tpu.core_type<tc>, window_params = [{transform_indices = @transform_0, window_bounds = array<i64: 1, 18, 18, 32>}, {transform_indices = @transform_1, window_bounds = array<i64: 3, 3, 32, 32>}, {transform_indices = @transform_2, window_bounds = array<i64: 1, 32>}, {transform_indices = @transform_3, window_bounds = array<i64: 1, 16, 16, 32>}, {transform_indices = @transform_4, window_bounds = array<i64: 1, 16, 16, 32>}]} {
    %cst = arith.constant 0.000000e+00 : f32
    %0 = vector.broadcast %cst : f32 to vector<256x32xf32>
    %c0 = arith.constant 0 : index
    %c0_0 = arith.constant 0 : index
    %c0_1 = arith.constant 0 : index
    %c0_2 = arith.constant 0 : index
    %1 = vector.load %arg2[%c0, %c0_0, %c0_1, %c0_2] : memref<1x18x18x32xbf16, #tpu.memory_space<vmem>>, vector<1x16x16x32xbf16>
    %2 = vector.shape_cast %1 : vector<1x16x16x32xbf16> to vector<16x16x32xbf16>
    %3 = vector.shape_cast %2 : vector<16x16x32xbf16> to vector<256x32xbf16>
    %c0_3 = arith.constant 0 : index
    %c0_4 = arith.constant 0 : index
    %c0_5 = arith.constant 0 : index
    %c0_6 = arith.constant 0 : index
    %4 = vector.load %arg3[%c0_3, %c0_4, %c0_5, %c0_6] : memref<3x3x32x32xbf16, #tpu.memory_space<vmem>>, vector<1x1x32x32xbf16>
    %5 = vector.shape_cast %4 : vector<1x1x32x32xbf16> to vector<32x32xbf16>
    %cst_7 = arith.constant dense<0.000000e+00> : vector<256x32xf32>
    %6 = tpu.matmul %3, %5, %cst_7 {dimension_numbers = #tpu.dot_dimension_numbers<[1], [0], [0], [1], [0, 0, 1, 1], [], []>} : vector<256x32xbf16>, vector<32x32xbf16>, vector<256x32xf32> -> vector<256x32xf32>
    %7 = arith.addf %0, %6 : vector<256x32xf32>
    %c0_8 = arith.constant 0 : index
    %c0_9 = arith.constant 0 : index
    %c1 = arith.constant 1 : index
    %c0_10 = arith.constant 0 : index
    %8 = vector.load %arg2[%c0_8, %c0_9, %c1, %c0_10] : memref<1x18x18x32xbf16, #tpu.memory_space<vmem>>, vector<1x16x16x32xbf16>
    %9 = vector.shape_cast %8 : vector<1x16x16x32xbf16> to vector<16x16x32xbf16>
    %10 = vector.shape_cast %9 : vector<16x16x32xbf16> to vector<256x32xbf16>
    %c0_11 = arith.constant 0 : index
    %c1_12 = arith.constant 1 : index
    %c0_13 = arith.constant 0 : index
    %c0_14 = arith.constant 0 : index
    %11 = vector.load %arg3[%c0_11, %c1_12, %c0_13, %c0_14] : memref<3x3x32x32xbf16, #tpu.memory_space<vmem>>, vector<1x1x32x32xbf16>
    %12 = vector.shape_cast %11 : vector<1x1x32x32xbf16> to vector<32x32xbf16>
    %cst_15 = arith.constant dense<0.000000e+00> : vector<256x32xf32>
    %13 = tpu.matmul %10, %12, %cst_15 {dimension_numbers = #tpu.dot_dimension_numbers<[1], [0], [0], [1], [0, 0, 1, 1], [], []>} : vector<256x32xbf16>, vector<32x32xbf16>, vector<256x32xf32> -> vector<256x32xf32>
    %14 = arith.addf %7, %13 : vector<256x32xf32>
    %c0_16 = arith.constant 0 : index
    %c0_17 = arith.constant 0 : index
    %c2 = arith.constant 2 : index
    %c0_18 = arith.constant 0 : index
    %15 = vector.load %arg2[%c0_16, %c0_17, %c2, %c0_18] : memref<1x18x18x32xbf16, #tpu.memory_space<vmem>>, vector<1x16x16x32xbf16>
    %16 = vector.shape_cast %15 : vector<1x16x16x32xbf16> to vector<16x16x32xbf16>
    %17 = vector.shape_cast %16 : vector<16x16x32xbf16> to vector<256x32xbf16>
    %c0_19 = arith.constant 0 : index
    %c2_20 = arith.constant 2 : index
    %c0_21 = arith.constant 0 : index
    %c0_22 = arith.constant 0 : index
    %18 = vector.load %arg3[%c0_19, %c2_20, %c0_21, %c0_22] : memref<3x3x32x32xbf16, #tpu.memory_space<vmem>>, vector<1x1x32x32xbf16>
    %19 = vector.shape_cast %18 : vector<1x1x32x32xbf16> to vector<32x32xbf16>
    %cst_23 = arith.constant dense<0.000000e+00> : vector<256x32xf32>
    %20 = tpu.matmul %17, %19, %cst_23 {dimension_numbers = #tpu.dot_dimension_numbers<[1], [0], [0], [1], [0, 0, 1, 1], [], []>} : vector<256x32xbf16>, vector<32x32xbf16>, vector<256x32xf32> -> vector<256x32xf32>
    %21 = arith.addf %14, %20 : vector<256x32xf32>
    %c0_24 = arith.constant 0 : index
    %c1_25 = arith.constant 1 : index
    %c0_26 = arith.constant 0 : index
    %c0_27 = arith.constant 0 : index
    %22 = vector.load %arg2[%c0_24, %c1_25, %c0_26, %c0_27] : memref<1x18x18x32xbf16, #tpu.memory_space<vmem>>, vector<1x16x16x32xbf16>
    %23 = vector.shape_cast %22 : vector<1x16x16x32xbf16> to vector<16x16x32xbf16>
    %24 = vector.shape_cast %23 : vector<16x16x32xbf16> to vector<256x32xbf16>
    %c1_28 = arith.constant 1 : index
    %c0_29 = arith.constant 0 : index
    %c0_30 = arith.constant 0 : index
    %c0_31 = arith.constant 0 : index
    %25 = vector.load %arg3[%c1_28, %c0_29, %c0_30, %c0_31] : memref<3x3x32x32xbf16, #tpu.memory_space<vmem>>, vector<1x1x32x32xbf16>
    %26 = vector.shape_cast %25 : vector<1x1x32x32xbf16> to vector<32x32xbf16>
    %cst_32 = arith.constant dense<0.000000e+00> : vector<256x32xf32>
    %27 = tpu.matmul %24, %26, %cst_32 {dimension_numbers = #tpu.dot_dimension_numbers<[1], [0], [0], [1], [0, 0, 1, 1], [], []>} : vector<256x32xbf16>, vector<32x32xbf16>, vector<256x32xf32> -> vector<256x32xf32>
    %28 = arith.addf %21, %27 : vector<256x32xf32>
    %c0_33 = arith.constant 0 : index
    %c1_34 = arith.constant 1 : index
    %c1_35 = arith.constant 1 : index
    %c0_36 = arith.constant 0 : index
    %29 = vector.load %arg2[%c0_33, %c1_34, %c1_35, %c0_36] : memref<1x18x18x32xbf16, #tpu.memory_space<vmem>>, vector<1x16x16x32xbf16>
    %30 = vector.shape_cast %29 : vector<1x16x16x32xbf16> to vector<16x16x32xbf16>
    %31 = vector.shape_cast %30 : vector<16x16x32xbf16> to vector<256x32xbf16>
    %c1_37 = arith.constant 1 : index
    %c1_38 = arith.constant 1 : index
    %c0_39 = arith.constant 0 : index
    %c0_40 = arith.constant 0 : index
    %32 = vector.load %arg3[%c1_37, %c1_38, %c0_39, %c0_40] : memref<3x3x32x32xbf16, #tpu.memory_space<vmem>>, vector<1x1x32x32xbf16>
    %33 = vector.shape_cast %32 : vector<1x1x32x32xbf16> to vector<32x32xbf16>
    %cst_41 = arith.constant dense<0.000000e+00> : vector<256x32xf32>
    %34 = tpu.matmul %31, %33, %cst_41 {dimension_numbers = #tpu.dot_dimension_numbers<[1], [0], [0], [1], [0, 0, 1, 1], [], []>} : vector<256x32xbf16>, vector<32x32xbf16>, vector<256x32xf32> -> vector<256x32xf32>
    %35 = arith.addf %28, %34 : vector<256x32xf32>
    %c0_42 = arith.constant 0 : index
    %c1_43 = arith.constant 1 : index
    %c2_44 = arith.constant 2 : index
    %c0_45 = arith.constant 0 : index
    %36 = vector.load %arg2[%c0_42, %c1_43, %c2_44, %c0_45] : memref<1x18x18x32xbf16, #tpu.memory_space<vmem>>, vector<1x16x16x32xbf16>
    %37 = vector.shape_cast %36 : vector<1x16x16x32xbf16> to vector<16x16x32xbf16>
    %38 = vector.shape_cast %37 : vector<16x16x32xbf16> to vector<256x32xbf16>
    %c1_46 = arith.constant 1 : index
    %c2_47 = arith.constant 2 : index
    %c0_48 = arith.constant 0 : index
    %c0_49 = arith.constant 0 : index
    %39 = vector.load %arg3[%c1_46, %c2_47, %c0_48, %c0_49] : memref<3x3x32x32xbf16, #tpu.memory_space<vmem>>, vector<1x1x32x32xbf16>
    %40 = vector.shape_cast %39 : vector<1x1x32x32xbf16> to vector<32x32xbf16>
    %cst_50 = arith.constant dense<0.000000e+00> : vector<256x32xf32>
    %41 = tpu.matmul %38, %40, %cst_50 {dimension_numbers = #tpu.dot_dimension_numbers<[1], [0], [0], [1], [0, 0, 1, 1], [], []>} : vector<256x32xbf16>, vector<32x32xbf16>, vector<256x32xf32> -> vector<256x32xf32>
    %42 = arith.addf %35, %41 : vector<256x32xf32>
    %c0_51 = arith.constant 0 : index
    %c2_52 = arith.constant 2 : index
    %c0_53 = arith.constant 0 : index
    %c0_54 = arith.constant 0 : index
    %43 = vector.load %arg2[%c0_51, %c2_52, %c0_53, %c0_54] : memref<1x18x18x32xbf16, #tpu.memory_space<vmem>>, vector<1x16x16x32xbf16>
    %44 = vector.shape_cast %43 : vector<1x16x16x32xbf16> to vector<16x16x32xbf16>
    %45 = vector.shape_cast %44 : vector<16x16x32xbf16> to vector<256x32xbf16>
    %c2_55 = arith.constant 2 : index
    %c0_56 = arith.constant 0 : index
    %c0_57 = arith.constant 0 : index
    %c0_58 = arith.constant 0 : index
    %46 = vector.load %arg3[%c2_55, %c0_56, %c0_57, %c0_58] : memref<3x3x32x32xbf16, #tpu.memory_space<vmem>>, vector<1x1x32x32xbf16>
    %47 = vector.shape_cast %46 : vector<1x1x32x32xbf16> to vector<32x32xbf16>
    %cst_59 = arith.constant dense<0.000000e+00> : vector<256x32xf32>
    %48 = tpu.matmul %45, %47, %cst_59 {dimension_numbers = #tpu.dot_dimension_numbers<[1], [0], [0], [1], [0, 0, 1, 1], [], []>} : vector<256x32xbf16>, vector<32x32xbf16>, vector<256x32xf32> -> vector<256x32xf32>
    %49 = arith.addf %42, %48 : vector<256x32xf32>
    %c0_60 = arith.constant 0 : index
    %c2_61 = arith.constant 2 : index
    %c1_62 = arith.constant 1 : index
    %c0_63 = arith.constant 0 : index
    %50 = vector.load %arg2[%c0_60, %c2_61, %c1_62, %c0_63] : memref<1x18x18x32xbf16, #tpu.memory_space<vmem>>, vector<1x16x16x32xbf16>
    %51 = vector.shape_cast %50 : vector<1x16x16x32xbf16> to vector<16x16x32xbf16>
    %52 = vector.shape_cast %51 : vector<16x16x32xbf16> to vector<256x32xbf16>
    %c2_64 = arith.constant 2 : index
    %c1_65 = arith.constant 1 : index
    %c0_66 = arith.constant 0 : index
    %c0_67 = arith.constant 0 : index
    %53 = vector.load %arg3[%c2_64, %c1_65, %c0_66, %c0_67] : memref<3x3x32x32xbf16, #tpu.memory_space<vmem>>, vector<1x1x32x32xbf16>
    %54 = vector.shape_cast %53 : vector<1x1x32x32xbf16> to vector<32x32xbf16>
    %cst_68 = arith.constant dense<0.000000e+00> : vector<256x32xf32>
    %55 = tpu.matmul %52, %54, %cst_68 {dimension_numbers = #tpu.dot_dimension_numbers<[1], [0], [0], [1], [0, 0, 1, 1], [], []>} : vector<256x32xbf16>, vector<32x32xbf16>, vector<256x32xf32> -> vector<256x32xf32>
    %56 = arith.addf %49, %55 : vector<256x32xf32>
    %c0_69 = arith.constant 0 : index
    %c2_70 = arith.constant 2 : index
    %c2_71 = arith.constant 2 : index
    %c0_72 = arith.constant 0 : index
    %57 = vector.load %arg2[%c0_69, %c2_70, %c2_71, %c0_72] : memref<1x18x18x32xbf16, #tpu.memory_space<vmem>>, vector<1x16x16x32xbf16>
    %58 = vector.shape_cast %57 : vector<1x16x16x32xbf16> to vector<16x16x32xbf16>
    %59 = vector.shape_cast %58 : vector<16x16x32xbf16> to vector<256x32xbf16>
    %c2_73 = arith.constant 2 : index
    %c2_74 = arith.constant 2 : index
    %c0_75 = arith.constant 0 : index
    %c0_76 = arith.constant 0 : index
    %60 = vector.load %arg3[%c2_73, %c2_74, %c0_75, %c0_76] : memref<3x3x32x32xbf16, #tpu.memory_space<vmem>>, vector<1x1x32x32xbf16>
    %61 = vector.shape_cast %60 : vector<1x1x32x32xbf16> to vector<32x32xbf16>
    %cst_77 = arith.constant dense<0.000000e+00> : vector<256x32xf32>
    %62 = tpu.matmul %59, %61, %cst_77 {dimension_numbers = #tpu.dot_dimension_numbers<[1], [0], [0], [1], [0, 0, 1, 1], [], []>} : vector<256x32xbf16>, vector<32x32xbf16>, vector<256x32xf32> -> vector<256x32xf32>
    %63 = arith.addf %56, %62 : vector<256x32xf32>
    %c0_78 = arith.constant 0 : index
    %c0_79 = arith.constant 0 : index
    %64 = vector.load %arg4[%c0_78, %c0_79] : memref<1x32xf32, #tpu.memory_space<vmem>>, vector<1x32xf32>
    %65 = vector.broadcast %64 : vector<1x32xf32> to vector<256x32xf32>
    %66 = arith.addf %63, %65 : vector<256x32xf32>
    %cst_80 = arith.constant dense<0.000000e+00> : vector<32xf32>
    %67 = vector.multi_reduction <add>, %66, %cst_80 [0] : vector<256x32xf32> to vector<32xf32>
    %68 = vector.shape_cast %67 : vector<32xf32> to vector<1x32xf32>
    %cst_81 = arith.constant 2.560000e+02 : f32
    %69 = vector.broadcast %cst_81 : f32 to vector<1x32xf32>
    %70 = arith.divf %68, %69 : vector<1x32xf32>
    %71 = vector.broadcast %70 : vector<1x32xf32> to vector<256x32xf32>
    %72 = arith.subf %66, %71 : vector<256x32xf32>
    %73 = arith.mulf %72, %72 : vector<256x32xf32>
    %cst_82 = arith.constant dense<0.000000e+00> : vector<32xf32>
    %74 = vector.multi_reduction <add>, %73, %cst_82 [0] : vector<256x32xf32> to vector<32xf32>
    %75 = vector.shape_cast %74 : vector<32xf32> to vector<1x32xf32>
    %cst_83 = arith.constant 2.560000e+02 : f32
    %76 = vector.broadcast %cst_83 : f32 to vector<1x32xf32>
    %77 = arith.divf %75, %76 : vector<1x32xf32>
    %cst_84 = arith.constant 9.99999974E-6 : f32
    %78 = vector.broadcast %cst_84 : f32 to vector<1x32xf32>
    %79 = arith.addf %77, %78 : vector<1x32xf32>
    %80 = math.rsqrt %79 : vector<1x32xf32>
    %81 = vector.broadcast %80 : vector<1x32xf32> to vector<256x32xf32>
    %82 = arith.mulf %72, %81 : vector<256x32xf32>
    %83 = vector.shape_cast %82 : vector<256x32xf32> to vector<1x16x16x32xf32>
    %c0_85 = arith.constant 0 : index
    %c0_86 = arith.constant 0 : index
    %c0_87 = arith.constant 0 : index
    %c0_88 = arith.constant 0 : index
    %84 = vector.load %arg5[%c0_85, %c0_86, %c0_87, %c0_88] : memref<1x16x16x32xf32, #tpu.memory_space<vmem>>, vector<1x16x16x32xf32>
    %85 = arith.addf %83, %84 : vector<1x16x16x32xf32>
    %c0_89 = arith.constant 0 : index
    %c0_90 = arith.constant 0 : index
    %c0_91 = arith.constant 0 : index
    %c0_92 = arith.constant 0 : index
    %86 = vector.load %arg6[%c0_89, %c0_90, %c0_91, %c0_92] : memref<1x16x16x32xf32, #tpu.memory_space<vmem>>, vector<1x16x16x32xf32>
    tpu.vector_store %arg6[%c0_89, %c0_90, %c0_91, %c0_92], %85 {strides = array<i32>} : memref<1x16x16x32xf32, #tpu.memory_space<vmem>>, vector<1x16x16x32xf32>,
    return
  }
  func.func @transform_0(%arg0: i32, %arg1: i32) -> (i32, i32, i32, i32) {
    %c0_i32 = arith.constant 0 : i32
    %c0_i32_0 = arith.constant 0 : i32
    %c0_i32_1 = arith.constant 0 : i32
    %c0_i32_2 = arith.constant 0 : i32
    return %arg0, %c0_i32, %c0_i32_0, %c0_i32_1 : i32, i32, i32, i32
  }
  func.func @transform_1(%arg0: i32, %arg1: i32) -> (i32, i32, i32, i32) {
    %c0_i32 = arith.constant 0 : i32
    %c0_i32_0 = arith.constant 0 : i32
    %c0_i32_1 = arith.constant 0 : i32
    %c0_i32_2 = arith.constant 0 : i32
    return %c0_i32, %c0_i32_0, %c0_i32_1, %arg1 : i32, i32, i32, i32
  }
  func.func @transform_2(%arg0: i32, %arg1: i32) -> (i32, i32) {
    %c0_i32 = arith.constant 0 : i32
    %c0_i32_0 = arith.constant 0 : i32
    return %c0_i32, %arg1 : i32, i32
  }
  func.func @transform_3(%arg0: i32, %arg1: i32) -> (i32, i32, i32, i32) {
    %c0_i32 = arith.constant 0 : i32
    %c0_i32_0 = arith.constant 0 : i32
    %c0_i32_1 = arith.constant 0 : i32
    return %arg0, %c0_i32, %c0_i32_0, %arg1 : i32, i32, i32, i32
  }
  func.func @transform_4(%arg0: i32, %arg1: i32) -> (i32, i32, i32, i32) {
    %c0_i32 = arith.constant 0 : i32
    %c0_i32_0 = arith.constant 0 : i32
    %c0_i32_1 = arith.constant 0 : i32
    return %arg0, %c0_i32, %c0_i32_0, %arg1 : i32, i32, i32, i32
  }
}

module attributes {stable_mosaic.version = 11 : i64} {
  func.func @_conv3x3_in_relu_kernel(%arg0: i32, %arg1: i32, %arg2: memref<1x18x18x32xbf16, #tpu.memory_space<vmem>>, %arg3: memref<3x3x32x32xbf16, #tpu.memory_space<vmem>>, %arg4: memref<1x32xf32, #tpu.memory_space<vmem>>, %arg5: memref<1x16x16x32xbf16, #tpu.memory_space<vmem>>) attributes {dimension_semantics = [#tpu.dimension_semantics<parallel>, #tpu.dimension_semantics<parallel>], iteration_bounds = array<i64: 2, 1>, scalar_prefetch = 0 : i64, scratch_operands = 0 : i64, tpu.core_type = #tpu.core_type<tc>, window_params = [{transform_indices = @transform_0, window_bounds = array<i64: 1, 18, 18, 32>}, {transform_indices = @transform_1, window_bounds = array<i64: 3, 3, 32, 32>}, {transform_indices = @transform_2, window_bounds = array<i64: 1, 32>}, {transform_indices = @transform_3, window_bounds = array<i64: 1, 16, 16, 32>}]} {
    %cst = arith.constant 0.000000e+00 : f32
    %0 = vector.broadcast %cst : f32 to vector<256x32xf32>
    %c0 = arith.constant 0 : index
    %c0_0 = arith.constant 0 : index
    %c0_1 = arith.constant 0 : index
    %c0_2 = arith.constant 0 : index
    %1 = vector.load %arg2[%c0, %c0_0, %c0_1, %c0_2] : memref<1x18x18x32xbf16, #tpu.memory_space<vmem>>, vector<1x16x16x32xbf16>
    %2 = vector.shape_cast %1 : vector<1x16x16x32xbf16> to vector<16x16x32xbf16>
    %3 = vector.shape_cast %2 : vector<16x16x32xbf16> to vector<256x32xbf16>
    %c0_3 = arith.constant 0 : index
    %c0_4 = arith.constant 0 : index
    %c0_5 = arith.constant 0 : index
    %c0_6 = arith.constant 0 : index
    %4 = vector.load %arg3[%c0_3, %c0_4, %c0_5, %c0_6] : memref<3x3x32x32xbf16, #tpu.memory_space<vmem>>, vector<1x1x32x32xbf16>
    %5 = vector.shape_cast %4 : vector<1x1x32x32xbf16> to vector<32x32xbf16>
    %cst_7 = arith.constant dense<0.000000e+00> : vector<256x32xf32>
    %6 = tpu.matmul %3, %5, %cst_7 {dimension_numbers = #tpu.dot_dimension_numbers<[1], [0], [0], [1], [0, 0, 1, 1], [], []>} : vector<256x32xbf16>, vector<32x32xbf16>, vector<256x32xf32> -> vector<256x32xf32>
    %7 = arith.addf %0, %6 : vector<256x32xf32>
    %c0_8 = arith.constant 0 : index
    %c0_9 = arith.constant 0 : index
    %c1 = arith.constant 1 : index
    %c0_10 = arith.constant 0 : index
    %8 = vector.load %arg2[%c0_8, %c0_9, %c1, %c0_10] : memref<1x18x18x32xbf16, #tpu.memory_space<vmem>>, vector<1x16x16x32xbf16>
    %9 = vector.shape_cast %8 : vector<1x16x16x32xbf16> to vector<16x16x32xbf16>
    %10 = vector.shape_cast %9 : vector<16x16x32xbf16> to vector<256x32xbf16>
    %c0_11 = arith.constant 0 : index
    %c1_12 = arith.constant 1 : index
    %c0_13 = arith.constant 0 : index
    %c0_14 = arith.constant 0 : index
    %11 = vector.load %arg3[%c0_11, %c1_12, %c0_13, %c0_14] : memref<3x3x32x32xbf16, #tpu.memory_space<vmem>>, vector<1x1x32x32xbf16>
    %12 = vector.shape_cast %11 : vector<1x1x32x32xbf16> to vector<32x32xbf16>
    %cst_15 = arith.constant dense<0.000000e+00> : vector<256x32xf32>
    %13 = tpu.matmul %10, %12, %cst_15 {dimension_numbers = #tpu.dot_dimension_numbers<[1], [0], [0], [1], [0, 0, 1, 1], [], []>} : vector<256x32xbf16>, vector<32x32xbf16>, vector<256x32xf32> -> vector<256x32xf32>
    %14 = arith.addf %7, %13 : vector<256x32xf32>
    %c0_16 = arith.constant 0 : index
    %c0_17 = arith.constant 0 : index
    %c2 = arith.constant 2 : index
    %c0_18 = arith.constant 0 : index
    %15 = vector.load %arg2[%c0_16, %c0_17, %c2, %c0_18] : memref<1x18x18x32xbf16, #tpu.memory_space<vmem>>, vector<1x16x16x32xbf16>
    %16 = vector.shape_cast %15 : vector<1x16x16x32xbf16> to vector<16x16x32xbf16>
    %17 = vector.shape_cast %16 : vector<16x16x32xbf16> to vector<256x32xbf16>
    %c0_19 = arith.constant 0 : index
    %c2_20 = arith.constant 2 : index
    %c0_21 = arith.constant 0 : index
    %c0_22 = arith.constant 0 : index
    %18 = vector.load %arg3[%c0_19, %c2_20, %c0_21, %c0_22] : memref<3x3x32x32xbf16, #tpu.memory_space<vmem>>, vector<1x1x32x32xbf16>
    %19 = vector.shape_cast %18 : vector<1x1x32x32xbf16> to vector<32x32xbf16>
    %cst_23 = arith.constant dense<0.000000e+00> : vector<256x32xf32>
    %20 = tpu.matmul %17, %19, %cst_23 {dimension_numbers = #tpu.dot_dimension_numbers<[1], [0], [0], [1], [0, 0, 1, 1], [], []>} : vector<256x32xbf16>, vector<32x32xbf16>, vector<256x32xf32> -> vector<256x32xf32>
    %21 = arith.addf %14, %20 : vector<256x32xf32>
    %c0_24 = arith.constant 0 : index
    %c1_25 = arith.constant 1 : index
    %c0_26 = arith.constant 0 : index
    %c0_27 = arith.constant 0 : index
    %22 = vector.load %arg2[%c0_24, %c1_25, %c0_26, %c0_27] : memref<1x18x18x32xbf16, #tpu.memory_space<vmem>>, vector<1x16x16x32xbf16>
    %23 = vector.shape_cast %22 : vector<1x16x16x32xbf16> to vector<16x16x32xbf16>
    %24 = vector.shape_cast %23 : vector<16x16x32xbf16> to vector<256x32xbf16>
    %c1_28 = arith.constant 1 : index
    %c0_29 = arith.constant 0 : index
    %c0_30 = arith.constant 0 : index
    %c0_31 = arith.constant 0 : index
    %25 = vector.load %arg3[%c1_28, %c0_29, %c0_30, %c0_31] : memref<3x3x32x32xbf16, #tpu.memory_space<vmem>>, vector<1x1x32x32xbf16>
    %26 = vector.shape_cast %25 : vector<1x1x32x32xbf16> to vector<32x32xbf16>
    %cst_32 = arith.constant dense<0.000000e+00> : vector<256x32xf32>
    %27 = tpu.matmul %24, %26, %cst_32 {dimension_numbers = #tpu.dot_dimension_numbers<[1], [0], [0], [1], [0, 0, 1, 1], [], []>} : vector<256x32xbf16>, vector<32x32xbf16>, vector<256x32xf32> -> vector<256x32xf32>
    %28 = arith.addf %21, %27 : vector<256x32xf32>
    %c0_33 = arith.constant 0 : index
    %c1_34 = arith.constant 1 : index
    %c1_35 = arith.constant 1 : index
    %c0_36 = arith.constant 0 : index
    %29 = vector.load %arg2[%c0_33, %c1_34, %c1_35, %c0_36] : memref<1x18x18x32xbf16, #tpu.memory_space<vmem>>, vector<1x16x16x32xbf16>
    %30 = vector.shape_cast %29 : vector<1x16x16x32xbf16> to vector<16x16x32xbf16>
    %31 = vector.shape_cast %30 : vector<16x16x32xbf16> to vector<256x32xbf16>
    %c1_37 = arith.constant 1 : index
    %c1_38 = arith.constant 1 : index
    %c0_39 = arith.constant 0 : index
    %c0_40 = arith.constant 0 : index
    %32 = vector.load %arg3[%c1_37, %c1_38, %c0_39, %c0_40] : memref<3x3x32x32xbf16, #tpu.memory_space<vmem>>, vector<1x1x32x32xbf16>
    %33 = vector.shape_cast %32 : vector<1x1x32x32xbf16> to vector<32x32xbf16>
    %cst_41 = arith.constant dense<0.000000e+00> : vector<256x32xf32>
    %34 = tpu.matmul %31, %33, %cst_41 {dimension_numbers = #tpu.dot_dimension_numbers<[1], [0], [0], [1], [0, 0, 1, 1], [], []>} : vector<256x32xbf16>, vector<32x32xbf16>, vector<256x32xf32> -> vector<256x32xf32>
    %35 = arith.addf %28, %34 : vector<256x32xf32>
    %c0_42 = arith.constant 0 : index
    %c1_43 = arith.constant 1 : index
    %c2_44 = arith.constant 2 : index
    %c0_45 = arith.constant 0 : index
    %36 = vector.load %arg2[%c0_42, %c1_43, %c2_44, %c0_45] : memref<1x18x18x32xbf16, #tpu.memory_space<vmem>>, vector<1x16x16x32xbf16>
    %37 = vector.shape_cast %36 : vector<1x16x16x32xbf16> to vector<16x16x32xbf16>
    %38 = vector.shape_cast %37 : vector<16x16x32xbf16> to vector<256x32xbf16>
    %c1_46 = arith.constant 1 : index
    %c2_47 = arith.constant 2 : index
    %c0_48 = arith.constant 0 : index
    %c0_49 = arith.constant 0 : index
    %39 = vector.load %arg3[%c1_46, %c2_47, %c0_48, %c0_49] : memref<3x3x32x32xbf16, #tpu.memory_space<vmem>>, vector<1x1x32x32xbf16>
    %40 = vector.shape_cast %39 : vector<1x1x32x32xbf16> to vector<32x32xbf16>
    %cst_50 = arith.constant dense<0.000000e+00> : vector<256x32xf32>
    %41 = tpu.matmul %38, %40, %cst_50 {dimension_numbers = #tpu.dot_dimension_numbers<[1], [0], [0], [1], [0, 0, 1, 1], [], []>} : vector<256x32xbf16>, vector<32x32xbf16>, vector<256x32xf32> -> vector<256x32xf32>
    %42 = arith.addf %35, %41 : vector<256x32xf32>
    %c0_51 = arith.constant 0 : index
    %c2_52 = arith.constant 2 : index
    %c0_53 = arith.constant 0 : index
    %c0_54 = arith.constant 0 : index
    %43 = vector.load %arg2[%c0_51, %c2_52, %c0_53, %c0_54] : memref<1x18x18x32xbf16, #tpu.memory_space<vmem>>, vector<1x16x16x32xbf16>
    %44 = vector.shape_cast %43 : vector<1x16x16x32xbf16> to vector<16x16x32xbf16>
    %45 = vector.shape_cast %44 : vector<16x16x32xbf16> to vector<256x32xbf16>
    %c2_55 = arith.constant 2 : index
    %c0_56 = arith.constant 0 : index
    %c0_57 = arith.constant 0 : index
    %c0_58 = arith.constant 0 : index
    %46 = vector.load %arg3[%c2_55, %c0_56, %c0_57, %c0_58] : memref<3x3x32x32xbf16, #tpu.memory_space<vmem>>, vector<1x1x32x32xbf16>
    %47 = vector.shape_cast %46 : vector<1x1x32x32xbf16> to vector<32x32xbf16>
    %cst_59 = arith.constant dense<0.000000e+00> : vector<256x32xf32>
    %48 = tpu.matmul %45, %47, %cst_59 {dimension_numbers = #tpu.dot_dimension_numbers<[1], [0], [0], [1], [0, 0, 1, 1], [], []>} : vector<256x32xbf16>, vector<32x32xbf16>, vector<256x32xf32> -> vector<256x32xf32>
    %49 = arith.addf %42, %48 : vector<256x32xf32>
    %c0_60 = arith.constant 0 : index
    %c2_61 = arith.constant 2 : index
    %c1_62 = arith.constant 1 : index
    %c0_63 = arith.constant 0 : index
    %50 = vector.load %arg2[%c0_60, %c2_61, %c1_62, %c0_63] : memref<1x18x18x32xbf16, #tpu.memory_space<vmem>>, vector<1x16x16x32xbf16>
    %51 = vector.shape_cast %50 : vector<1x16x16x32xbf16> to vector<16x16x32xbf16>
    %52 = vector.shape_cast %51 : vector<16x16x32xbf16> to vector<256x32xbf16>
    %c2_64 = arith.constant 2 : index
    %c1_65 = arith.constant 1 : index
    %c0_66 = arith.constant 0 : index
    %c0_67 = arith.constant 0 : index
    %53 = vector.load %arg3[%c2_64, %c1_65, %c0_66, %c0_67] : memref<3x3x32x32xbf16, #tpu.memory_space<vmem>>, vector<1x1x32x32xbf16>
    %54 = vector.shape_cast %53 : vector<1x1x32x32xbf16> to vector<32x32xbf16>
    %cst_68 = arith.constant dense<0.000000e+00> : vector<256x32xf32>
    %55 = tpu.matmul %52, %54, %cst_68 {dimension_numbers = #tpu.dot_dimension_numbers<[1], [0], [0], [1], [0, 0, 1, 1], [], []>} : vector<256x32xbf16>, vector<32x32xbf16>, vector<256x32xf32> -> vector<256x32xf32>
    %56 = arith.addf %49, %55 : vector<256x32xf32>
    %c0_69 = arith.constant 0 : index
    %c2_70 = arith.constant 2 : index
    %c2_71 = arith.constant 2 : index
    %c0_72 = arith.constant 0 : index
    %57 = vector.load %arg2[%c0_69, %c2_70, %c2_71, %c0_72] : memref<1x18x18x32xbf16, #tpu.memory_space<vmem>>, vector<1x16x16x32xbf16>
    %58 = vector.shape_cast %57 : vector<1x16x16x32xbf16> to vector<16x16x32xbf16>
    %59 = vector.shape_cast %58 : vector<16x16x32xbf16> to vector<256x32xbf16>
    %c2_73 = arith.constant 2 : index
    %c2_74 = arith.constant 2 : index
    %c0_75 = arith.constant 0 : index
    %c0_76 = arith.constant 0 : index
    %60 = vector.load %arg3[%c2_73, %c2_74, %c0_75, %c0_76] : memref<3x3x32x32xbf16, #tpu.memory_space<vmem>>, vector<1x1x32x32xbf16>
    %61 = vector.shape_cast %60 : vector<1x1x32x32xbf16> to vector<32x32xbf16>
    %cst_77 = arith.constant dense<0.000000e+00> : vector<256x32xf32>
    %62 = tpu.matmul %59, %61, %cst_77 {dimension_numbers = #tpu.dot_dimension_numbers<[1], [0], [0], [1], [0, 0, 1, 1], [], []>} : vector<256x32xbf16>, vector<32x32xbf16>, vector<256x32xf32> -> vector<256x32xf32>
    %63 = arith.addf %56, %62 : vector<256x32xf32>
    %c0_78 = arith.constant 0 : index
    %c0_79 = arith.constant 0 : index
    %64 = vector.load %arg4[%c0_78, %c0_79] : memref<1x32xf32, #tpu.memory_space<vmem>>, vector<1x32xf32>
    %65 = vector.broadcast %64 : vector<1x32xf32> to vector<256x32xf32>
    %66 = arith.addf %63, %65 : vector<256x32xf32>
    %cst_80 = arith.constant dense<0.000000e+00> : vector<32xf32>
    %67 = vector.multi_reduction <add>, %66, %cst_80 [0] : vector<256x32xf32> to vector<32xf32>
    %68 = vector.shape_cast %67 : vector<32xf32> to vector<1x32xf32>
    %cst_81 = arith.constant 2.560000e+02 : f32
    %69 = vector.broadcast %cst_81 : f32 to vector<1x32xf32>
    %70 = arith.divf %68, %69 : vector<1x32xf32>
    %71 = vector.broadcast %70 : vector<1x32xf32> to vector<256x32xf32>
    %72 = arith.subf %66, %71 : vector<256x32xf32>
    %73 = arith.mulf %72, %72 : vector<256x32xf32>
    %cst_82 = arith.constant dense<0.000000e+00> : vector<32xf32>
    %74 = vector.multi_reduction <add>, %73, %cst_82 [0] : vector<256x32xf32> to vector<32xf32>
    %75 = vector.shape_cast %74 : vector<32xf32> to vector<1x32xf32>
    %cst_83 = arith.constant 2.560000e+02 : f32
    %76 = vector.broadcast %cst_83 : f32 to vector<1x32xf32>
    %77 = arith.divf %75, %76 : vector<1x32xf32>
    %cst_84 = arith.constant 9.99999974E-6 : f32
    %78 = vector.broadcast %cst_84 : f32 to vector<1x32xf32>
    %79 = arith.addf %77, %78 : vector<1x32xf32>
    %80 = math.rsqrt %79 : vector<1x32xf32>
    %81 = vector.broadcast %80 : vector<1x32xf32> to vector<256x32xf32>
    %82 = arith.mulf %72, %81 : vector<256x32xf32>
    %cst_85 = arith.constant 0.000000e+00 : f32
    %83 = vector.broadcast %cst_85 : f32 to vector<256x32xf32>
    %84 = arith.maximumf %82, %83 : vector<256x32xf32>
    %85 = vector.shape_cast %84 : vector<256x32xf32> to vector<1x16x16x32xf32>
    %86 = arith.truncf %85 : vector<1x16x16x32xf32> to vector<1x16x16x32xbf16>
    %c0_86 = arith.constant 0 : index
    %c0_87 = arith.constant 0 : index
    %c0_88 = arith.constant 0 : index
    %c0_89 = arith.constant 0 : index
    %87 = vector.load %arg5[%c0_86, %c0_87, %c0_88, %c0_89] : memref<1x16x16x32xbf16, #tpu.memory_space<vmem>>, vector<1x16x16x32xbf16>
    tpu.vector_store %arg5[%c0_86, %c0_87, %c0_88, %c0_89], %86 {strides = array<i32>} : memref<1x16x16x32xbf16, #tpu.memory_space<vmem>>, vector<1x16x16x32xbf16>,
    return
  }
  func.func @transform_0(%arg0: i32, %arg1: i32) -> (i32, i32, i32, i32) {
    %c0_i32 = arith.constant 0 : i32
    %c0_i32_0 = arith.constant 0 : i32
    %c0_i32_1 = arith.constant 0 : i32
    %c0_i32_2 = arith.constant 0 : i32
    return %arg0, %c0_i32, %c0_i32_0, %c0_i32_1 : i32, i32, i32, i32
  }
  func.func @transform_1(%arg0: i32, %arg1: i32) -> (i32, i32, i32, i32) {
    %c0_i32 = arith.constant 0 : i32
    %c0_i32_0 = arith.constant 0 : i32
    %c0_i32_1 = arith.constant 0 : i32
    %c0_i32_2 = arith.constant 0 : i32
    return %c0_i32, %c0_i32_0, %c0_i32_1, %arg1 : i32, i32, i32, i32
  }
  func.func @transform_2(%arg0: i32, %arg1: i32) -> (i32, i32) {
    %c0_i32 = arith.constant 0 : i32
    %c0_i32_0 = arith.constant 0 : i32
    return %c0_i32, %arg1 : i32, i32
  }
  func.func @transform_3(%arg0: i32, %arg1: i32) -> (i32, i32, i32, i32) {
    %c0_i32 = arith.constant 0 : i32
    %c0_i32_0 = arith.constant 0 : i32
    %c0_i32_1 = arith.constant 0 : i32
    return %arg0, %c0_i32, %c0_i32_0, %arg1 : i32, i32, i32, i32
  }
}

</mosaic_0001>

<llo_original>
// kernel: resnet_block_forward.3
$region0: #{resnet_block_forward.3}
  #allocation0 [shape = 'u32[]', space=smem, size = 0x4, offset = 0x4, fixed_abs, tag = 'smem constant byte address 0x4 - core index']
  #allocation1 [shape = 'u32[72,128]{1,0:T(1,128)}', space=vmem, size = 0x9000, scoped, tag = 'internal scratch']
  %s0 = inlined_call_operand.vmem [shape: bf16[2,18,18,32], index: 0, kind: input, shape index: {}]
  %s1 = inlined_call_operand.vmem [shape: bf16[3,3,32,32], index: 1, kind: input, shape index: {}]
  %s2 = inlined_call_operand.vmem [shape: f32[1,32], index: 2, kind: input, shape index: {}]
  %s3 = inlined_call_operand.vmem [shape: f32[2,16,16,32], index: 3, kind: input, shape index: {}]
  %s4 = inlined_call_operand.hbm [shape: f32[2,16,16,32], index: 4, kind: output, shape index: {}]
  %s5 = sld [smem:[#allocation0]]
  $region49: #{resnet_block_forward.3} parent=0
    _
  %s7 = ssub.s32 1, %s5
  %s8 = scalar_select 0, %s7, %s5
  $region1: #{resnet_block_forward.3} parent=0
    #allocation2 [shape = 'u8[262144]{0}', space=vmem, size = 0x40000, scoped, tag = 'output window, operand 0']
    #allocation3 [shape = 's32[2]{0}', space=sflag, size = 0x8, scoped, tag = 'scoped memory for resnet_block_forward.3']
    %9 = vsyncpa [#allocation3], 0
    %s10 = scalar_lea.sflag [#allocation3], 1
    %11 = vsyncpa %s10, 0
    loop: start=0, step=1, limit=4
    $region2: #{resnet_block_forward.3} parent=1 // loop_pre_header
      _
    $region3: #{resnet_block_forward.3} parent=1 // loop_header
      %s13 = sphi 0, %s17
      %p14 = scmp.ge.s32.totalorder %s13, 4
      %s20 = sphi 0, %s32
      %s21 = sphi 0, %s28
      %s22 = sphi 0, %s20
      %s23 = sphi 0, %s21
      %s24 = sphi 0, %s22
      %s25 = sphi 0, %s23
      %s35 = sphi 0, %s37
      %s38 = sphi 0, %s35
      %s39 = sphi 0, %s38
      %s55 = sphi 0, %s39
      %s61 = sphi 0, %s63
      %s64 = sphi 0, %s61
      %s65 = sphi 0, %s64
      %s81 = sphi 0, %s65
      %s87 = sphi 0, %s89
      %s90 = sphi 0, %s87
      %s91 = sphi 0, %s90
      %s107 = sphi 0, %s91
      %s115 = sphi 0, %s117
      %s118 = sphi 0, %s115
      %s119 = sphi 0, %s118
      %s135 = sphi 0, %s119
      %s143 = sphi 0, %s145
      %s146 = sphi 0, %s143
      %s147 = sphi 0, %s146
      %s163 = sphi 0, %s147
    $region4: #{resnet_block_forward.3} parent=1 // loop_header_branch
      %16 = sbr.rel (%p14) target = $region8
    $region5: #{resnet_block_forward.3} parent=1 // loop_body
      %s18 = ssub.s32 %s13, 1
      %s19 = ssub.s32 %s13, 2
      %s26 = sadd.s32 1, %s21
      %p27 = scmp.ge.s32.totalorder %s26, 1
      %s28 = scalar_select %p27, 0, %s26
      %s29 = sadd.s32 1, %s20
      %s30 = scalar_select %p27, %s29, %s20
      %p31 = scmp.ge.s32.totalorder %s30, 2
      %s32 = scalar_select %p31, 0, %s30
      %s33 = ssub.s32 %s20, %s32
      %p34 = scmp.eq.s32.totalorder %s33, 0
      %s36 = sadd.s32 %s35, 1
      %s37 = scalar_select %p34, %s35, %s36
      %p40 = pneg %p34
      %p41 = scmp.eq.s32.totalorder %s13, 1
      %p42 = por %p40, %p41
      %p43 = scmp.ne.s32.totalorder %s35, %s38
      %p44 = scmp.eq.s32.totalorder %s13, 0
      %p45 = por %p43, %p44
      %p46 = scmp.ne.s32.totalorder %s35, %s38
      %p47 = scmp.eq.s32.totalorder %s18, 1
      %p48 = por %p46, %p47
      %p49 = scmp.ne.s32.totalorder %s38, %s39
      %p50 = scmp.eq.s32.totalorder %s18, 0
      %p51 = por %p49, %p50
      %p52 = scmp.ne.s32.totalorder %s38, %s39
      %p53 = scmp.eq.s32.totalorder %s19, 1
      %p54 = por %p52, %p53
      %p56 = scmp.ne.s32.totalorder %s39, %s55
      %p57 = scmp.eq.s32.totalorder %s19, 0
      %p58 = por %p56, %p57
      %s59 = ssub.s32 %s21, %s28
      %p60 = scmp.eq.s32.totalorder %s59, 0
      %s62 = sadd.s32 %s61, 1
      %s63 = scalar_select %p60, %s61, %s62
      %p66 = pneg %p60
      %p67 = scmp.eq.s32.totalorder %s13, 1
      %p68 = por %p66, %p67
      %p69 = scmp.ne.s32.totalorder %s61, %s64
      %p70 = scmp.eq.s32.totalorder %s13, 0
      %p71 = por %p69, %p70
      %p72 = scmp.ne.s32.totalorder %s61, %s64
      %p73 = scmp.eq.s32.totalorder %s18, 1
      %p74 = por %p72, %p73
      %p75 = scmp.ne.s32.totalorder %s64, %s65
      %p76 = scmp.eq.s32.totalorder %s18, 0
      %p77 = por %p75, %p76
      %p78 = scmp.ne.s32.totalorder %s64, %s65
      %p79 = scmp.eq.s32.totalorder %s19, 1
      %p80 = por %p78, %p79
      %p82 = scmp.ne.s32.totalorder %s65, %s81
      %p83 = scmp.eq.s32.totalorder %s19, 0
      %p84 = por %p82, %p83
      %s85 = ssub.s32 %s21, %s28
      %p86 = scmp.eq.s32.totalorder %s85, 0
      %s88 = sadd.s32 %s87, 1
      %s89 = scalar_select %p86, %s87, %s88
      %p92 = pneg %p86
      %p93 = scmp.eq.s32.totalorder %s13, 1
      %p94 = por %p92, %p93
      %p95 = scmp.ne.s32.totalorder %s87, %s90
      %p96 = scmp.eq.s32.totalorder %s13, 0
      %p97 = por %p95, %p96
      %p98 = scmp.ne.s32.totalorder %s87, %s90
      %p99 = scmp.eq.s32.totalorder %s18, 1
      %p100 = por %p98, %p99
      %p101 = scmp.ne.s32.totalorder %s90, %s91
      %p102 = scmp.eq.s32.totalorder %s18, 0
      %p103 = por %p101, %p102
      %p104 = scmp.ne.s32.totalorder %s90, %s91
      %p105 = scmp.eq.s32.totalorder %s19, 1
      %p106 = por %p104, %p105
      %p108 = scmp.ne.s32.totalorder %s91, %s107
      %p109 = scmp.eq.s32.totalorder %s19, 0
      %p110 = por %p108, %p109
      %s111 = ssub.s32 %s20, %s32
      %s112 = ssub.s32 %s21, %s28
      %s113 = sor.u32 %s111, %s112
      %p114 = scmp.eq.s32.totalorder %s113, 0
      %s116 = sadd.s32 %s115, 1
      %s117 = scalar_select %p114, %s115, %s116
      %p120 = pneg %p114
      %p121 = scmp.eq.s32.totalorder %s13, 1
      %p122 = por %p120, %p121
      %p123 = scmp.ne.s32.totalorder %s115, %s118
      %p124 = scmp.eq.s32.totalorder %s13, 0
      %p125 = por %p123, %p124
      %p126 = scmp.ne.s32.totalorder %s115, %s118
      %p127 = scmp.eq.s32.totalorder %s18, 1
      %p128 = por %p126, %p127
      %p129 = scmp.ne.s32.totalorder %s118, %s119
      %p130 = scmp.eq.s32.totalorder %s18, 0
      %p131 = por %p129, %p130
      %p132 = scmp.ne.s32.totalorder %s118, %s119
      %p133 = scmp.eq.s32.totalorder %s19, 1
      %p134 = por %p132, %p133
      %p136 = scmp.ne.s32.totalorder %s119, %s135
      %p137 = scmp.eq.s32.totalorder %s19, 0
      %p138 = por %p136, %p137
      %s139 = ssub.s32 %s20, %s32
      %s140 = ssub.s32 %s21, %s28
      %s141 = sor.u32 %s139, %s140
      %p142 = scmp.eq.s32.totalorder %s141, 0
      %s144 = sadd.s32 %s143, 1
      %s145 = scalar_select %p142, %s143, %s144
      %p148 = pneg %p142
      %p149 = scmp.eq.s32.totalorder %s13, 1
      %p150 = por %p148, %p149
      %p151 = scmp.ne.s32.totalorder %s143, %s146
      %p152 = scmp.eq.s32.totalorder %s13, 0
      %p153 = por %p151, %p152
      %p154 = scmp.ne.s32.totalorder %s143, %s146
      %p155 = scmp.eq.s32.totalorder %s18, 1
      %p156 = por %p154, %p155
      %p157 = scmp.ne.s32.totalorder %s146, %s147
      %p158 = scmp.eq.s32.totalorder %s18, 0
      %p159 = por %p157, %p158
      %p160 = scmp.ne.s32.totalorder %s146, %s147
      %p161 = scmp.eq.s32.totalorder %s19, 1
      %p162 = por %p160, %p161
      %p164 = scmp.ne.s32.totalorder %s147, %s163
      %p165 = scmp.eq.s32.totalorder %s19, 0
      %p166 = por %p164, %p165
      %p167 = scmp.le.s32.totalorder 1, %s13
      %p168 = scmp.lt.s32.totalorder %s13, 3
      %p169 = pnand %p167, %p168
      %p170 = pneg %p169
      // Predicated region
      $region9: #{resnet_block_forward.3} parent=5 // pred_check
        _
      $region10: #{resnet_block_forward.3} parent=5 // pred_check_branch
        %172 = sbr.rel (%p169) target = $region12
      $region11: #{resnet_block_forward.3} parent=5 // pred_region
        %s173 = ssub.s32 %s13, 1
        // Predicated region
        $region13: #{resnet_block_forward.3} parent=11 // pred_check
          %p174 = pneg %p77
        $region14: #{resnet_block_forward.3} parent=11 // pred_check_branch
          %176 = sbr.rel (%p174) target = $region16
        $region15: #{resnet_block_forward.3} parent=11 // pred_region
          %p177 = scmp.lt.s32.totalorder %s23, 0
          %s178 = scalar_select %p177, %s23, 0
          %s179 = smul.addr %s178, 4
          %s180 = scalar_lea.vmem %s1, %s179
        $region16: #{resnet_block_forward.3} parent=11 // pred_fallthru
          _
        // Predicated region
        $region17: #{resnet_block_forward.3} parent=11 // pred_check
          %p181 = pneg %p103
        $region18: #{resnet_block_forward.3} parent=11 // pred_check_branch
          %183 = sbr.rel (%p181) target = $region20
        $region19: #{resnet_block_forward.3} parent=11 // pred_region
          %p184 = scmp.lt.s32.totalorder %s23, 0
          %s185 = scalar_select %p184, %s23, 0
          %s186 = scalar_lea.vmem %s2, %s185
        $region20: #{resnet_block_forward.3} parent=11 // pred_fallthru
          _
      $region12: #{resnet_block_forward.3} parent=5 // pred_fallthru
        _
      %p187 = scmp.lt.s32.totalorder %s13, 2
      // Predicated region
      $region21: #{resnet_block_forward.3} parent=5 // pred_check
        %p188 = pneg %p187
      $region22: #{resnet_block_forward.3} parent=5 // pred_check_branch
        %190 = sbr.rel (%p188) target = $region24
      $region23: #{resnet_block_forward.3} parent=5 // pred_region
        // Predicated region
        $region25: #{resnet_block_forward.3} parent=23 // pred_check
          %p191 = pneg %p45
        $region26: #{resnet_block_forward.3} parent=23 // pred_check_branch
          %193 = sbr.rel (%p191) target = $region28
        $region27: #{resnet_block_forward.3} parent=23 // pred_region
          %p194 = scmp.lt.s32.totalorder %s20, 1
          %s195 = scalar_select %p194, %s20, 1
          %s196 = smul.addr %s195, 54
          %s197 = smul.addr %s196, 4
          %s198 = scalar_lea.vmem %s0, %s197
        $region28: #{resnet_block_forward.3} parent=23 // pred_fallthru
          _
        // Predicated region
        $region29: #{resnet_block_forward.3} parent=23 // pred_check
          %p199 = pneg %p125
        $region30: #{resnet_block_forward.3} parent=23 // pred_check_branch
          %201 = sbr.rel (%p199) target = $region32
        $region31: #{resnet_block_forward.3} parent=23 // pred_region
          %p202 = scmp.lt.s32.totalorder %s20, 1
          %s203 = scalar_select %p202, %s20, 1
          %p204 = scmp.lt.s32.totalorder %s21, 0
          %s205 = scalar_select %p204, %s21, 0
          %s206 = smul.addr %s203, 32
          %s207 = sadd.s32 %s205, %s206
          %s208 = smul.addr %s207, 8
          %s209 = scalar_lea.vmem %s3, %s208
        $region32: #{resnet_block_forward.3} parent=23 // pred_fallthru
          _
      $region24: #{resnet_block_forward.3} parent=5 // pred_fallthru
        _
      %p210 = scmp.le.s32.totalorder 1, %s13
      %p211 = scmp.lt.s32.totalorder %s13, 3
      %p212 = pnand %p210, %p211
      %p213 = pneg %p212
      // Predicated region
      $region33: #{resnet_block_forward.3} parent=5 // pred_check
        _
      $region34: #{resnet_block_forward.3} parent=5 // pred_check_branch
        %215 = sbr.rel (%p212) target = $region36
      $region35: #{resnet_block_forward.3} parent=5 // pred_region
        %s216 = ssub.s32 %s13, 1
        %p217 = scmp.lt.s32.totalorder %s22, 1
        %s218 = scalar_select %p217, %s22, 1
        %s219 = smul.addr %s218, 54
        %s220 = smul.addr %s219, 4
        %s221 = scalar_lea.vmem %s0, %s220
        %p222 = pneg %p51
        %p223 = pneg %p48
        %p224 = scmp.lt.s32.totalorder %s23, 0
        %s225 = scalar_select %p224, %s23, 0
        %s226 = smul.addr %s225, 4
        %s227 = scalar_lea.vmem %s1, %s226
        %p228 = pneg %p77
        %p229 = pneg %p74
        %p230 = scmp.lt.s32.totalorder %s23, 0
        %s231 = scalar_select %p230, %s23, 0
        %s232 = scalar_lea.vmem %s2, %s231
        %p233 = pneg %p103
        %p234 = pneg %p100
        %p235 = scmp.lt.s32.totalorder %s22, 1
        %s236 = scalar_select %p235, %s22, 1
        %p237 = scmp.lt.s32.totalorder %s23, 0
        %s238 = scalar_select %p237, %s23, 0
        %s239 = smul.addr %s236, 32
        %s240 = sadd.s32 %s238, %s239
        %s241 = smul.addr %s240, 8
        %s242 = scalar_lea.vmem %s3, %s241
        %p243 = pneg %p131
        %p244 = pneg %p128
        %p245 = pneg %p159
        %p246 = pneg %p156
        %s247 = sand.u32 %s146, 1
        %s248 = scalar_lea.sflag [#allocation3], %s247
        %s249 = sand.u32 %s146, 1
        %s250 = smul.addr %s249, 256
        %s251 = scalar_lea.vmem [#allocation2], %s250
        %p252 = scmp.lt.s32.totalorder %s22, 1
        %s253 = scalar_select %p252, %s22, 1
        %s254 = smul.addr %s253, 54
        %s255 = smul.addr %s254, 4
        %s256 = scalar_lea.vmem %s0, %s255
        %p257 = scmp.lt.s32.totalorder %s23, 0
        %s258 = scalar_select %p257, %s23, 0
        %s259 = smul.addr %s258, 4
        %s260 = scalar_lea.vmem %s1, %s259
        %p261 = scmp.lt.s32.totalorder %s23, 0
        %s262 = scalar_select %p261, %s23, 0
        %s263 = scalar_lea.vmem %s2, %s262
        %p264 = scmp.lt.s32.totalorder %s22, 1
        %s265 = scalar_select %p264, %s22, 1
        %p266 = scmp.lt.s32.totalorder %s23, 0
        %s267 = scalar_select %p266, %s23, 0
        %s268 = smul.addr %s265, 32
        %s269 = sadd.s32 %s267, %s268
        %s270 = smul.addr %s269, 8
        %s271 = scalar_lea.vmem %s3, %s270
        %v273 = vld [vmem:[%s256] sm:$0xf]
        %v274 = vld [vmem:[%s256 + $0x4] sm:$0xf]
        %v275 = vld [vmem:[%s256 + $0xc] sm:$0xf]
        %v276 = vld [vmem:[%s256 + $0x10] sm:$0xf]
        %v277 = vld [vmem:[%s256 + $0x18] sm:$0xf]
        %v278 = vld [vmem:[%s256 + $0x1c] sm:$0xf]
        %v279 = vld [vmem:[%s256 + $0x24] sm:$0xf]
        %v280 = vld [vmem:[%s256 + $0x28] sm:$0xf]
        %v281 = vld [vmem:[%s256 + $0x30] sm:$0xf]
        %v282 = vld [vmem:[%s256 + $0x34] sm:$0xf]
        %v283 = vld [vmem:[%s256 + $0x3c] sm:$0xf]
        %v284 = vld [vmem:[%s256 + $0x40] sm:$0xf]
        %v285 = vld [vmem:[%s256 + $0x48] sm:$0xf]
        %v286 = vld [vmem:[%s256 + $0x4c] sm:$0xf]
        %v287 = vld [vmem:[%s256 + $0x54] sm:$0xf]
        %v288 = vld [vmem:[%s256 + $0x58] sm:$0xf]
        %v289 = vld [vmem:[%s256 + $0x60] sm:$0xf]
        %v290 = vld [vmem:[%s256 + $0x64] sm:$0xf]
        %v291 = vld [vmem:[%s256 + $0x6c] sm:$0xf]
        %v292 = vld [vmem:[%s256 + $0x70] sm:$0xf]
        %v293 = vld [vmem:[%s256 + $0x78] sm:$0xf]
        %v294 = vld [vmem:[%s256 + $0x7c] sm:$0xf]
        %v295 = vld [vmem:[%s256 + $0x84] sm:$0xf]
        %v296 = vld [vmem:[%s256 + $0x88] sm:$0xf]
        %v297 = vld [vmem:[%s256 + $0x90] sm:$0xf]
        %v298 = vld [vmem:[%s256 + $0x94] sm:$0xf]
        %v299 = vld [vmem:[%s256 + $0x9c] sm:$0xf]
        %v300 = vld [vmem:[%s256 + $0xa0] sm:$0xf]
        %v301 = vld [vmem:[%s256 + $0xa8] sm:$0xf]
        %v302 = vld [vmem:[%s256 + $0xac] sm:$0xf]
        %v303 = vld [vmem:[%s256 + $0xb4] sm:$0xf]
        %v304 = vld [vmem:[%s256 + $0xb8] sm:$0xf]
        %v305 = vld [vmem:[%s260] sm:$0xf]
        %v306 = vld [vmem:[%s260 + $0x4] sm:$0xf]
        %v307 = vld [vmem:[%s260 + $0x8] sm:$0xf]
        %v308 = vld [vmem:[%s260 + $0xc] sm:$0xf]
        %v309 = vld [vmem:[%s256 + $0x8] sm:$0x1]
        %v310 = vld [vmem:[%s256 + $0x14] sm:$0x1]
        %v311 = vld [vmem:[%s256 + $0x20] sm:$0x1]
        %v312 = vld [vmem:[%s256 + $0x2c] sm:$0x1]
        %v313 = vld [vmem:[%s256 + $0x38] sm:$0x1]
        %v314 = vld [vmem:[%s256 + $0x44] sm:$0x1]
        %v315 = vld [vmem:[%s256 + $0x50] sm:$0x1]
        %v316 = vld [vmem:[%s256 + $0x5c] sm:$0x1]
        %v317 = vld [vmem:[%s256 + $0x68] sm:$0x1]
        %v318 = vld [vmem:[%s256 + $0x74] sm:$0x1]
        %v319 = vld [vmem:[%s256 + $0x80] sm:$0x1]
        %v320 = vld [vmem:[%s256 + $0x8c] sm:$0x1]
        %v321 = vld [vmem:[%s256 + $0x98] sm:$0x1]
        %v322 = vld [vmem:[%s256 + $0xa4] sm:$0x1]
        %v323 = vld [vmem:[%s256 + $0xb0] sm:$0x1]
        %v324 = vld [vmem:[%s256 + $0xbc] sm:$0x1]
        %vm325 = vsmask.f32 3328
        %vm326 = vsmask.f32 7440
        %vm327 = vmor %vm325, %vm326
        %v329 = vshrl.u32 %v273, 16
        %v331 = vrot.slane %v329, 4
        %v332 = vshll.u32 %v273, 16
        %v334 = vrot.slane %v332, 5
        %v335 = vor.u32 %v331, %v334
        %v336 = vrot.slane %v335, 4
        %v338 = vshll.u32 %v274, 16
        %v340 = vrot.slane %v338, 5
        %v341 = vsel %vm327, %v336, %v340
        %v342 = vshrl.u32 %v274, 16
        %v344 = vrot.slane %v342, 4
        %v345 = vor.u32 %v344, %v340
        %v346 = vrot.slane %v345, 4
        %v348 = vshll.u32 %v309, 16
        %v350 = vrot.slane %v348, 5
        %v351 = vsel %vm327, %v346, %v350
        %v353 = vshrl.u32 %v275, 16
        %v355 = vrot.slane %v353, 4
        %v356 = vshll.u32 %v275, 16
        %v358 = vrot.slane %v356, 5
        %v359 = vor.u32 %v355, %v358
        %v360 = vrot.slane %v359, 4
        %v362 = vshll.u32 %v276, 16
        %v364 = vrot.slane %v362, 5
        %v365 = vsel %vm327, %v360, %v364
        %v366 = vshrl.u32 %v276, 16
        %v368 = vrot.slane %v366, 4
        %v369 = vor.u32 %v368, %v364
        %v370 = vrot.slane %v369, 4
        %v372 = vshll.u32 %v310, 16
        %v374 = vrot.slane %v372, 5
        %v375 = vsel %vm327, %v370, %v374
        %v377 = vshrl.u32 %v277, 16
        %v379 = vrot.slane %v377, 4
        %v380 = vshll.u32 %v277, 16
        %v382 = vrot.slane %v380, 5
        %v383 = vor.u32 %v379, %v382
        %v384 = vrot.slane %v383, 4
        %v386 = vshll.u32 %v278, 16
        %v388 = vrot.slane %v386, 5
        %v389 = vsel %vm327, %v384, %v388
        %v390 = vshrl.u32 %v278, 16
        %v392 = vrot.slane %v390, 4
        %v393 = vor.u32 %v392, %v388
        %v394 = vrot.slane %v393, 4
        %v396 = vshll.u32 %v311, 16
        %v398 = vrot.slane %v396, 5
        %v399 = vsel %vm327, %v394, %v398
        %v401 = vshrl.u32 %v279, 16
        %v403 = vrot.slane %v401, 4
        %v404 = vshll.u32 %v279, 16
        %v406 = vrot.slane %v404, 5
        %v407 = vor.u32 %v403, %v406
        %v408 = vrot.slane %v407, 4
        %v410 = vshll.u32 %v280, 16
        %v412 = vrot.slane %v410, 5
        %v413 = vsel %vm327, %v408, %v412
        %v414 = vshrl.u32 %v280, 16
        %v416 = vrot.slane %v414, 4
        %v417 = vor.u32 %v416, %v412
        %v418 = vrot.slane %v417, 4
        %v420 = vshll.u32 %v312, 16
        %v422 = vrot.slane %v420, 5
        %v423 = vsel %vm327, %v418, %v422
        %v425 = vshrl.u32 %v281, 16
        %v427 = vrot.slane %v425, 4
        %v428 = vshll.u32 %v281, 16
        %v430 = vrot.slane %v428, 5
        %v431 = vor.u32 %v427, %v430
        %v432 = vrot.slane %v431, 4
        %v434 = vshll.u32 %v282, 16
        %v436 = vrot.slane %v434, 5
        %v437 = vsel %vm327, %v432, %v436
        %v438 = vshrl.u32 %v282, 16
        %v440 = vrot.slane %v438, 4
        %v441 = vor.u32 %v440, %v436
        %v442 = vrot.slane %v441, 4
        %v444 = vshll.u32 %v313, 16
        %v446 = vrot.slane %v444, 5
        %v447 = vsel %vm327, %v442, %v446
        %v449 = vshrl.u32 %v283, 16
        %v451 = vrot.slane %v449, 4
        %v452 = vshll.u32 %v283, 16
        %v454 = vrot.slane %v452, 5
        %v455 = vor.u32 %v451, %v454
        %v456 = vrot.slane %v455, 4
        %v458 = vshll.u32 %v284, 16
        %v460 = vrot.slane %v458, 5
        %v461 = vsel %vm327, %v456, %v460
        %v462 = vshrl.u32 %v284, 16
        %v464 = vrot.slane %v462, 4
        %v465 = vor.u32 %v464, %v460
        %v466 = vrot.slane %v465, 4
        %v468 = vshll.u32 %v314, 16
        %v470 = vrot.slane %v468, 5
        %v471 = vsel %vm327, %v466, %v470
        %v473 = vshrl.u32 %v285, 16
        %v475 = vrot.slane %v473, 4
        %v476 = vshll.u32 %v285, 16
        %v478 = vrot.slane %v476, 5
        %v479 = vor.u32 %v475, %v478
        %v480 = vrot.slane %v479, 4
        %v482 = vshll.u32 %v286, 16
        %v484 = vrot.slane %v482, 5
        %v485 = vsel %vm327, %v480, %v484
        %v486 = vshrl.u32 %v286, 16
        %v488 = vrot.slane %v486, 4
        %v489 = vor.u32 %v488, %v484
        %v490 = vrot.slane %v489, 4
        %v492 = vshll.u32 %v315, 16
        %v494 = vrot.slane %v492, 5
        %v495 = vsel %vm327, %v490, %v494
        %v497 = vshrl.u32 %v287, 16
        %v499 = vrot.slane %v497, 4
        %v500 = vshll.u32 %v287, 16
        %v502 = vrot.slane %v500, 5
        %v503 = vor.u32 %v499, %v502
        %v504 = vrot.slane %v503, 4
        %v506 = vshll.u32 %v288, 16
        %v508 = vrot.slane %v506, 5
        %v509 = vsel %vm327, %v504, %v508
        %v510 = vshrl.u32 %v288, 16
        %v512 = vrot.slane %v510, 4
        %v513 = vor.u32 %v512, %v508
        %v514 = vrot.slane %v513, 4
        %v516 = vshll.u32 %v316, 16
        %v518 = vrot.slane %v516, 5
        %v519 = vsel %vm327, %v514, %v518
        %v521 = vshrl.u32 %v289, 16
        %v523 = vrot.slane %v521, 4
        %v524 = vshll.u32 %v289, 16
        %v526 = vrot.slane %v524, 5
        %v527 = vor.u32 %v523, %v526
        %v528 = vrot.slane %v527, 4
        %v530 = vshll.u32 %v290, 16
        %v532 = vrot.slane %v530, 5
        %v533 = vsel %vm327, %v528, %v532
        %v534 = vshrl.u32 %v290, 16
        %v536 = vrot.slane %v534, 4
        %v537 = vor.u32 %v536, %v532
        %v538 = vrot.slane %v537, 4
        %v540 = vshll.u32 %v317, 16
        %v542 = vrot.slane %v540, 5
        %v543 = vsel %vm327, %v538, %v542
        %v545 = vshrl.u32 %v291, 16
        %v547 = vrot.slane %v545, 4
        %v548 = vshll.u32 %v291, 16
        %v550 = vrot.slane %v548, 5
        %v551 = vor.u32 %v547, %v550
        %v552 = vrot.slane %v551, 4
        %v554 = vshll.u32 %v292, 16
        %v556 = vrot.slane %v554, 5
        %v557 = vsel %vm327, %v552, %v556
        %v558 = vshrl.u32 %v292, 16
        %v560 = vrot.slane %v558, 4
        %v561 = vor.u32 %v560, %v556
        %v562 = vrot.slane %v561, 4
        %v564 = vshll.u32 %v318, 16
        %v566 = vrot.slane %v564, 5
        %v567 = vsel %vm327, %v562, %v566
        %v569 = vshrl.u32 %v293, 16
        %v571 = vrot.slane %v569, 4
        %v572 = vshll.u32 %v293, 16
        %v574 = vrot.slane %v572, 5
        %v575 = vor.u32 %v571, %v574
        %v576 = vrot.slane %v575, 4
        %v578 = vshll.u32 %v294, 16
        %v580 = vrot.slane %v578, 5
        %v581 = vsel %vm327, %v576, %v580
        %v582 = vshrl.u32 %v294, 16
        %v584 = vrot.slane %v582, 4
        %v585 = vor.u32 %v584, %v580
        %v586 = vrot.slane %v585, 4
        %v588 = vshll.u32 %v319, 16
        %v590 = vrot.slane %v588, 5
        %v591 = vsel %vm327, %v586, %v590
        %v593 = vshrl.u32 %v295, 16
        %v595 = vrot.slane %v593, 4
        %v596 = vshll.u32 %v295, 16
        %v598 = vrot.slane %v596, 5
        %v599 = vor.u32 %v595, %v598
        %v600 = vrot.slane %v599, 4
        %v602 = vshll.u32 %v296, 16
        %v604 = vrot.slane %v602, 5
        %v605 = vsel %vm327, %v600, %v604
        %v606 = vshrl.u32 %v296, 16
        %v608 = vrot.slane %v606, 4
        %v609 = vor.u32 %v608, %v604
        %v610 = vrot.slane %v609, 4
        %v612 = vshll.u32 %v320, 16
        %v614 = vrot.slane %v612, 5
        %v615 = vsel %vm327, %v610, %v614
        %v617 = vshrl.u32 %v297, 16
        %v619 = vrot.slane %v617, 4
        %v620 = vshll.u32 %v297, 16
        %v622 = vrot.slane %v620, 5
        %v623 = vor.u32 %v619, %v622
        %v624 = vrot.slane %v623, 4
        %v626 = vshll.u32 %v298, 16
        %v628 = vrot.slane %v626, 5
        %v629 = vsel %vm327, %v624, %v628
        %v630 = vshrl.u32 %v298, 16
        %v632 = vrot.slane %v630, 4
        %v633 = vor.u32 %v632, %v628
        %v634 = vrot.slane %v633, 4
        %v636 = vshll.u32 %v321, 16
        %v638 = vrot.slane %v636, 5
        %v639 = vsel %vm327, %v634, %v638
        %v641 = vshrl.u32 %v299, 16
        %v643 = vrot.slane %v641, 4
        %v644 = vshll.u32 %v299, 16
        %v646 = vrot.slane %v644, 5
        %v647 = vor.u32 %v643, %v646
        %v648 = vrot.slane %v647, 4
        %v650 = vshll.u32 %v300, 16
        %v652 = vrot.slane %v650, 5
        %v653 = vsel %vm327, %v648, %v652
        %v654 = vshrl.u32 %v300, 16
        %v656 = vrot.slane %v654, 4
        %v657 = vor.u32 %v656, %v652
        %v658 = vrot.slane %v657, 4
        %v660 = vshll.u32 %v322, 16
        %v662 = vrot.slane %v660, 5
        %v663 = vsel %vm327, %v658, %v662
        %v665 = vshrl.u32 %v301, 16
        %v667 = vrot.slane %v665, 4
        %v668 = vshll.u32 %v301, 16
        %v670 = vrot.slane %v668, 5
        %v671 = vor.u32 %v667, %v670
        %v672 = vrot.slane %v671, 4
        %v674 = vshll.u32 %v302, 16
        %v676 = vrot.slane %v674, 5
        %v677 = vsel %vm327, %v672, %v676
        %v678 = vshrl.u32 %v302, 16
        %v680 = vrot.slane %v678, 4
        %v681 = vor.u32 %v680, %v676
        %v682 = vrot.slane %v681, 4
        %v684 = vshll.u32 %v323, 16
        %v686 = vrot.slane %v684, 5
        %v687 = vsel %vm327, %v682, %v686
        %v689 = vshrl.u32 %v303, 16
        %v691 = vrot.slane %v689, 4
        %v692 = vshll.u32 %v303, 16
        %v694 = vrot.slane %v692, 5
        %v695 = vor.u32 %v691, %v694
        %v696 = vrot.slane %v695, 4
        %v698 = vshll.u32 %v304, 16
        %v700 = vrot.slane %v698, 5
        %v701 = vsel %vm327, %v696, %v700
        %v702 = vshrl.u32 %v304, 16
        %v704 = vrot.slane %v702, 4
        %v705 = vor.u32 %v704, %v700
        %v706 = vrot.slane %v705, 4
        %v708 = vshll.u32 %v324, 16
        %v710 = vrot.slane %v708, 5
        %v711 = vsel %vm327, %v706, %v710
        %s712 = scalar_lea.vmem %s260, 16
        %v713 = vld [vmem:[%s712] sm:$0xf]
        %v714 = vld [vmem:[%s712 + $0x4] sm:$0xf]
        %v715 = vld [vmem:[%s712 + $0x8] sm:$0xf]
        %v716 = vld [vmem:[%s712 + $0xc] sm:$0xf]
        %v717 = vunpack.c.l.b16 %v341
        %v718 = vunpack.c.l.b16 %v351
        %v719 = vunpack.c.l.b16 %v365
        %v720 = vunpack.c.l.b16 %v375
        %v721 = vunpack.c.l.b16 %v389
        %v722 = vunpack.c.l.b16 %v399
        %v723 = vunpack.c.l.b16 %v413
        %v724 = vunpack.c.l.b16 %v423
        %v725 = vunpack.c.l.b16 %v437
        %v726 = vunpack.c.l.b16 %v447
        %v727 = vunpack.c.l.b16 %v461
        %v728 = vunpack.c.l.b16 %v471
        %v729 = vunpack.c.l.b16 %v485
        %v730 = vunpack.c.l.b16 %v495
        %v731 = vunpack.c.l.b16 %v509
        %v732 = vunpack.c.l.b16 %v519
        %v733 = vunpack.c.l.b16 %v533
        %v734 = vunpack.c.l.b16 %v543
        %v735 = vunpack.c.l.b16 %v557
        %v736 = vunpack.c.l.b16 %v567
        %v737 = vunpack.c.l.b16 %v581
        %v738 = vunpack.c.l.b16 %v591
        %v739 = vunpack.c.l.b16 %v605
        %v740 = vunpack.c.l.b16 %v615
        %v741 = vunpack.c.l.b16 %v629
        %v742 = vunpack.c.l.b16 %v639
        %v743 = vunpack.c.l.b16 %v653
        %v744 = vunpack.c.l.b16 %v663
        %v745 = vunpack.c.l.b16 %v677
        %v746 = vunpack.c.l.b16 %v687
        %v747 = vunpack.c.l.b16 %v701
        %v748 = vunpack.c.l.b16 %v711
        %v749 = vpack.c.b16 %v718, %v717
        %v750 = vpack.c.b16 %v720, %v719
        %v751 = vpack.c.b16 %v722, %v721
        %v752 = vpack.c.b16 %v724, %v723
        %v753 = vpack.c.b16 %v726, %v725
        %v754 = vpack.c.b16 %v728, %v727
        %v755 = vpack.c.b16 %v730, %v729
        %v756 = vpack.c.b16 %v732, %v731
        %v757 = vpack.c.b16 %v734, %v733
        %v758 = vpack.c.b16 %v736, %v735
        %v759 = vpack.c.b16 %v738, %v737
        %v760 = vpack.c.b16 %v740, %v739
        %v761 = vpack.c.b16 %v742, %v741
        %v762 = vpack.c.b16 %v744, %v743
        %v763 = vpack.c.b16 %v746, %v745
        %v764 = vpack.c.b16 %v748, %v747
        %v769 = vunpack.c.l.b16 %v713
        %v770 = vunpack.c.l.b16 %v714
        %v771 = vunpack.c.l.b16 %v715
        %v772 = vunpack.c.l.b16 %v716
        %v773 = vpack.c.b16 %v770, %v769
        %v774 = vpack.c.b16 %v772, %v771
        %vm777 = vcmask 261120
        %v779 = vsel %vm777, %v749, 0
        %v782 = vsel %vm777, %v750, 0
        %v785 = vsel %vm777, %v751, 0
        %v788 = vsel %vm777, %v752, 0
        %v791 = vsel %vm777, %v753, 0
        %v794 = vsel %vm777, %v754, 0
        %v797 = vsel %vm777, %v755, 0
        %v800 = vsel %vm777, %v756, 0
        %v803 = vsel %vm777, %v757, 0
        %v806 = vsel %vm777, %v758, 0
        %v809 = vsel %vm777, %v759, 0
        %v812 = vsel %vm777, %v760, 0
        %v815 = vsel %vm777, %v761, 0
        %v818 = vsel %vm777, %v762, 0
        %v821 = vsel %vm777, %v763, 0
        %v824 = vsel %vm777, %v764, 0
        %826 = vmatpush.bf16.msra.mxu0 0
        %827 = vmatpush.bf16.msra.mxu0 0
        %828 = vmatpush.bf16.msra.mxu0 0
        %829 = vmatpush.bf16.msra.mxu0 0
        %830 = vmatpush.bf16.msra.mxu0 0
        %831 = vmatpush.bf16.msra.mxu0 0
        %832 = vmatpush.bf16.msra.mxu0 %v774
        %833 = vmatpush.bf16.msra.mxu0 %v773
        %834 = vmatmul.bf16.gmra.mxu0 %v779
        %v835 = vpop.f32.mrf.mxu0
        %v836 = vadd.f32 0.0, %v835
        %v837 = vpop.f32.mrf.mxu0
        %v838 = vadd.f32 0.0, %v837
        %839 = vmatmul.bf16.gmra.mxu0 %v782
        %v840 = vpop.f32.mrf.mxu0
        %v841 = vadd.f32 0.0, %v840
        %v842 = vpop.f32.mrf.mxu0
        %v843 = vadd.f32 0.0, %v842
        %844 = vmatmul.bf16.gmra.mxu0 %v785
        %v845 = vpop.f32.mrf.mxu0
        %v846 = vadd.f32 0.0, %v845
        %v847 = vpop.f32.mrf.mxu0
        %v848 = vadd.f32 0.0, %v847
        %849 = vmatmul.bf16.gmra.mxu0 %v788
        %v850 = vpop.f32.mrf.mxu0
        %v851 = vadd.f32 0.0, %v850
        %v852 = vpop.f32.mrf.mxu0
        %v853 = vadd.f32 0.0, %v852
        %854 = vmatmul.bf16.gmra.mxu0 %v791
        %v855 = vpop.f32.mrf.mxu0
        %v856 = vadd.f32 0.0, %v855
        %v857 = vpop.f32.mrf.mxu0
        %v858 = vadd.f32 0.0, %v857
        %859 = vmatmul.bf16.gmra.mxu0 %v794
        %v860 = vpop.f32.mrf.mxu0
        %v861 = vadd.f32 0.0, %v860
        %v862 = vpop.f32.mrf.mxu0
        %v863 = vadd.f32 0.0, %v862
        %864 = vmatmul.bf16.gmra.mxu0 %v797
        %v865 = vpop.f32.mrf.mxu0
        %v866 = vadd.f32 0.0, %v865
        %v867 = vpop.f32.mrf.mxu0
        %v868 = vadd.f32 0.0, %v867
        %869 = vmatmul.bf16.gmra.mxu0 %v800
        %v870 = vpop.f32.mrf.mxu0
        %v871 = vadd.f32 0.0, %v870
        %v872 = vpop.f32.mrf.mxu0
        %v873 = vadd.f32 0.0, %v872
        %874 = vmatmul.bf16.gmra.mxu0 %v803
        %v875 = vpop.f32.mrf.mxu0
        %v876 = vadd.f32 0.0, %v875
        %v877 = vpop.f32.mrf.mxu0
        %v878 = vadd.f32 0.0, %v877
        %879 = vmatmul.bf16.gmra.mxu0 %v806
        %v880 = vpop.f32.mrf.mxu0
        %v881 = vadd.f32 0.0, %v880
        %v882 = vpop.f32.mrf.mxu0
        %v883 = vadd.f32 0.0, %v882
        %884 = vmatmul.bf16.gmra.mxu0 %v809
        %v885 = vpop.f32.mrf.mxu0
        %v886 = vadd.f32 0.0, %v885
        %v887 = vpop.f32.mrf.mxu0
        %v888 = vadd.f32 0.0, %v887
        %889 = vmatmul.bf16.gmra.mxu0 %v812
        %v890 = vpop.f32.mrf.mxu0
        %v891 = vadd.f32 0.0, %v890
        %v892 = vpop.f32.mrf.mxu0
        %v893 = vadd.f32 0.0, %v892
        %894 = vmatmul.bf16.gmra.mxu0 %v815
        %v895 = vpop.f32.mrf.mxu0
        %v896 = vadd.f32 0.0, %v895
        %v897 = vpop.f32.mrf.mxu0
        %v898 = vadd.f32 0.0, %v897
        %899 = vmatmul.bf16.gmra.mxu0 %v818
        %v900 = vpop.f32.mrf.mxu0
        %v901 = vadd.f32 0.0, %v900
        %v902 = vpop.f32.mrf.mxu0
        %v903 = vadd.f32 0.0, %v902
        %904 = vmatmul.bf16.gmra.mxu0 %v821
        %v905 = vpop.f32.mrf.mxu0
        %v906 = vadd.f32 0.0, %v905
        %v907 = vpop.f32.mrf.mxu0
        %v908 = vadd.f32 0.0, %v907
        %909 = vmatmul.bf16.gmra.mxu0 %v824
        %v910 = vpop.f32.mrf.mxu0
        %v911 = vadd.f32 0.0, %v910
        %v912 = vpop.f32.mrf.mxu0
        %v913 = vadd.f32 0.0, %v912
        %914 = vdwg.mxu0
        %v947 = vunpack.c.l.b16 %v273
        %v948 = vunpack.c.l.b16 %v274
        %v949 = vunpack.c.l.b16 %v275
        %v950 = vunpack.c.l.b16 %v276
        %v951 = vunpack.c.l.b16 %v277
        %v952 = vunpack.c.l.b16 %v278
        %v953 = vunpack.c.l.b16 %v279
        %v954 = vunpack.c.l.b16 %v280
        %v955 = vunpack.c.l.b16 %v281
        %v956 = vunpack.c.l.b16 %v282
        %v957 = vunpack.c.l.b16 %v283
        %v958 = vunpack.c.l.b16 %v284
        %v959 = vunpack.c.l.b16 %v285
        %v960 = vunpack.c.l.b16 %v286
        %v961 = vunpack.c.l.b16 %v287
        %v962 = vunpack.c.l.b16 %v288
        %v963 = vunpack.c.l.b16 %v289
        %v964 = vunpack.c.l.b16 %v290
        %v965 = vunpack.c.l.b16 %v291
        %v966 = vunpack.c.l.b16 %v292
        %v967 = vunpack.c.l.b16 %v293
        %v968 = vunpack.c.l.b16 %v294
        %v969 = vunpack.c.l.b16 %v295
        %v970 = vunpack.c.l.b16 %v296
        %v971 = vunpack.c.l.b16 %v297
        %v972 = vunpack.c.l.b16 %v298
        %v973 = vunpack.c.l.b16 %v299
        %v974 = vunpack.c.l.b16 %v300
        %v975 = vunpack.c.l.b16 %v301
        %v976 = vunpack.c.l.b16 %v302
        %v977 = vunpack.c.l.b16 %v303
        %v978 = vunpack.c.l.b16 %v304
        %v979 = vpack.c.b16 %v948, %v947
        %v980 = vpack.c.b16 %v950, %v949
        %v981 = vpack.c.b16 %v952, %v951
        %v982 = vpack.c.b16 %v954, %v953
        %v983 = vpack.c.b16 %v956, %v955
        %v984 = vpack.c.b16 %v958, %v957
        %v985 = vpack.c.b16 %v960, %v959
        %v986 = vpack.c.b16 %v962, %v961
        %v987 = vpack.c.b16 %v964, %v963
        %v988 = vpack.c.b16 %v966, %v965
        %v989 = vpack.c.b16 %v968, %v967
        %v990 = vpack.c.b16 %v970, %v969
        %v991 = vpack.c.b16 %v972, %v971
        %v992 = vpack.c.b16 %v974, %v973
        %v993 = vpack.c.b16 %v976, %v975
        %v994 = vpack.c.b16 %v978, %v977
        %v999 = vunpack.c.l.b16 %v305
        %v1000 = vunpack.c.l.b16 %v306
        %v1001 = vunpack.c.l.b16 %v307
        %v1002 = vunpack.c.l.b16 %v308
        %v1003 = vpack.c.b16 %v1000, %v999
        %v1004 = vpack.c.b16 %v1002, %v1001
        %v1008 = vsel %vm777, %v979, 0
        %v1011 = vsel %vm777, %v980, 0
        %v1014 = vsel %vm777, %v981, 0
        %v1017 = vsel %vm777, %v982, 0
        %v1020 = vsel %vm777, %v983, 0
        %v1023 = vsel %vm777, %v984, 0
        %v1026 = vsel %vm777, %v985, 0
        %v1029 = vsel %vm777, %v986, 0
        %v1032 = vsel %vm777, %v987, 0
        %v1035 = vsel %vm777, %v988, 0
        %v1038 = vsel %vm777, %v989, 0
        %v1041 = vsel %vm777, %v990, 0
        %v1044 = vsel %vm777, %v991, 0
        %v1047 = vsel %vm777, %v992, 0
        %v1050 = vsel %vm777, %v993, 0
        %v1053 = vsel %vm777, %v994, 0
        %1055 = vmatpush.bf16.msra.mxu0 0
        %1056 = vmatpush.bf16.msra.mxu0 0
        %1057 = vmatpush.bf16.msra.mxu0 0
        %1058 = vmatpush.bf16.msra.mxu0 0
        %1059 = vmatpush.bf16.msra.mxu0 0
        %1060 = vmatpush.bf16.msra.mxu0 0
        %1061 = vmatpush.bf16.msra.mxu0 %v1004
        %1062 = vmatpush.bf16.msra.mxu0 %v1003
        %1063 = vmatmul.bf16.gmra.mxu0 %v1008
        %v1064 = vpop.f32.mrf.mxu0
        %v1065 = vadd.f32 %v836, %v1064
        %v1066 = vpop.f32.mrf.mxu0
        %v1067 = vadd.f32 %v838, %v1066
        %1068 = vmatmul.bf16.gmra.mxu0 %v1011
        %v1069 = vpop.f32.mrf.mxu0
        %v1070 = vadd.f32 %v841, %v1069
        %v1071 = vpop.f32.mrf.mxu0
        %v1072 = vadd.f32 %v843, %v1071
        %1073 = vmatmul.bf16.gmra.mxu0 %v1014
        %v1074 = vpop.f32.mrf.mxu0
        %v1075 = vadd.f32 %v846, %v1074
        %v1076 = vpop.f32.mrf.mxu0
        %v1077 = vadd.f32 %v848, %v1076
        %1078 = vmatmul.bf16.gmra.mxu0 %v1017
        %v1079 = vpop.f32.mrf.mxu0
        %v1080 = vadd.f32 %v851, %v1079
        %v1081 = vpop.f32.mrf.mxu0
        %v1082 = vadd.f32 %v853, %v1081
        %1083 = vmatmul.bf16.gmra.mxu0 %v1020
        %v1084 = vpop.f32.mrf.mxu0
        %v1085 = vadd.f32 %v856, %v1084
        %v1086 = vpop.f32.mrf.mxu0
        %v1087 = vadd.f32 %v858, %v1086
        %1088 = vmatmul.bf16.gmra.mxu0 %v1023
        %v1089 = vpop.f32.mrf.mxu0
        %v1090 = vadd.f32 %v861, %v1089
        %v1091 = vpop.f32.mrf.mxu0
        %v1092 = vadd.f32 %v863, %v1091
        %1093 = vmatmul.bf16.gmra.mxu0 %v1026
        %v1094 = vpop.f32.mrf.mxu0
        %v1095 = vadd.f32 %v866, %v1094
        %v1096 = vpop.f32.mrf.mxu0
        %v1097 = vadd.f32 %v868, %v1096
        %1098 = vmatmul.bf16.gmra.mxu0 %v1029
        %v1099 = vpop.f32.mrf.mxu0
        %v1100 = vadd.f32 %v871, %v1099
        %v1101 = vpop.f32.mrf.mxu0
        %v1102 = vadd.f32 %v873, %v1101
        %1103 = vmatmul.bf16.gmra.mxu0 %v1032
        %v1104 = vpop.f32.mrf.mxu0
        %v1105 = vadd.f32 %v876, %v1104
        %v1106 = vpop.f32.mrf.mxu0
        %v1107 = vadd.f32 %v878, %v1106
        %1108 = vmatmul.bf16.gmra.mxu0 %v1035
        %v1109 = vpop.f32.mrf.mxu0
        %v1110 = vadd.f32 %v881, %v1109
        %v1111 = vpop.f32.mrf.mxu0
        %v1112 = vadd.f32 %v883, %v1111
        %1113 = vmatmul.bf16.gmra.mxu0 %v1038
        %v1114 = vpop.f32.mrf.mxu0
        %v1115 = vadd.f32 %v886, %v1114
        %v1116 = vpop.f32.mrf.mxu0
        %v1117 = vadd.f32 %v888, %v1116
        %1118 = vmatmul.bf16.gmra.mxu0 %v1041
        %v1119 = vpop.f32.mrf.mxu0
        %v1120 = vadd.f32 %v891, %v1119
        %v1121 = vpop.f32.mrf.mxu0
        %v1122 = vadd.f32 %v893, %v1121
        %1123 = vmatmul.bf16.gmra.mxu0 %v1044
        %v1124 = vpop.f32.mrf.mxu0
        %v1125 = vadd.f32 %v896, %v1124
        %v1126 = vpop.f32.mrf.mxu0
        %v1127 = vadd.f32 %v898, %v1126
        %1128 = vmatmul.bf16.gmra.mxu0 %v1047
        %v1129 = vpop.f32.mrf.mxu0
        %v1130 = vadd.f32 %v901, %v1129
        %v1131 = vpop.f32.mrf.mxu0
        %v1132 = vadd.f32 %v903, %v1131
        %1133 = vmatmul.bf16.gmra.mxu0 %v1050
        %v1134 = vpop.f32.mrf.mxu0
        %v1135 = vadd.f32 %v906, %v1134
        %v1136 = vpop.f32.mrf.mxu0
        %v1137 = vadd.f32 %v908, %v1136
        %1138 = vmatmul.bf16.gmra.mxu0 %v1053
        %v1139 = vpop.f32.mrf.mxu0
        %v1140 = vadd.f32 %v911, %v1139
        %v1141 = vpop.f32.mrf.mxu0
        %v1142 = vadd.f32 %v913, %v1141
        %1143 = vdwg.mxu0
        %v1144 = vld [vmem:[%s256] sm:$0xe]
        %v1145 = vld [vmem:[%s256 + $0xc] sm:$0xe]
        %v1146 = vld [vmem:[%s256 + $0x18] sm:$0xe]
        %v1147 = vld [vmem:[%s256 + $0x24] sm:$0xe]
        %v1148 = vld [vmem:[%s256 + $0x30] sm:$0xe]
        %v1149 = vld [vmem:[%s256 + $0x3c] sm:$0xe]
        %v1150 = vld [vmem:[%s256 + $0x48] sm:$0xe]
        %v1151 = vld [vmem:[%s256 + $0x54] sm:$0xe]
        %v1152 = vld [vmem:[%s256 + $0x60] sm:$0xe]
        %v1153 = vld [vmem:[%s256 + $0x6c] sm:$0xe]
        %v1154 = vld [vmem:[%s256 + $0x78] sm:$0xe]
        %v1155 = vld [vmem:[%s256 + $0x84] sm:$0xe]
        %v1156 = vld [vmem:[%s256 + $0x90] sm:$0xe]
        %v1157 = vld [vmem:[%s256 + $0x9c] sm:$0xe]
        %v1158 = vld [vmem:[%s256 + $0xa8] sm:$0xe]
        %v1159 = vld [vmem:[%s256 + $0xb4] sm:$0xe]
        %vm1192 = vcmask 1042432
        %vm1193 = vcmask 1046532
        %vm1194 = vmor %vm1192, %vm1193
        %v1195 = vrot.slane %v1144, 5
        %v1196 = vrot.slane %v1195, 4
        %v1197 = vrot.slane %v274, 5
        %v1198 = vsel %vm1194, %v1196, %v1197
        %v1199 = vrot.slane %v1197, 4
        %v1200 = vrot.slane %v309, 5
        %v1201 = vsel %vm1194, %v1199, %v1200
        %v1202 = vrot.slane %v1145, 5
        %v1203 = vrot.slane %v1202, 4
        %v1204 = vrot.slane %v276, 5
        %v1205 = vsel %vm1194, %v1203, %v1204
        %v1206 = vrot.slane %v1204, 4
        %v1207 = vrot.slane %v310, 5
        %v1208 = vsel %vm1194, %v1206, %v1207
        %v1209 = vrot.slane %v1146, 5
        %v1210 = vrot.slane %v1209, 4
        %v1211 = vrot.slane %v278, 5
        %v1212 = vsel %vm1194, %v1210, %v1211
        %v1213 = vrot.slane %v1211, 4
        %v1214 = vrot.slane %v311, 5
        %v1215 = vsel %vm1194, %v1213, %v1214
        %v1216 = vrot.slane %v1147, 5
        %v1217 = vrot.slane %v1216, 4
        %v1218 = vrot.slane %v280, 5
        %v1219 = vsel %vm1194, %v1217, %v1218
        %v1220 = vrot.slane %v1218, 4
        %v1221 = vrot.slane %v312, 5
        %v1222 = vsel %vm1194, %v1220, %v1221
        %v1223 = vrot.slane %v1148, 5
        %v1224 = vrot.slane %v1223, 4
        %v1225 = vrot.slane %v282, 5
        %v1226 = vsel %vm1194, %v1224, %v1225
        %v1227 = vrot.slane %v1225, 4
        %v1228 = vrot.slane %v313, 5
        %v1229 = vsel %vm1194, %v1227, %v1228
        %v1230 = vrot.slane %v1149, 5
        %v1231 = vrot.slane %v1230, 4
        %v1232 = vrot.slane %v284, 5
        %v1233 = vsel %vm1194, %v1231, %v1232
        %v1234 = vrot.slane %v1232, 4
        %v1235 = vrot.slane %v314, 5
        %v1236 = vsel %vm1194, %v1234, %v1235
        %v1237 = vrot.slane %v1150, 5
        %v1238 = vrot.slane %v1237, 4
        %v1239 = vrot.slane %v286, 5
        %v1240 = vsel %vm1194, %v1238, %v1239
        %v1241 = vrot.slane %v1239, 4
        %v1242 = vrot.slane %v315, 5
        %v1243 = vsel %vm1194, %v1241, %v1242
        %v1244 = vrot.slane %v1151, 5
        %v1245 = vrot.slane %v1244, 4
        %v1246 = vrot.slane %v288, 5
        %v1247 = vsel %vm1194, %v1245, %v1246
        %v1248 = vrot.slane %v1246, 4
        %v1249 = vrot.slane %v316, 5
        %v1250 = vsel %vm1194, %v1248, %v1249
        %v1251 = vrot.slane %v1152, 5
        %v1252 = vrot.slane %v1251, 4
        %v1253 = vrot.slane %v290, 5
        %v1254 = vsel %vm1194, %v1252, %v1253
        %v1255 = vrot.slane %v1253, 4
        %v1256 = vrot.slane %v317, 5
        %v1257 = vsel %vm1194, %v1255, %v1256
        %v1258 = vrot.slane %v1153, 5
        %v1259 = vrot.slane %v1258, 4
        %v1260 = vrot.slane %v292, 5
        %v1261 = vsel %vm1194, %v1259, %v1260
        %v1262 = vrot.slane %v1260, 4
        %v1263 = vrot.slane %v318, 5
        %v1264 = vsel %vm1194, %v1262, %v1263
        %v1265 = vrot.slane %v1154, 5
        %v1266 = vrot.slane %v1265, 4
        %v1267 = vrot.slane %v294, 5
        %v1268 = vsel %vm1194, %v1266, %v1267
        %v1269 = vrot.slane %v1267, 4
        %v1270 = vrot.slane %v319, 5
        %v1271 = vsel %vm1194, %v1269, %v1270
        %v1272 = vrot.slane %v1155, 5
        %v1273 = vrot.slane %v1272, 4
        %v1274 = vrot.slane %v296, 5
        %v1275 = vsel %vm1194, %v1273, %v1274
        %v1276 = vrot.slane %v1274, 4
        %v1277 = vrot.slane %v320, 5
        %v1278 = vsel %vm1194, %v1276, %v1277
        %v1279 = vrot.slane %v1156, 5
        %v1280 = vrot.slane %v1279, 4
        %v1281 = vrot.slane %v298, 5
        %v1282 = vsel %vm1194, %v1280, %v1281
        %v1283 = vrot.slane %v1281, 4
        %v1284 = vrot.slane %v321, 5
        %v1285 = vsel %vm1194, %v1283, %v1284
        %v1286 = vrot.slane %v1157, 5
        %v1287 = vrot.slane %v1286, 4
        %v1288 = vrot.slane %v300, 5
        %v1289 = vsel %vm1194, %v1287, %v1288
        %v1290 = vrot.slane %v1288, 4
        %v1291 = vrot.slane %v322, 5
        %v1292 = vsel %vm1194, %v1290, %v1291
        %v1293 = vrot.slane %v1158, 5
        %v1294 = vrot.slane %v1293, 4
        %v1295 = vrot.slane %v302, 5
        %v1296 = vsel %vm1194, %v1294, %v1295
        %v1297 = vrot.slane %v1295, 4
        %v1298 = vrot.slane %v323, 5
        %v1299 = vsel %vm1194, %v1297, %v1298
        %v1300 = vrot.slane %v1159, 5
        %v1301 = vrot.slane %v1300, 4
        %v1302 = vrot.slane %v304, 5
        %v1303 = vsel %vm1194, %v1301, %v1302
        %v1304 = vrot.slane %v1302, 4
        %v1305 = vrot.slane %v324, 5
        %v1306 = vsel %vm1194, %v1304, %v1305
        %s1307 = scalar_lea.vmem %s260, 32
        %v1308 = vld [vmem:[%s1307] sm:$0xf]
        %v1309 = vld [vmem:[%s1307 + $0x4] sm:$0xf]
        %v1310 = vld [vmem:[%s1307 + $0x8] sm:$0xf]
        %v1311 = vld [vmem:[%s1307 + $0xc] sm:$0xf]
        %v1312 = vunpack.c.l.b16 %v1198
        %v1313 = vunpack.c.l.b16 %v1201
        %v1314 = vunpack.c.l.b16 %v1205
        %v1315 = vunpack.c.l.b16 %v1208
        %v1316 = vunpack.c.l.b16 %v1212
        %v1317 = vunpack.c.l.b16 %v1215
        %v1318 = vunpack.c.l.b16 %v1219
        %v1319 = vunpack.c.l.b16 %v1222
        %v1320 = vunpack.c.l.b16 %v1226
        %v1321 = vunpack.c.l.b16 %v1229
        %v1322 = vunpack.c.l.b16 %v1233
        %v1323 = vunpack.c.l.b16 %v1236
        %v1324 = vunpack.c.l.b16 %v1240
        %v1325 = vunpack.c.l.b16 %v1243
        %v1326 = vunpack.c.l.b16 %v1247
        %v1327 = vunpack.c.l.b16 %v1250
        %v1328 = vunpack.c.l.b16 %v1254
        %v1329 = vunpack.c.l.b16 %v1257
        %v1330 = vunpack.c.l.b16 %v1261
        %v1331 = vunpack.c.l.b16 %v1264
        %v1332 = vunpack.c.l.b16 %v1268
        %v1333 = vunpack.c.l.b16 %v1271
        %v1334 = vunpack.c.l.b16 %v1275
        %v1335 = vunpack.c.l.b16 %v1278
        %v1336 = vunpack.c.l.b16 %v1282
        %v1337 = vunpack.c.l.b16 %v1285
        %v1338 = vunpack.c.l.b16 %v1289
        %v1339 = vunpack.c.l.b16 %v1292
        %v1340 = vunpack.c.l.b16 %v1296
        %v1341 = vunpack.c.l.b16 %v1299
        %v1342 = vunpack.c.l.b16 %v1303
        %v1343 = vunpack.c.l.b16 %v1306
        %v1344 = vpack.c.b16 %v1313, %v1312
        %v1345 = vpack.c.b16 %v1315, %v1314
        %v1346 = vpack.c.b16 %v1317, %v1316
        %v1347 = vpack.c.b16 %v1319, %v1318
        %v1348 = vpack.c.b16 %v1321, %v1320
        %v1349 = vpack.c.b16 %v1323, %v1322
        %v1350 = vpack.c.b16 %v1325, %v1324
        %v1351 = vpack.c.b16 %v1327, %v1326
        %v1352 = vpack.c.b16 %v1329, %v1328
        %v1353 = vpack.c.b16 %v1331, %v1330
        %v1354 = vpack.c.b16 %v1333, %v1332
        %v1355 = vpack.c.b16 %v1335, %v1334
        %v1356 = vpack.c.b16 %v1337, %v1336
        %v1357 = vpack.c.b16 %v1339, %v1338
        %v1358 = vpack.c.b16 %v1341, %v1340
        %v1359 = vpack.c.b16 %v1343, %v1342
        %v1364 = vunpack.c.l.b16 %v1308
        %v1365 = vunpack.c.l.b16 %v1309
        %v1366 = vunpack.c.l.b16 %v1310
        %v1367 = vunpack.c.l.b16 %v1311
        %v1368 = vpack.c.b16 %v1365, %v1364
        %v1369 = vpack.c.b16 %v1367, %v1366
        %v1373 = vsel %vm777, %v1344, 0
        %v1376 = vsel %vm777, %v1345, 0
        %v1379 = vsel %vm777, %v1346, 0
        %v1382 = vsel %vm777, %v1347, 0
        %v1385 = vsel %vm777, %v1348, 0
        %v1388 = vsel %vm777, %v1349, 0
        %v1391 = vsel %vm777, %v1350, 0
        %v1394 = vsel %vm777, %v1351, 0
        %v1397 = vsel %vm777, %v1352, 0
        %v1400 = vsel %vm777, %v1353, 0
        %v1403 = vsel %vm777, %v1354, 0
        %v1406 = vsel %vm777, %v1355, 0
        %v1409 = vsel %vm777, %v1356, 0
        %v1412 = vsel %vm777, %v1357, 0
        %v1415 = vsel %vm777, %v1358, 0
        %v1418 = vsel %vm777, %v1359, 0
        %1420 = vmatpush.bf16.msra.mxu0 0
        %1421 = vmatpush.bf16.msra.mxu0 0
        %1422 = vmatpush.bf16.msra.mxu0 0
        %1423 = vmatpush.bf16.msra.mxu0 0
        %1424 = vmatpush.bf16.msra.mxu0 0
        %1425 = vmatpush.bf16.msra.mxu0 0
        %1426 = vmatpush.bf16.msra.mxu0 %v1369
        %1427 = vmatpush.bf16.msra.mxu0 %v1368
        %1428 = vmatmul.bf16.gmra.mxu0 %v1373
        %v1429 = vpop.f32.mrf.mxu0
        %v1430 = vadd.f32 0.0, %v1429
        %v1431 = vpop.f32.mrf.mxu0
        %v1432 = vadd.f32 0.0, %v1431
        %1433 = vmatmul.bf16.gmra.mxu0 %v1376
        %v1434 = vpop.f32.mrf.mxu0
        %v1435 = vadd.f32 0.0, %v1434
        %v1436 = vpop.f32.mrf.mxu0
        %v1437 = vadd.f32 0.0, %v1436
        %1438 = vmatmul.bf16.gmra.mxu0 %v1379
        %v1439 = vpop.f32.mrf.mxu0
        %v1440 = vadd.f32 0.0, %v1439
        %v1441 = vpop.f32.mrf.mxu0
        %v1442 = vadd.f32 0.0, %v1441
        %1443 = vmatmul.bf16.gmra.mxu0 %v1382
        %v1444 = vpop.f32.mrf.mxu0
        %v1445 = vadd.f32 0.0, %v1444
        %v1446 = vpop.f32.mrf.mxu0
        %v1447 = vadd.f32 0.0, %v1446
        %1448 = vmatmul.bf16.gmra.mxu0 %v1385
        %v1449 = vpop.f32.mrf.mxu0
        %v1450 = vadd.f32 0.0, %v1449
        %v1451 = vpop.f32.mrf.mxu0
        %v1452 = vadd.f32 0.0, %v1451
        %1453 = vmatmul.bf16.gmra.mxu0 %v1388
        %v1454 = vpop.f32.mrf.mxu0
        %v1455 = vadd.f32 0.0, %v1454
        %v1456 = vpop.f32.mrf.mxu0
        %v1457 = vadd.f32 0.0, %v1456
        %1458 = vmatmul.bf16.gmra.mxu0 %v1391
        %v1459 = vpop.f32.mrf.mxu0
        %v1460 = vadd.f32 0.0, %v1459
        %v1461 = vpop.f32.mrf.mxu0
        %v1462 = vadd.f32 0.0, %v1461
        %1463 = vmatmul.bf16.gmra.mxu0 %v1394
        %v1464 = vpop.f32.mrf.mxu0
        %v1465 = vadd.f32 0.0, %v1464
        %v1466 = vpop.f32.mrf.mxu0
        %v1467 = vadd.f32 0.0, %v1466
        %1468 = vmatmul.bf16.gmra.mxu0 %v1397
        %v1469 = vpop.f32.mrf.mxu0
        %v1470 = vadd.f32 0.0, %v1469
        %v1471 = vpop.f32.mrf.mxu0
        %v1472 = vadd.f32 0.0, %v1471
        %1473 = vmatmul.bf16.gmra.mxu0 %v1400
        %v1474 = vpop.f32.mrf.mxu0
        %v1475 = vadd.f32 0.0, %v1474
        %v1476 = vpop.f32.mrf.mxu0
        %v1477 = vadd.f32 0.0, %v1476
        %1478 = vmatmul.bf16.gmra.mxu0 %v1403
        %v1479 = vpop.f32.mrf.mxu0
        %v1480 = vadd.f32 0.0, %v1479
        %v1481 = vpop.f32.mrf.mxu0
        %v1482 = vadd.f32 0.0, %v1481
        %1483 = vmatmul.bf16.gmra.mxu0 %v1406
        %v1484 = vpop.f32.mrf.mxu0
        %v1485 = vadd.f32 0.0, %v1484
        %v1486 = vpop.f32.mrf.mxu0
        %v1487 = vadd.f32 0.0, %v1486
        %1488 = vmatmul.bf16.gmra.mxu0 %v1409
        %v1489 = vpop.f32.mrf.mxu0
        %v1490 = vadd.f32 0.0, %v1489
        %v1491 = vpop.f32.mrf.mxu0
        %v1492 = vadd.f32 0.0, %v1491
        %1493 = vmatmul.bf16.gmra.mxu0 %v1412
        %v1494 = vpop.f32.mrf.mxu0
        %v1495 = vadd.f32 0.0, %v1494
        %v1496 = vpop.f32.mrf.mxu0
        %v1497 = vadd.f32 0.0, %v1496
        %1498 = vmatmul.bf16.gmra.mxu0 %v1415
        %v1499 = vpop.f32.mrf.mxu0
        %v1500 = vadd.f32 0.0, %v1499
        %v1501 = vpop.f32.mrf.mxu0
        %v1502 = vadd.f32 0.0, %v1501
        %1503 = vmatmul.bf16.gmra.mxu0 %v1418
        %v1504 = vpop.f32.mrf.mxu0
        %v1505 = vadd.f32 0.0, %v1504
        %v1506 = vpop.f32.mrf.mxu0
        %v1507 = vadd.f32 0.0, %v1506
        %1508 = vdwg.mxu0
        %v1509 = vadd.f32 %v1065, %v1430
        %v1510 = vadd.f32 %v1067, %v1432
        %v1511 = vadd.f32 %v1070, %v1435
        %v1512 = vadd.f32 %v1072, %v1437
        %v1513 = vadd.f32 %v1075, %v1440
        %v1514 = vadd.f32 %v1077, %v1442
        %v1515 = vadd.f32 %v1080, %v1445
        %v1516 = vadd.f32 %v1082, %v1447
        %v1517 = vadd.f32 %v1085, %v1450
        %v1518 = vadd.f32 %v1087, %v1452
        %v1519 = vadd.f32 %v1090, %v1455
        %v1520 = vadd.f32 %v1092, %v1457
        %v1521 = vadd.f32 %v1095, %v1460
        %v1522 = vadd.f32 %v1097, %v1462
        %v1523 = vadd.f32 %v1100, %v1465
        %v1524 = vadd.f32 %v1102, %v1467
        %v1525 = vadd.f32 %v1105, %v1470
        %v1526 = vadd.f32 %v1107, %v1472
        %v1527 = vadd.f32 %v1110, %v1475
        %v1528 = vadd.f32 %v1112, %v1477
        %v1529 = vadd.f32 %v1115, %v1480
        %v1530 = vadd.f32 %v1117, %v1482
        %v1531 = vadd.f32 %v1120, %v1485
        %v1532 = vadd.f32 %v1122, %v1487
        %v1533 = vadd.f32 %v1125, %v1490
        %v1534 = vadd.f32 %v1127, %v1492
        %v1535 = vadd.f32 %v1130, %v1495
        %v1536 = vadd.f32 %v1132, %v1497
        %v1537 = vadd.f32 %v1135, %v1500
        %v1538 = vadd.f32 %v1137, %v1502
        %v1539 = vadd.f32 %v1140, %v1505
        %v1540 = vadd.f32 %v1142, %v1507
        %s1541 = scalar_lea.vmem %s256, 12
        %v1542 = vld [vmem:[%s1541] sm:$0xf]
        %v1543 = vld [vmem:[%s1541 + $0x4] sm:$0xf]
        %v1544 = vld [vmem:[%s1541 + $0xc] sm:$0xf]
        %v1545 = vld [vmem:[%s1541 + $0x10] sm:$0xf]
        %v1546 = vld [vmem:[%s1541 + $0x18] sm:$0xf]
        %v1547 = vld [vmem:[%s1541 + $0x1c] sm:$0xf]
        %v1548 = vld [vmem:[%s1541 + $0x24] sm:$0xf]
        %v1549 = vld [vmem:[%s1541 + $0x28] sm:$0xf]
        %v1550 = vld [vmem:[%s1541 + $0x30] sm:$0xf]
        %v1551 = vld [vmem:[%s1541 + $0x34] sm:$0xf]
        %v1552 = vld [vmem:[%s1541 + $0x3c] sm:$0xf]
        %v1553 = vld [vmem:[%s1541 + $0x40] sm:$0xf]
        %v1554 = vld [vmem:[%s1541 + $0x48] sm:$0xf]
        %v1555 = vld [vmem:[%s1541 + $0x4c] sm:$0xf]
        %v1556 = vld [vmem:[%s1541 + $0x54] sm:$0xf]
        %v1557 = vld [vmem:[%s1541 + $0x58] sm:$0xf]
        %v1558 = vld [vmem:[%s1541 + $0x60] sm:$0xf]
        %v1559 = vld [vmem:[%s1541 + $0x64] sm:$0xf]
        %v1560 = vld [vmem:[%s1541 + $0x6c] sm:$0xf]
        %v1561 = vld [vmem:[%s1541 + $0x70] sm:$0xf]
        %v1562 = vld [vmem:[%s1541 + $0x78] sm:$0xf]
        %v1563 = vld [vmem:[%s1541 + $0x7c] sm:$0xf]
        %v1564 = vld [vmem:[%s1541 + $0x84] sm:$0xf]
        %v1565 = vld [vmem:[%s1541 + $0x88] sm:$0xf]
        %v1566 = vld [vmem:[%s1541 + $0x90] sm:$0xf]
        %v1567 = vld [vmem:[%s1541 + $0x94] sm:$0xf]
        %v1568 = vld [vmem:[%s1541 + $0x9c] sm:$0xf]
        %v1569 = vld [vmem:[%s1541 + $0xa0] sm:$0xf]
        %v1570 = vld [vmem:[%s1541 + $0xa8] sm:$0xf]
        %v1571 = vld [vmem:[%s1541 + $0xac] sm:$0xf]
        %v1572 = vld [vmem:[%s1541 + $0xb4] sm:$0xf]
        %v1573 = vld [vmem:[%s1541 + $0xb8] sm:$0xf]
        %s1574 = scalar_lea.vmem %s260, 48
        %v1575 = vld [vmem:[%s1574] sm:$0xf]
        %v1576 = vld [vmem:[%s1574 + $0x4] sm:$0xf]
        %v1577 = vld [vmem:[%s1574 + $0x8] sm:$0xf]
        %v1578 = vld [vmem:[%s1574 + $0xc] sm:$0xf]
        %v1611 = vunpack.c.l.b16 %v1542
        %v1612 = vunpack.c.l.b16 %v1543
        %v1613 = vunpack.c.l.b16 %v1544
        %v1614 = vunpack.c.l.b16 %v1545
        %v1615 = vunpack.c.l.b16 %v1546
        %v1616 = vunpack.c.l.b16 %v1547
        %v1617 = vunpack.c.l.b16 %v1548
        %v1618 = vunpack.c.l.b16 %v1549
        %v1619 = vunpack.c.l.b16 %v1550
        %v1620 = vunpack.c.l.b16 %v1551
        %v1621 = vunpack.c.l.b16 %v1552
        %v1622 = vunpack.c.l.b16 %v1553
        %v1623 = vunpack.c.l.b16 %v1554
        %v1624 = vunpack.c.l.b16 %v1555
        %v1625 = vunpack.c.l.b16 %v1556
        %v1626 = vunpack.c.l.b16 %v1557
        %v1627 = vunpack.c.l.b16 %v1558
        %v1628 = vunpack.c.l.b16 %v1559
        %v1629 = vunpack.c.l.b16 %v1560
        %v1630 = vunpack.c.l.b16 %v1561
        %v1631 = vunpack.c.l.b16 %v1562
        %v1632 = vunpack.c.l.b16 %v1563
        %v1633 = vunpack.c.l.b16 %v1564
        %v1634 = vunpack.c.l.b16 %v1565
        %v1635 = vunpack.c.l.b16 %v1566
        %v1636 = vunpack.c.l.b16 %v1567
        %v1637 = vunpack.c.l.b16 %v1568
        %v1638 = vunpack.c.l.b16 %v1569
        %v1639 = vunpack.c.l.b16 %v1570
        %v1640 = vunpack.c.l.b16 %v1571
        %v1641 = vunpack.c.l.b16 %v1572
        %v1642 = vunpack.c.l.b16 %v1573
        %v1643 = vpack.c.b16 %v1612, %v1611
        %v1644 = vpack.c.b16 %v1614, %v1613
        %v1645 = vpack.c.b16 %v1616, %v1615
        %v1646 = vpack.c.b16 %v1618, %v1617
        %v1647 = vpack.c.b16 %v1620, %v1619
        %v1648 = vpack.c.b16 %v1622, %v1621
        %v1649 = vpack.c.b16 %v1624, %v1623
        %v1650 = vpack.c.b16 %v1626, %v1625
        %v1651 = vpack.c.b16 %v1628, %v1627
        %v1652 = vpack.c.b16 %v1630, %v1629
        %v1653 = vpack.c.b16 %v1632, %v1631
        %v1654 = vpack.c.b16 %v1634, %v1633
        %v1655 = vpack.c.b16 %v1636, %v1635
        %v1656 = vpack.c.b16 %v1638, %v1637
        %v1657 = vpack.c.b16 %v1640, %v1639
        %v1658 = vpack.c.b16 %v1642, %v1641
        %v1663 = vunpack.c.l.b16 %v1575
        %v1664 = vunpack.c.l.b16 %v1576
        %v1665 = vunpack.c.l.b16 %v1577
        %v1666 = vunpack.c.l.b16 %v1578
        %v1667 = vpack.c.b16 %v1664, %v1663
        %v1668 = vpack.c.b16 %v1666, %v1665
        %v1672 = vsel %vm777, %v1643, 0
        %v1675 = vsel %vm777, %v1644, 0
        %v1678 = vsel %vm777, %v1645, 0
        %v1681 = vsel %vm777, %v1646, 0
        %v1684 = vsel %vm777, %v1647, 0
        %v1687 = vsel %vm777, %v1648, 0
        %v1690 = vsel %vm777, %v1649, 0
        %v1693 = vsel %vm777, %v1650, 0
        %v1696 = vsel %vm777, %v1651, 0
        %v1699 = vsel %vm777, %v1652, 0
        %v1702 = vsel %vm777, %v1653, 0
        %v1705 = vsel %vm777, %v1654, 0
        %v1708 = vsel %vm777, %v1655, 0
        %v1711 = vsel %vm777, %v1656, 0
        %v1714 = vsel %vm777, %v1657, 0
        %v1717 = vsel %vm777, %v1658, 0
        %1719 = vmatpush.bf16.msra.mxu0 0
        %1720 = vmatpush.bf16.msra.mxu0 0
        %1721 = vmatpush.bf16.msra.mxu0 0
        %1722 = vmatpush.bf16.msra.mxu0 0
        %1723 = vmatpush.bf16.msra.mxu0 0
        %1724 = vmatpush.bf16.msra.mxu0 0
        %1725 = vmatpush.bf16.msra.mxu0 %v1668
        %1726 = vmatpush.bf16.msra.mxu0 %v1667
        %1727 = vmatmul.bf16.gmra.mxu0 %v1672
        %v1728 = vpop.f32.mrf.mxu0
        %v1729 = vadd.f32 0.0, %v1728
        %v1730 = vpop.f32.mrf.mxu0
        %v1731 = vadd.f32 0.0, %v1730
        %1732 = vmatmul.bf16.gmra.mxu0 %v1675
        %v1733 = vpop.f32.mrf.mxu0
        %v1734 = vadd.f32 0.0, %v1733
        %v1735 = vpop.f32.mrf.mxu0
        %v1736 = vadd.f32 0.0, %v1735
        %1737 = vmatmul.bf16.gmra.mxu0 %v1678
        %v1738 = vpop.f32.mrf.mxu0
        %v1739 = vadd.f32 0.0, %v1738
        %v1740 = vpop.f32.mrf.mxu0
        %v1741 = vadd.f32 0.0, %v1740
        %1742 = vmatmul.bf16.gmra.mxu0 %v1681
        %v1743 = vpop.f32.mrf.mxu0
        %v1744 = vadd.f32 0.0, %v1743
        %v1745 = vpop.f32.mrf.mxu0
        %v1746 = vadd.f32 0.0, %v1745
        %1747 = vmatmul.bf16.gmra.mxu0 %v1684
        %v1748 = vpop.f32.mrf.mxu0
        %v1749 = vadd.f32 0.0, %v1748
        %v1750 = vpop.f32.mrf.mxu0
        %v1751 = vadd.f32 0.0, %v1750
        %1752 = vmatmul.bf16.gmra.mxu0 %v1687
        %v1753 = vpop.f32.mrf.mxu0
        %v1754 = vadd.f32 0.0, %v1753
        %v1755 = vpop.f32.mrf.mxu0
        %v1756 = vadd.f32 0.0, %v1755
        %1757 = vmatmul.bf16.gmra.mxu0 %v1690
        %v1758 = vpop.f32.mrf.mxu0
        %v1759 = vadd.f32 0.0, %v1758
        %v1760 = vpop.f32.mrf.mxu0
        %v1761 = vadd.f32 0.0, %v1760
        %1762 = vmatmul.bf16.gmra.mxu0 %v1693
        %v1763 = vpop.f32.mrf.mxu0
        %v1764 = vadd.f32 0.0, %v1763
        %v1765 = vpop.f32.mrf.mxu0
        %v1766 = vadd.f32 0.0, %v1765
        %1767 = vmatmul.bf16.gmra.mxu0 %v1696
        %v1768 = vpop.f32.mrf.mxu0
        %v1769 = vadd.f32 0.0, %v1768
        %v1770 = vpop.f32.mrf.mxu0
        %v1771 = vadd.f32 0.0, %v1770
        %1772 = vmatmul.bf16.gmra.mxu0 %v1699
        %v1773 = vpop.f32.mrf.mxu0
        %v1774 = vadd.f32 0.0, %v1773
        %v1775 = vpop.f32.mrf.mxu0
        %v1776 = vadd.f32 0.0, %v1775
        %1777 = vmatmul.bf16.gmra.mxu0 %v1702
        %v1778 = vpop.f32.mrf.mxu0
        %v1779 = vadd.f32 0.0, %v1778
        %v1780 = vpop.f32.mrf.mxu0
        %v1781 = vadd.f32 0.0, %v1780
        %1782 = vmatmul.bf16.gmra.mxu0 %v1705
        %v1783 = vpop.f32.mrf.mxu0
        %v1784 = vadd.f32 0.0, %v1783
        %v1785 = vpop.f32.mrf.mxu0
        %v1786 = vadd.f32 0.0, %v1785
        %1787 = vmatmul.bf16.gmra.mxu0 %v1708
        %v1788 = vpop.f32.mrf.mxu0
        %v1789 = vadd.f32 0.0, %v1788
        %v1790 = vpop.f32.mrf.mxu0
        %v1791 = vadd.f32 0.0, %v1790
        %1792 = vmatmul.bf16.gmra.mxu0 %v1711
        %v1793 = vpop.f32.mrf.mxu0
        %v1794 = vadd.f32 0.0, %v1793
        %v1795 = vpop.f32.mrf.mxu0
        %v1796 = vadd.f32 0.0, %v1795
        %1797 = vmatmul.bf16.gmra.mxu0 %v1714
        %v1798 = vpop.f32.mrf.mxu0
        %v1799 = vadd.f32 0.0, %v1798
        %v1800 = vpop.f32.mrf.mxu0
        %v1801 = vadd.f32 0.0, %v1800
        %1802 = vmatmul.bf16.gmra.mxu0 %v1717
        %v1803 = vpop.f32.mrf.mxu0
        %v1804 = vadd.f32 0.0, %v1803
        %v1805 = vpop.f32.mrf.mxu0
        %v1806 = vadd.f32 0.0, %v1805
        %1807 = vdwg.mxu0
        %v1808 = vadd.f32 %v1509, %v1729
        %v1809 = vadd.f32 %v1510, %v1731
        %v1810 = vadd.f32 %v1511, %v1734
        %v1811 = vadd.f32 %v1512, %v1736
        %v1812 = vadd.f32 %v1513, %v1739
        %v1813 = vadd.f32 %v1514, %v1741
        %v1814 = vadd.f32 %v1515, %v1744
        %v1815 = vadd.f32 %v1516, %v1746
        %v1816 = vadd.f32 %v1517, %v1749
        %v1817 = vadd.f32 %v1518, %v1751
        %v1818 = vadd.f32 %v1519, %v1754
        %v1819 = vadd.f32 %v1520, %v1756
        %v1820 = vadd.f32 %v1521, %v1759
        %v1821 = vadd.f32 %v1522, %v1761
        %v1822 = vadd.f32 %v1523, %v1764
        %v1823 = vadd.f32 %v1524, %v1766
        %v1824 = vadd.f32 %v1525, %v1769
        %v1825 = vadd.f32 %v1526, %v1771
        %v1826 = vadd.f32 %v1527, %v1774
        %v1827 = vadd.f32 %v1528, %v1776
        %v1828 = vadd.f32 %v1529, %v1779
        %v1829 = vadd.f32 %v1530, %v1781
        %v1830 = vadd.f32 %v1531, %v1784
        %v1831 = vadd.f32 %v1532, %v1786
        %v1832 = vadd.f32 %v1533, %v1789
        %v1833 = vadd.f32 %v1534, %v1791
        %v1834 = vadd.f32 %v1535, %v1794
        %v1835 = vadd.f32 %v1536, %v1796
        %v1836 = vadd.f32 %v1537, %v1799
        %v1837 = vadd.f32 %v1538, %v1801
        %v1838 = vadd.f32 %v1539, %v1804
        %v1839 = vadd.f32 %v1540, %v1806
        %v1840 = vld [vmem:[%s1541] sm:$0xf]
        %v1841 = vld [vmem:[%s1541 + $0x4] sm:$0xf]
        %v1842 = vld [vmem:[%s1541 + $0x8] sm:$0x1]
        %v1843 = vld [vmem:[%s1541 + $0xc] sm:$0xf]
        %v1844 = vld [vmem:[%s1541 + $0x10] sm:$0xf]
        %v1845 = vld [vmem:[%s1541 + $0x14] sm:$0x1]
        %v1846 = vld [vmem:[%s1541 + $0x18] sm:$0xf]
        %v1847 = vld [vmem:[%s1541 + $0x1c] sm:$0xf]
        %v1848 = vld [vmem:[%s1541 + $0x20] sm:$0x1]
        %v1849 = vld [vmem:[%s1541 + $0x24] sm:$0xf]
        %v1850 = vld [vmem:[%s1541 + $0x28] sm:$0xf]
        %v1851 = vld [vmem:[%s1541 + $0x2c] sm:$0x1]
        %v1852 = vld [vmem:[%s1541 + $0x30] sm:$0xf]
        %v1853 = vld [vmem:[%s1541 + $0x34] sm:$0xf]
        %v1854 = vld [vmem:[%s1541 + $0x38] sm:$0x1]
        %v1855 = vld [vmem:[%s1541 + $0x3c] sm:$0xf]
        %v1856 = vld [vmem:[%s1541 + $0x40] sm:$0xf]
        %v1857 = vld [vmem:[%s1541 + $0x44] sm:$0x1]
        %v1858 = vld [vmem:[%s1541 + $0x48] sm:$0xf]
        %v1859 = vld [vmem:[%s1541 + $0x4c] sm:$0xf]
        %v1860 = vld [vmem:[%s1541 + $0x50] sm:$0x1]
        %v1861 = vld [vmem:[%s1541 + $0x54] sm:$0xf]
        %v1862 = vld [vmem:[%s1541 + $0x58] sm:$0xf]
        %v1863 = vld [vmem:[%s1541 + $0x5c] sm:$0x1]
        %v1864 = vld [vmem:[%s1541 + $0x60] sm:$0xf]
        %v1865 = vld [vmem:[%s1541 + $0x64] sm:$0xf]
        %v1866 = vld [vmem:[%s1541 + $0x68] sm:$0x1]
        %v1867 = vld [vmem:[%s1541 + $0x6c] sm:$0xf]
        %v1868 = vld [vmem:[%s1541 + $0x70] sm:$0xf]
        %v1869 = vld [vmem:[%s1541 + $0x74] sm:$0x1]
        %v1870 = vld [vmem:[%s1541 + $0x78] sm:$0xf]
        %v1871 = vld [vmem:[%s1541 + $0x7c] sm:$0xf]
        %v1872 = vld [vmem:[%s1541 + $0x80] sm:$0x1]
        %v1873 = vld [vmem:[%s1541 + $0x84] sm:$0xf]
        %v1874 = vld [vmem:[%s1541 + $0x88] sm:$0xf]
        %v1875 = vld [vmem:[%s1541 + $0x8c] sm:$0x1]
        %v1876 = vld [vmem:[%s1541 + $0x90] sm:$0xf]
        %v1877 = vld [vmem:[%s1541 + $0x94] sm:$0xf]
        %v1878 = vld [vmem:[%s1541 + $0x98] sm:$0x1]
        %v1879 = vld [vmem:[%s1541 + $0x9c] sm:$0xf]
        %v1880 = vld [vmem:[%s1541 + $0xa0] sm:$0xf]
        %v1881 = vld [vmem:[%s1541 + $0xa4] sm:$0x1]
        %v1882 = vld [vmem:[%s1541 + $0xa8] sm:$0xf]
        %v1883 = vld [vmem:[%s1541 + $0xac] sm:$0xf]
        %v1884 = vld [vmem:[%s1541 + $0xb0] sm:$0x1]
        %v1885 = vld [vmem:[%s1541 + $0xb4] sm:$0xf]
        %v1886 = vld [vmem:[%s1541 + $0xb8] sm:$0xf]
        %v1887 = vld [vmem:[%s1541 + $0xbc] sm:$0x1]
        %v1889 = vshrl.u32 %v1840, 16
        %v1891 = vrot.slane %v1889, 4
        %v1892 = vshll.u32 %v1840, 16
        %v1894 = vrot.slane %v1892, 5
        %v1895 = vor.u32 %v1891, %v1894
        %v1896 = vrot.slane %v1895, 4
        %v1898 = vshll.u32 %v1841, 16
        %v1900 = vrot.slane %v1898, 5
        %v1901 = vsel %vm327, %v1896, %v1900
        %v1902 = vshrl.u32 %v1841, 16
        %v1904 = vrot.slane %v1902, 4
        %v1905 = vor.u32 %v1904, %v1900
        %v1906 = vrot.slane %v1905, 4
        %v1908 = vshll.u32 %v1842, 16
        %v1910 = vrot.slane %v1908, 5
        %v1911 = vsel %vm327, %v1906, %v1910
        %v1913 = vshrl.u32 %v1843, 16
        %v1915 = vrot.slane %v1913, 4
        %v1916 = vshll.u32 %v1843, 16
        %v1918 = vrot.slane %v1916, 5
        %v1919 = vor.u32 %v1915, %v1918
        %v1920 = vrot.slane %v1919, 4
        %v1922 = vshll.u32 %v1844, 16
        %v1924 = vrot.slane %v1922, 5
        %v1925 = vsel %vm327, %v1920, %v1924
        %v1926 = vshrl.u32 %v1844, 16
        %v1928 = vrot.slane %v1926, 4
        %v1929 = vor.u32 %v1928, %v1924
        %v1930 = vrot.slane %v1929, 4
        %v1932 = vshll.u32 %v1845, 16
        %v1934 = vrot.slane %v1932, 5
        %v1935 = vsel %vm327, %v1930, %v1934
        %v1937 = vshrl.u32 %v1846, 16
        %v1939 = vrot.slane %v1937, 4
        %v1940 = vshll.u32 %v1846, 16
        %v1942 = vrot.slane %v1940, 5
        %v1943 = vor.u32 %v1939, %v1942
        %v1944 = vrot.slane %v1943, 4
        %v1946 = vshll.u32 %v1847, 16
        %v1948 = vrot.slane %v1946, 5
        %v1949 = vsel %vm327, %v1944, %v1948
        %v1950 = vshrl.u32 %v1847, 16
        %v1952 = vrot.slane %v1950, 4
        %v1953 = vor.u32 %v1952, %v1948
        %v1954 = vrot.slane %v1953, 4
        %v1956 = vshll.u32 %v1848, 16
        %v1958 = vrot.slane %v1956, 5
        %v1959 = vsel %vm327, %v1954, %v1958
        %v1961 = vshrl.u32 %v1849, 16
        %v1963 = vrot.slane %v1961, 4
        %v1964 = vshll.u32 %v1849, 16
        %v1966 = vrot.slane %v1964, 5
        %v1967 = vor.u32 %v1963, %v1966
        %v1968 = vrot.slane %v1967, 4
        %v1970 = vshll.u32 %v1850, 16
        %v1972 = vrot.slane %v1970, 5
        %v1973 = vsel %vm327, %v1968, %v1972
        %v1974 = vshrl.u32 %v1850, 16
        %v1976 = vrot.slane %v1974, 4
        %v1977 = vor.u32 %v1976, %v1972
        %v1978 = vrot.slane %v1977, 4
        %v1980 = vshll.u32 %v1851, 16
        %v1982 = vrot.slane %v1980, 5
        %v1983 = vsel %vm327, %v1978, %v1982
        %v1985 = vshrl.u32 %v1852, 16
        %v1987 = vrot.slane %v1985, 4
        %v1988 = vshll.u32 %v1852, 16
        %v1990 = vrot.slane %v1988, 5
        %v1991 = vor.u32 %v1987, %v1990
        %v1992 = vrot.slane %v1991, 4
        %v1994 = vshll.u32 %v1853, 16
        %v1996 = vrot.slane %v1994, 5
        %v1997 = vsel %vm327, %v1992, %v1996
        %v1998 = vshrl.u32 %v1853, 16
        %v2000 = vrot.slane %v1998, 4
        %v2001 = vor.u32 %v2000, %v1996
        %v2002 = vrot.slane %v2001, 4
        %v2004 = vshll.u32 %v1854, 16
        %v2006 = vrot.slane %v2004, 5
        %v2007 = vsel %vm327, %v2002, %v2006
        %v2009 = vshrl.u32 %v1855, 16
        %v2011 = vrot.slane %v2009, 4
        %v2012 = vshll.u32 %v1855, 16
        %v2014 = vrot.slane %v2012, 5
        %v2015 = vor.u32 %v2011, %v2014
        %v2016 = vrot.slane %v2015, 4
        %v2018 = vshll.u32 %v1856, 16
        %v2020 = vrot.slane %v2018, 5
        %v2021 = vsel %vm327, %v2016, %v2020
        %v2022 = vshrl.u32 %v1856, 16
        %v2024 = vrot.slane %v2022, 4
        %v2025 = vor.u32 %v2024, %v2020
        %v2026 = vrot.slane %v2025, 4
        %v2028 = vshll.u32 %v1857, 16
        %v2030 = vrot.slane %v2028, 5
        %v2031 = vsel %vm327, %v2026, %v2030
        %v2033 = vshrl.u32 %v1858, 16
        %v2035 = vrot.slane %v2033, 4
        %v2036 = vshll.u32 %v1858, 16
        %v2038 = vrot.slane %v2036, 5
        %v2039 = vor.u32 %v2035, %v2038
        %v2040 = vrot.slane %v2039, 4
        %v2042 = vshll.u32 %v1859, 16
        %v2044 = vrot.slane %v2042, 5
        %v2045 = vsel %vm327, %v2040, %v2044
        %v2046 = vshrl.u32 %v1859, 16
        %v2048 = vrot.slane %v2046, 4
        %v2049 = vor.u32 %v2048, %v2044
        %v2050 = vrot.slane %v2049, 4
        %v2052 = vshll.u32 %v1860, 16
        %v2054 = vrot.slane %v2052, 5
        %v2055 = vsel %vm327, %v2050, %v2054
        %v2057 = vshrl.u32 %v1861, 16
        %v2059 = vrot.slane %v2057, 4
        %v2060 = vshll.u32 %v1861, 16
        %v2062 = vrot.slane %v2060, 5
        %v2063 = vor.u32 %v2059, %v2062
        %v2064 = vrot.slane %v2063, 4
        %v2066 = vshll.u32 %v1862, 16
        %v2068 = vrot.slane %v2066, 5
        %v2069 = vsel %vm327, %v2064, %v2068
        %v2070 = vshrl.u32 %v1862, 16
        %v2072 = vrot.slane %v2070, 4
        %v2073 = vor.u32 %v2072, %v2068
        %v2074 = vrot.slane %v2073, 4
        %v2076 = vshll.u32 %v1863, 16
        %v2078 = vrot.slane %v2076, 5
        %v2079 = vsel %vm327, %v2074, %v2078
        %v2081 = vshrl.u32 %v1864, 16
        %v2083 = vrot.slane %v2081, 4
        %v2084 = vshll.u32 %v1864, 16
        %v2086 = vrot.slane %v2084, 5
        %v2087 = vor.u32 %v2083, %v2086
        %v2088 = vrot.slane %v2087, 4
        %v2090 = vshll.u32 %v1865, 16
        %v2092 = vrot.slane %v2090, 5
        %v2093 = vsel %vm327, %v2088, %v2092
        %v2094 = vshrl.u32 %v1865, 16
        %v2096 = vrot.slane %v2094, 4
        %v2097 = vor.u32 %v2096, %v2092
        %v2098 = vrot.slane %v2097, 4
        %v2100 = vshll.u32 %v1866, 16
        %v2102 = vrot.slane %v2100, 5
        %v2103 = vsel %vm327, %v2098, %v2102
        %v2105 = vshrl.u32 %v1867, 16
        %v2107 = vrot.slane %v2105, 4
        %v2108 = vshll.u32 %v1867, 16
        %v2110 = vrot.slane %v2108, 5
        %v2111 = vor.u32 %v2107, %v2110
        %v2112 = vrot.slane %v2111, 4
        %v2114 = vshll.u32 %v1868, 16
        %v2116 = vrot.slane %v2114, 5
        %v2117 = vsel %vm327, %v2112, %v2116
        %v2118 = vshrl.u32 %v1868, 16
        %v2120 = vrot.slane %v2118, 4
        %v2121 = vor.u32 %v2120, %v2116
        %v2122 = vrot.slane %v2121, 4
        %v2124 = vshll.u32 %v1869, 16
        %v2126 = vrot.slane %v2124, 5
        %v2127 = vsel %vm327, %v2122, %v2126
        %v2129 = vshrl.u32 %v1870, 16
        %v2131 = vrot.slane %v2129, 4
        %v2132 = vshll.u32 %v1870, 16
        %v2134 = vrot.slane %v2132, 5
        %v2135 = vor.u32 %v2131, %v2134
        %v2136 = vrot.slane %v2135, 4
        %v2138 = vshll.u32 %v1871, 16
        %v2140 = vrot.slane %v2138, 5
        %v2141 = vsel %vm327, %v2136, %v2140
        %v2142 = vshrl.u32 %v1871, 16
        %v2144 = vrot.slane %v2142, 4
        %v2145 = vor.u32 %v2144, %v2140
        %v2146 = vrot.slane %v2145, 4
        %v2148 = vshll.u32 %v1872, 16
        %v2150 = vrot.slane %v2148, 5
        %v2151 = vsel %vm327, %v2146, %v2150
        %v2153 = vshrl.u32 %v1873, 16
        %v2155 = vrot.slane %v2153, 4
        %v2156 = vshll.u32 %v1873, 16
        %v2158 = vrot.slane %v2156, 5
        %v2159 = vor.u32 %v2155, %v2158
        %v2160 = vrot.slane %v2159, 4
        %v2162 = vshll.u32 %v1874, 16
        %v2164 = vrot.slane %v2162, 5
        %v2165 = vsel %vm327, %v2160, %v2164
        %v2166 = vshrl.u32 %v1874, 16
        %v2168 = vrot.slane %v2166, 4
        %v2169 = vor.u32 %v2168, %v2164
        %v2170 = vrot.slane %v2169, 4
        %v2172 = vshll.u32 %v1875, 16
        %v2174 = vrot.slane %v2172, 5
        %v2175 = vsel %vm327, %v2170, %v2174
        %v2177 = vshrl.u32 %v1876, 16
        %v2179 = vrot.slane %v2177, 4
        %v2180 = vshll.u32 %v1876, 16
        %v2182 = vrot.slane %v2180, 5
        %v2183 = vor.u32 %v2179, %v2182
        %v2184 = vrot.slane %v2183, 4
        %v2186 = vshll.u32 %v1877, 16
        %v2188 = vrot.slane %v2186, 5
        %v2189 = vsel %vm327, %v2184, %v2188
        %v2190 = vshrl.u32 %v1877, 16
        %v2192 = vrot.slane %v2190, 4
        %v2193 = vor.u32 %v2192, %v2188
        %v2194 = vrot.slane %v2193, 4
        %v2196 = vshll.u32 %v1878, 16
        %v2198 = vrot.slane %v2196, 5
        %v2199 = vsel %vm327, %v2194, %v2198
        %v2201 = vshrl.u32 %v1879, 16
        %v2203 = vrot.slane %v2201, 4
        %v2204 = vshll.u32 %v1879, 16
        %v2206 = vrot.slane %v2204, 5
        %v2207 = vor.u32 %v2203, %v2206
        %v2208 = vrot.slane %v2207, 4
        %v2210 = vshll.u32 %v1880, 16
        %v2212 = vrot.slane %v2210, 5
        %v2213 = vsel %vm327, %v2208, %v2212
        %v2214 = vshrl.u32 %v1880, 16
        %v2216 = vrot.slane %v2214, 4
        %v2217 = vor.u32 %v2216, %v2212
        %v2218 = vrot.slane %v2217, 4
        %v2220 = vshll.u32 %v1881, 16
        %v2222 = vrot.slane %v2220, 5
        %v2223 = vsel %vm327, %v2218, %v2222
        %v2225 = vshrl.u32 %v1882, 16
        %v2227 = vrot.slane %v2225, 4
        %v2228 = vshll.u32 %v1882, 16
        %v2230 = vrot.slane %v2228, 5
        %v2231 = vor.u32 %v2227, %v2230
        %v2232 = vrot.slane %v2231, 4
        %v2234 = vshll.u32 %v1883, 16
        %v2236 = vrot.slane %v2234, 5
        %v2237 = vsel %vm327, %v2232, %v2236
        %v2238 = vshrl.u32 %v1883, 16
        %v2240 = vrot.slane %v2238, 4
        %v2241 = vor.u32 %v2240, %v2236
        %v2242 = vrot.slane %v2241, 4
        %v2244 = vshll.u32 %v1884, 16
        %v2246 = vrot.slane %v2244, 5
        %v2247 = vsel %vm327, %v2242, %v2246
        %v2249 = vshrl.u32 %v1885, 16
        %v2251 = vrot.slane %v2249, 4
        %v2252 = vshll.u32 %v1885, 16
        %v2254 = vrot.slane %v2252, 5
        %v2255 = vor.u32 %v2251, %v2254
        %v2256 = vrot.slane %v2255, 4
        %v2258 = vshll.u32 %v1886, 16
        %v2260 = vrot.slane %v2258, 5
        %v2261 = vsel %vm327, %v2256, %v2260
        %v2262 = vshrl.u32 %v1886, 16
        %v2264 = vrot.slane %v2262, 4
        %v2265 = vor.u32 %v2264, %v2260
        %v2266 = vrot.slane %v2265, 4
        %v2268 = vshll.u32 %v1887, 16
        %v2270 = vrot.slane %v2268, 5
        %v2271 = vsel %vm327, %v2266, %v2270
        %s2272 = scalar_lea.vmem %s260, 64
        %v2273 = vld [vmem:[%s2272] sm:$0xf]
        %v2274 = vld [vmem:[%s2272 + $0x4] sm:$0xf]
        %v2275 = vld [vmem:[%s2272 + $0x8] sm:$0xf]
        %v2276 = vld [vmem:[%s2272 + $0xc] sm:$0xf]
        %v2277 = vunpack.c.l.b16 %v1901
        %v2278 = vunpack.c.l.b16 %v1911
        %v2279 = vunpack.c.l.b16 %v1925
        %v2280 = vunpack.c.l.b16 %v1935
        %v2281 = vunpack.c.l.b16 %v1949
        %v2282 = vunpack.c.l.b16 %v1959
        %v2283 = vunpack.c.l.b16 %v1973
        %v2284 = vunpack.c.l.b16 %v1983
        %v2285 = vunpack.c.l.b16 %v1997
        %v2286 = vunpack.c.l.b16 %v2007
        %v2287 = vunpack.c.l.b16 %v2021
        %v2288 = vunpack.c.l.b16 %v2031
        %v2289 = vunpack.c.l.b16 %v2045
        %v2290 = vunpack.c.l.b16 %v2055
        %v2291 = vunpack.c.l.b16 %v2069
        %v2292 = vunpack.c.l.b16 %v2079
        %v2293 = vunpack.c.l.b16 %v2093
        %v2294 = vunpack.c.l.b16 %v2103
        %v2295 = vunpack.c.l.b16 %v2117
        %v2296 = vunpack.c.l.b16 %v2127
        %v2297 = vunpack.c.l.b16 %v2141
        %v2298 = vunpack.c.l.b16 %v2151
        %v2299 = vunpack.c.l.b16 %v2165
        %v2300 = vunpack.c.l.b16 %v2175
        %v2301 = vunpack.c.l.b16 %v2189
        %v2302 = vunpack.c.l.b16 %v2199
        %v2303 = vunpack.c.l.b16 %v2213
        %v2304 = vunpack.c.l.b16 %v2223
        %v2305 = vunpack.c.l.b16 %v2237
        %v2306 = vunpack.c.l.b16 %v2247
        %v2307 = vunpack.c.l.b16 %v2261
        %v2308 = vunpack.c.l.b16 %v2271
        %v2309 = vpack.c.b16 %v2278, %v2277
        %v2310 = vpack.c.b16 %v2280, %v2279
        %v2311 = vpack.c.b16 %v2282, %v2281
        %v2312 = vpack.c.b16 %v2284, %v2283
        %v2313 = vpack.c.b16 %v2286, %v2285
        %v2314 = vpack.c.b16 %v2288, %v2287
        %v2315 = vpack.c.b16 %v2290, %v2289
        %v2316 = vpack.c.b16 %v2292, %v2291
        %v2317 = vpack.c.b16 %v2294, %v2293
        %v2318 = vpack.c.b16 %v2296, %v2295
        %v2319 = vpack.c.b16 %v2298, %v2297
        %v2320 = vpack.c.b16 %v2300, %v2299
        %v2321 = vpack.c.b16 %v2302, %v2301
        %v2322 = vpack.c.b16 %v2304, %v2303
        %v2323 = vpack.c.b16 %v2306, %v2305
        %v2324 = vpack.c.b16 %v2308, %v2307
        %v2329 = vunpack.c.l.b16 %v2273
        %v2330 = vunpack.c.l.b16 %v2274
        %v2331 = vunpack.c.l.b16 %v2275
        %v2332 = vunpack.c.l.b16 %v2276
        %v2333 = vpack.c.b16 %v2330, %v2329
        %v2334 = vpack.c.b16 %v2332, %v2331
        %v2338 = vsel %vm777, %v2309, 0
        %v2341 = vsel %vm777, %v2310, 0
        %v2344 = vsel %vm777, %v2311, 0
        %v2347 = vsel %vm777, %v2312, 0
        %v2350 = vsel %vm777, %v2313, 0
        %v2353 = vsel %vm777, %v2314, 0
        %v2356 = vsel %vm777, %v2315, 0
        %v2359 = vsel %vm777, %v2316, 0
        %v2362 = vsel %vm777, %v2317, 0
        %v2365 = vsel %vm777, %v2318, 0
        %v2368 = vsel %vm777, %v2319, 0
        %v2371 = vsel %vm777, %v2320, 0
        %v2374 = vsel %vm777, %v2321, 0
        %v2377 = vsel %vm777, %v2322, 0
        %v2380 = vsel %vm777, %v2323, 0
        %v2383 = vsel %vm777, %v2324, 0
        %2385 = vmatpush.bf16.msra.mxu0 0
        %2386 = vmatpush.bf16.msra.mxu0 0
        %2387 = vmatpush.bf16.msra.mxu0 0
        %2388 = vmatpush.bf16.msra.mxu0 0
        %2389 = vmatpush.bf16.msra.mxu0 0
        %2390 = vmatpush.bf16.msra.mxu0 0
        %2391 = vmatpush.bf16.msra.mxu0 %v2334
        %2392 = vmatpush.bf16.msra.mxu0 %v2333
        %2393 = vmatmul.bf16.gmra.mxu0 %v2338
        %v2394 = vpop.f32.mrf.mxu0
        %v2395 = vadd.f32 0.0, %v2394
        %v2396 = vpop.f32.mrf.mxu0
        %v2397 = vadd.f32 0.0, %v2396
        %2398 = vmatmul.bf16.gmra.mxu0 %v2341
        %v2399 = vpop.f32.mrf.mxu0
        %v2400 = vadd.f32 0.0, %v2399
        %v2401 = vpop.f32.mrf.mxu0
        %v2402 = vadd.f32 0.0, %v2401
        %2403 = vmatmul.bf16.gmra.mxu0 %v2344
        %v2404 = vpop.f32.mrf.mxu0
        %v2405 = vadd.f32 0.0, %v2404
        %v2406 = vpop.f32.mrf.mxu0
        %v2407 = vadd.f32 0.0, %v2406
        %2408 = vmatmul.bf16.gmra.mxu0 %v2347
        %v2409 = vpop.f32.mrf.mxu0
        %v2410 = vadd.f32 0.0, %v2409
        %v2411 = vpop.f32.mrf.mxu0
        %v2412 = vadd.f32 0.0, %v2411
        %2413 = vmatmul.bf16.gmra.mxu0 %v2350
        %v2414 = vpop.f32.mrf.mxu0
        %v2415 = vadd.f32 0.0, %v2414
        %v2416 = vpop.f32.mrf.mxu0
        %v2417 = vadd.f32 0.0, %v2416
        %2418 = vmatmul.bf16.gmra.mxu0 %v2353
        %v2419 = vpop.f32.mrf.mxu0
        %v2420 = vadd.f32 0.0, %v2419
        %v2421 = vpop.f32.mrf.mxu0
        %v2422 = vadd.f32 0.0, %v2421
        %2423 = vmatmul.bf16.gmra.mxu0 %v2356
        %v2424 = vpop.f32.mrf.mxu0
        %v2425 = vadd.f32 0.0, %v2424
        %v2426 = vpop.f32.mrf.mxu0
        %v2427 = vadd.f32 0.0, %v2426
        %2428 = vmatmul.bf16.gmra.mxu0 %v2359
        %v2429 = vpop.f32.mrf.mxu0
        %v2430 = vadd.f32 0.0, %v2429
        %v2431 = vpop.f32.mrf.mxu0
        %v2432 = vadd.f32 0.0, %v2431
        %2433 = vmatmul.bf16.gmra.mxu0 %v2362
        %v2434 = vpop.f32.mrf.mxu0
        %v2435 = vadd.f32 0.0, %v2434
        %v2436 = vpop.f32.mrf.mxu0
        %v2437 = vadd.f32 0.0, %v2436
        %2438 = vmatmul.bf16.gmra.mxu0 %v2365
        %v2439 = vpop.f32.mrf.mxu0
        %v2440 = vadd.f32 0.0, %v2439
        %v2441 = vpop.f32.mrf.mxu0
        %v2442 = vadd.f32 0.0, %v2441
        %2443 = vmatmul.bf16.gmra.mxu0 %v2368
        %v2444 = vpop.f32.mrf.mxu0
        %v2445 = vadd.f32 0.0, %v2444
        %v2446 = vpop.f32.mrf.mxu0
        %v2447 = vadd.f32 0.0, %v2446
        %2448 = vmatmul.bf16.gmra.mxu0 %v2371
        %v2449 = vpop.f32.mrf.mxu0
        %v2450 = vadd.f32 0.0, %v2449
        %v2451 = vpop.f32.mrf.mxu0
        %v2452 = vadd.f32 0.0, %v2451
        %2453 = vmatmul.bf16.gmra.mxu0 %v2374
        %v2454 = vpop.f32.mrf.mxu0
        %v2455 = vadd.f32 0.0, %v2454
        %v2456 = vpop.f32.mrf.mxu0
        %v2457 = vadd.f32 0.0, %v2456
        %2458 = vmatmul.bf16.gmra.mxu0 %v2377
        %v2459 = vpop.f32.mrf.mxu0
        %v2460 = vadd.f32 0.0, %v2459
        %v2461 = vpop.f32.mrf.mxu0
        %v2462 = vadd.f32 0.0, %v2461
        %2463 = vmatmul.bf16.gmra.mxu0 %v2380
        %v2464 = vpop.f32.mrf.mxu0
        %v2465 = vadd.f32 0.0, %v2464
        %v2466 = vpop.f32.mrf.mxu0
        %v2467 = vadd.f32 0.0, %v2466
        %2468 = vmatmul.bf16.gmra.mxu0 %v2383
        %v2469 = vpop.f32.mrf.mxu0
        %v2470 = vadd.f32 0.0, %v2469
        %v2471 = vpop.f32.mrf.mxu0
        %v2472 = vadd.f32 0.0, %v2471
        %2473 = vdwg.mxu0
        %v2474 = vadd.f32 %v1808, %v2395
        %v2475 = vadd.f32 %v1809, %v2397
        %v2476 = vadd.f32 %v1810, %v2400
        %v2477 = vadd.f32 %v1811, %v2402
        %v2478 = vadd.f32 %v1812, %v2405
        %v2479 = vadd.f32 %v1813, %v2407
        %v2480 = vadd.f32 %v1814, %v2410
        %v2481 = vadd.f32 %v1815, %v2412
        %v2482 = vadd.f32 %v1816, %v2415
        %v2483 = vadd.f32 %v1817, %v2417
        %v2484 = vadd.f32 %v1818, %v2420
        %v2485 = vadd.f32 %v1819, %v2422
        %v2486 = vadd.f32 %v1820, %v2425
        %v2487 = vadd.f32 %v1821, %v2427
        %v2488 = vadd.f32 %v1822, %v2430
        %v2489 = vadd.f32 %v1823, %v2432
        %v2490 = vadd.f32 %v1824, %v2435
        %v2491 = vadd.f32 %v1825, %v2437
        %v2492 = vadd.f32 %v1826, %v2440
        %v2493 = vadd.f32 %v1827, %v2442
        %v2494 = vadd.f32 %v1828, %v2445
        %v2495 = vadd.f32 %v1829, %v2447
        %v2496 = vadd.f32 %v1830, %v2450
        %v2497 = vadd.f32 %v1831, %v2452
        %v2498 = vadd.f32 %v1832, %v2455
        %v2499 = vadd.f32 %v1833, %v2457
        %v2500 = vadd.f32 %v1834, %v2460
        %v2501 = vadd.f32 %v1835, %v2462
        %v2502 = vadd.f32 %v1836, %v2465
        %v2503 = vadd.f32 %v1837, %v2467
        %v2504 = vadd.f32 %v1838, %v2470
        %v2505 = vadd.f32 %v1839, %v2472
        %v2506 = vld [vmem:[%s1541] sm:$0xe]
        %v2507 = vld [vmem:[%s1541 + $0xc] sm:$0xe]
        %v2508 = vld [vmem:[%s1541 + $0x18] sm:$0xe]
        %v2509 = vld [vmem:[%s1541 + $0x24] sm:$0xe]
        %v2510 = vld [vmem:[%s1541 + $0x30] sm:$0xe]
        %v2511 = vld [vmem:[%s1541 + $0x3c] sm:$0xe]
        %v2512 = vld [vmem:[%s1541 + $0x48] sm:$0xe]
        %v2513 = vld [vmem:[%s1541 + $0x54] sm:$0xe]
        %v2514 = vld [vmem:[%s1541 + $0x60] sm:$0xe]
        %v2515 = vld [vmem:[%s1541 + $0x6c] sm:$0xe]
        %v2516 = vld [vmem:[%s1541 + $0x78] sm:$0xe]
        %v2517 = vld [vmem:[%s1541 + $0x84] sm:$0xe]
        %v2518 = vld [vmem:[%s1541 + $0x90] sm:$0xe]
        %v2519 = vld [vmem:[%s1541 + $0x9c] sm:$0xe]
        %v2520 = vld [vmem:[%s1541 + $0xa8] sm:$0xe]
        %v2521 = vld [vmem:[%s1541 + $0xb4] sm:$0xe]
        %v2570 = vrot.slane %v2506, 5
        %v2571 = vrot.slane %v2570, 4
        %v2572 = vrot.slane %v1841, 5
        %v2573 = vsel %vm1194, %v2571, %v2572
        %v2574 = vrot.slane %v2572, 4
        %v2575 = vrot.slane %v1842, 5
        %v2576 = vsel %vm1194, %v2574, %v2575
        %v2577 = vrot.slane %v2507, 5
        %v2578 = vrot.slane %v2577, 4
        %v2579 = vrot.slane %v1844, 5
        %v2580 = vsel %vm1194, %v2578, %v2579
        %v2581 = vrot.slane %v2579, 4
        %v2582 = vrot.slane %v1845, 5
        %v2583 = vsel %vm1194, %v2581, %v2582
        %v2584 = vrot.slane %v2508, 5
        %v2585 = vrot.slane %v2584, 4
        %v2586 = vrot.slane %v1847, 5
        %v2587 = vsel %vm1194, %v2585, %v2586
        %v2588 = vrot.slane %v2586, 4
        %v2589 = vrot.slane %v1848, 5
        %v2590 = vsel %vm1194, %v2588, %v2589
        %v2591 = vrot.slane %v2509, 5
        %v2592 = vrot.slane %v2591, 4
        %v2593 = vrot.slane %v1850, 5
        %v2594 = vsel %vm1194, %v2592, %v2593
        %v2595 = vrot.slane %v2593, 4
        %v2596 = vrot.slane %v1851, 5
        %v2597 = vsel %vm1194, %v2595, %v2596
        %v2598 = vrot.slane %v2510, 5
        %v2599 = vrot.slane %v2598, 4
        %v2600 = vrot.slane %v1853, 5
        %v2601 = vsel %vm1194, %v2599, %v2600
        %v2602 = vrot.slane %v2600, 4
        %v2603 = vrot.slane %v1854, 5
        %v2604 = vsel %vm1194, %v2602, %v2603
        %v2605 = vrot.slane %v2511, 5
        %v2606 = vrot.slane %v2605, 4
        %v2607 = vrot.slane %v1856, 5
        %v2608 = vsel %vm1194, %v2606, %v2607
        %v2609 = vrot.slane %v2607, 4
        %v2610 = vrot.slane %v1857, 5
        %v2611 = vsel %vm1194, %v2609, %v2610
        %v2612 = vrot.slane %v2512, 5
        %v2613 = vrot.slane %v2612, 4
        %v2614 = vrot.slane %v1859, 5
        %v2615 = vsel %vm1194, %v2613, %v2614
        %v2616 = vrot.slane %v2614, 4
        %v2617 = vrot.slane %v1860, 5
        %v2618 = vsel %vm1194, %v2616, %v2617
        %v2619 = vrot.slane %v2513, 5
        %v2620 = vrot.slane %v2619, 4
        %v2621 = vrot.slane %v1862, 5
        %v2622 = vsel %vm1194, %v2620, %v2621
        %v2623 = vrot.slane %v2621, 4
        %v2624 = vrot.slane %v1863, 5
        %v2625 = vsel %vm1194, %v2623, %v2624
        %v2626 = vrot.slane %v2514, 5
        %v2627 = vrot.slane %v2626, 4
        %v2628 = vrot.slane %v1865, 5
        %v2629 = vsel %vm1194, %v2627, %v2628
        %v2630 = vrot.slane %v2628, 4
        %v2631 = vrot.slane %v1866, 5
        %v2632 = vsel %vm1194, %v2630, %v2631
        %v2633 = vrot.slane %v2515, 5
        %v2634 = vrot.slane %v2633, 4
        %v2635 = vrot.slane %v1868, 5
        %v2636 = vsel %vm1194, %v2634, %v2635
        %v2637 = vrot.slane %v2635, 4
        %v2638 = vrot.slane %v1869, 5
        %v2639 = vsel %vm1194, %v2637, %v2638
        %v2640 = vrot.slane %v2516, 5
        %v2641 = vrot.slane %v2640, 4
        %v2642 = vrot.slane %v1871, 5
        %v2643 = vsel %vm1194, %v2641, %v2642
        %v2644 = vrot.slane %v2642, 4
        %v2645 = vrot.slane %v1872, 5
        %v2646 = vsel %vm1194, %v2644, %v2645
        %v2647 = vrot.slane %v2517, 5
        %v2648 = vrot.slane %v2647, 4
        %v2649 = vrot.slane %v1874, 5
        %v2650 = vsel %vm1194, %v2648, %v2649
        %v2651 = vrot.slane %v2649, 4
        %v2652 = vrot.slane %v1875, 5
        %v2653 = vsel %vm1194, %v2651, %v2652
        %v2654 = vrot.slane %v2518, 5
        %v2655 = vrot.slane %v2654, 4
        %v2656 = vrot.slane %v1877, 5
        %v2657 = vsel %vm1194, %v2655, %v2656
        %v2658 = vrot.slane %v2656, 4
        %v2659 = vrot.slane %v1878, 5
        %v2660 = vsel %vm1194, %v2658, %v2659
        %v2661 = vrot.slane %v2519, 5
        %v2662 = vrot.slane %v2661, 4
        %v2663 = vrot.slane %v1880, 5
        %v2664 = vsel %vm1194, %v2662, %v2663
        %v2665 = vrot.slane %v2663, 4
        %v2666 = vrot.slane %v1881, 5
        %v2667 = vsel %vm1194, %v2665, %v2666
        %v2668 = vrot.slane %v2520, 5
        %v2669 = vrot.slane %v2668, 4
        %v2670 = vrot.slane %v1883, 5
        %v2671 = vsel %vm1194, %v2669, %v2670
        %v2672 = vrot.slane %v2670, 4
        %v2673 = vrot.slane %v1884, 5
        %v2674 = vsel %vm1194, %v2672, %v2673
        %v2675 = vrot.slane %v2521, 5
        %v2676 = vrot.slane %v2675, 4
        %v2677 = vrot.slane %v1886, 5
        %v2678 = vsel %vm1194, %v2676, %v2677
        %v2679 = vrot.slane %v2677, 4
        %v2680 = vrot.slane %v1887, 5
        %v2681 = vsel %vm1194, %v2679, %v2680
        %s2682 = scalar_lea.vmem %s260, 80
        %v2683 = vld [vmem:[%s2682] sm:$0xf]
        %v2684 = vld [vmem:[%s2682 + $0x4] sm:$0xf]
        %v2685 = vld [vmem:[%s2682 + $0x8] sm:$0xf]
        %v2686 = vld [vmem:[%s2682 + $0xc] sm:$0xf]
        %v2687 = vunpack.c.l.b16 %v2573
        %v2688 = vunpack.c.l.b16 %v2576
        %v2689 = vunpack.c.l.b16 %v2580
        %v2690 = vunpack.c.l.b16 %v2583
        %v2691 = vunpack.c.l.b16 %v2587
        %v2692 = vunpack.c.l.b16 %v2590
        %v2693 = vunpack.c.l.b16 %v2594
        %v2694 = vunpack.c.l.b16 %v2597
        %v2695 = vunpack.c.l.b16 %v2601
        %v2696 = vunpack.c.l.b16 %v2604
        %v2697 = vunpack.c.l.b16 %v2608
        %v2698 = vunpack.c.l.b16 %v2611
        %v2699 = vunpack.c.l.b16 %v2615
        %v2700 = vunpack.c.l.b16 %v2618
        %v2701 = vunpack.c.l.b16 %v2622
        %v2702 = vunpack.c.l.b16 %v2625
        %v2703 = vunpack.c.l.b16 %v2629
        %v2704 = vunpack.c.l.b16 %v2632
        %v2705 = vunpack.c.l.b16 %v2636
        %v2706 = vunpack.c.l.b16 %v2639
        %v2707 = vunpack.c.l.b16 %v2643
        %v2708 = vunpack.c.l.b16 %v2646
        %v2709 = vunpack.c.l.b16 %v2650
        %v2710 = vunpack.c.l.b16 %v2653
        %v2711 = vunpack.c.l.b16 %v2657
        %v2712 = vunpack.c.l.b16 %v2660
        %v2713 = vunpack.c.l.b16 %v2664
        %v2714 = vunpack.c.l.b16 %v2667
        %v2715 = vunpack.c.l.b16 %v2671
        %v2716 = vunpack.c.l.b16 %v2674
        %v2717 = vunpack.c.l.b16 %v2678
        %v2718 = vunpack.c.l.b16 %v2681
        %v2719 = vpack.c.b16 %v2688, %v2687
        %v2720 = vpack.c.b16 %v2690, %v2689
        %v2721 = vpack.c.b16 %v2692, %v2691
        %v2722 = vpack.c.b16 %v2694, %v2693
        %v2723 = vpack.c.b16 %v2696, %v2695
        %v2724 = vpack.c.b16 %v2698, %v2697
        %v2725 = vpack.c.b16 %v2700, %v2699
        %v2726 = vpack.c.b16 %v2702, %v2701
        %v2727 = vpack.c.b16 %v2704, %v2703
        %v2728 = vpack.c.b16 %v2706, %v2705
        %v2729 = vpack.c.b16 %v2708, %v2707
        %v2730 = vpack.c.b16 %v2710, %v2709
        %v2731 = vpack.c.b16 %v2712, %v2711
        %v2732 = vpack.c.b16 %v2714, %v2713
        %v2733 = vpack.c.b16 %v2716, %v2715
        %v2734 = vpack.c.b16 %v2718, %v2717
        %v2739 = vunpack.c.l.b16 %v2683
        %v2740 = vunpack.c.l.b16 %v2684
        %v2741 = vunpack.c.l.b16 %v2685
        %v2742 = vunpack.c.l.b16 %v2686
        %v2743 = vpack.c.b16 %v2740, %v2739
        %v2744 = vpack.c.b16 %v2742, %v2741
        %v2748 = vsel %vm777, %v2719, 0
        %v2751 = vsel %vm777, %v2720, 0
        %v2754 = vsel %vm777, %v2721, 0
        %v2757 = vsel %vm777, %v2722, 0
        %v2760 = vsel %vm777, %v2723, 0
        %v2763 = vsel %vm777, %v2724, 0
        %v2766 = vsel %vm777, %v2725, 0
        %v2769 = vsel %vm777, %v2726, 0
        %v2772 = vsel %vm777, %v2727, 0
        %v2775 = vsel %vm777, %v2728, 0
        %v2778 = vsel %vm777, %v2729, 0
        %v2781 = vsel %vm777, %v2730, 0
        %v2784 = vsel %vm777, %v2731, 0
        %v2787 = vsel %vm777, %v2732, 0
        %v2790 = vsel %vm777, %v2733, 0
        %v2793 = vsel %vm777, %v2734, 0
        %2795 = vmatpush.bf16.msra.mxu0 0
        %2796 = vmatpush.bf16.msra.mxu0 0
        %2797 = vmatpush.bf16.msra.mxu0 0
        %2798 = vmatpush.bf16.msra.mxu0 0
        %2799 = vmatpush.bf16.msra.mxu0 0
        %2800 = vmatpush.bf16.msra.mxu0 0
        %2801 = vmatpush.bf16.msra.mxu0 %v2744
        %2802 = vmatpush.bf16.msra.mxu0 %v2743
        %2803 = vmatmul.bf16.gmra.mxu0 %v2748
        %v2804 = vpop.f32.mrf.mxu0
        %v2805 = vadd.f32 0.0, %v2804
        %v2806 = vpop.f32.mrf.mxu0
        %v2807 = vadd.f32 0.0, %v2806
        %2808 = vmatmul.bf16.gmra.mxu0 %v2751
        %v2809 = vpop.f32.mrf.mxu0
        %v2810 = vadd.f32 0.0, %v2809
        %v2811 = vpop.f32.mrf.mxu0
        %v2812 = vadd.f32 0.0, %v2811
        %2813 = vmatmul.bf16.gmra.mxu0 %v2754
        %v2814 = vpop.f32.mrf.mxu0
        %v2815 = vadd.f32 0.0, %v2814
        %v2816 = vpop.f32.mrf.mxu0
        %v2817 = vadd.f32 0.0, %v2816
        %2818 = vmatmul.bf16.gmra.mxu0 %v2757
        %v2819 = vpop.f32.mrf.mxu0
        %v2820 = vadd.f32 0.0, %v2819
        %v2821 = vpop.f32.mrf.mxu0
        %v2822 = vadd.f32 0.0, %v2821
        %2823 = vmatmul.bf16.gmra.mxu0 %v2760
        %v2824 = vpop.f32.mrf.mxu0
        %v2825 = vadd.f32 0.0, %v2824
        %v2826 = vpop.f32.mrf.mxu0
        %v2827 = vadd.f32 0.0, %v2826
        %2828 = vmatmul.bf16.gmra.mxu0 %v2763
        %v2829 = vpop.f32.mrf.mxu0
        %v2830 = vadd.f32 0.0, %v2829
        %v2831 = vpop.f32.mrf.mxu0
        %v2832 = vadd.f32 0.0, %v2831
        %2833 = vmatmul.bf16.gmra.mxu0 %v2766
        %v2834 = vpop.f32.mrf.mxu0
        %v2835 = vadd.f32 0.0, %v2834
        %v2836 = vpop.f32.mrf.mxu0
        %v2837 = vadd.f32 0.0, %v2836
        %2838 = vmatmul.bf16.gmra.mxu0 %v2769
        %v2839 = vpop.f32.mrf.mxu0
        %v2840 = vadd.f32 0.0, %v2839
        %v2841 = vpop.f32.mrf.mxu0
        %v2842 = vadd.f32 0.0, %v2841
        %2843 = vmatmul.bf16.gmra.mxu0 %v2772
        %v2844 = vpop.f32.mrf.mxu0
        %v2845 = vadd.f32 0.0, %v2844
        %v2846 = vpop.f32.mrf.mxu0
        %v2847 = vadd.f32 0.0, %v2846
        %2848 = vmatmul.bf16.gmra.mxu0 %v2775
        %v2849 = vpop.f32.mrf.mxu0
        %v2850 = vadd.f32 0.0, %v2849
        %v2851 = vpop.f32.mrf.mxu0
        %v2852 = vadd.f32 0.0, %v2851
        %2853 = vmatmul.bf16.gmra.mxu0 %v2778
        %v2854 = vpop.f32.mrf.mxu0
        %v2855 = vadd.f32 0.0, %v2854
        %v2856 = vpop.f32.mrf.mxu0
        %v2857 = vadd.f32 0.0, %v2856
        %2858 = vmatmul.bf16.gmra.mxu0 %v2781
        %v2859 = vpop.f32.mrf.mxu0
        %v2860 = vadd.f32 0.0, %v2859
        %v2861 = vpop.f32.mrf.mxu0
        %v2862 = vadd.f32 0.0, %v2861
        %2863 = vmatmul.bf16.gmra.mxu0 %v2784
        %v2864 = vpop.f32.mrf.mxu0
        %v2865 = vadd.f32 0.0, %v2864
        %v2866 = vpop.f32.mrf.mxu0
        %v2867 = vadd.f32 0.0, %v2866
        %2868 = vmatmul.bf16.gmra.mxu0 %v2787
        %v2869 = vpop.f32.mrf.mxu0
        %v2870 = vadd.f32 0.0, %v2869
        %v2871 = vpop.f32.mrf.mxu0
        %v2872 = vadd.f32 0.0, %v2871
        %2873 = vmatmul.bf16.gmra.mxu0 %v2790
        %v2874 = vpop.f32.mrf.mxu0
        %v2875 = vadd.f32 0.0, %v2874
        %v2876 = vpop.f32.mrf.mxu0
        %v2877 = vadd.f32 0.0, %v2876
        %2878 = vmatmul.bf16.gmra.mxu0 %v2793
        %v2879 = vpop.f32.mrf.mxu0
        %v2880 = vadd.f32 0.0, %v2879
        %v2881 = vpop.f32.mrf.mxu0
        %v2882 = vadd.f32 0.0, %v2881
        %2883 = vdwg.mxu0
        %v2884 = vadd.f32 %v2474, %v2805
        %v2885 = vadd.f32 %v2475, %v2807
        %v2886 = vadd.f32 %v2476, %v2810
        %v2887 = vadd.f32 %v2477, %v2812
        %v2888 = vadd.f32 %v2478, %v2815
        %v2889 = vadd.f32 %v2479, %v2817
        %v2890 = vadd.f32 %v2480, %v2820
        %v2891 = vadd.f32 %v2481, %v2822
        %v2892 = vadd.f32 %v2482, %v2825
        %v2893 = vadd.f32 %v2483, %v2827
        %v2894 = vadd.f32 %v2484, %v2830
        %v2895 = vadd.f32 %v2485, %v2832
        %v2896 = vadd.f32 %v2486, %v2835
        %v2897 = vadd.f32 %v2487, %v2837
        %v2898 = vadd.f32 %v2488, %v2840
        %v2899 = vadd.f32 %v2489, %v2842
        %v2900 = vadd.f32 %v2490, %v2845
        %v2901 = vadd.f32 %v2491, %v2847
        %v2902 = vadd.f32 %v2492, %v2850
        %v2903 = vadd.f32 %v2493, %v2852
        %v2904 = vadd.f32 %v2494, %v2855
        %v2905 = vadd.f32 %v2495, %v2857
        %v2906 = vadd.f32 %v2496, %v2860
        %v2907 = vadd.f32 %v2497, %v2862
        %v2908 = vadd.f32 %v2498, %v2865
        %v2909 = vadd.f32 %v2499, %v2867
        %v2910 = vadd.f32 %v2500, %v2870
        %v2911 = vadd.f32 %v2501, %v2872
        %v2912 = vadd.f32 %v2502, %v2875
        %v2913 = vadd.f32 %v2503, %v2877
        %v2914 = vadd.f32 %v2504, %v2880
        %v2915 = vadd.f32 %v2505, %v2882
        %s2916 = scalar_lea.vmem %s256, 24
        %v2917 = vld [vmem:[%s2916] sm:$0xf]
        %v2918 = vld [vmem:[%s2916 + $0x4] sm:$0xf]
        %v2919 = vld [vmem:[%s2916 + $0xc] sm:$0xf]
        %v2920 = vld [vmem:[%s2916 + $0x10] sm:$0xf]
        %v2921 = vld [vmem:[%s2916 + $0x18] sm:$0xf]
        %v2922 = vld [vmem:[%s2916 + $0x1c] sm:$0xf]
        %v2923 = vld [vmem:[%s2916 + $0x24] sm:$0xf]
        %v2924 = vld [vmem:[%s2916 + $0x28] sm:$0xf]
        %v2925 = vld [vmem:[%s2916 + $0x30] sm:$0xf]
        %v2926 = vld [vmem:[%s2916 + $0x34] sm:$0xf]
        %v2927 = vld [vmem:[%s2916 + $0x3c] sm:$0xf]
        %v2928 = vld [vmem:[%s2916 + $0x40] sm:$0xf]
        %v2929 = vld [vmem:[%s2916 + $0x48] sm:$0xf]
        %v2930 = vld [vmem:[%s2916 + $0x4c] sm:$0xf]
        %v2931 = vld [vmem:[%s2916 + $0x54] sm:$0xf]
        %v2932 = vld [vmem:[%s2916 + $0x58] sm:$0xf]
        %v2933 = vld [vmem:[%s2916 + $0x60] sm:$0xf]
        %v2934 = vld [vmem:[%s2916 + $0x64] sm:$0xf]
        %v2935 = vld [vmem:[%s2916 + $0x6c] sm:$0xf]
        %v2936 = vld [vmem:[%s2916 + $0x70] sm:$0xf]
        %v2937 = vld [vmem:[%s2916 + $0x78] sm:$0xf]
        %v2938 = vld [vmem:[%s2916 + $0x7c] sm:$0xf]
        %v2939 = vld [vmem:[%s2916 + $0x84] sm:$0xf]
        %v2940 = vld [vmem:[%s2916 + $0x88] sm:$0xf]
        %v2941 = vld [vmem:[%s2916 + $0x90] sm:$0xf]
        %v2942 = vld [vmem:[%s2916 + $0x94] sm:$0xf]
        %v2943 = vld [vmem:[%s2916 + $0x9c] sm:$0xf]
        %v2944 = vld [vmem:[%s2916 + $0xa0] sm:$0xf]
        %v2945 = vld [vmem:[%s2916 + $0xa8] sm:$0xf]
        %v2946 = vld [vmem:[%s2916 + $0xac] sm:$0xf]
        %v2947 = vld [vmem:[%s2916 + $0xb4] sm:$0xf]
        %v2948 = vld [vmem:[%s2916 + $0xb8] sm:$0xf]
        %s2949 = scalar_lea.vmem %s260, 96
        %v2950 = vld [vmem:[%s2949] sm:$0xf]
        %v2951 = vld [vmem:[%s2949 + $0x4] sm:$0xf]
        %v2952 = vld [vmem:[%s2949 + $0x8] sm:$0xf]
        %v2953 = vld [vmem:[%s2949 + $0xc] sm:$0xf]
        %v2986 = vunpack.c.l.b16 %v2917
        %v2987 = vunpack.c.l.b16 %v2918
        %v2988 = vunpack.c.l.b16 %v2919
        %v2989 = vunpack.c.l.b16 %v2920
        %v2990 = vunpack.c.l.b16 %v2921
        %v2991 = vunpack.c.l.b16 %v2922
        %v2992 = vunpack.c.l.b16 %v2923
        %v2993 = vunpack.c.l.b16 %v2924
        %v2994 = vunpack.c.l.b16 %v2925
        %v2995 = vunpack.c.l.b16 %v2926
        %v2996 = vunpack.c.l.b16 %v2927
        %v2997 = vunpack.c.l.b16 %v2928
        %v2998 = vunpack.c.l.b16 %v2929
        %v2999 = vunpack.c.l.b16 %v2930
        %v3000 = vunpack.c.l.b16 %v2931
        %v3001 = vunpack.c.l.b16 %v2932
        %v3002 = vunpack.c.l.b16 %v2933
        %v3003 = vunpack.c.l.b16 %v2934
        %v3004 = vunpack.c.l.b16 %v2935
        %v3005 = vunpack.c.l.b16 %v2936
        %v3006 = vunpack.c.l.b16 %v2937
        %v3007 = vunpack.c.l.b16 %v2938
        %v3008 = vunpack.c.l.b16 %v2939
        %v3009 = vunpack.c.l.b16 %v2940
        %v3010 = vunpack.c.l.b16 %v2941
        %v3011 = vunpack.c.l.b16 %v2942
        %v3012 = vunpack.c.l.b16 %v2943
        %v3013 = vunpack.c.l.b16 %v2944
        %v3014 = vunpack.c.l.b16 %v2945
        %v3015 = vunpack.c.l.b16 %v2946
        %v3016 = vunpack.c.l.b16 %v2947
        %v3017 = vunpack.c.l.b16 %v2948
        %v3018 = vpack.c.b16 %v2987, %v2986
        %v3019 = vpack.c.b16 %v2989, %v2988
        %v3020 = vpack.c.b16 %v2991, %v2990
        %v3021 = vpack.c.b16 %v2993, %v2992
        %v3022 = vpack.c.b16 %v2995, %v2994
        %v3023 = vpack.c.b16 %v2997, %v2996
        %v3024 = vpack.c.b16 %v2999, %v2998
        %v3025 = vpack.c.b16 %v3001, %v3000
        %v3026 = vpack.c.b16 %v3003, %v3002
        %v3027 = vpack.c.b16 %v3005, %v3004
        %v3028 = vpack.c.b16 %v3007, %v3006
        %v3029 = vpack.c.b16 %v3009, %v3008
        %v3030 = vpack.c.b16 %v3011, %v3010
        %v3031 = vpack.c.b16 %v3013, %v3012
        %v3032 = vpack.c.b16 %v3015, %v3014
        %v3033 = vpack.c.b16 %v3017, %v3016
        %v3038 = vunpack.c.l.b16 %v2950
        %v3039 = vunpack.c.l.b16 %v2951
        %v3040 = vunpack.c.l.b16 %v2952
        %v3041 = vunpack.c.l.b16 %v2953
        %v3042 = vpack.c.b16 %v3039, %v3038
        %v3043 = vpack.c.b16 %v3041, %v3040
        %v3047 = vsel %vm777, %v3018, 0
        %v3050 = vsel %vm777, %v3019, 0
        %v3053 = vsel %vm777, %v3020, 0
        %v3056 = vsel %vm777, %v3021, 0
        %v3059 = vsel %vm777, %v3022, 0
        %v3062 = vsel %vm777, %v3023, 0
        %v3065 = vsel %vm777, %v3024, 0
        %v3068 = vsel %vm777, %v3025, 0
        %v3071 = vsel %vm777, %v3026, 0
        %v3074 = vsel %vm777, %v3027, 0
        %v3077 = vsel %vm777, %v3028, 0
        %v3080 = vsel %vm777, %v3029, 0
        %v3083 = vsel %vm777, %v3030, 0
        %v3086 = vsel %vm777, %v3031, 0
        %v3089 = vsel %vm777, %v3032, 0
        %v3092 = vsel %vm777, %v3033, 0
        %3094 = vmatpush.bf16.msra.mxu0 0
        %3095 = vmatpush.bf16.msra.mxu0 0
        %3096 = vmatpush.bf16.msra.mxu0 0
        %3097 = vmatpush.bf16.msra.mxu0 0
        %3098 = vmatpush.bf16.msra.mxu0 0
        %3099 = vmatpush.bf16.msra.mxu0 0
        %3100 = vmatpush.bf16.msra.mxu0 %v3043
        %3101 = vmatpush.bf16.msra.mxu0 %v3042
        %3102 = vmatmul.bf16.gmra.mxu0 %v3047
        %v3103 = vpop.f32.mrf.mxu0
        %v3104 = vadd.f32 0.0, %v3103
        %v3105 = vpop.f32.mrf.mxu0
        %v3106 = vadd.f32 0.0, %v3105
        %3107 = vmatmul.bf16.gmra.mxu0 %v3050
        %v3108 = vpop.f32.mrf.mxu0
        %v3109 = vadd.f32 0.0, %v3108
        %v3110 = vpop.f32.mrf.mxu0
        %v3111 = vadd.f32 0.0, %v3110
        %3112 = vmatmul.bf16.gmra.mxu0 %v3053
        %v3113 = vpop.f32.mrf.mxu0
        %v3114 = vadd.f32 0.0, %v3113
        %v3115 = vpop.f32.mrf.mxu0
        %v3116 = vadd.f32 0.0, %v3115
        %3117 = vmatmul.bf16.gmra.mxu0 %v3056
        %v3118 = vpop.f32.mrf.mxu0
        %v3119 = vadd.f32 0.0, %v3118
        %v3120 = vpop.f32.mrf.mxu0
        %v3121 = vadd.f32 0.0, %v3120
        %3122 = vmatmul.bf16.gmra.mxu0 %v3059
        %v3123 = vpop.f32.mrf.mxu0
        %v3124 = vadd.f32 0.0, %v3123
        %v3125 = vpop.f32.mrf.mxu0
        %v3126 = vadd.f32 0.0, %v3125
        %3127 = vmatmul.bf16.gmra.mxu0 %v3062
        %v3128 = vpop.f32.mrf.mxu0
        %v3129 = vadd.f32 0.0, %v3128
        %v3130 = vpop.f32.mrf.mxu0
        %v3131 = vadd.f32 0.0, %v3130
        %3132 = vmatmul.bf16.gmra.mxu0 %v3065
        %v3133 = vpop.f32.mrf.mxu0
        %v3134 = vadd.f32 0.0, %v3133
        %v3135 = vpop.f32.mrf.mxu0
        %v3136 = vadd.f32 0.0, %v3135
        %3137 = vmatmul.bf16.gmra.mxu0 %v3068
        %v3138 = vpop.f32.mrf.mxu0
        %v3139 = vadd.f32 0.0, %v3138
        %v3140 = vpop.f32.mrf.mxu0
        %v3141 = vadd.f32 0.0, %v3140
        %3142 = vmatmul.bf16.gmra.mxu0 %v3071
        %v3143 = vpop.f32.mrf.mxu0
        %v3144 = vadd.f32 0.0, %v3143
        %v3145 = vpop.f32.mrf.mxu0
        %v3146 = vadd.f32 0.0, %v3145
        %3147 = vmatmul.bf16.gmra.mxu0 %v3074
        %v3148 = vpop.f32.mrf.mxu0
        %v3149 = vadd.f32 0.0, %v3148
        %v3150 = vpop.f32.mrf.mxu0
        %v3151 = vadd.f32 0.0, %v3150
        %3152 = vmatmul.bf16.gmra.mxu0 %v3077
        %v3153 = vpop.f32.mrf.mxu0
        %v3154 = vadd.f32 0.0, %v3153
        %v3155 = vpop.f32.mrf.mxu0
        %v3156 = vadd.f32 0.0, %v3155
        %3157 = vmatmul.bf16.gmra.mxu0 %v3080
        %v3158 = vpop.f32.mrf.mxu0
        %v3159 = vadd.f32 0.0, %v3158
        %v3160 = vpop.f32.mrf.mxu0
        %v3161 = vadd.f32 0.0, %v3160
        %3162 = vmatmul.bf16.gmra.mxu0 %v3083
        %v3163 = vpop.f32.mrf.mxu0
        %v3164 = vadd.f32 0.0, %v3163
        %v3165 = vpop.f32.mrf.mxu0
        %v3166 = vadd.f32 0.0, %v3165
        %3167 = vmatmul.bf16.gmra.mxu0 %v3086
        %v3168 = vpop.f32.mrf.mxu0
        %v3169 = vadd.f32 0.0, %v3168
        %v3170 = vpop.f32.mrf.mxu0
        %v3171 = vadd.f32 0.0, %v3170
        %3172 = vmatmul.bf16.gmra.mxu0 %v3089
        %v3173 = vpop.f32.mrf.mxu0
        %v3174 = vadd.f32 0.0, %v3173
        %v3175 = vpop.f32.mrf.mxu0
        %v3176 = vadd.f32 0.0, %v3175
        %3177 = vmatmul.bf16.gmra.mxu0 %v3092
        %v3178 = vpop.f32.mrf.mxu0
        %v3179 = vadd.f32 0.0, %v3178
        %v3180 = vpop.f32.mrf.mxu0
        %v3181 = vadd.f32 0.0, %v3180
        %3182 = vdwg.mxu0
        %v3183 = vadd.f32 %v2884, %v3104
        %v3184 = vadd.f32 %v2885, %v3106
        %v3185 = vadd.f32 %v2886, %v3109
        %v3186 = vadd.f32 %v2887, %v3111
        %v3187 = vadd.f32 %v2888, %v3114
        %v3188 = vadd.f32 %v2889, %v3116
        %v3189 = vadd.f32 %v2890, %v3119
        %v3190 = vadd.f32 %v2891, %v3121
        %v3191 = vadd.f32 %v2892, %v3124
        %v3192 = vadd.f32 %v2893, %v3126
        %v3193 = vadd.f32 %v2894, %v3129
        %v3194 = vadd.f32 %v2895, %v3131
        %v3195 = vadd.f32 %v2896, %v3134
        %v3196 = vadd.f32 %v2897, %v3136
        %v3197 = vadd.f32 %v2898, %v3139
        %v3198 = vadd.f32 %v2899, %v3141
        %v3199 = vadd.f32 %v2900, %v3144
        %v3200 = vadd.f32 %v2901, %v3146
        %v3201 = vadd.f32 %v2902, %v3149
        %v3202 = vadd.f32 %v2903, %v3151
        %v3203 = vadd.f32 %v2904, %v3154
        %v3204 = vadd.f32 %v2905, %v3156
        %v3205 = vadd.f32 %v2906, %v3159
        %v3206 = vadd.f32 %v2907, %v3161
        %v3207 = vadd.f32 %v2908, %v3164
        %v3208 = vadd.f32 %v2909, %v3166
        %v3209 = vadd.f32 %v2910, %v3169
        %v3210 = vadd.f32 %v2911, %v3171
        %v3211 = vadd.f32 %v2912, %v3174
        %v3212 = vadd.f32 %v2913, %v3176
        %v3213 = vadd.f32 %v2914, %v3179
        %v3214 = vadd.f32 %v2915, %v3181
        %v3215 = vld [vmem:[%s2916] sm:$0xf]
        %v3216 = vld [vmem:[%s2916 + $0x4] sm:$0xf]
        %v3217 = vld [vmem:[%s2916 + $0x8] sm:$0x1]
        %v3218 = vld [vmem:[%s2916 + $0xc] sm:$0xf]
        %v3219 = vld [vmem:[%s2916 + $0x10] sm:$0xf]
        %v3220 = vld [vmem:[%s2916 + $0x14] sm:$0x1]
        %v3221 = vld [vmem:[%s2916 + $0x18] sm:$0xf]
        %v3222 = vld [vmem:[%s2916 + $0x1c] sm:$0xf]
        %v3223 = vld [vmem:[%s2916 + $0x20] sm:$0x1]
        %v3224 = vld [vmem:[%s2916 + $0x24] sm:$0xf]
        %v3225 = vld [vmem:[%s2916 + $0x28] sm:$0xf]
        %v3226 = vld [vmem:[%s2916 + $0x2c] sm:$0x1]
        %v3227 = vld [vmem:[%s2916 + $0x30] sm:$0xf]
        %v3228 = vld [vmem:[%s2916 + $0x34] sm:$0xf]
        %v3229 = vld [vmem:[%s2916 + $0x38] sm:$0x1]
        %v3230 = vld [vmem:[%s2916 + $0x3c] sm:$0xf]
        %v3231 = vld [vmem:[%s2916 + $0x40] sm:$0xf]
        %v3232 = vld [vmem:[%s2916 + $0x44] sm:$0x1]
        %v3233 = vld [vmem:[%s2916 + $0x48] sm:$0xf]
        %v3234 = vld [vmem:[%s2916 + $0x4c] sm:$0xf]
        %v3235 = vld [vmem:[%s2916 + $0x50] sm:$0x1]
        %v3236 = vld [vmem:[%s2916 + $0x54] sm:$0xf]
        %v3237 = vld [vmem:[%s2916 + $0x58] sm:$0xf]
        %v3238 = vld [vmem:[%s2916 + $0x5c] sm:$0x1]
        %v3239 = vld [vmem:[%s2916 + $0x60] sm:$0xf]
        %v3240 = vld [vmem:[%s2916 + $0x64] sm:$0xf]
        %v3241 = vld [vmem:[%s2916 + $0x68] sm:$0x1]
        %v3242 = vld [vmem:[%s2916 + $0x6c] sm:$0xf]
        %v3243 = vld [vmem:[%s2916 + $0x70] sm:$0xf]
        %v3244 = vld [vmem:[%s2916 + $0x74] sm:$0x1]
        %v3245 = vld [vmem:[%s2916 + $0x78] sm:$0xf]
        %v3246 = vld [vmem:[%s2916 + $0x7c] sm:$0xf]
        %v3247 = vld [vmem:[%s2916 + $0x80] sm:$0x1]
        %v3248 = vld [vmem:[%s2916 + $0x84] sm:$0xf]
        %v3249 = vld [vmem:[%s2916 + $0x88] sm:$0xf]
        %v3250 = vld [vmem:[%s2916 + $0x8c] sm:$0x1]
        %v3251 = vld [vmem:[%s2916 + $0x90] sm:$0xf]
        %v3252 = vld [vmem:[%s2916 + $0x94] sm:$0xf]
        %v3253 = vld [vmem:[%s2916 + $0x98] sm:$0x1]
        %v3254 = vld [vmem:[%s2916 + $0x9c] sm:$0xf]
        %v3255 = vld [vmem:[%s2916 + $0xa0] sm:$0xf]
        %v3256 = vld [vmem:[%s2916 + $0xa4] sm:$0x1]
        %v3257 = vld [vmem:[%s2916 + $0xa8] sm:$0xf]
        %v3258 = vld [vmem:[%s2916 + $0xac] sm:$0xf]
        %v3259 = vld [vmem:[%s2916 + $0xb0] sm:$0x1]
        %v3260 = vld [vmem:[%s2916 + $0xb4] sm:$0xf]
        %v3261 = vld [vmem:[%s2916 + $0xb8] sm:$0xf]
        %v3262 = vld [vmem:[%s2916 + $0xbc] sm:$0x1]
        %v3264 = vshrl.u32 %v3215, 16
        %v3266 = vrot.slane %v3264, 4
        %v3267 = vshll.u32 %v3215, 16
        %v3269 = vrot.slane %v3267, 5
        %v3270 = vor.u32 %v3266, %v3269
        %v3271 = vrot.slane %v3270, 4
        %v3273 = vshll.u32 %v3216, 16
        %v3275 = vrot.slane %v3273, 5
        %v3276 = vsel %vm327, %v3271, %v3275
        %v3277 = vshrl.u32 %v3216, 16
        %v3279 = vrot.slane %v3277, 4
        %v3280 = vor.u32 %v3279, %v3275
        %v3281 = vrot.slane %v3280, 4
        %v3283 = vshll.u32 %v3217, 16
        %v3285 = vrot.slane %v3283, 5
        %v3286 = vsel %vm327, %v3281, %v3285
        %v3288 = vshrl.u32 %v3218, 16
        %v3290 = vrot.slane %v3288, 4
        %v3291 = vshll.u32 %v3218, 16
        %v3293 = vrot.slane %v3291, 5
        %v3294 = vor.u32 %v3290, %v3293
        %v3295 = vrot.slane %v3294, 4
        %v3297 = vshll.u32 %v3219, 16
        %v3299 = vrot.slane %v3297, 5
        %v3300 = vsel %vm327, %v3295, %v3299
        %v3301 = vshrl.u32 %v3219, 16
        %v3303 = vrot.slane %v3301, 4
        %v3304 = vor.u32 %v3303, %v3299
        %v3305 = vrot.slane %v3304, 4
        %v3307 = vshll.u32 %v3220, 16
        %v3309 = vrot.slane %v3307, 5
        %v3310 = vsel %vm327, %v3305, %v3309
        %v3312 = vshrl.u32 %v3221, 16
        %v3314 = vrot.slane %v3312, 4
        %v3315 = vshll.u32 %v3221, 16
        %v3317 = vrot.slane %v3315, 5
        %v3318 = vor.u32 %v3314, %v3317
        %v3319 = vrot.slane %v3318, 4
        %v3321 = vshll.u32 %v3222, 16
        %v3323 = vrot.slane %v3321, 5
        %v3324 = vsel %vm327, %v3319, %v3323
        %v3325 = vshrl.u32 %v3222, 16
        %v3327 = vrot.slane %v3325, 4
        %v3328 = vor.u32 %v3327, %v3323
        %v3329 = vrot.slane %v3328, 4
        %v3331 = vshll.u32 %v3223, 16
        %v3333 = vrot.slane %v3331, 5
        %v3334 = vsel %vm327, %v3329, %v3333
        %v3336 = vshrl.u32 %v3224, 16
        %v3338 = vrot.slane %v3336, 4
        %v3339 = vshll.u32 %v3224, 16
        %v3341 = vrot.slane %v3339, 5
        %v3342 = vor.u32 %v3338, %v3341
        %v3343 = vrot.slane %v3342, 4
        %v3345 = vshll.u32 %v3225, 16
        %v3347 = vrot.slane %v3345, 5
        %v3348 = vsel %vm327, %v3343, %v3347
        %v3349 = vshrl.u32 %v3225, 16
        %v3351 = vrot.slane %v3349, 4
        %v3352 = vor.u32 %v3351, %v3347
        %v3353 = vrot.slane %v3352, 4
        %v3355 = vshll.u32 %v3226, 16
        %v3357 = vrot.slane %v3355, 5
        %v3358 = vsel %vm327, %v3353, %v3357
        %v3360 = vshrl.u32 %v3227, 16
        %v3362 = vrot.slane %v3360, 4
        %v3363 = vshll.u32 %v3227, 16
        %v3365 = vrot.slane %v3363, 5
        %v3366 = vor.u32 %v3362, %v3365
        %v3367 = vrot.slane %v3366, 4
        %v3369 = vshll.u32 %v3228, 16
        %v3371 = vrot.slane %v3369, 5
        %v3372 = vsel %vm327, %v3367, %v3371
        %v3373 = vshrl.u32 %v3228, 16
        %v3375 = vrot.slane %v3373, 4
        %v3376 = vor.u32 %v3375, %v3371
        %v3377 = vrot.slane %v3376, 4
        %v3379 = vshll.u32 %v3229, 16
        %v3381 = vrot.slane %v3379, 5
        %v3382 = vsel %vm327, %v3377, %v3381
        %v3384 = vshrl.u32 %v3230, 16
        %v3386 = vrot.slane %v3384, 4
        %v3387 = vshll.u32 %v3230, 16
        %v3389 = vrot.slane %v3387, 5
        %v3390 = vor.u32 %v3386, %v3389
        %v3391 = vrot.slane %v3390, 4
        %v3393 = vshll.u32 %v3231, 16
        %v3395 = vrot.slane %v3393, 5
        %v3396 = vsel %vm327, %v3391, %v3395
        %v3397 = vshrl.u32 %v3231, 16
        %v3399 = vrot.slane %v3397, 4
        %v3400 = vor.u32 %v3399, %v3395
        %v3401 = vrot.slane %v3400, 4
        %v3403 = vshll.u32 %v3232, 16
        %v3405 = vrot.slane %v3403, 5
        %v3406 = vsel %vm327, %v3401, %v3405
        %v3408 = vshrl.u32 %v3233, 16
        %v3410 = vrot.slane %v3408, 4
        %v3411 = vshll.u32 %v3233, 16
        %v3413 = vrot.slane %v3411, 5
        %v3414 = vor.u32 %v3410, %v3413
        %v3415 = vrot.slane %v3414, 4
        %v3417 = vshll.u32 %v3234, 16
        %v3419 = vrot.slane %v3417, 5
        %v3420 = vsel %vm327, %v3415, %v3419
        %v3421 = vshrl.u32 %v3234, 16
        %v3423 = vrot.slane %v3421, 4
        %v3424 = vor.u32 %v3423, %v3419
        %v3425 = vrot.slane %v3424, 4
        %v3427 = vshll.u32 %v3235, 16
        %v3429 = vrot.slane %v3427, 5
        %v3430 = vsel %vm327, %v3425, %v3429
        %v3432 = vshrl.u32 %v3236, 16
        %v3434 = vrot.slane %v3432, 4
        %v3435 = vshll.u32 %v3236, 16
        %v3437 = vrot.slane %v3435, 5
        %v3438 = vor.u32 %v3434, %v3437
        %v3439 = vrot.slane %v3438, 4
        %v3441 = vshll.u32 %v3237, 16
        %v3443 = vrot.slane %v3441, 5
        %v3444 = vsel %vm327, %v3439, %v3443
        %v3445 = vshrl.u32 %v3237, 16
        %v3447 = vrot.slane %v3445, 4
        %v3448 = vor.u32 %v3447, %v3443
        %v3449 = vrot.slane %v3448, 4
        %v3451 = vshll.u32 %v3238, 16
        %v3453 = vrot.slane %v3451, 5
        %v3454 = vsel %vm327, %v3449, %v3453
        %v3456 = vshrl.u32 %v3239, 16
        %v3458 = vrot.slane %v3456, 4
        %v3459 = vshll.u32 %v3239, 16
        %v3461 = vrot.slane %v3459, 5
        %v3462 = vor.u32 %v3458, %v3461
        %v3463 = vrot.slane %v3462, 4
        %v3465 = vshll.u32 %v3240, 16
        %v3467 = vrot.slane %v3465, 5
        %v3468 = vsel %vm327, %v3463, %v3467
        %v3469 = vshrl.u32 %v3240, 16
        %v3471 = vrot.slane %v3469, 4
        %v3472 = vor.u32 %v3471, %v3467
        %v3473 = vrot.slane %v3472, 4
        %v3475 = vshll.u32 %v3241, 16
        %v3477 = vrot.slane %v3475, 5
        %v3478 = vsel %vm327, %v3473, %v3477
        %v3480 = vshrl.u32 %v3242, 16
        %v3482 = vrot.slane %v3480, 4
        %v3483 = vshll.u32 %v3242, 16
        %v3485 = vrot.slane %v3483, 5
        %v3486 = vor.u32 %v3482, %v3485
        %v3487 = vrot.slane %v3486, 4
        %v3489 = vshll.u32 %v3243, 16
        %v3491 = vrot.slane %v3489, 5
        %v3492 = vsel %vm327, %v3487, %v3491
        %v3493 = vshrl.u32 %v3243, 16
        %v3495 = vrot.slane %v3493, 4
        %v3496 = vor.u32 %v3495, %v3491
        %v3497 = vrot.slane %v3496, 4
        %v3499 = vshll.u32 %v3244, 16
        %v3501 = vrot.slane %v3499, 5
        %v3502 = vsel %vm327, %v3497, %v3501
        %v3504 = vshrl.u32 %v3245, 16
        %v3506 = vrot.slane %v3504, 4
        %v3507 = vshll.u32 %v3245, 16
        %v3509 = vrot.slane %v3507, 5
        %v3510 = vor.u32 %v3506, %v3509
        %v3511 = vrot.slane %v3510, 4
        %v3513 = vshll.u32 %v3246, 16
        %v3515 = vrot.slane %v3513, 5
        %v3516 = vsel %vm327, %v3511, %v3515
        %v3517 = vshrl.u32 %v3246, 16
        %v3519 = vrot.slane %v3517, 4
        %v3520 = vor.u32 %v3519, %v3515
        %v3521 = vrot.slane %v3520, 4
        %v3523 = vshll.u32 %v3247, 16
        %v3525 = vrot.slane %v3523, 5
        %v3526 = vsel %vm327, %v3521, %v3525
        %v3528 = vshrl.u32 %v3248, 16
        %v3530 = vrot.slane %v3528, 4
        %v3531 = vshll.u32 %v3248, 16
        %v3533 = vrot.slane %v3531, 5
        %v3534 = vor.u32 %v3530, %v3533
        %v3535 = vrot.slane %v3534, 4
        %v3537 = vshll.u32 %v3249, 16
        %v3539 = vrot.slane %v3537, 5
        %v3540 = vsel %vm327, %v3535, %v3539
        %v3541 = vshrl.u32 %v3249, 16
        %v3543 = vrot.slane %v3541, 4
        %v3544 = vor.u32 %v3543, %v3539
        %v3545 = vrot.slane %v3544, 4
        %v3547 = vshll.u32 %v3250, 16
        %v3549 = vrot.slane %v3547, 5
        %v3550 = vsel %vm327, %v3545, %v3549
        %v3552 = vshrl.u32 %v3251, 16
        %v3554 = vrot.slane %v3552, 4
        %v3555 = vshll.u32 %v3251, 16
        %v3557 = vrot.slane %v3555, 5
        %v3558 = vor.u32 %v3554, %v3557
        %v3559 = vrot.slane %v3558, 4
        %v3561 = vshll.u32 %v3252, 16
        %v3563 = vrot.slane %v3561, 5
        %v3564 = vsel %vm327, %v3559, %v3563
        %v3565 = vshrl.u32 %v3252, 16
        %v3567 = vrot.slane %v3565, 4
        %v3568 = vor.u32 %v3567, %v3563
        %v3569 = vrot.slane %v3568, 4
        %v3571 = vshll.u32 %v3253, 16
        %v3573 = vrot.slane %v3571, 5
        %v3574 = vsel %vm327, %v3569, %v3573
        %v3576 = vshrl.u32 %v3254, 16
        %v3578 = vrot.slane %v3576, 4
        %v3579 = vshll.u32 %v3254, 16
        %v3581 = vrot.slane %v3579, 5
        %v3582 = vor.u32 %v3578, %v3581
        %v3583 = vrot.slane %v3582, 4
        %v3585 = vshll.u32 %v3255, 16
        %v3587 = vrot.slane %v3585, 5
        %v3588 = vsel %vm327, %v3583, %v3587
        %v3589 = vshrl.u32 %v3255, 16
        %v3591 = vrot.slane %v3589, 4
        %v3592 = vor.u32 %v3591, %v3587
        %v3593 = vrot.slane %v3592, 4
        %v3595 = vshll.u32 %v3256, 16
        %v3597 = vrot.slane %v3595, 5
        %v3598 = vsel %vm327, %v3593, %v3597
        %v3600 = vshrl.u32 %v3257, 16
        %v3602 = vrot.slane %v3600, 4
        %v3603 = vshll.u32 %v3257, 16
        %v3605 = vrot.slane %v3603, 5
        %v3606 = vor.u32 %v3602, %v3605
        %v3607 = vrot.slane %v3606, 4
        %v3609 = vshll.u32 %v3258, 16
        %v3611 = vrot.slane %v3609, 5
        %v3612 = vsel %vm327, %v3607, %v3611
        %v3613 = vshrl.u32 %v3258, 16
        %v3615 = vrot.slane %v3613, 4
        %v3616 = vor.u32 %v3615, %v3611
        %v3617 = vrot.slane %v3616, 4
        %v3619 = vshll.u32 %v3259, 16
        %v3621 = vrot.slane %v3619, 5
        %v3622 = vsel %vm327, %v3617, %v3621
        %v3624 = vshrl.u32 %v3260, 16
        %v3626 = vrot.slane %v3624, 4
        %v3627 = vshll.u32 %v3260, 16
        %v3629 = vrot.slane %v3627, 5
        %v3630 = vor.u32 %v3626, %v3629
        %v3631 = vrot.slane %v3630, 4
        %v3633 = vshll.u32 %v3261, 16
        %v3635 = vrot.slane %v3633, 5
        %v3636 = vsel %vm327, %v3631, %v3635
        %v3637 = vshrl.u32 %v3261, 16
        %v3639 = vrot.slane %v3637, 4
        %v3640 = vor.u32 %v3639, %v3635
        %v3641 = vrot.slane %v3640, 4
        %v3643 = vshll.u32 %v3262, 16
        %v3645 = vrot.slane %v3643, 5
        %v3646 = vsel %vm327, %v3641, %v3645
        %s3647 = scalar_lea.vmem %s260, 112
        %v3648 = vld [vmem:[%s3647] sm:$0xf]
        %v3649 = vld [vmem:[%s3647 + $0x4] sm:$0xf]
        %v3650 = vld [vmem:[%s3647 + $0x8] sm:$0xf]
        %v3651 = vld [vmem:[%s3647 + $0xc] sm:$0xf]
        %v3652 = vunpack.c.l.b16 %v3276
        %v3653 = vunpack.c.l.b16 %v3286
        %v3654 = vunpack.c.l.b16 %v3300
        %v3655 = vunpack.c.l.b16 %v3310
        %v3656 = vunpack.c.l.b16 %v3324
        %v3657 = vunpack.c.l.b16 %v3334
        %v3658 = vunpack.c.l.b16 %v3348
        %v3659 = vunpack.c.l.b16 %v3358
        %v3660 = vunpack.c.l.b16 %v3372
        %v3661 = vunpack.c.l.b16 %v3382
        %v3662 = vunpack.c.l.b16 %v3396
        %v3663 = vunpack.c.l.b16 %v3406
        %v3664 = vunpack.c.l.b16 %v3420
        %v3665 = vunpack.c.l.b16 %v3430
        %v3666 = vunpack.c.l.b16 %v3444
        %v3667 = vunpack.c.l.b16 %v3454
        %v3668 = vunpack.c.l.b16 %v3468
        %v3669 = vunpack.c.l.b16 %v3478
        %v3670 = vunpack.c.l.b16 %v3492
        %v3671 = vunpack.c.l.b16 %v3502
        %v3672 = vunpack.c.l.b16 %v3516
        %v3673 = vunpack.c.l.b16 %v3526
        %v3674 = vunpack.c.l.b16 %v3540
        %v3675 = vunpack.c.l.b16 %v3550
        %v3676 = vunpack.c.l.b16 %v3564
        %v3677 = vunpack.c.l.b16 %v3574
        %v3678 = vunpack.c.l.b16 %v3588
        %v3679 = vunpack.c.l.b16 %v3598
        %v3680 = vunpack.c.l.b16 %v3612
        %v3681 = vunpack.c.l.b16 %v3622
        %v3682 = vunpack.c.l.b16 %v3636
        %v3683 = vunpack.c.l.b16 %v3646
        %v3684 = vpack.c.b16 %v3653, %v3652
        %v3685 = vpack.c.b16 %v3655, %v3654
        %v3686 = vpack.c.b16 %v3657, %v3656
        %v3687 = vpack.c.b16 %v3659, %v3658
        %v3688 = vpack.c.b16 %v3661, %v3660
        %v3689 = vpack.c.b16 %v3663, %v3662
        %v3690 = vpack.c.b16 %v3665, %v3664
        %v3691 = vpack.c.b16 %v3667, %v3666
        %v3692 = vpack.c.b16 %v3669, %v3668
        %v3693 = vpack.c.b16 %v3671, %v3670
        %v3694 = vpack.c.b16 %v3673, %v3672
        %v3695 = vpack.c.b16 %v3675, %v3674
        %v3696 = vpack.c.b16 %v3677, %v3676
        %v3697 = vpack.c.b16 %v3679, %v3678
        %v3698 = vpack.c.b16 %v3681, %v3680
        %v3699 = vpack.c.b16 %v3683, %v3682
        %v3704 = vunpack.c.l.b16 %v3648
        %v3705 = vunpack.c.l.b16 %v3649
        %v3706 = vunpack.c.l.b16 %v3650
        %v3707 = vunpack.c.l.b16 %v3651
        %v3708 = vpack.c.b16 %v3705, %v3704
        %v3709 = vpack.c.b16 %v3707, %v3706
        %v3713 = vsel %vm777, %v3684, 0
        %v3716 = vsel %vm777, %v3685, 0
        %v3719 = vsel %vm777, %v3686, 0
        %v3722 = vsel %vm777, %v3687, 0
        %v3725 = vsel %vm777, %v3688, 0
        %v3728 = vsel %vm777, %v3689, 0
        %v3731 = vsel %vm777, %v3690, 0
        %v3734 = vsel %vm777, %v3691, 0
        %v3737 = vsel %vm777, %v3692, 0
        %v3740 = vsel %vm777, %v3693, 0
        %v3743 = vsel %vm777, %v3694, 0
        %v3746 = vsel %vm777, %v3695, 0
        %v3749 = vsel %vm777, %v3696, 0
        %v3752 = vsel %vm777, %v3697, 0
        %v3755 = vsel %vm777, %v3698, 0
        %v3758 = vsel %vm777, %v3699, 0
        %3760 = vmatpush.bf16.msra.mxu0 0
        %3761 = vmatpush.bf16.msra.mxu0 0
        %3762 = vmatpush.bf16.msra.mxu0 0
        %3763 = vmatpush.bf16.msra.mxu0 0
        %3764 = vmatpush.bf16.msra.mxu0 0
        %3765 = vmatpush.bf16.msra.mxu0 0
        %3766 = vmatpush.bf16.msra.mxu0 %v3709
        %3767 = vmatpush.bf16.msra.mxu0 %v3708
        %3768 = vmatmul.bf16.gmra.mxu0 %v3713
        %v3769 = vpop.f32.mrf.mxu0
        %v3770 = vadd.f32 0.0, %v3769
        %v3771 = vpop.f32.mrf.mxu0
        %v3772 = vadd.f32 0.0, %v3771
        %3773 = vmatmul.bf16.gmra.mxu0 %v3716
        %v3774 = vpop.f32.mrf.mxu0
        %v3775 = vadd.f32 0.0, %v3774
        %v3776 = vpop.f32.mrf.mxu0
        %v3777 = vadd.f32 0.0, %v3776
        %3778 = vmatmul.bf16.gmra.mxu0 %v3719
        %v3779 = vpop.f32.mrf.mxu0
        %v3780 = vadd.f32 0.0, %v3779
        %v3781 = vpop.f32.mrf.mxu0
        %v3782 = vadd.f32 0.0, %v3781
        %3783 = vmatmul.bf16.gmra.mxu0 %v3722
        %v3784 = vpop.f32.mrf.mxu0
        %v3785 = vadd.f32 0.0, %v3784
        %v3786 = vpop.f32.mrf.mxu0
        %v3787 = vadd.f32 0.0, %v3786
        %3788 = vmatmul.bf16.gmra.mxu0 %v3725
        %v3789 = vpop.f32.mrf.mxu0
        %v3790 = vadd.f32 0.0, %v3789
        %v3791 = vpop.f32.mrf.mxu0
        %v3792 = vadd.f32 0.0, %v3791
        %3793 = vmatmul.bf16.gmra.mxu0 %v3728
        %v3794 = vpop.f32.mrf.mxu0
        %v3795 = vadd.f32 0.0, %v3794
        %v3796 = vpop.f32.mrf.mxu0
        %v3797 = vadd.f32 0.0, %v3796
        %3798 = vmatmul.bf16.gmra.mxu0 %v3731
        %v3799 = vpop.f32.mrf.mxu0
        %v3800 = vadd.f32 0.0, %v3799
        %v3801 = vpop.f32.mrf.mxu0
        %v3802 = vadd.f32 0.0, %v3801
        %3803 = vmatmul.bf16.gmra.mxu0 %v3734
        %v3804 = vpop.f32.mrf.mxu0
        %v3805 = vadd.f32 0.0, %v3804
        %v3806 = vpop.f32.mrf.mxu0
        %v3807 = vadd.f32 0.0, %v3806
        %3808 = vmatmul.bf16.gmra.mxu0 %v3737
        %v3809 = vpop.f32.mrf.mxu0
        %v3810 = vadd.f32 0.0, %v3809
        %v3811 = vpop.f32.mrf.mxu0
        %v3812 = vadd.f32 0.0, %v3811
        %3813 = vmatmul.bf16.gmra.mxu0 %v3740
        %v3814 = vpop.f32.mrf.mxu0
        %v3815 = vadd.f32 0.0, %v3814
        %v3816 = vpop.f32.mrf.mxu0
        %v3817 = vadd.f32 0.0, %v3816
        %3818 = vmatmul.bf16.gmra.mxu0 %v3743
        %v3819 = vpop.f32.mrf.mxu0
        %v3820 = vadd.f32 0.0, %v3819
        %v3821 = vpop.f32.mrf.mxu0
        %v3822 = vadd.f32 0.0, %v3821
        %3823 = vmatmul.bf16.gmra.mxu0 %v3746
        %v3824 = vpop.f32.mrf.mxu0
        %v3825 = vadd.f32 0.0, %v3824
        %v3826 = vpop.f32.mrf.mxu0
        %v3827 = vadd.f32 0.0, %v3826
        %3828 = vmatmul.bf16.gmra.mxu0 %v3749
        %v3829 = vpop.f32.mrf.mxu0
        %v3830 = vadd.f32 0.0, %v3829
        %v3831 = vpop.f32.mrf.mxu0
        %v3832 = vadd.f32 0.0, %v3831
        %3833 = vmatmul.bf16.gmra.mxu0 %v3752
        %v3834 = vpop.f32.mrf.mxu0
        %v3835 = vadd.f32 0.0, %v3834
        %v3836 = vpop.f32.mrf.mxu0
        %v3837 = vadd.f32 0.0, %v3836
        %3838 = vmatmul.bf16.gmra.mxu0 %v3755
        %v3839 = vpop.f32.mrf.mxu0
        %v3840 = vadd.f32 0.0, %v3839
        %v3841 = vpop.f32.mrf.mxu0
        %v3842 = vadd.f32 0.0, %v3841
        %3843 = vmatmul.bf16.gmra.mxu0 %v3758
        %v3844 = vpop.f32.mrf.mxu0
        %v3845 = vadd.f32 0.0, %v3844
        %v3846 = vpop.f32.mrf.mxu0
        %v3847 = vadd.f32 0.0, %v3846
        %3848 = vdwg.mxu0
        %v3849 = vadd.f32 %v3183, %v3770
        %v3850 = vadd.f32 %v3184, %v3772
        %v3851 = vadd.f32 %v3185, %v3775
        %v3852 = vadd.f32 %v3186, %v3777
        %v3853 = vadd.f32 %v3187, %v3780
        %v3854 = vadd.f32 %v3188, %v3782
        %v3855 = vadd.f32 %v3189, %v3785
        %v3856 = vadd.f32 %v3190, %v3787
        %v3857 = vadd.f32 %v3191, %v3790
        %v3858 = vadd.f32 %v3192, %v3792
        %v3859 = vadd.f32 %v3193, %v3795
        %v3860 = vadd.f32 %v3194, %v3797
        %v3861 = vadd.f32 %v3195, %v3800
        %v3862 = vadd.f32 %v3196, %v3802
        %v3863 = vadd.f32 %v3197, %v3805
        %v3864 = vadd.f32 %v3198, %v3807
        %v3865 = vadd.f32 %v3199, %v3810
        %v3866 = vadd.f32 %v3200, %v3812
        %v3867 = vadd.f32 %v3201, %v3815
        %v3868 = vadd.f32 %v3202, %v3817
        %v3869 = vadd.f32 %v3203, %v3820
        %v3870 = vadd.f32 %v3204, %v3822
        %v3871 = vadd.f32 %v3205, %v3825
        %v3872 = vadd.f32 %v3206, %v3827
        %v3873 = vadd.f32 %v3207, %v3830
        %v3874 = vadd.f32 %v3208, %v3832
        %v3875 = vadd.f32 %v3209, %v3835
        %v3876 = vadd.f32 %v3210, %v3837
        %v3877 = vadd.f32 %v3211, %v3840
        %v3878 = vadd.f32 %v3212, %v3842
        %v3879 = vadd.f32 %v3213, %v3845
        %v3880 = vadd.f32 %v3214, %v3847
        %v3881 = vld [vmem:[%s2916] sm:$0xe]
        %v3882 = vld [vmem:[%s2916 + $0xc] sm:$0xe]
        %v3883 = vld [vmem:[%s2916 + $0x18] sm:$0xe]
        %v3884 = vld [vmem:[%s2916 + $0x24] sm:$0xe]
        %v3885 = vld [vmem:[%s2916 + $0x30] sm:$0xe]
        %v3886 = vld [vmem:[%s2916 + $0x3c] sm:$0xe]
        %v3887 = vld [vmem:[%s2916 + $0x48] sm:$0xe]
        %v3888 = vld [vmem:[%s2916 + $0x54] sm:$0xe]
        %v3889 = vld [vmem:[%s2916 + $0x60] sm:$0xe]
        %v3890 = vld [vmem:[%s2916 + $0x6c] sm:$0xe]
        %v3891 = vld [vmem:[%s2916 + $0x78] sm:$0xe]
        %v3892 = vld [vmem:[%s2916 + $0x84] sm:$0xe]
        %v3893 = vld [vmem:[%s2916 + $0x90] sm:$0xe]
        %v3894 = vld [vmem:[%s2916 + $0x9c] sm:$0xe]
        %v3895 = vld [vmem:[%s2916 + $0xa8] sm:$0xe]
        %v3896 = vld [vmem:[%s2916 + $0xb4] sm:$0xe]
        %v3945 = vrot.slane %v3881, 5
        %v3946 = vrot.slane %v3945, 4
        %v3947 = vrot.slane %v3216, 5
        %v3948 = vsel %vm1194, %v3946, %v3947
        %v3949 = vrot.slane %v3947, 4
        %v3950 = vrot.slane %v3217, 5
        %v3951 = vsel %vm1194, %v3949, %v3950
        %v3952 = vrot.slane %v3882, 5
        %v3953 = vrot.slane %v3952, 4
        %v3954 = vrot.slane %v3219, 5
        %v3955 = vsel %vm1194, %v3953, %v3954
        %v3956 = vrot.slane %v3954, 4
        %v3957 = vrot.slane %v3220, 5
        %v3958 = vsel %vm1194, %v3956, %v3957
        %v3959 = vrot.slane %v3883, 5
        %v3960 = vrot.slane %v3959, 4
        %v3961 = vrot.slane %v3222, 5
        %v3962 = vsel %vm1194, %v3960, %v3961
        %v3963 = vrot.slane %v3961, 4
        %v3964 = vrot.slane %v3223, 5
        %v3965 = vsel %vm1194, %v3963, %v3964
        %v3966 = vrot.slane %v3884, 5
        %v3967 = vrot.slane %v3966, 4
        %v3968 = vrot.slane %v3225, 5
        %v3969 = vsel %vm1194, %v3967, %v3968
        %v3970 = vrot.slane %v3968, 4
        %v3971 = vrot.slane %v3226, 5
        %v3972 = vsel %vm1194, %v3970, %v3971
        %v3973 = vrot.slane %v3885, 5
        %v3974 = vrot.slane %v3973, 4
        %v3975 = vrot.slane %v3228, 5
        %v3976 = vsel %vm1194, %v3974, %v3975
        %v3977 = vrot.slane %v3975, 4
        %v3978 = vrot.slane %v3229, 5
        %v3979 = vsel %vm1194, %v3977, %v3978
        %v3980 = vrot.slane %v3886, 5
        %v3981 = vrot.slane %v3980, 4
        %v3982 = vrot.slane %v3231, 5
        %v3983 = vsel %vm1194, %v3981, %v3982
        %v3984 = vrot.slane %v3982, 4
        %v3985 = vrot.slane %v3232, 5
        %v3986 = vsel %vm1194, %v3984, %v3985
        %v3987 = vrot.slane %v3887, 5
        %v3988 = vrot.slane %v3987, 4
        %v3989 = vrot.slane %v3234, 5
        %v3990 = vsel %vm1194, %v3988, %v3989
        %v3991 = vrot.slane %v3989, 4
        %v3992 = vrot.slane %v3235, 5
        %v3993 = vsel %vm1194, %v3991, %v3992
        %v3994 = vrot.slane %v3888, 5
        %v3995 = vrot.slane %v3994, 4
        %v3996 = vrot.slane %v3237, 5
        %v3997 = vsel %vm1194, %v3995, %v3996
        %v3998 = vrot.slane %v3996, 4
        %v3999 = vrot.slane %v3238, 5
        %v4000 = vsel %vm1194, %v3998, %v3999
        %v4001 = vrot.slane %v3889, 5
        %v4002 = vrot.slane %v4001, 4
        %v4003 = vrot.slane %v3240, 5
        %v4004 = vsel %vm1194, %v4002, %v4003
        %v4005 = vrot.slane %v4003, 4
        %v4006 = vrot.slane %v3241, 5
        %v4007 = vsel %vm1194, %v4005, %v4006
        %v4008 = vrot.slane %v3890, 5
        %v4009 = vrot.slane %v4008, 4
        %v4010 = vrot.slane %v3243, 5
        %v4011 = vsel %vm1194, %v4009, %v4010
        %v4012 = vrot.slane %v4010, 4
        %v4013 = vrot.slane %v3244, 5
        %v4014 = vsel %vm1194, %v4012, %v4013
        %v4015 = vrot.slane %v3891, 5
        %v4016 = vrot.slane %v4015, 4
        %v4017 = vrot.slane %v3246, 5
        %v4018 = vsel %vm1194, %v4016, %v4017
        %v4019 = vrot.slane %v4017, 4
        %v4020 = vrot.slane %v3247, 5
        %v4021 = vsel %vm1194, %v4019, %v4020
        %v4022 = vrot.slane %v3892, 5
        %v4023 = vrot.slane %v4022, 4
        %v4024 = vrot.slane %v3249, 5
        %v4025 = vsel %vm1194, %v4023, %v4024
        %v4026 = vrot.slane %v4024, 4
        %v4027 = vrot.slane %v3250, 5
        %v4028 = vsel %vm1194, %v4026, %v4027
        %v4029 = vrot.slane %v3893, 5
        %v4030 = vrot.slane %v4029, 4
        %v4031 = vrot.slane %v3252, 5
        %v4032 = vsel %vm1194, %v4030, %v4031
        %v4033 = vrot.slane %v4031, 4
        %v4034 = vrot.slane %v3253, 5
        %v4035 = vsel %vm1194, %v4033, %v4034
        %v4036 = vrot.slane %v3894, 5
        %v4037 = vrot.slane %v4036, 4
        %v4038 = vrot.slane %v3255, 5
        %v4039 = vsel %vm1194, %v4037, %v4038
        %v4040 = vrot.slane %v4038, 4
        %v4041 = vrot.slane %v3256, 5
        %v4042 = vsel %vm1194, %v4040, %v4041
        %v4043 = vrot.slane %v3895, 5
        %v4044 = vrot.slane %v4043, 4
        %v4045 = vrot.slane %v3258, 5
        %v4046 = vsel %vm1194, %v4044, %v4045
        %v4047 = vrot.slane %v4045, 4
        %v4048 = vrot.slane %v3259, 5
        %v4049 = vsel %vm1194, %v4047, %v4048
        %v4050 = vrot.slane %v3896, 5
        %v4051 = vrot.slane %v4050, 4
        %v4052 = vrot.slane %v3261, 5
        %v4053 = vsel %vm1194, %v4051, %v4052
        %v4054 = vrot.slane %v4052, 4
        %v4055 = vrot.slane %v3262, 5
        %v4056 = vsel %vm1194, %v4054, %v4055
        %s4057 = scalar_lea.vmem %s260, 128
        %v4058 = vld [vmem:[%s4057] sm:$0xf]
        %v4059 = vld [vmem:[%s4057 + $0x4] sm:$0xf]
        %v4060 = vld [vmem:[%s4057 + $0x8] sm:$0xf]
        %v4061 = vld [vmem:[%s4057 + $0xc] sm:$0xf]
        %v4062 = vunpack.c.l.b16 %v3948
        %v4063 = vunpack.c.l.b16 %v3951
        %v4064 = vunpack.c.l.b16 %v3955
        %v4065 = vunpack.c.l.b16 %v3958
        %v4066 = vunpack.c.l.b16 %v3962
        %v4067 = vunpack.c.l.b16 %v3965
        %v4068 = vunpack.c.l.b16 %v3969
        %v4069 = vunpack.c.l.b16 %v3972
        %v4070 = vunpack.c.l.b16 %v3976
        %v4071 = vunpack.c.l.b16 %v3979
        %v4072 = vunpack.c.l.b16 %v3983
        %v4073 = vunpack.c.l.b16 %v3986
        %v4074 = vunpack.c.l.b16 %v3990
        %v4075 = vunpack.c.l.b16 %v3993
        %v4076 = vunpack.c.l.b16 %v3997
        %v4077 = vunpack.c.l.b16 %v4000
        %v4078 = vunpack.c.l.b16 %v4004
        %v4079 = vunpack.c.l.b16 %v4007
        %v4080 = vunpack.c.l.b16 %v4011
        %v4081 = vunpack.c.l.b16 %v4014
        %v4082 = vunpack.c.l.b16 %v4018
        %v4083 = vunpack.c.l.b16 %v4021
        %v4084 = vunpack.c.l.b16 %v4025
        %v4085 = vunpack.c.l.b16 %v4028
        %v4086 = vunpack.c.l.b16 %v4032
        %v4087 = vunpack.c.l.b16 %v4035
        %v4088 = vunpack.c.l.b16 %v4039
        %v4089 = vunpack.c.l.b16 %v4042
        %v4090 = vunpack.c.l.b16 %v4046
        %v4091 = vunpack.c.l.b16 %v4049
        %v4092 = vunpack.c.l.b16 %v4053
        %v4093 = vunpack.c.l.b16 %v4056
        %v4094 = vpack.c.b16 %v4063, %v4062
        %v4095 = vpack.c.b16 %v4065, %v4064
        %v4096 = vpack.c.b16 %v4067, %v4066
        %v4097 = vpack.c.b16 %v4069, %v4068
        %v4098 = vpack.c.b16 %v4071, %v4070
        %v4099 = vpack.c.b16 %v4073, %v4072
        %v4100 = vpack.c.b16 %v4075, %v4074
        %v4101 = vpack.c.b16 %v4077, %v4076
        %v4102 = vpack.c.b16 %v4079, %v4078
        %v4103 = vpack.c.b16 %v4081, %v4080
        %v4104 = vpack.c.b16 %v4083, %v4082
        %v4105 = vpack.c.b16 %v4085, %v4084
        %v4106 = vpack.c.b16 %v4087, %v4086
        %v4107 = vpack.c.b16 %v4089, %v4088
        %v4108 = vpack.c.b16 %v4091, %v4090
        %v4109 = vpack.c.b16 %v4093, %v4092
        %v4114 = vunpack.c.l.b16 %v4058
        %v4115 = vunpack.c.l.b16 %v4059
        %v4116 = vunpack.c.l.b16 %v4060
        %v4117 = vunpack.c.l.b16 %v4061
        %v4118 = vpack.c.b16 %v4115, %v4114
        %v4119 = vpack.c.b16 %v4117, %v4116
        %v4123 = vsel %vm777, %v4094, 0
        %v4126 = vsel %vm777, %v4095, 0
        %v4129 = vsel %vm777, %v4096, 0
        %v4132 = vsel %vm777, %v4097, 0
        %v4135 = vsel %vm777, %v4098, 0
        %v4138 = vsel %vm777, %v4099, 0
        %v4141 = vsel %vm777, %v4100, 0
        %v4144 = vsel %vm777, %v4101, 0
        %v4147 = vsel %vm777, %v4102, 0
        %v4150 = vsel %vm777, %v4103, 0
        %v4153 = vsel %vm777, %v4104, 0
        %v4156 = vsel %vm777, %v4105, 0
        %v4159 = vsel %vm777, %v4106, 0
        %v4162 = vsel %vm777, %v4107, 0
        %v4165 = vsel %vm777, %v4108, 0
        %v4168 = vsel %vm777, %v4109, 0
        %4170 = vmatpush.bf16.msra.mxu0 0
        %4171 = vmatpush.bf16.msra.mxu0 0
        %4172 = vmatpush.bf16.msra.mxu0 0
        %4173 = vmatpush.bf16.msra.mxu0 0
        %4174 = vmatpush.bf16.msra.mxu0 0
        %4175 = vmatpush.bf16.msra.mxu0 0
        %4176 = vmatpush.bf16.msra.mxu0 %v4119
        %4177 = vmatpush.bf16.msra.mxu0 %v4118
        %4178 = vmatmul.bf16.gmra.mxu0 %v4123
        %v4179 = vpop.f32.mrf.mxu0
        %v4180 = vadd.f32 0.0, %v4179
        %v4181 = vpop.f32.mrf.mxu0
        %v4182 = vadd.f32 0.0, %v4181
        %4183 = vmatmul.bf16.gmra.mxu0 %v4126
        %v4184 = vpop.f32.mrf.mxu0
        %v4185 = vadd.f32 0.0, %v4184
        %v4186 = vpop.f32.mrf.mxu0
        %v4187 = vadd.f32 0.0, %v4186
        %4188 = vmatmul.bf16.gmra.mxu0 %v4129
        %v4189 = vpop.f32.mrf.mxu0
        %v4190 = vadd.f32 0.0, %v4189
        %v4191 = vpop.f32.mrf.mxu0
        %v4192 = vadd.f32 0.0, %v4191
        %4193 = vmatmul.bf16.gmra.mxu0 %v4132
        %v4194 = vpop.f32.mrf.mxu0
        %v4195 = vadd.f32 0.0, %v4194
        %v4196 = vpop.f32.mrf.mxu0
        %v4197 = vadd.f32 0.0, %v4196
        %4198 = vmatmul.bf16.gmra.mxu0 %v4135
        %v4199 = vpop.f32.mrf.mxu0
        %v4200 = vadd.f32 0.0, %v4199
        %v4201 = vpop.f32.mrf.mxu0
        %v4202 = vadd.f32 0.0, %v4201
        %4203 = vmatmul.bf16.gmra.mxu0 %v4138
        %v4204 = vpop.f32.mrf.mxu0
        %v4205 = vadd.f32 0.0, %v4204
        %v4206 = vpop.f32.mrf.mxu0
        %v4207 = vadd.f32 0.0, %v4206
        %4208 = vmatmul.bf16.gmra.mxu0 %v4141
        %v4209 = vpop.f32.mrf.mxu0
        %v4210 = vadd.f32 0.0, %v4209
        %v4211 = vpop.f32.mrf.mxu0
        %v4212 = vadd.f32 0.0, %v4211
        %4213 = vmatmul.bf16.gmra.mxu0 %v4144
        %v4214 = vpop.f32.mrf.mxu0
        %v4215 = vadd.f32 0.0, %v4214
        %v4216 = vpop.f32.mrf.mxu0
        %v4217 = vadd.f32 0.0, %v4216
        %4218 = vmatmul.bf16.gmra.mxu0 %v4147
        %v4219 = vpop.f32.mrf.mxu0
        %v4220 = vadd.f32 0.0, %v4219
        %v4221 = vpop.f32.mrf.mxu0
        %v4222 = vadd.f32 0.0, %v4221
        %4223 = vmatmul.bf16.gmra.mxu0 %v4150
        %v4224 = vpop.f32.mrf.mxu0
        %v4225 = vadd.f32 0.0, %v4224
        %v4226 = vpop.f32.mrf.mxu0
        %v4227 = vadd.f32 0.0, %v4226
        %4228 = vmatmul.bf16.gmra.mxu0 %v4153
        %v4229 = vpop.f32.mrf.mxu0
        %v4230 = vadd.f32 0.0, %v4229
        %v4231 = vpop.f32.mrf.mxu0
        %v4232 = vadd.f32 0.0, %v4231
        %4233 = vmatmul.bf16.gmra.mxu0 %v4156
        %v4234 = vpop.f32.mrf.mxu0
        %v4235 = vadd.f32 0.0, %v4234
        %v4236 = vpop.f32.mrf.mxu0
        %v4237 = vadd.f32 0.0, %v4236
        %4238 = vmatmul.bf16.gmra.mxu0 %v4159
        %v4239 = vpop.f32.mrf.mxu0
        %v4240 = vadd.f32 0.0, %v4239
        %v4241 = vpop.f32.mrf.mxu0
        %v4242 = vadd.f32 0.0, %v4241
        %4243 = vmatmul.bf16.gmra.mxu0 %v4162
        %v4244 = vpop.f32.mrf.mxu0
        %v4245 = vadd.f32 0.0, %v4244
        %v4246 = vpop.f32.mrf.mxu0
        %v4247 = vadd.f32 0.0, %v4246
        %4248 = vmatmul.bf16.gmra.mxu0 %v4165
        %v4249 = vpop.f32.mrf.mxu0
        %v4250 = vadd.f32 0.0, %v4249
        %v4251 = vpop.f32.mrf.mxu0
        %v4252 = vadd.f32 0.0, %v4251
        %4253 = vmatmul.bf16.gmra.mxu0 %v4168
        %v4254 = vpop.f32.mrf.mxu0
        %v4255 = vadd.f32 0.0, %v4254
        %v4256 = vpop.f32.mrf.mxu0
        %v4257 = vadd.f32 0.0, %v4256
        %4258 = vdwg.mxu0
        %v4259 = vadd.f32 %v3849, %v4180
        %v4260 = vadd.f32 %v3850, %v4182
        %v4261 = vadd.f32 %v3851, %v4185
        %v4262 = vadd.f32 %v3852, %v4187
        %v4263 = vadd.f32 %v3853, %v4190
        %v4264 = vadd.f32 %v3854, %v4192
        %v4265 = vadd.f32 %v3855, %v4195
        %v4266 = vadd.f32 %v3856, %v4197
        %v4267 = vadd.f32 %v3857, %v4200
        %v4268 = vadd.f32 %v3858, %v4202
        %v4269 = vadd.f32 %v3859, %v4205
        %v4270 = vadd.f32 %v3860, %v4207
        %v4271 = vadd.f32 %v3861, %v4210
        %v4272 = vadd.f32 %v3862, %v4212
        %v4273 = vadd.f32 %v3863, %v4215
        %v4274 = vadd.f32 %v3864, %v4217
        %v4275 = vadd.f32 %v3865, %v4220
        %v4276 = vadd.f32 %v3866, %v4222
        %v4277 = vadd.f32 %v3867, %v4225
        %v4278 = vadd.f32 %v3868, %v4227
        %v4279 = vadd.f32 %v3869, %v4230
        %v4280 = vadd.f32 %v3870, %v4232
        %v4281 = vadd.f32 %v3871, %v4235
        %v4282 = vadd.f32 %v3872, %v4237
        %v4283 = vadd.f32 %v3873, %v4240
        %v4284 = vadd.f32 %v3874, %v4242
        %v4285 = vadd.f32 %v3875, %v4245
        %v4286 = vadd.f32 %v3876, %v4247
        %v4287 = vadd.f32 %v3877, %v4250
        %v4288 = vadd.f32 %v3878, %v4252
        %v4289 = vadd.f32 %v3879, %v4255
        %v4290 = vadd.f32 %v3880, %v4257
        %v4291 = vld [vmem:[%s263] sm:$0x1]
        %v4293 = vperm.slane %v4291, 0
        %v4295 = vadd.f32 %v4259, %v4293
        %v4296 = vadd.f32 %v4260, %v4293
        %v4297 = vadd.f32 %v4261, %v4293
        %v4298 = vadd.f32 %v4262, %v4293
        %v4299 = vadd.f32 %v4263, %v4293
        %v4300 = vadd.f32 %v4264, %v4293
        %v4301 = vadd.f32 %v4265, %v4293
        %v4302 = vadd.f32 %v4266, %v4293
        %v4303 = vadd.f32 %v4267, %v4293
        %v4304 = vadd.f32 %v4268, %v4293
        %v4305 = vadd.f32 %v4269, %v4293
        %v4306 = vadd.f32 %v4270, %v4293
        %v4307 = vadd.f32 %v4271, %v4293
        %v4308 = vadd.f32 %v4272, %v4293
        %v4309 = vadd.f32 %v4273, %v4293
        %v4310 = vadd.f32 %v4274, %v4293
        %v4311 = vadd.f32 %v4275, %v4293
        %v4312 = vadd.f32 %v4276, %v4293
        %v4313 = vadd.f32 %v4277, %v4293
        %v4314 = vadd.f32 %v4278, %v4293
        %v4315 = vadd.f32 %v4279, %v4293
        %v4316 = vadd.f32 %v4280, %v4293
        %v4317 = vadd.f32 %v4281, %v4293
        %v4318 = vadd.f32 %v4282, %v4293
        %v4319 = vadd.f32 %v4283, %v4293
        %v4320 = vadd.f32 %v4284, %v4293
        %v4321 = vadd.f32 %v4285, %v4293
        %v4322 = vadd.f32 %v4286, %v4293
        %v4323 = vadd.f32 %v4287, %v4293
        %v4324 = vadd.f32 %v4288, %v4293
        %v4325 = vadd.f32 %v4289, %v4293
        %v4326 = vadd.f32 %v4290, %v4293
        %v4327 = vsel %vm777, %v4295, 0.0
        %v4328 = vsel %vm777, %v4296, 0.0
        %v4329 = vadd.f32 %v4327, %v4328
        %v4330 = vsel %vm777, %v4297, 0.0
        %v4331 = vadd.f32 %v4329, %v4330
        %v4332 = vsel %vm777, %v4298, 0.0
        %v4333 = vadd.f32 %v4331, %v4332
        %v4334 = vsel %vm777, %v4299, 0.0
        %v4335 = vadd.f32 %v4333, %v4334
        %v4336 = vsel %vm777, %v4300, 0.0
        %v4337 = vadd.f32 %v4335, %v4336
        %v4338 = vsel %vm777, %v4301, 0.0
        %v4339 = vadd.f32 %v4337, %v4338
        %v4340 = vsel %vm777, %v4302, 0.0
        %v4341 = vadd.f32 %v4339, %v4340
        %v4342 = vsel %vm777, %v4303, 0.0
        %v4343 = vadd.f32 %v4341, %v4342
        %v4344 = vsel %vm777, %v4304, 0.0
        %v4345 = vadd.f32 %v4343, %v4344
        %v4346 = vsel %vm777, %v4305, 0.0
        %v4347 = vadd.f32 %v4345, %v4346
        %v4348 = vsel %vm777, %v4306, 0.0
        %v4349 = vadd.f32 %v4347, %v4348
        %v4350 = vsel %vm777, %v4307, 0.0
        %v4351 = vadd.f32 %v4349, %v4350
        %v4352 = vsel %vm777, %v4308, 0.0
        %v4353 = vadd.f32 %v4351, %v4352
        %v4354 = vsel %vm777, %v4309, 0.0
        %v4355 = vadd.f32 %v4353, %v4354
        %v4356 = vsel %vm777, %v4310, 0.0
        %v4357 = vadd.f32 %v4355, %v4356
        %v4358 = vsel %vm777, %v4311, 0.0
        %v4359 = vadd.f32 %v4357, %v4358
        %v4360 = vsel %vm777, %v4312, 0.0
        %v4361 = vadd.f32 %v4359, %v4360
        %v4362 = vsel %vm777, %v4313, 0.0
        %v4363 = vadd.f32 %v4361, %v4362
        %v4364 = vsel %vm777, %v4314, 0.0
        %v4365 = vadd.f32 %v4363, %v4364
        %v4366 = vsel %vm777, %v4315, 0.0
        %v4367 = vadd.f32 %v4365, %v4366
        %v4368 = vsel %vm777, %v4316, 0.0
        %v4369 = vadd.f32 %v4367, %v4368
        %v4370 = vsel %vm777, %v4317, 0.0
        %v4371 = vadd.f32 %v4369, %v4370
        %v4372 = vsel %vm777, %v4318, 0.0
        %v4373 = vadd.f32 %v4371, %v4372
        %v4374 = vsel %vm777, %v4319, 0.0
        %v4375 = vadd.f32 %v4373, %v4374
        %v4376 = vsel %vm777, %v4320, 0.0
        %v4377 = vadd.f32 %v4375, %v4376
        %v4378 = vsel %vm777, %v4321, 0.0
        %v4379 = vadd.f32 %v4377, %v4378
        %v4380 = vsel %vm777, %v4322, 0.0
        %v4381 = vadd.f32 %v4379, %v4380
        %v4382 = vsel %vm777, %v4323, 0.0
        %v4383 = vadd.f32 %v4381, %v4382
        %v4384 = vsel %vm777, %v4324, 0.0
        %v4385 = vadd.f32 %v4383, %v4384
        %v4386 = vsel %vm777, %v4325, 0.0
        %v4387 = vadd.f32 %v4385, %v4386
        %v4388 = vsel %vm777, %v4326, 0.0
        %v4389 = vadd.f32 %v4387, %v4388
        %v4390 = vrot.slane %v4389, 4
        %v4391 = vadd.f32 %v4389, %v4390
        %v4392 = vrot.slane %v4391, 2
        %v4393 = vadd.f32 %v4391, %v4392
        %v4394 = vrot.slane %v4393, 1
        %v4395 = vadd.f32 %v4393, %v4394
        %v4396 = vrcp.pop 256.0
        %v4397 = vmul.f32 256.0, %v4396
        %v4398 = vsub.f32 1.0, %v4397
        %v4399 = vmul.f32 %v4396, %v4398
        %v4400 = vadd.f32 %v4396, %v4399
        %vm4401 = vweird.f32 %v4396
        %v4402 = vsel %vm4401, %v4396, %v4400
        %v4403 = vmul.f32 %v4395, %v4402
        %v4404 = vsub.f32 %v4295, %v4403
        %v4405 = vsub.f32 %v4296, %v4403
        %v4406 = vsub.f32 %v4297, %v4403
        %v4407 = vsub.f32 %v4298, %v4403
        %v4408 = vsub.f32 %v4299, %v4403
        %v4409 = vsub.f32 %v4300, %v4403
        %v4410 = vsub.f32 %v4301, %v4403
        %v4411 = vsub.f32 %v4302, %v4403
        %v4412 = vsub.f32 %v4303, %v4403
        %v4413 = vsub.f32 %v4304, %v4403
        %v4414 = vsub.f32 %v4305, %v4403
        %v4415 = vsub.f32 %v4306, %v4403
        %v4416 = vsub.f32 %v4307, %v4403
        %v4417 = vsub.f32 %v4308, %v4403
        %v4418 = vsub.f32 %v4309, %v4403
        %v4419 = vsub.f32 %v4310, %v4403
        %v4420 = vsub.f32 %v4311, %v4403
        %v4421 = vsub.f32 %v4312, %v4403
        %v4422 = vsub.f32 %v4313, %v4403
        %v4423 = vsub.f32 %v4314, %v4403
        %v4424 = vsub.f32 %v4315, %v4403
        %v4425 = vsub.f32 %v4316, %v4403
        %v4426 = vsub.f32 %v4317, %v4403
        %v4427 = vsub.f32 %v4318, %v4403
        %v4428 = vsub.f32 %v4319, %v4403
        %v4429 = vsub.f32 %v4320, %v4403
        %v4430 = vsub.f32 %v4321, %v4403
        %v4431 = vsub.f32 %v4322, %v4403
        %v4432 = vsub.f32 %v4323, %v4403
        %v4433 = vsub.f32 %v4324, %v4403
        %v4434 = vsub.f32 %v4325, %v4403
        %v4435 = vsub.f32 %v4326, %v4403
        %v4436 = vmul.f32 %v4404, %v4404
        %v4437 = vmul.f32 %v4405, %v4405
        %v4438 = vmul.f32 %v4406, %v4406
        %v4439 = vmul.f32 %v4407, %v4407
        %v4440 = vmul.f32 %v4408, %v4408
        %v4441 = vmul.f32 %v4409, %v4409
        %v4442 = vmul.f32 %v4410, %v4410
        %v4443 = vmul.f32 %v4411, %v4411
        %v4444 = vmul.f32 %v4412, %v4412
        %v4445 = vmul.f32 %v4413, %v4413
        %v4446 = vmul.f32 %v4414, %v4414
        %v4447 = vmul.f32 %v4415, %v4415
        %v4448 = vmul.f32 %v4416, %v4416
        %v4449 = vmul.f32 %v4417, %v4417
        %v4450 = vmul.f32 %v4418, %v4418
        %v4451 = vmul.f32 %v4419, %v4419
        %v4452 = vmul.f32 %v4420, %v4420
        %v4453 = vmul.f32 %v4421, %v4421
        %v4454 = vmul.f32 %v4422, %v4422
        %v4455 = vmul.f32 %v4423, %v4423
        %v4456 = vmul.f32 %v4424, %v4424
        %v4457 = vmul.f32 %v4425, %v4425
        %v4458 = vmul.f32 %v4426, %v4426
        %v4459 = vmul.f32 %v4427, %v4427
        %v4460 = vmul.f32 %v4428, %v4428
        %v4461 = vmul.f32 %v4429, %v4429
        %v4462 = vmul.f32 %v4430, %v4430
        %v4463 = vmul.f32 %v4431, %v4431
        %v4464 = vmul.f32 %v4432, %v4432
        %v4465 = vmul.f32 %v4433, %v4433
        %v4466 = vmul.f32 %v4434, %v4434
        %v4467 = vmul.f32 %v4435, %v4435
        %v4468 = vsel %vm777, %v4436, 0.0
        %v4469 = vsel %vm777, %v4437, 0.0
        %v4470 = vadd.f32 %v4468, %v4469
        %v4471 = vsel %vm777, %v4438, 0.0
        %v4472 = vadd.f32 %v4470, %v4471
        %v4473 = vsel %vm777, %v4439, 0.0
        %v4474 = vadd.f32 %v4472, %v4473
        %v4475 = vsel %vm777, %v4440, 0.0
        %v4476 = vadd.f32 %v4474, %v4475
        %v4477 = vsel %vm777, %v4441, 0.0
        %v4478 = vadd.f32 %v4476, %v4477
        %v4479 = vsel %vm777, %v4442, 0.0
        %v4480 = vadd.f32 %v4478, %v4479
        %v4481 = vsel %vm777, %v4443, 0.0
        %v4482 = vadd.f32 %v4480, %v4481
        %v4483 = vsel %vm777, %v4444, 0.0
        %v4484 = vadd.f32 %v4482, %v4483
        %v4485 = vsel %vm777, %v4445, 0.0
        %v4486 = vadd.f32 %v4484, %v4485
        %v4487 = vsel %vm777, %v4446, 0.0
        %v4488 = vadd.f32 %v4486, %v4487
        %v4489 = vsel %vm777, %v4447, 0.0
        %v4490 = vadd.f32 %v4488, %v4489
        %v4491 = vsel %vm777, %v4448, 0.0
        %v4492 = vadd.f32 %v4490, %v4491
        %v4493 = vsel %vm777, %v4449, 0.0
        %v4494 = vadd.f32 %v4492, %v4493
        %v4495 = vsel %vm777, %v4450, 0.0
        %v4496 = vadd.f32 %v4494, %v4495
        %v4497 = vsel %vm777, %v4451, 0.0
        %v4498 = vadd.f32 %v4496, %v4497
        %v4499 = vsel %vm777, %v4452, 0.0
        %v4500 = vadd.f32 %v4498, %v4499
        %v4501 = vsel %vm777, %v4453, 0.0
        %v4502 = vadd.f32 %v4500, %v4501
        %v4503 = vsel %vm777, %v4454, 0.0
        %v4504 = vadd.f32 %v4502, %v4503
        %v4505 = vsel %vm777, %v4455, 0.0
        %v4506 = vadd.f32 %v4504, %v4505
        %v4507 = vsel %vm777, %v4456, 0.0
        %v4508 = vadd.f32 %v4506, %v4507
        %v4509 = vsel %vm777, %v4457, 0.0
        %v4510 = vadd.f32 %v4508, %v4509
        %v4511 = vsel %vm777, %v4458, 0.0
        %v4512 = vadd.f32 %v4510, %v4511
        %v4513 = vsel %vm777, %v4459, 0.0
        %v4514 = vadd.f32 %v4512, %v4513
        %v4515 = vsel %vm777, %v4460, 0.0
        %v4516 = vadd.f32 %v4514, %v4515
        %v4517 = vsel %vm777, %v4461, 0.0
        %v4518 = vadd.f32 %v4516, %v4517
        %v4519 = vsel %vm777, %v4462, 0.0
        %v4520 = vadd.f32 %v4518, %v4519
        %v4521 = vsel %vm777, %v4463, 0.0
        %v4522 = vadd.f32 %v4520, %v4521
        %v4523 = vsel %vm777, %v4464, 0.0
        %v4524 = vadd.f32 %v4522, %v4523
        %v4525 = vsel %vm777, %v4465, 0.0
        %v4526 = vadd.f32 %v4524, %v4525
        %v4527 = vsel %vm777, %v4466, 0.0
        %v4528 = vadd.f32 %v4526, %v4527
        %v4529 = vsel %vm777, %v4467, 0.0
        %v4530 = vadd.f32 %v4528, %v4529
        %v4531 = vrot.slane %v4530, 4
        %v4532 = vadd.f32 %v4530, %v4531
        %v4533 = vrot.slane %v4532, 2
        %v4534 = vadd.f32 %v4532, %v4533
        %v4535 = vrot.slane %v4534, 1
        %v4536 = vadd.f32 %v4534, %v4535
        %v4537 = vmul.f32 %v4536, %v4402
        %v4538 = vadd.f32 %v4537, 1e-05
        %v4539 = vrsqrt.pop %v4538
        %v4540 = vmul.f32 %v4539, %v4538
        %v4541 = vmul.f32 %v4540, %v4539
        %v4542 = vmul.f32 0.5, %v4541
        %v4543 = vsub.f32 1.5, %v4542
        %v4544 = vmul.f32 %v4539, %v4543
        %vm4545 = vweird.f32 %v4538
        %vm4546 = vweird.f32 %v4539
        %vm4547 = vmor %vm4545, %vm4546
        %v4548 = vsel %vm4547, %v4539, %v4544
        %v4549 = vmul.f32 %v4404, %v4548
        %v4550 = vmul.f32 %v4405, %v4548
        %v4551 = vmul.f32 %v4406, %v4548
        %v4552 = vmul.f32 %v4407, %v4548
        %v4553 = vmul.f32 %v4408, %v4548
        %v4554 = vmul.f32 %v4409, %v4548
        %v4555 = vmul.f32 %v4410, %v4548
        %v4556 = vmul.f32 %v4411, %v4548
        %v4557 = vmul.f32 %v4412, %v4548
        %v4558 = vmul.f32 %v4413, %v4548
        %v4559 = vmul.f32 %v4414, %v4548
        %v4560 = vmul.f32 %v4415, %v4548
        %v4561 = vmul.f32 %v4416, %v4548
        %v4562 = vmul.f32 %v4417, %v4548
        %v4563 = vmul.f32 %v4418, %v4548
        %v4564 = vmul.f32 %v4419, %v4548
        %v4565 = vmul.f32 %v4420, %v4548
        %v4566 = vmul.f32 %v4421, %v4548
        %v4567 = vmul.f32 %v4422, %v4548
        %v4568 = vmul.f32 %v4423, %v4548
        %v4569 = vmul.f32 %v4424, %v4548
        %v4570 = vmul.f32 %v4425, %v4548
        %v4571 = vmul.f32 %v4426, %v4548
        %v4572 = vmul.f32 %v4427, %v4548
        %v4573 = vmul.f32 %v4428, %v4548
        %v4574 = vmul.f32 %v4429, %v4548
        %v4575 = vmul.f32 %v4430, %v4548
        %v4576 = vmul.f32 %v4431, %v4548
        %v4577 = vmul.f32 %v4432, %v4548
        %v4578 = vmul.f32 %v4433, %v4548
        %v4579 = vmul.f32 %v4434, %v4548
        %v4580 = vmul.f32 %v4435, %v4548
        %v4581 = vld [vmem:[%s271] sm:$0xff]
        %v4582 = vld [vmem:[%s271 + $0x8] sm:$0xff]
        %v4583 = vld [vmem:[%s271 + $0x10] sm:$0xff]
        %v4584 = vld [vmem:[%s271 + $0x18] sm:$0xff]
        %v4585 = vld [vmem:[%s271 + $0x20] sm:$0xff]
        %v4586 = vld [vmem:[%s271 + $0x28] sm:$0xff]
        %v4587 = vld [vmem:[%s271 + $0x30] sm:$0xff]
        %v4588 = vld [vmem:[%s271 + $0x38] sm:$0xff]
        %v4589 = vld [vmem:[%s271 + $0x40] sm:$0xff]
        %v4590 = vld [vmem:[%s271 + $0x48] sm:$0xff]
        %v4591 = vld [vmem:[%s271 + $0x50] sm:$0xff]
        %v4592 = vld [vmem:[%s271 + $0x58] sm:$0xff]
        %v4593 = vld [vmem:[%s271 + $0x60] sm:$0xff]
        %v4594 = vld [vmem:[%s271 + $0x68] sm:$0xff]
        %v4595 = vld [vmem:[%s271 + $0x70] sm:$0xff]
        %v4596 = vld [vmem:[%s271 + $0x78] sm:$0xff]
        %v4597 = vld [vmem:[%s271 + $0x80] sm:$0xff]
        %v4598 = vld [vmem:[%s271 + $0x88] sm:$0xff]
        %v4599 = vld [vmem:[%s271 + $0x90] sm:$0xff]
        %v4600 = vld [vmem:[%s271 + $0x98] sm:$0xff]
        %v4601 = vld [vmem:[%s271 + $0xa0] sm:$0xff]
        %v4602 = vld [vmem:[%s271 + $0xa8] sm:$0xff]
        %v4603 = vld [vmem:[%s271 + $0xb0] sm:$0xff]
        %v4604 = vld [vmem:[%s271 + $0xb8] sm:$0xff]
        %v4605 = vld [vmem:[%s271 + $0xc0] sm:$0xff]
        %v4606 = vld [vmem:[%s271 + $0xc8] sm:$0xff]
        %v4607 = vld [vmem:[%s271 + $0xd0] sm:$0xff]
        %v4608 = vld [vmem:[%s271 + $0xd8] sm:$0xff]
        %v4609 = vld [vmem:[%s271 + $0xe0] sm:$0xff]
        %v4610 = vld [vmem:[%s271 + $0xe8] sm:$0xff]
        %v4611 = vld [vmem:[%s271 + $0xf0] sm:$0xff]
        %v4612 = vld [vmem:[%s271 + $0xf8] sm:$0xff]
        %v4613 = vadd.f32 %v4549, %v4581
        %v4614 = vadd.f32 %v4550, %v4582
        %v4615 = vadd.f32 %v4551, %v4583
        %v4616 = vadd.f32 %v4552, %v4584
        %v4617 = vadd.f32 %v4553, %v4585
        %v4618 = vadd.f32 %v4554, %v4586
        %v4619 = vadd.f32 %v4555, %v4587
        %v4620 = vadd.f32 %v4556, %v4588
        %v4621 = vadd.f32 %v4557, %v4589
        %v4622 = vadd.f32 %v4558, %v4590
        %v4623 = vadd.f32 %v4559, %v4591
        %v4624 = vadd.f32 %v4560, %v4592
        %v4625 = vadd.f32 %v4561, %v4593
        %v4626 = vadd.f32 %v4562, %v4594
        %v4627 = vadd.f32 %v4563, %v4595
        %v4628 = vadd.f32 %v4564, %v4596
        %v4629 = vadd.f32 %v4565, %v4597
        %v4630 = vadd.f32 %v4566, %v4598
        %v4631 = vadd.f32 %v4567, %v4599
        %v4632 = vadd.f32 %v4568, %v4600
        %v4633 = vadd.f32 %v4569, %v4601
        %v4634 = vadd.f32 %v4570, %v4602
        %v4635 = vadd.f32 %v4571, %v4603
        %v4636 = vadd.f32 %v4572, %v4604
        %v4637 = vadd.f32 %v4573, %v4605
        %v4638 = vadd.f32 %v4574, %v4606
        %v4639 = vadd.f32 %v4575, %v4607
        %v4640 = vadd.f32 %v4576, %v4608
        %v4641 = vadd.f32 %v4577, %v4609
        %v4642 = vadd.f32 %v4578, %v4610
        %v4643 = vadd.f32 %v4579, %v4611
        %v4644 = vadd.f32 %v4580, %v4612
        %4645 = vst.msk [vmem:[%s251] sm:$0xff] %vm777, %v4613
        %4646 = vst.msk [vmem:[%s251 + $0x8] sm:$0xff] %vm777, %v4614
        %4647 = vst.msk [vmem:[%s251 + $0x10] sm:$0xff] %vm777, %v4615
        %4648 = vst.msk [vmem:[%s251 + $0x18] sm:$0xff] %vm777, %v4616
        %4649 = vst.msk [vmem:[%s251 + $0x20] sm:$0xff] %vm777, %v4617
        %4650 = vst.msk [vmem:[%s251 + $0x28] sm:$0xff] %vm777, %v4618
        %4651 = vst.msk [vmem:[%s251 + $0x30] sm:$0xff] %vm777, %v4619
        %4652 = vst.msk [vmem:[%s251 + $0x38] sm:$0xff] %vm777, %v4620
        %4653 = vst.msk [vmem:[%s251 + $0x40] sm:$0xff] %vm777, %v4621
        %4654 = vst.msk [vmem:[%s251 + $0x48] sm:$0xff] %vm777, %v4622
        %4655 = vst.msk [vmem:[%s251 + $0x50] sm:$0xff] %vm777, %v4623
        %4656 = vst.msk [vmem:[%s251 + $0x58] sm:$0xff] %vm777, %v4624
        %4657 = vst.msk [vmem:[%s251 + $0x60] sm:$0xff] %vm777, %v4625
        %4658 = vst.msk [vmem:[%s251 + $0x68] sm:$0xff] %vm777, %v4626
        %4659 = vst.msk [vmem:[%s251 + $0x70] sm:$0xff] %vm777, %v4627
        %4660 = vst.msk [vmem:[%s251 + $0x78] sm:$0xff] %vm777, %v4628
        %4661 = vst.msk [vmem:[%s251 + $0x80] sm:$0xff] %vm777, %v4629
        %4662 = vst.msk [vmem:[%s251 + $0x88] sm:$0xff] %vm777, %v4630
        %4663 = vst.msk [vmem:[%s251 + $0x90] sm:$0xff] %vm777, %v4631
        %4664 = vst.msk [vmem:[%s251 + $0x98] sm:$0xff] %vm777, %v4632
        %4665 = vst.msk [vmem:[%s251 + $0xa0] sm:$0xff] %vm777, %v4633
        %4666 = vst.msk [vmem:[%s251 + $0xa8] sm:$0xff] %vm777, %v4634
        %4667 = vst.msk [vmem:[%s251 + $0xb0] sm:$0xff] %vm777, %v4635
        %4668 = vst.msk [vmem:[%s251 + $0xb8] sm:$0xff] %vm777, %v4636
        %4669 = vst.msk [vmem:[%s251 + $0xc0] sm:$0xff] %vm777, %v4637
        %4670 = vst.msk [vmem:[%s251 + $0xc8] sm:$0xff] %vm777, %v4638
        %4671 = vst.msk [vmem:[%s251 + $0xd0] sm:$0xff] %vm777, %v4639
        %4672 = vst.msk [vmem:[%s251 + $0xd8] sm:$0xff] %vm777, %v4640
        %4673 = vst.msk [vmem:[%s251 + $0xe0] sm:$0xff] %vm777, %v4641
        %4674 = vst.msk [vmem:[%s251 + $0xe8] sm:$0xff] %vm777, %v4642
        %4675 = vst.msk [vmem:[%s251 + $0xf0] sm:$0xff] %vm777, %v4643
        %4676 = vst.msk [vmem:[%s251 + $0xf8] sm:$0xff] %vm777, %v4644
        %s4677 = sand.u32 %s146, 1
        %s4678 = scalar_lea.sflag [#allocation3], %s4677
        %s4679 = sand.u32 %s146, 1
        %s4680 = smul.addr %s4679, 256
        %s4681 = scalar_lea.vmem [#allocation2], %s4680
        // Predicated region
        $region37: #{resnet_block_forward.3} parent=35 // pred_check
          %p4682 = pneg %p156
        $region38: #{resnet_block_forward.3} parent=35 // pred_check_branch
          %4684 = sbr.rel (%p4682) target = $region40
        $region39: #{resnet_block_forward.3} parent=35 // pred_region
          %4686 = vsyncadd %s4678, 0
          %s4687 = smul.addr %s22, 32
          %s4688 = sadd.s32 %s23, %s4687
          %s4689 = smul.addr %s4688, 8
          %s4690 = scalar_lea.hbm %s4, %s4689
          %s4691 = sshll.u32 %s4681, 4
          %s4692 = int_to_ptr.vmem [resolvable:$true] %s4691
          %s4693 = sshll.u32 %s4690, 4
          %s4694 = int_to_ptr.hbm [resolvable:$true] %s4693
          %4699 = dma.vmem_to_hbm [thread:$0]  %s4692, 4096, %s4694, %s4678, 128, 128, 8
        $region40: #{resnet_block_forward.3} parent=35 // pred_fallthru
          _
      $region36: #{resnet_block_forward.3} parent=5 // pred_fallthru
        _
      %p4700 = scmp.le.s32.totalorder 2, %s13
      // Predicated region
      $region41: #{resnet_block_forward.3} parent=5 // pred_check
        %p4701 = pneg %p4700
      $region42: #{resnet_block_forward.3} parent=5 // pred_check_branch
        %4703 = sbr.rel (%p4701) target = $region44
      $region43: #{resnet_block_forward.3} parent=5 // pred_region
        %s4704 = ssub.s32 %s13, 2
        // Predicated region
        $region45: #{resnet_block_forward.3} parent=43 // pred_check
          %p4705 = pneg %p162
        $region46: #{resnet_block_forward.3} parent=43 // pred_check_branch
          %4707 = sbr.rel (%p4705) target = $region48
        $region47: #{resnet_block_forward.3} parent=43 // pred_region
          %s4708 = sand.u32 %s147, 1
          %s4709 = scalar_lea.sflag [#allocation3], %s4708
          %s4710 = sand.u32 %s147, 1
          %s4711 = smul.addr %s4710, 256
          %s4712 = scalar_lea.vmem [#allocation2], %s4711
          %4714 = dma.done %s4709, 4096
        $region48: #{resnet_block_forward.3} parent=43 // pred_fallthru
          _
      $region44: #{resnet_block_forward.3} parent=5 // pred_fallthru
        _
    $region6: #{resnet_block_forward.3} parent=1 // loop_footer
      %s17 = sadd.s32 1, %s13
    $region7: #{resnet_block_forward.3} parent=1 // loop_footer_branch
      %12 = sbr.rel target = $region3
    $region8: #{resnet_block_forward.3} parent=1 // loop_exit
      _
    %4715 = vsyncpa [#allocation3], 1
    %s4716 = scalar_lea.sflag [#allocation3], 1
    %4717 = vsyncpa %s4716, 1

// kernel: resnet_block_forward.2
$region0: #{resnet_block_forward.2}
  #allocation0 [shape = 'u32[]', space=smem, size = 0x4, offset = 0x4, fixed_abs, tag = 'smem constant byte address 0x4 - core index']
  #allocation1 [shape = 'u32[72,128]{1,0:T(1,128)}', space=vmem, size = 0x9000, scoped, tag = 'internal scratch']
  %s0 = inlined_call_operand.vmem [shape: bf16[2,18,18,32], index: 0, kind: input, shape index: {}]
  %s1 = inlined_call_operand.vmem [shape: bf16[3,3,32,32], index: 1, kind: input, shape index: {}]
  %s2 = inlined_call_operand.vmem [shape: f32[1,32], index: 2, kind: input, shape index: {}]
  %s3 = inlined_call_operand.vmem [shape: bf16[2,16,16,32], index: 3, kind: output, shape index: {}]
  %s4 = sld [smem:[#allocation0]]
  $region45: #{resnet_block_forward.2} parent=0
    _
  %s6 = ssub.s32 1, %s4
  %s7 = scalar_select 0, %s6, %s4
  loop: start=0, step=1, limit=4
  $region2: #{resnet_block_forward.2} parent=0 // loop_pre_header
    _
  $region3: #{resnet_block_forward.2} parent=0 // loop_header
    %s9 = sphi 0, %s13
    %p10 = scmp.ge.s32.totalorder %s9, 4
    %s16 = sphi 0, %s28
    %s17 = sphi 0, %s24
    %s18 = sphi 0, %s16
    %s19 = sphi 0, %s17
    %s20 = sphi 0, %s18
    %s21 = sphi 0, %s19
    %s31 = sphi 0, %s33
    %s34 = sphi 0, %s31
    %s35 = sphi 0, %s34
    %s51 = sphi 0, %s35
    %s57 = sphi 0, %s59
    %s60 = sphi 0, %s57
    %s61 = sphi 0, %s60
    %s77 = sphi 0, %s61
    %s83 = sphi 0, %s85
    %s86 = sphi 0, %s83
    %s87 = sphi 0, %s86
    %s103 = sphi 0, %s87
    %s111 = sphi 0, %s113
    %s114 = sphi 0, %s111
    %s115 = sphi 0, %s114
    %s131 = sphi 0, %s115
  $region4: #{resnet_block_forward.2} parent=0 // loop_header_branch
    %12 = sbr.rel (%p10) target = $region8
  $region5: #{resnet_block_forward.2} parent=0 // loop_body
    %s14 = ssub.s32 %s9, 1
    %s15 = ssub.s32 %s9, 2
    %s22 = sadd.s32 1, %s17
    %p23 = scmp.ge.s32.totalorder %s22, 1
    %s24 = scalar_select %p23, 0, %s22
    %s25 = sadd.s32 1, %s16
    %s26 = scalar_select %p23, %s25, %s16
    %p27 = scmp.ge.s32.totalorder %s26, 2
    %s28 = scalar_select %p27, 0, %s26
    %s29 = ssub.s32 %s16, %s28
    %p30 = scmp.eq.s32.totalorder %s29, 0
    %s32 = sadd.s32 %s31, 1
    %s33 = scalar_select %p30, %s31, %s32
    %p36 = pneg %p30
    %p37 = scmp.eq.s32.totalorder %s9, 1
    %p38 = por %p36, %p37
    %p39 = scmp.ne.s32.totalorder %s31, %s34
    %p40 = scmp.eq.s32.totalorder %s9, 0
    %p41 = por %p39, %p40
    %p42 = scmp.ne.s32.totalorder %s31, %s34
    %p43 = scmp.eq.s32.totalorder %s14, 1
    %p44 = por %p42, %p43
    %p45 = scmp.ne.s32.totalorder %s34, %s35
    %p46 = scmp.eq.s32.totalorder %s14, 0
    %p47 = por %p45, %p46
    %p48 = scmp.ne.s32.totalorder %s34, %s35
    %p49 = scmp.eq.s32.totalorder %s15, 1
    %p50 = por %p48, %p49
    %p52 = scmp.ne.s32.totalorder %s35, %s51
    %p53 = scmp.eq.s32.totalorder %s15, 0
    %p54 = por %p52, %p53
    %s55 = ssub.s32 %s17, %s24
    %p56 = scmp.eq.s32.totalorder %s55, 0
    %s58 = sadd.s32 %s57, 1
    %s59 = scalar_select %p56, %s57, %s58
    %p62 = pneg %p56
    %p63 = scmp.eq.s32.totalorder %s9, 1
    %p64 = por %p62, %p63
    %p65 = scmp.ne.s32.totalorder %s57, %s60
    %p66 = scmp.eq.s32.totalorder %s9, 0
    %p67 = por %p65, %p66
    %p68 = scmp.ne.s32.totalorder %s57, %s60
    %p69 = scmp.eq.s32.totalorder %s14, 1
    %p70 = por %p68, %p69
    %p71 = scmp.ne.s32.totalorder %s60, %s61
    %p72 = scmp.eq.s32.totalorder %s14, 0
    %p73 = por %p71, %p72
    %p74 = scmp.ne.s32.totalorder %s60, %s61
    %p75 = scmp.eq.s32.totalorder %s15, 1
    %p76 = por %p74, %p75
    %p78 = scmp.ne.s32.totalorder %s61, %s77
    %p79 = scmp.eq.s32.totalorder %s15, 0
    %p80 = por %p78, %p79
    %s81 = ssub.s32 %s17, %s24
    %p82 = scmp.eq.s32.totalorder %s81, 0
    %s84 = sadd.s32 %s83, 1
    %s85 = scalar_select %p82, %s83, %s84
    %p88 = pneg %p82
    %p89 = scmp.eq.s32.totalorder %s9, 1
    %p90 = por %p88, %p89
    %p91 = scmp.ne.s32.totalorder %s83, %s86
    %p92 = scmp.eq.s32.totalorder %s9, 0
    %p93 = por %p91, %p92
    %p94 = scmp.ne.s32.totalorder %s83, %s86
    %p95 = scmp.eq.s32.totalorder %s14, 1
    %p96 = por %p94, %p95
    %p97 = scmp.ne.s32.totalorder %s86, %s87
    %p98 = scmp.eq.s32.totalorder %s14, 0
    %p99 = por %p97, %p98
    %p100 = scmp.ne.s32.totalorder %s86, %s87
    %p101 = scmp.eq.s32.totalorder %s15, 1
    %p102 = por %p100, %p101
    %p104 = scmp.ne.s32.totalorder %s87, %s103
    %p105 = scmp.eq.s32.totalorder %s15, 0
    %p106 = por %p104, %p105
    %s107 = ssub.s32 %s16, %s28
    %s108 = ssub.s32 %s17, %s24
    %s109 = sor.u32 %s107, %s108
    %p110 = scmp.eq.s32.totalorder %s109, 0
    %s112 = sadd.s32 %s111, 1
    %s113 = scalar_select %p110, %s111, %s112
    %p116 = pneg %p110
    %p117 = scmp.eq.s32.totalorder %s9, 1
    %p118 = por %p116, %p117
    %p119 = scmp.ne.s32.totalorder %s111, %s114
    %p120 = scmp.eq.s32.totalorder %s9, 0
    %p121 = por %p119, %p120
    %p122 = scmp.ne.s32.totalorder %s111, %s114
    %p123 = scmp.eq.s32.totalorder %s14, 1
    %p124 = por %p122, %p123
    %p125 = scmp.ne.s32.totalorder %s114, %s115
    %p126 = scmp.eq.s32.totalorder %s14, 0
    %p127 = por %p125, %p126
    %p128 = scmp.ne.s32.totalorder %s114, %s115
    %p129 = scmp.eq.s32.totalorder %s15, 1
    %p130 = por %p128, %p129
    %p132 = scmp.ne.s32.totalorder %s115, %s131
    %p133 = scmp.eq.s32.totalorder %s15, 0
    %p134 = por %p132, %p133
    %p135 = scmp.le.s32.totalorder 1, %s9
    %p136 = scmp.lt.s32.totalorder %s9, 3
    %p137 = pnand %p135, %p136
    %p138 = pneg %p137
    // Predicated region
    $region9: #{resnet_block_forward.2} parent=5 // pred_check
      _
    $region10: #{resnet_block_forward.2} parent=5 // pred_check_branch
      %140 = sbr.rel (%p137) target = $region12
    $region11: #{resnet_block_forward.2} parent=5 // pred_region
      %s141 = ssub.s32 %s9, 1
      // Predicated region
      $region13: #{resnet_block_forward.2} parent=11 // pred_check
        %p142 = pneg %p73
      $region14: #{resnet_block_forward.2} parent=11 // pred_check_branch
        %144 = sbr.rel (%p142) target = $region16
      $region15: #{resnet_block_forward.2} parent=11 // pred_region
        %p145 = scmp.lt.s32.totalorder %s19, 0
        %s146 = scalar_select %p145, %s19, 0
        %s147 = smul.addr %s146, 4
        %s148 = scalar_lea.vmem %s1, %s147
      $region16: #{resnet_block_forward.2} parent=11 // pred_fallthru
        _
      // Predicated region
      $region17: #{resnet_block_forward.2} parent=11 // pred_check
        %p149 = pneg %p99
      $region18: #{resnet_block_forward.2} parent=11 // pred_check_branch
        %151 = sbr.rel (%p149) target = $region20
      $region19: #{resnet_block_forward.2} parent=11 // pred_region
        %p152 = scmp.lt.s32.totalorder %s19, 0
        %s153 = scalar_select %p152, %s19, 0
        %s154 = scalar_lea.vmem %s2, %s153
      $region20: #{resnet_block_forward.2} parent=11 // pred_fallthru
        _
    $region12: #{resnet_block_forward.2} parent=5 // pred_fallthru
      _
    %p155 = scmp.lt.s32.totalorder %s9, 2
    // Predicated region
    $region21: #{resnet_block_forward.2} parent=5 // pred_check
      %p156 = pneg %p155
    $region22: #{resnet_block_forward.2} parent=5 // pred_check_branch
      %158 = sbr.rel (%p156) target = $region24
    $region23: #{resnet_block_forward.2} parent=5 // pred_region
      // Predicated region
      $region25: #{resnet_block_forward.2} parent=23 // pred_check
        %p159 = pneg %p41
      $region26: #{resnet_block_forward.2} parent=23 // pred_check_branch
        %161 = sbr.rel (%p159) target = $region28
      $region27: #{resnet_block_forward.2} parent=23 // pred_region
        %p162 = scmp.lt.s32.totalorder %s16, 1
        %s163 = scalar_select %p162, %s16, 1
        %s164 = smul.addr %s163, 54
        %s165 = smul.addr %s164, 4
        %s166 = scalar_lea.vmem %s0, %s165
      $region28: #{resnet_block_forward.2} parent=23 // pred_fallthru
        _
    $region24: #{resnet_block_forward.2} parent=5 // pred_fallthru
      _
    %p167 = scmp.le.s32.totalorder 1, %s9
    %p168 = scmp.lt.s32.totalorder %s9, 3
    %p169 = pnand %p167, %p168
    %p170 = pneg %p169
    // Predicated region
    $region29: #{resnet_block_forward.2} parent=5 // pred_check
      _
    $region30: #{resnet_block_forward.2} parent=5 // pred_check_branch
      %172 = sbr.rel (%p169) target = $region32
    $region31: #{resnet_block_forward.2} parent=5 // pred_region
      %s173 = ssub.s32 %s9, 1
      %p174 = scmp.lt.s32.totalorder %s18, 1
      %s175 = scalar_select %p174, %s18, 1
      %s176 = smul.addr %s175, 54
      %s177 = smul.addr %s176, 4
      %s178 = scalar_lea.vmem %s0, %s177
      %p179 = pneg %p47
      %p180 = pneg %p44
      %p181 = scmp.lt.s32.totalorder %s19, 0
      %s182 = scalar_select %p181, %s19, 0
      %s183 = smul.addr %s182, 4
      %s184 = scalar_lea.vmem %s1, %s183
      %p185 = pneg %p73
      %p186 = pneg %p70
      %p187 = scmp.lt.s32.totalorder %s19, 0
      %s188 = scalar_select %p187, %s19, 0
      %s189 = scalar_lea.vmem %s2, %s188
      %p190 = pneg %p99
      %p191 = pneg %p96
      %p192 = pneg %p127
      %p193 = pneg %p124
      %p194 = scmp.lt.s32.totalorder %s18, 1
      %s195 = scalar_select %p194, %s18, 1
      %p196 = scmp.lt.s32.totalorder %s19, 0
      %s197 = scalar_select %p196, %s19, 0
      %s198 = smul.addr %s195, 32
      %s199 = sadd.s32 %s197, %s198
      %s200 = smul.addr %s199, 4
      %s201 = scalar_lea.vmem %s3, %s200
      %p202 = scmp.lt.s32.totalorder %s18, 1
      %s203 = scalar_select %p202, %s18, 1
      %s204 = smul.addr %s203, 54
      %s205 = smul.addr %s204, 4
      %s206 = scalar_lea.vmem %s0, %s205
      %p207 = scmp.lt.s32.totalorder %s19, 0
      %s208 = scalar_select %p207, %s19, 0
      %s209 = smul.addr %s208, 4
      %s210 = scalar_lea.vmem %s1, %s209
      %p211 = scmp.lt.s32.totalorder %s19, 0
      %s212 = scalar_select %p211, %s19, 0
      %s213 = scalar_lea.vmem %s2, %s212
      %p214 = scmp.lt.s32.totalorder %s18, 1
      %s215 = scalar_select %p214, %s18, 1
      %p216 = scmp.lt.s32.totalorder %s19, 0
      %s217 = scalar_select %p216, %s19, 0
      %s218 = smul.addr %s215, 32
      %s219 = sadd.s32 %s217, %s218
      %s220 = smul.addr %s219, 4
      %s221 = scalar_lea.vmem %s3, %s220
      %v223 = vld [vmem:[%s206] sm:$0xf]
      %v224 = vld [vmem:[%s206 + $0x4] sm:$0xf]
      %v225 = vld [vmem:[%s206 + $0xc] sm:$0xf]
      %v226 = vld [vmem:[%s206 + $0x10] sm:$0xf]
      %v227 = vld [vmem:[%s206 + $0x18] sm:$0xf]
      %v228 = vld [vmem:[%s206 + $0x1c] sm:$0xf]
      %v229 = vld [vmem:[%s206 + $0x24] sm:$0xf]
      %v230 = vld [vmem:[%s206 + $0x28] sm:$0xf]
      %v231 = vld [vmem:[%s206 + $0x30] sm:$0xf]
      %v232 = vld [vmem:[%s206 + $0x34] sm:$0xf]
      %v233 = vld [vmem:[%s206 + $0x3c] sm:$0xf]
      %v234 = vld [vmem:[%s206 + $0x40] sm:$0xf]
      %v235 = vld [vmem:[%s206 + $0x48] sm:$0xf]
      %v236 = vld [vmem:[%s206 + $0x4c] sm:$0xf]
      %v237 = vld [vmem:[%s206 + $0x54] sm:$0xf]
      %v238 = vld [vmem:[%s206 + $0x58] sm:$0xf]
      %v239 = vld [vmem:[%s206 + $0x60] sm:$0xf]
      %v240 = vld [vmem:[%s206 + $0x64] sm:$0xf]
      %v241 = vld [vmem:[%s206 + $0x6c] sm:$0xf]
      %v242 = vld [vmem:[%s206 + $0x70] sm:$0xf]
      %v243 = vld [vmem:[%s206 + $0x78] sm:$0xf]
      %v244 = vld [vmem:[%s206 + $0x7c] sm:$0xf]
      %v245 = vld [vmem:[%s206 + $0x84] sm:$0xf]
      %v246 = vld [vmem:[%s206 + $0x88] sm:$0xf]
      %v247 = vld [vmem:[%s206 + $0x90] sm:$0xf]
      %v248 = vld [vmem:[%s206 + $0x94] sm:$0xf]
      %v249 = vld [vmem:[%s206 + $0x9c] sm:$0xf]
      %v250 = vld [vmem:[%s206 + $0xa0] sm:$0xf]
      %v251 = vld [vmem:[%s206 + $0xa8] sm:$0xf]
      %v252 = vld [vmem:[%s206 + $0xac] sm:$0xf]
      %v253 = vld [vmem:[%s206 + $0xb4] sm:$0xf]
      %v254 = vld [vmem:[%s206 + $0xb8] sm:$0xf]
      %v255 = vld [vmem:[%s210] sm:$0xf]
      %v256 = vld [vmem:[%s210 + $0x4] sm:$0xf]
      %v257 = vld [vmem:[%s210 + $0x8] sm:$0xf]
      %v258 = vld [vmem:[%s210 + $0xc] sm:$0xf]
      %v259 = vld [vmem:[%s206 + $0x8] sm:$0x1]
      %v260 = vld [vmem:[%s206 + $0x14] sm:$0x1]
      %v261 = vld [vmem:[%s206 + $0x20] sm:$0x1]
      %v262 = vld [vmem:[%s206 + $0x2c] sm:$0x1]
      %v263 = vld [vmem:[%s206 + $0x38] sm:$0x1]
      %v264 = vld [vmem:[%s206 + $0x44] sm:$0x1]
      %v265 = vld [vmem:[%s206 + $0x50] sm:$0x1]
      %v266 = vld [vmem:[%s206 + $0x5c] sm:$0x1]
      %v267 = vld [vmem:[%s206 + $0x68] sm:$0x1]
      %v268 = vld [vmem:[%s206 + $0x74] sm:$0x1]
      %v269 = vld [vmem:[%s206 + $0x80] sm:$0x1]
      %v270 = vld [vmem:[%s206 + $0x8c] sm:$0x1]
      %v271 = vld [vmem:[%s206 + $0x98] sm:$0x1]
      %v272 = vld [vmem:[%s206 + $0xa4] sm:$0x1]
      %v273 = vld [vmem:[%s206 + $0xb0] sm:$0x1]
      %v274 = vld [vmem:[%s206 + $0xbc] sm:$0x1]
      %vm275 = vsmask.f32 3328
      %vm276 = vsmask.f32 7440
      %vm277 = vmor %vm275, %vm276
      %v279 = vshrl.u32 %v223, 16
      %v281 = vrot.slane %v279, 4
      %v282 = vshll.u32 %v223, 16
      %v284 = vrot.slane %v282, 5
      %v285 = vor.u32 %v281, %v284
      %v286 = vrot.slane %v285, 4
      %v288 = vshll.u32 %v224, 16
      %v290 = vrot.slane %v288, 5
      %v291 = vsel %vm277, %v286, %v290
      %v292 = vshrl.u32 %v224, 16
      %v294 = vrot.slane %v292, 4
      %v295 = vor.u32 %v294, %v290
      %v296 = vrot.slane %v295, 4
      %v298 = vshll.u32 %v259, 16
      %v300 = vrot.slane %v298, 5
      %v301 = vsel %vm277, %v296, %v300
      %v303 = vshrl.u32 %v225, 16
      %v305 = vrot.slane %v303, 4
      %v306 = vshll.u32 %v225, 16
      %v308 = vrot.slane %v306, 5
      %v309 = vor.u32 %v305, %v308
      %v310 = vrot.slane %v309, 4
      %v312 = vshll.u32 %v226, 16
      %v314 = vrot.slane %v312, 5
      %v315 = vsel %vm277, %v310, %v314
      %v316 = vshrl.u32 %v226, 16
      %v318 = vrot.slane %v316, 4
      %v319 = vor.u32 %v318, %v314
      %v320 = vrot.slane %v319, 4
      %v322 = vshll.u32 %v260, 16
      %v324 = vrot.slane %v322, 5
      %v325 = vsel %vm277, %v320, %v324
      %v327 = vshrl.u32 %v227, 16
      %v329 = vrot.slane %v327, 4
      %v330 = vshll.u32 %v227, 16
      %v332 = vrot.slane %v330, 5
      %v333 = vor.u32 %v329, %v332
      %v334 = vrot.slane %v333, 4
      %v336 = vshll.u32 %v228, 16
      %v338 = vrot.slane %v336, 5
      %v339 = vsel %vm277, %v334, %v338
      %v340 = vshrl.u32 %v228, 16
      %v342 = vrot.slane %v340, 4
      %v343 = vor.u32 %v342, %v338
      %v344 = vrot.slane %v343, 4
      %v346 = vshll.u32 %v261, 16
      %v348 = vrot.slane %v346, 5
      %v349 = vsel %vm277, %v344, %v348
      %v351 = vshrl.u32 %v229, 16
      %v353 = vrot.slane %v351, 4
      %v354 = vshll.u32 %v229, 16
      %v356 = vrot.slane %v354, 5
      %v357 = vor.u32 %v353, %v356
      %v358 = vrot.slane %v357, 4
      %v360 = vshll.u32 %v230, 16
      %v362 = vrot.slane %v360, 5
      %v363 = vsel %vm277, %v358, %v362
      %v364 = vshrl.u32 %v230, 16
      %v366 = vrot.slane %v364, 4
      %v367 = vor.u32 %v366, %v362
      %v368 = vrot.slane %v367, 4
      %v370 = vshll.u32 %v262, 16
      %v372 = vrot.slane %v370, 5
      %v373 = vsel %vm277, %v368, %v372
      %v375 = vshrl.u32 %v231, 16
      %v377 = vrot.slane %v375, 4
      %v378 = vshll.u32 %v231, 16
      %v380 = vrot.slane %v378, 5
      %v381 = vor.u32 %v377, %v380
      %v382 = vrot.slane %v381, 4
      %v384 = vshll.u32 %v232, 16
      %v386 = vrot.slane %v384, 5
      %v387 = vsel %vm277, %v382, %v386
      %v388 = vshrl.u32 %v232, 16
      %v390 = vrot.slane %v388, 4
      %v391 = vor.u32 %v390, %v386
      %v392 = vrot.slane %v391, 4
      %v394 = vshll.u32 %v263, 16
      %v396 = vrot.slane %v394, 5
      %v397 = vsel %vm277, %v392, %v396
      %v399 = vshrl.u32 %v233, 16
      %v401 = vrot.slane %v399, 4
      %v402 = vshll.u32 %v233, 16
      %v404 = vrot.slane %v402, 5
      %v405 = vor.u32 %v401, %v404
      %v406 = vrot.slane %v405, 4
      %v408 = vshll.u32 %v234, 16
      %v410 = vrot.slane %v408, 5
      %v411 = vsel %vm277, %v406, %v410
      %v412 = vshrl.u32 %v234, 16
      %v414 = vrot.slane %v412, 4
      %v415 = vor.u32 %v414, %v410
      %v416 = vrot.slane %v415, 4
      %v418 = vshll.u32 %v264, 16
      %v420 = vrot.slane %v418, 5
      %v421 = vsel %vm277, %v416, %v420
      %v423 = vshrl.u32 %v235, 16
      %v425 = vrot.slane %v423, 4
      %v426 = vshll.u32 %v235, 16
      %v428 = vrot.slane %v426, 5
      %v429 = vor.u32 %v425, %v428
      %v430 = vrot.slane %v429, 4
      %v432 = vshll.u32 %v236, 16
      %v434 = vrot.slane %v432, 5
      %v435 = vsel %vm277, %v430, %v434
      %v436 = vshrl.u32 %v236, 16
      %v438 = vrot.slane %v436, 4
      %v439 = vor.u32 %v438, %v434
      %v440 = vrot.slane %v439, 4
      %v442 = vshll.u32 %v265, 16
      %v444 = vrot.slane %v442, 5
      %v445 = vsel %vm277, %v440, %v444
      %v447 = vshrl.u32 %v237, 16
      %v449 = vrot.slane %v447, 4
      %v450 = vshll.u32 %v237, 16
      %v452 = vrot.slane %v450, 5
      %v453 = vor.u32 %v449, %v452
      %v454 = vrot.slane %v453, 4
      %v456 = vshll.u32 %v238, 16
      %v458 = vrot.slane %v456, 5
      %v459 = vsel %vm277, %v454, %v458
      %v460 = vshrl.u32 %v238, 16
      %v462 = vrot.slane %v460, 4
      %v463 = vor.u32 %v462, %v458
      %v464 = vrot.slane %v463, 4
      %v466 = vshll.u32 %v266, 16
      %v468 = vrot.slane %v466, 5
      %v469 = vsel %vm277, %v464, %v468
      %v471 = vshrl.u32 %v239, 16
      %v473 = vrot.slane %v471, 4
      %v474 = vshll.u32 %v239, 16
      %v476 = vrot.slane %v474, 5
      %v477 = vor.u32 %v473, %v476
      %v478 = vrot.slane %v477, 4
      %v480 = vshll.u32 %v240, 16
      %v482 = vrot.slane %v480, 5
      %v483 = vsel %vm277, %v478, %v482
      %v484 = vshrl.u32 %v240, 16
      %v486 = vrot.slane %v484, 4
      %v487 = vor.u32 %v486, %v482
      %v488 = vrot.slane %v487, 4
      %v490 = vshll.u32 %v267, 16
      %v492 = vrot.slane %v490, 5
      %v493 = vsel %vm277, %v488, %v492
      %v495 = vshrl.u32 %v241, 16
      %v497 = vrot.slane %v495, 4
      %v498 = vshll.u32 %v241, 16
      %v500 = vrot.slane %v498, 5
      %v501 = vor.u32 %v497, %v500
      %v502 = vrot.slane %v501, 4
      %v504 = vshll.u32 %v242, 16
      %v506 = vrot.slane %v504, 5
      %v507 = vsel %vm277, %v502, %v506
      %v508 = vshrl.u32 %v242, 16
      %v510 = vrot.slane %v508, 4
      %v511 = vor.u32 %v510, %v506
      %v512 = vrot.slane %v511, 4
      %v514 = vshll.u32 %v268, 16
      %v516 = vrot.slane %v514, 5
      %v517 = vsel %vm277, %v512, %v516
      %v519 = vshrl.u32 %v243, 16
      %v521 = vrot.slane %v519, 4
      %v522 = vshll.u32 %v243, 16
      %v524 = vrot.slane %v522, 5
      %v525 = vor.u32 %v521, %v524
      %v526 = vrot.slane %v525, 4
      %v528 = vshll.u32 %v244, 16
      %v530 = vrot.slane %v528, 5
      %v531 = vsel %vm277, %v526, %v530
      %v532 = vshrl.u32 %v244, 16
      %v534 = vrot.slane %v532, 4
      %v535 = vor.u32 %v534, %v530
      %v536 = vrot.slane %v535, 4
      %v538 = vshll.u32 %v269, 16
      %v540 = vrot.slane %v538, 5
      %v541 = vsel %vm277, %v536, %v540
      %v543 = vshrl.u32 %v245, 16
      %v545 = vrot.slane %v543, 4
      %v546 = vshll.u32 %v245, 16
      %v548 = vrot.slane %v546, 5
      %v549 = vor.u32 %v545, %v548
      %v550 = vrot.slane %v549, 4
      %v552 = vshll.u32 %v246, 16
      %v554 = vrot.slane %v552, 5
      %v555 = vsel %vm277, %v550, %v554
      %v556 = vshrl.u32 %v246, 16
      %v558 = vrot.slane %v556, 4
      %v559 = vor.u32 %v558, %v554
      %v560 = vrot.slane %v559, 4
      %v562 = vshll.u32 %v270, 16
      %v564 = vrot.slane %v562, 5
      %v565 = vsel %vm277, %v560, %v564
      %v567 = vshrl.u32 %v247, 16
      %v569 = vrot.slane %v567, 4
      %v570 = vshll.u32 %v247, 16
      %v572 = vrot.slane %v570, 5
      %v573 = vor.u32 %v569, %v572
      %v574 = vrot.slane %v573, 4
      %v576 = vshll.u32 %v248, 16
      %v578 = vrot.slane %v576, 5
      %v579 = vsel %vm277, %v574, %v578
      %v580 = vshrl.u32 %v248, 16
      %v582 = vrot.slane %v580, 4
      %v583 = vor.u32 %v582, %v578
      %v584 = vrot.slane %v583, 4
      %v586 = vshll.u32 %v271, 16
      %v588 = vrot.slane %v586, 5
      %v589 = vsel %vm277, %v584, %v588
      %v591 = vshrl.u32 %v249, 16
      %v593 = vrot.slane %v591, 4
      %v594 = vshll.u32 %v249, 16
      %v596 = vrot.slane %v594, 5
      %v597 = vor.u32 %v593, %v596
      %v598 = vrot.slane %v597, 4
      %v600 = vshll.u32 %v250, 16
      %v602 = vrot.slane %v600, 5
      %v603 = vsel %vm277, %v598, %v602
      %v604 = vshrl.u32 %v250, 16
      %v606 = vrot.slane %v604, 4
      %v607 = vor.u32 %v606, %v602
      %v608 = vrot.slane %v607, 4
      %v610 = vshll.u32 %v272, 16
      %v612 = vrot.slane %v610, 5
      %v613 = vsel %vm277, %v608, %v612
      %v615 = vshrl.u32 %v251, 16
      %v617 = vrot.slane %v615, 4
      %v618 = vshll.u32 %v251, 16
      %v620 = vrot.slane %v618, 5
      %v621 = vor.u32 %v617, %v620
      %v622 = vrot.slane %v621, 4
      %v624 = vshll.u32 %v252, 16
      %v626 = vrot.slane %v624, 5
      %v627 = vsel %vm277, %v622, %v626
      %v628 = vshrl.u32 %v252, 16
      %v630 = vrot.slane %v628, 4
      %v631 = vor.u32 %v630, %v626
      %v632 = vrot.slane %v631, 4
      %v634 = vshll.u32 %v273, 16
      %v636 = vrot.slane %v634, 5
      %v637 = vsel %vm277, %v632, %v636
      %v639 = vshrl.u32 %v253, 16
      %v641 = vrot.slane %v639, 4
      %v642 = vshll.u32 %v253, 16
      %v644 = vrot.slane %v642, 5
      %v645 = vor.u32 %v641, %v644
      %v646 = vrot.slane %v645, 4
      %v648 = vshll.u32 %v254, 16
      %v650 = vrot.slane %v648, 5
      %v651 = vsel %vm277, %v646, %v650
      %v652 = vshrl.u32 %v254, 16
      %v654 = vrot.slane %v652, 4
      %v655 = vor.u32 %v654, %v650
      %v656 = vrot.slane %v655, 4
      %v658 = vshll.u32 %v274, 16
      %v660 = vrot.slane %v658, 5
      %v661 = vsel %vm277, %v656, %v660
      %s662 = scalar_lea.vmem %s210, 16
      %v663 = vld [vmem:[%s662] sm:$0xf]
      %v664 = vld [vmem:[%s662 + $0x4] sm:$0xf]
      %v665 = vld [vmem:[%s662 + $0x8] sm:$0xf]
      %v666 = vld [vmem:[%s662 + $0xc] sm:$0xf]
      %v667 = vunpack.c.l.b16 %v291
      %v668 = vunpack.c.l.b16 %v301
      %v669 = vunpack.c.l.b16 %v315
      %v670 = vunpack.c.l.b16 %v325
      %v671 = vunpack.c.l.b16 %v339
      %v672 = vunpack.c.l.b16 %v349
      %v673 = vunpack.c.l.b16 %v363
      %v674 = vunpack.c.l.b16 %v373
      %v675 = vunpack.c.l.b16 %v387
      %v676 = vunpack.c.l.b16 %v397
      %v677 = vunpack.c.l.b16 %v411
      %v678 = vunpack.c.l.b16 %v421
      %v679 = vunpack.c.l.b16 %v435
      %v680 = vunpack.c.l.b16 %v445
      %v681 = vunpack.c.l.b16 %v459
      %v682 = vunpack.c.l.b16 %v469
      %v683 = vunpack.c.l.b16 %v483
      %v684 = vunpack.c.l.b16 %v493
      %v685 = vunpack.c.l.b16 %v507
      %v686 = vunpack.c.l.b16 %v517
      %v687 = vunpack.c.l.b16 %v531
      %v688 = vunpack.c.l.b16 %v541
      %v689 = vunpack.c.l.b16 %v555
      %v690 = vunpack.c.l.b16 %v565
      %v691 = vunpack.c.l.b16 %v579
      %v692 = vunpack.c.l.b16 %v589
      %v693 = vunpack.c.l.b16 %v603
      %v694 = vunpack.c.l.b16 %v613
      %v695 = vunpack.c.l.b16 %v627
      %v696 = vunpack.c.l.b16 %v637
      %v697 = vunpack.c.l.b16 %v651
      %v698 = vunpack.c.l.b16 %v661
      %v699 = vpack.c.b16 %v668, %v667
      %v700 = vpack.c.b16 %v670, %v669
      %v701 = vpack.c.b16 %v672, %v671
      %v702 = vpack.c.b16 %v674, %v673
      %v703 = vpack.c.b16 %v676, %v675
      %v704 = vpack.c.b16 %v678, %v677
      %v705 = vpack.c.b16 %v680, %v679
      %v706 = vpack.c.b16 %v682, %v681
      %v707 = vpack.c.b16 %v684, %v683
      %v708 = vpack.c.b16 %v686, %v685
      %v709 = vpack.c.b16 %v688, %v687
      %v710 = vpack.c.b16 %v690, %v689
      %v711 = vpack.c.b16 %v692, %v691
      %v712 = vpack.c.b16 %v694, %v693
      %v713 = vpack.c.b16 %v696, %v695
      %v714 = vpack.c.b16 %v698, %v697
      %v719 = vunpack.c.l.b16 %v663
      %v720 = vunpack.c.l.b16 %v664
      %v721 = vunpack.c.l.b16 %v665
      %v722 = vunpack.c.l.b16 %v666
      %v723 = vpack.c.b16 %v720, %v719
      %v724 = vpack.c.b16 %v722, %v721
      %vm727 = vcmask 261120
      %v729 = vsel %vm727, %v699, 0
      %v732 = vsel %vm727, %v700, 0
      %v735 = vsel %vm727, %v701, 0
      %v738 = vsel %vm727, %v702, 0
      %v741 = vsel %vm727, %v703, 0
      %v744 = vsel %vm727, %v704, 0
      %v747 = vsel %vm727, %v705, 0
      %v750 = vsel %vm727, %v706, 0
      %v753 = vsel %vm727, %v707, 0
      %v756 = vsel %vm727, %v708, 0
      %v759 = vsel %vm727, %v709, 0
      %v762 = vsel %vm727, %v710, 0
      %v765 = vsel %vm727, %v711, 0
      %v768 = vsel %vm727, %v712, 0
      %v771 = vsel %vm727, %v713, 0
      %v774 = vsel %vm727, %v714, 0
      %776 = vmatpush.bf16.msra.mxu0 0
      %777 = vmatpush.bf16.msra.mxu0 0
      %778 = vmatpush.bf16.msra.mxu0 0
      %779 = vmatpush.bf16.msra.mxu0 0
      %780 = vmatpush.bf16.msra.mxu0 0
      %781 = vmatpush.bf16.msra.mxu0 0
      %782 = vmatpush.bf16.msra.mxu0 %v724
      %783 = vmatpush.bf16.msra.mxu0 %v723
      %784 = vmatmul.bf16.gmra.mxu0 %v729
      %v785 = vpop.f32.mrf.mxu0
      %v786 = vadd.f32 0.0, %v785
      %v787 = vpop.f32.mrf.mxu0
      %v788 = vadd.f32 0.0, %v787
      %789 = vmatmul.bf16.gmra.mxu0 %v732
      %v790 = vpop.f32.mrf.mxu0
      %v791 = vadd.f32 0.0, %v790
      %v792 = vpop.f32.mrf.mxu0
      %v793 = vadd.f32 0.0, %v792
      %794 = vmatmul.bf16.gmra.mxu0 %v735
      %v795 = vpop.f32.mrf.mxu0
      %v796 = vadd.f32 0.0, %v795
      %v797 = vpop.f32.mrf.mxu0
      %v798 = vadd.f32 0.0, %v797
      %799 = vmatmul.bf16.gmra.mxu0 %v738
      %v800 = vpop.f32.mrf.mxu0
      %v801 = vadd.f32 0.0, %v800
      %v802 = vpop.f32.mrf.mxu0
      %v803 = vadd.f32 0.0, %v802
      %804 = vmatmul.bf16.gmra.mxu0 %v741
      %v805 = vpop.f32.mrf.mxu0
      %v806 = vadd.f32 0.0, %v805
      %v807 = vpop.f32.mrf.mxu0
      %v808 = vadd.f32 0.0, %v807
      %809 = vmatmul.bf16.gmra.mxu0 %v744
      %v810 = vpop.f32.mrf.mxu0
      %v811 = vadd.f32 0.0, %v810
      %v812 = vpop.f32.mrf.mxu0
      %v813 = vadd.f32 0.0, %v812
      %814 = vmatmul.bf16.gmra.mxu0 %v747
      %v815 = vpop.f32.mrf.mxu0
      %v816 = vadd.f32 0.0, %v815
      %v817 = vpop.f32.mrf.mxu0
      %v818 = vadd.f32 0.0, %v817
      %819 = vmatmul.bf16.gmra.mxu0 %v750
      %v820 = vpop.f32.mrf.mxu0
      %v821 = vadd.f32 0.0, %v820
      %v822 = vpop.f32.mrf.mxu0
      %v823 = vadd.f32 0.0, %v822
      %824 = vmatmul.bf16.gmra.mxu0 %v753
      %v825 = vpop.f32.mrf.mxu0
      %v826 = vadd.f32 0.0, %v825
      %v827 = vpop.f32.mrf.mxu0
      %v828 = vadd.f32 0.0, %v827
      %829 = vmatmul.bf16.gmra.mxu0 %v756
      %v830 = vpop.f32.mrf.mxu0
      %v831 = vadd.f32 0.0, %v830
      %v832 = vpop.f32.mrf.mxu0
      %v833 = vadd.f32 0.0, %v832
      %834 = vmatmul.bf16.gmra.mxu0 %v759
      %v835 = vpop.f32.mrf.mxu0
      %v836 = vadd.f32 0.0, %v835
      %v837 = vpop.f32.mrf.mxu0
      %v838 = vadd.f32 0.0, %v837
      %839 = vmatmul.bf16.gmra.mxu0 %v762
      %v840 = vpop.f32.mrf.mxu0
      %v841 = vadd.f32 0.0, %v840
      %v842 = vpop.f32.mrf.mxu0
      %v843 = vadd.f32 0.0, %v842
      %844 = vmatmul.bf16.gmra.mxu0 %v765
      %v845 = vpop.f32.mrf.mxu0
      %v846 = vadd.f32 0.0, %v845
      %v847 = vpop.f32.mrf.mxu0
      %v848 = vadd.f32 0.0, %v847
      %849 = vmatmul.bf16.gmra.mxu0 %v768
      %v850 = vpop.f32.mrf.mxu0
      %v851 = vadd.f32 0.0, %v850
      %v852 = vpop.f32.mrf.mxu0
      %v853 = vadd.f32 0.0, %v852
      %854 = vmatmul.bf16.gmra.mxu0 %v771
      %v855 = vpop.f32.mrf.mxu0
      %v856 = vadd.f32 0.0, %v855
      %v857 = vpop.f32.mrf.mxu0
      %v858 = vadd.f32 0.0, %v857
      %859 = vmatmul.bf16.gmra.mxu0 %v774
      %v860 = vpop.f32.mrf.mxu0
      %v861 = vadd.f32 0.0, %v860
      %v862 = vpop.f32.mrf.mxu0
      %v863 = vadd.f32 0.0, %v862
      %864 = vdwg.mxu0
      %v897 = vunpack.c.l.b16 %v223
      %v898 = vunpack.c.l.b16 %v224
      %v899 = vunpack.c.l.b16 %v225
      %v900 = vunpack.c.l.b16 %v226
      %v901 = vunpack.c.l.b16 %v227
      %v902 = vunpack.c.l.b16 %v228
      %v903 = vunpack.c.l.b16 %v229
      %v904 = vunpack.c.l.b16 %v230
      %v905 = vunpack.c.l.b16 %v231
      %v906 = vunpack.c.l.b16 %v232
      %v907 = vunpack.c.l.b16 %v233
      %v908 = vunpack.c.l.b16 %v234
      %v909 = vunpack.c.l.b16 %v235
      %v910 = vunpack.c.l.b16 %v236
      %v911 = vunpack.c.l.b16 %v237
      %v912 = vunpack.c.l.b16 %v238
      %v913 = vunpack.c.l.b16 %v239
      %v914 = vunpack.c.l.b16 %v240
      %v915 = vunpack.c.l.b16 %v241
      %v916 = vunpack.c.l.b16 %v242
      %v917 = vunpack.c.l.b16 %v243
      %v918 = vunpack.c.l.b16 %v244
      %v919 = vunpack.c.l.b16 %v245
      %v920 = vunpack.c.l.b16 %v246
      %v921 = vunpack.c.l.b16 %v247
      %v922 = vunpack.c.l.b16 %v248
      %v923 = vunpack.c.l.b16 %v249
      %v924 = vunpack.c.l.b16 %v250
      %v925 = vunpack.c.l.b16 %v251
      %v926 = vunpack.c.l.b16 %v252
      %v927 = vunpack.c.l.b16 %v253
      %v928 = vunpack.c.l.b16 %v254
      %v929 = vpack.c.b16 %v898, %v897
      %v930 = vpack.c.b16 %v900, %v899
      %v931 = vpack.c.b16 %v902, %v901
      %v932 = vpack.c.b16 %v904, %v903
      %v933 = vpack.c.b16 %v906, %v905
      %v934 = vpack.c.b16 %v908, %v907
      %v935 = vpack.c.b16 %v910, %v909
      %v936 = vpack.c.b16 %v912, %v911
      %v937 = vpack.c.b16 %v914, %v913
      %v938 = vpack.c.b16 %v916, %v915
      %v939 = vpack.c.b16 %v918, %v917
      %v940 = vpack.c.b16 %v920, %v919
      %v941 = vpack.c.b16 %v922, %v921
      %v942 = vpack.c.b16 %v924, %v923
      %v943 = vpack.c.b16 %v926, %v925
      %v944 = vpack.c.b16 %v928, %v927
      %v949 = vunpack.c.l.b16 %v255
      %v950 = vunpack.c.l.b16 %v256
      %v951 = vunpack.c.l.b16 %v257
      %v952 = vunpack.c.l.b16 %v258
      %v953 = vpack.c.b16 %v950, %v949
      %v954 = vpack.c.b16 %v952, %v951
      %v958 = vsel %vm727, %v929, 0
      %v961 = vsel %vm727, %v930, 0
      %v964 = vsel %vm727, %v931, 0
      %v967 = vsel %vm727, %v932, 0
      %v970 = vsel %vm727, %v933, 0
      %v973 = vsel %vm727, %v934, 0
      %v976 = vsel %vm727, %v935, 0
      %v979 = vsel %vm727, %v936, 0
      %v982 = vsel %vm727, %v937, 0
      %v985 = vsel %vm727, %v938, 0
      %v988 = vsel %vm727, %v939, 0
      %v991 = vsel %vm727, %v940, 0
      %v994 = vsel %vm727, %v941, 0
      %v997 = vsel %vm727, %v942, 0
      %v1000 = vsel %vm727, %v943, 0
      %v1003 = vsel %vm727, %v944, 0
      %1005 = vmatpush.bf16.msra.mxu0 0
      %1006 = vmatpush.bf16.msra.mxu0 0
      %1007 = vmatpush.bf16.msra.mxu0 0
      %1008 = vmatpush.bf16.msra.mxu0 0
      %1009 = vmatpush.bf16.msra.mxu0 0
      %1010 = vmatpush.bf16.msra.mxu0 0
      %1011 = vmatpush.bf16.msra.mxu0 %v954
      %1012 = vmatpush.bf16.msra.mxu0 %v953
      %1013 = vmatmul.bf16.gmra.mxu0 %v958
      %v1014 = vpop.f32.mrf.mxu0
      %v1015 = vadd.f32 %v786, %v1014
      %v1016 = vpop.f32.mrf.mxu0
      %v1017 = vadd.f32 %v788, %v1016
      %1018 = vmatmul.bf16.gmra.mxu0 %v961
      %v1019 = vpop.f32.mrf.mxu0
      %v1020 = vadd.f32 %v791, %v1019
      %v1021 = vpop.f32.mrf.mxu0
      %v1022 = vadd.f32 %v793, %v1021
      %1023 = vmatmul.bf16.gmra.mxu0 %v964
      %v1024 = vpop.f32.mrf.mxu0
      %v1025 = vadd.f32 %v796, %v1024
      %v1026 = vpop.f32.mrf.mxu0
      %v1027 = vadd.f32 %v798, %v1026
      %1028 = vmatmul.bf16.gmra.mxu0 %v967
      %v1029 = vpop.f32.mrf.mxu0
      %v1030 = vadd.f32 %v801, %v1029
      %v1031 = vpop.f32.mrf.mxu0
      %v1032 = vadd.f32 %v803, %v1031
      %1033 = vmatmul.bf16.gmra.mxu0 %v970
      %v1034 = vpop.f32.mrf.mxu0
      %v1035 = vadd.f32 %v806, %v1034
      %v1036 = vpop.f32.mrf.mxu0
      %v1037 = vadd.f32 %v808, %v1036
      %1038 = vmatmul.bf16.gmra.mxu0 %v973
      %v1039 = vpop.f32.mrf.mxu0
      %v1040 = vadd.f32 %v811, %v1039
      %v1041 = vpop.f32.mrf.mxu0
      %v1042 = vadd.f32 %v813, %v1041
      %1043 = vmatmul.bf16.gmra.mxu0 %v976
      %v1044 = vpop.f32.mrf.mxu0
      %v1045 = vadd.f32 %v816, %v1044
      %v1046 = vpop.f32.mrf.mxu0
      %v1047 = vadd.f32 %v818, %v1046
      %1048 = vmatmul.bf16.gmra.mxu0 %v979
      %v1049 = vpop.f32.mrf.mxu0
      %v1050 = vadd.f32 %v821, %v1049
      %v1051 = vpop.f32.mrf.mxu0
      %v1052 = vadd.f32 %v823, %v1051
      %1053 = vmatmul.bf16.gmra.mxu0 %v982
      %v1054 = vpop.f32.mrf.mxu0
      %v1055 = vadd.f32 %v826, %v1054
      %v1056 = vpop.f32.mrf.mxu0
      %v1057 = vadd.f32 %v828, %v1056
      %1058 = vmatmul.bf16.gmra.mxu0 %v985
      %v1059 = vpop.f32.mrf.mxu0
      %v1060 = vadd.f32 %v831, %v1059
      %v1061 = vpop.f32.mrf.mxu0
      %v1062 = vadd.f32 %v833, %v1061
      %1063 = vmatmul.bf16.gmra.mxu0 %v988
      %v1064 = vpop.f32.mrf.mxu0
      %v1065 = vadd.f32 %v836, %v1064
      %v1066 = vpop.f32.mrf.mxu0
      %v1067 = vadd.f32 %v838, %v1066
      %1068 = vmatmul.bf16.gmra.mxu0 %v991
      %v1069 = vpop.f32.mrf.mxu0
      %v1070 = vadd.f32 %v841, %v1069
      %v1071 = vpop.f32.mrf.mxu0
      %v1072 = vadd.f32 %v843, %v1071
      %1073 = vmatmul.bf16.gmra.mxu0 %v994
      %v1074 = vpop.f32.mrf.mxu0
      %v1075 = vadd.f32 %v846, %v1074
      %v1076 = vpop.f32.mrf.mxu0
      %v1077 = vadd.f32 %v848, %v1076
      %1078 = vmatmul.bf16.gmra.mxu0 %v997
      %v1079 = vpop.f32.mrf.mxu0
      %v1080 = vadd.f32 %v851, %v1079
      %v1081 = vpop.f32.mrf.mxu0
      %v1082 = vadd.f32 %v853, %v1081
      %1083 = vmatmul.bf16.gmra.mxu0 %v1000
      %v1084 = vpop.f32.mrf.mxu0
      %v1085 = vadd.f32 %v856, %v1084
      %v1086 = vpop.f32.mrf.mxu0
      %v1087 = vadd.f32 %v858, %v1086
      %1088 = vmatmul.bf16.gmra.mxu0 %v1003
      %v1089 = vpop.f32.mrf.mxu0
      %v1090 = vadd.f32 %v861, %v1089
      %v1091 = vpop.f32.mrf.mxu0
      %v1092 = vadd.f32 %v863, %v1091
      %1093 = vdwg.mxu0
      %v1094 = vld [vmem:[%s206] sm:$0xe]
      %v1095 = vld [vmem:[%s206 + $0xc] sm:$0xe]
      %v1096 = vld [vmem:[%s206 + $0x18] sm:$0xe]
      %v1097 = vld [vmem:[%s206 + $0x24] sm:$0xe]
      %v1098 = vld [vmem:[%s206 + $0x30] sm:$0xe]
      %v1099 = vld [vmem:[%s206 + $0x3c] sm:$0xe]
      %v1100 = vld [vmem:[%s206 + $0x48] sm:$0xe]
      %v1101 = vld [vmem:[%s206 + $0x54] sm:$0xe]
      %v1102 = vld [vmem:[%s206 + $0x60] sm:$0xe]
      %v1103 = vld [vmem:[%s206 + $0x6c] sm:$0xe]
      %v1104 = vld [vmem:[%s206 + $0x78] sm:$0xe]
      %v1105 = vld [vmem:[%s206 + $0x84] sm:$0xe]
      %v1106 = vld [vmem:[%s206 + $0x90] sm:$0xe]
      %v1107 = vld [vmem:[%s206 + $0x9c] sm:$0xe]
      %v1108 = vld [vmem:[%s206 + $0xa8] sm:$0xe]
      %v1109 = vld [vmem:[%s206 + $0xb4] sm:$0xe]
      %vm1142 = vcmask 1042432
      %vm1143 = vcmask 1046532
      %vm1144 = vmor %vm1142, %vm1143
      %v1145 = vrot.slane %v1094, 5
      %v1146 = vrot.slane %v1145, 4
      %v1147 = vrot.slane %v224, 5
      %v1148 = vsel %vm1144, %v1146, %v1147
      %v1149 = vrot.slane %v1147, 4
      %v1150 = vrot.slane %v259, 5
      %v1151 = vsel %vm1144, %v1149, %v1150
      %v1152 = vrot.slane %v1095, 5
      %v1153 = vrot.slane %v1152, 4
      %v1154 = vrot.slane %v226, 5
      %v1155 = vsel %vm1144, %v1153, %v1154
      %v1156 = vrot.slane %v1154, 4
      %v1157 = vrot.slane %v260, 5
      %v1158 = vsel %vm1144, %v1156, %v1157
      %v1159 = vrot.slane %v1096, 5
      %v1160 = vrot.slane %v1159, 4
      %v1161 = vrot.slane %v228, 5
      %v1162 = vsel %vm1144, %v1160, %v1161
      %v1163 = vrot.slane %v1161, 4
      %v1164 = vrot.slane %v261, 5
      %v1165 = vsel %vm1144, %v1163, %v1164
      %v1166 = vrot.slane %v1097, 5
      %v1167 = vrot.slane %v1166, 4
      %v1168 = vrot.slane %v230, 5
      %v1169 = vsel %vm1144, %v1167, %v1168
      %v1170 = vrot.slane %v1168, 4
      %v1171 = vrot.slane %v262, 5
      %v1172 = vsel %vm1144, %v1170, %v1171
      %v1173 = vrot.slane %v1098, 5
      %v1174 = vrot.slane %v1173, 4
      %v1175 = vrot.slane %v232, 5
      %v1176 = vsel %vm1144, %v1174, %v1175
      %v1177 = vrot.slane %v1175, 4
      %v1178 = vrot.slane %v263, 5
      %v1179 = vsel %vm1144, %v1177, %v1178
      %v1180 = vrot.slane %v1099, 5
      %v1181 = vrot.slane %v1180, 4
      %v1182 = vrot.slane %v234, 5
      %v1183 = vsel %vm1144, %v1181, %v1182
      %v1184 = vrot.slane %v1182, 4
      %v1185 = vrot.slane %v264, 5
      %v1186 = vsel %vm1144, %v1184, %v1185
      %v1187 = vrot.slane %v1100, 5
      %v1188 = vrot.slane %v1187, 4
      %v1189 = vrot.slane %v236, 5
      %v1190 = vsel %vm1144, %v1188, %v1189
      %v1191 = vrot.slane %v1189, 4
      %v1192 = vrot.slane %v265, 5
      %v1193 = vsel %vm1144, %v1191, %v1192
      %v1194 = vrot.slane %v1101, 5
      %v1195 = vrot.slane %v1194, 4
      %v1196 = vrot.slane %v238, 5
      %v1197 = vsel %vm1144, %v1195, %v1196
      %v1198 = vrot.slane %v1196, 4
      %v1199 = vrot.slane %v266, 5
      %v1200 = vsel %vm1144, %v1198, %v1199
      %v1201 = vrot.slane %v1102, 5
      %v1202 = vrot.slane %v1201, 4
      %v1203 = vrot.slane %v240, 5
      %v1204 = vsel %vm1144, %v1202, %v1203
      %v1205 = vrot.slane %v1203, 4
      %v1206 = vrot.slane %v267, 5
      %v1207 = vsel %vm1144, %v1205, %v1206
      %v1208 = vrot.slane %v1103, 5
      %v1209 = vrot.slane %v1208, 4
      %v1210 = vrot.slane %v242, 5
      %v1211 = vsel %vm1144, %v1209, %v1210
      %v1212 = vrot.slane %v1210, 4
      %v1213 = vrot.slane %v268, 5
      %v1214 = vsel %vm1144, %v1212, %v1213
      %v1215 = vrot.slane %v1104, 5
      %v1216 = vrot.slane %v1215, 4
      %v1217 = vrot.slane %v244, 5
      %v1218 = vsel %vm1144, %v1216, %v1217
      %v1219 = vrot.slane %v1217, 4
      %v1220 = vrot.slane %v269, 5
      %v1221 = vsel %vm1144, %v1219, %v1220
      %v1222 = vrot.slane %v1105, 5
      %v1223 = vrot.slane %v1222, 4
      %v1224 = vrot.slane %v246, 5
      %v1225 = vsel %vm1144, %v1223, %v1224
      %v1226 = vrot.slane %v1224, 4
      %v1227 = vrot.slane %v270, 5
      %v1228 = vsel %vm1144, %v1226, %v1227
      %v1229 = vrot.slane %v1106, 5
      %v1230 = vrot.slane %v1229, 4
      %v1231 = vrot.slane %v248, 5
      %v1232 = vsel %vm1144, %v1230, %v1231
      %v1233 = vrot.slane %v1231, 4
      %v1234 = vrot.slane %v271, 5
      %v1235 = vsel %vm1144, %v1233, %v1234
      %v1236 = vrot.slane %v1107, 5
      %v1237 = vrot.slane %v1236, 4
      %v1238 = vrot.slane %v250, 5
      %v1239 = vsel %vm1144, %v1237, %v1238
      %v1240 = vrot.slane %v1238, 4
      %v1241 = vrot.slane %v272, 5
      %v1242 = vsel %vm1144, %v1240, %v1241
      %v1243 = vrot.slane %v1108, 5
      %v1244 = vrot.slane %v1243, 4
      %v1245 = vrot.slane %v252, 5
      %v1246 = vsel %vm1144, %v1244, %v1245
      %v1247 = vrot.slane %v1245, 4
      %v1248 = vrot.slane %v273, 5
      %v1249 = vsel %vm1144, %v1247, %v1248
      %v1250 = vrot.slane %v1109, 5
      %v1251 = vrot.slane %v1250, 4
      %v1252 = vrot.slane %v254, 5
      %v1253 = vsel %vm1144, %v1251, %v1252
      %v1254 = vrot.slane %v1252, 4
      %v1255 = vrot.slane %v274, 5
      %v1256 = vsel %vm1144, %v1254, %v1255
      %s1257 = scalar_lea.vmem %s210, 32
      %v1258 = vld [vmem:[%s1257] sm:$0xf]
      %v1259 = vld [vmem:[%s1257 + $0x4] sm:$0xf]
      %v1260 = vld [vmem:[%s1257 + $0x8] sm:$0xf]
      %v1261 = vld [vmem:[%s1257 + $0xc] sm:$0xf]
      %v1262 = vunpack.c.l.b16 %v1148
      %v1263 = vunpack.c.l.b16 %v1151
      %v1264 = vunpack.c.l.b16 %v1155
      %v1265 = vunpack.c.l.b16 %v1158
      %v1266 = vunpack.c.l.b16 %v1162
      %v1267 = vunpack.c.l.b16 %v1165
      %v1268 = vunpack.c.l.b16 %v1169
      %v1269 = vunpack.c.l.b16 %v1172
      %v1270 = vunpack.c.l.b16 %v1176
      %v1271 = vunpack.c.l.b16 %v1179
      %v1272 = vunpack.c.l.b16 %v1183
      %v1273 = vunpack.c.l.b16 %v1186
      %v1274 = vunpack.c.l.b16 %v1190
      %v1275 = vunpack.c.l.b16 %v1193
      %v1276 = vunpack.c.l.b16 %v1197
      %v1277 = vunpack.c.l.b16 %v1200
      %v1278 = vunpack.c.l.b16 %v1204
      %v1279 = vunpack.c.l.b16 %v1207
      %v1280 = vunpack.c.l.b16 %v1211
      %v1281 = vunpack.c.l.b16 %v1214
      %v1282 = vunpack.c.l.b16 %v1218
      %v1283 = vunpack.c.l.b16 %v1221
      %v1284 = vunpack.c.l.b16 %v1225
      %v1285 = vunpack.c.l.b16 %v1228
      %v1286 = vunpack.c.l.b16 %v1232
      %v1287 = vunpack.c.l.b16 %v1235
      %v1288 = vunpack.c.l.b16 %v1239
      %v1289 = vunpack.c.l.b16 %v1242
      %v1290 = vunpack.c.l.b16 %v1246
      %v1291 = vunpack.c.l.b16 %v1249
      %v1292 = vunpack.c.l.b16 %v1253
      %v1293 = vunpack.c.l.b16 %v1256
      %v1294 = vpack.c.b16 %v1263, %v1262
      %v1295 = vpack.c.b16 %v1265, %v1264
      %v1296 = vpack.c.b16 %v1267, %v1266
      %v1297 = vpack.c.b16 %v1269, %v1268
      %v1298 = vpack.c.b16 %v1271, %v1270
      %v1299 = vpack.c.b16 %v1273, %v1272
      %v1300 = vpack.c.b16 %v1275, %v1274
      %v1301 = vpack.c.b16 %v1277, %v1276
      %v1302 = vpack.c.b16 %v1279, %v1278
      %v1303 = vpack.c.b16 %v1281, %v1280
      %v1304 = vpack.c.b16 %v1283, %v1282
      %v1305 = vpack.c.b16 %v1285, %v1284
      %v1306 = vpack.c.b16 %v1287, %v1286
      %v1307 = vpack.c.b16 %v1289, %v1288
      %v1308 = vpack.c.b16 %v1291, %v1290
      %v1309 = vpack.c.b16 %v1293, %v1292
      %v1314 = vunpack.c.l.b16 %v1258
      %v1315 = vunpack.c.l.b16 %v1259
      %v1316 = vunpack.c.l.b16 %v1260
      %v1317 = vunpack.c.l.b16 %v1261
      %v1318 = vpack.c.b16 %v1315, %v1314
      %v1319 = vpack.c.b16 %v1317, %v1316
      %v1323 = vsel %vm727, %v1294, 0
      %v1326 = vsel %vm727, %v1295, 0
      %v1329 = vsel %vm727, %v1296, 0
      %v1332 = vsel %vm727, %v1297, 0
      %v1335 = vsel %vm727, %v1298, 0
      %v1338 = vsel %vm727, %v1299, 0
      %v1341 = vsel %vm727, %v1300, 0
      %v1344 = vsel %vm727, %v1301, 0
      %v1347 = vsel %vm727, %v1302, 0
      %v1350 = vsel %vm727, %v1303, 0
      %v1353 = vsel %vm727, %v1304, 0
      %v1356 = vsel %vm727, %v1305, 0
      %v1359 = vsel %vm727, %v1306, 0
      %v1362 = vsel %vm727, %v1307, 0
      %v1365 = vsel %vm727, %v1308, 0
      %v1368 = vsel %vm727, %v1309, 0
      %1370 = vmatpush.bf16.msra.mxu0 0
      %1371 = vmatpush.bf16.msra.mxu0 0
      %1372 = vmatpush.bf16.msra.mxu0 0
      %1373 = vmatpush.bf16.msra.mxu0 0
      %1374 = vmatpush.bf16.msra.mxu0 0
      %1375 = vmatpush.bf16.msra.mxu0 0
      %1376 = vmatpush.bf16.msra.mxu0 %v1319
      %1377 = vmatpush.bf16.msra.mxu0 %v1318
      %1378 = vmatmul.bf16.gmra.mxu0 %v1323
      %v1379 = vpop.f32.mrf.mxu0
      %v1380 = vadd.f32 0.0, %v1379
      %v1381 = vpop.f32.mrf.mxu0
      %v1382 = vadd.f32 0.0, %v1381
      %1383 = vmatmul.bf16.gmra.mxu0 %v1326
      %v1384 = vpop.f32.mrf.mxu0
      %v1385 = vadd.f32 0.0, %v1384
      %v1386 = vpop.f32.mrf.mxu0
      %v1387 = vadd.f32 0.0, %v1386
      %1388 = vmatmul.bf16.gmra.mxu0 %v1329
      %v1389 = vpop.f32.mrf.mxu0
      %v1390 = vadd.f32 0.0, %v1389
      %v1391 = vpop.f32.mrf.mxu0
      %v1392 = vadd.f32 0.0, %v1391
      %1393 = vmatmul.bf16.gmra.mxu0 %v1332
      %v1394 = vpop.f32.mrf.mxu0
      %v1395 = vadd.f32 0.0, %v1394
      %v1396 = vpop.f32.mrf.mxu0
      %v1397 = vadd.f32 0.0, %v1396
      %1398 = vmatmul.bf16.gmra.mxu0 %v1335
      %v1399 = vpop.f32.mrf.mxu0
      %v1400 = vadd.f32 0.0, %v1399
      %v1401 = vpop.f32.mrf.mxu0
      %v1402 = vadd.f32 0.0, %v1401
      %1403 = vmatmul.bf16.gmra.mxu0 %v1338
      %v1404 = vpop.f32.mrf.mxu0
      %v1405 = vadd.f32 0.0, %v1404
      %v1406 = vpop.f32.mrf.mxu0
      %v1407 = vadd.f32 0.0, %v1406
      %1408 = vmatmul.bf16.gmra.mxu0 %v1341
      %v1409 = vpop.f32.mrf.mxu0
      %v1410 = vadd.f32 0.0, %v1409
      %v1411 = vpop.f32.mrf.mxu0
      %v1412 = vadd.f32 0.0, %v1411
      %1413 = vmatmul.bf16.gmra.mxu0 %v1344
      %v1414 = vpop.f32.mrf.mxu0
      %v1415 = vadd.f32 0.0, %v1414
      %v1416 = vpop.f32.mrf.mxu0
      %v1417 = vadd.f32 0.0, %v1416
      %1418 = vmatmul.bf16.gmra.mxu0 %v1347
      %v1419 = vpop.f32.mrf.mxu0
      %v1420 = vadd.f32 0.0, %v1419
      %v1421 = vpop.f32.mrf.mxu0
      %v1422 = vadd.f32 0.0, %v1421
      %1423 = vmatmul.bf16.gmra.mxu0 %v1350
      %v1424 = vpop.f32.mrf.mxu0
      %v1425 = vadd.f32 0.0, %v1424
      %v1426 = vpop.f32.mrf.mxu0
      %v1427 = vadd.f32 0.0, %v1426
      %1428 = vmatmul.bf16.gmra.mxu0 %v1353
      %v1429 = vpop.f32.mrf.mxu0
      %v1430 = vadd.f32 0.0, %v1429
      %v1431 = vpop.f32.mrf.mxu0
      %v1432 = vadd.f32 0.0, %v1431
      %1433 = vmatmul.bf16.gmra.mxu0 %v1356
      %v1434 = vpop.f32.mrf.mxu0
      %v1435 = vadd.f32 0.0, %v1434
      %v1436 = vpop.f32.mrf.mxu0
      %v1437 = vadd.f32 0.0, %v1436
      %1438 = vmatmul.bf16.gmra.mxu0 %v1359
      %v1439 = vpop.f32.mrf.mxu0
      %v1440 = vadd.f32 0.0, %v1439
      %v1441 = vpop.f32.mrf.mxu0
      %v1442 = vadd.f32 0.0, %v1441
      %1443 = vmatmul.bf16.gmra.mxu0 %v1362
      %v1444 = vpop.f32.mrf.mxu0
      %v1445 = vadd.f32 0.0, %v1444
      %v1446 = vpop.f32.mrf.mxu0
      %v1447 = vadd.f32 0.0, %v1446
      %1448 = vmatmul.bf16.gmra.mxu0 %v1365
      %v1449 = vpop.f32.mrf.mxu0
      %v1450 = vadd.f32 0.0, %v1449
      %v1451 = vpop.f32.mrf.mxu0
      %v1452 = vadd.f32 0.0, %v1451
      %1453 = vmatmul.bf16.gmra.mxu0 %v1368
      %v1454 = vpop.f32.mrf.mxu0
      %v1455 = vadd.f32 0.0, %v1454
      %v1456 = vpop.f32.mrf.mxu0
      %v1457 = vadd.f32 0.0, %v1456
      %1458 = vdwg.mxu0
      %v1459 = vadd.f32 %v1015, %v1380
      %v1460 = vadd.f32 %v1017, %v1382
      %v1461 = vadd.f32 %v1020, %v1385
      %v1462 = vadd.f32 %v1022, %v1387
      %v1463 = vadd.f32 %v1025, %v1390
      %v1464 = vadd.f32 %v1027, %v1392
      %v1465 = vadd.f32 %v1030, %v1395
      %v1466 = vadd.f32 %v1032, %v1397
      %v1467 = vadd.f32 %v1035, %v1400
      %v1468 = vadd.f32 %v1037, %v1402
      %v1469 = vadd.f32 %v1040, %v1405
      %v1470 = vadd.f32 %v1042, %v1407
      %v1471 = vadd.f32 %v1045, %v1410
      %v1472 = vadd.f32 %v1047, %v1412
      %v1473 = vadd.f32 %v1050, %v1415
      %v1474 = vadd.f32 %v1052, %v1417
      %v1475 = vadd.f32 %v1055, %v1420
      %v1476 = vadd.f32 %v1057, %v1422
      %v1477 = vadd.f32 %v1060, %v1425
      %v1478 = vadd.f32 %v1062, %v1427
      %v1479 = vadd.f32 %v1065, %v1430
      %v1480 = vadd.f32 %v1067, %v1432
      %v1481 = vadd.f32 %v1070, %v1435
      %v1482 = vadd.f32 %v1072, %v1437
      %v1483 = vadd.f32 %v1075, %v1440
      %v1484 = vadd.f32 %v1077, %v1442
      %v1485 = vadd.f32 %v1080, %v1445
      %v1486 = vadd.f32 %v1082, %v1447
      %v1487 = vadd.f32 %v1085, %v1450
      %v1488 = vadd.f32 %v1087, %v1452
      %v1489 = vadd.f32 %v1090, %v1455
      %v1490 = vadd.f32 %v1092, %v1457
      %s1491 = scalar_lea.vmem %s206, 12
      %v1492 = vld [vmem:[%s1491] sm:$0xf]
      %v1493 = vld [vmem:[%s1491 + $0x4] sm:$0xf]
      %v1494 = vld [vmem:[%s1491 + $0xc] sm:$0xf]
      %v1495 = vld [vmem:[%s1491 + $0x10] sm:$0xf]
      %v1496 = vld [vmem:[%s1491 + $0x18] sm:$0xf]
      %v1497 = vld [vmem:[%s1491 + $0x1c] sm:$0xf]
      %v1498 = vld [vmem:[%s1491 + $0x24] sm:$0xf]
      %v1499 = vld [vmem:[%s1491 + $0x28] sm:$0xf]
      %v1500 = vld [vmem:[%s1491 + $0x30] sm:$0xf]
      %v1501 = vld [vmem:[%s1491 + $0x34] sm:$0xf]
      %v1502 = vld [vmem:[%s1491 + $0x3c] sm:$0xf]
      %v1503 = vld [vmem:[%s1491 + $0x40] sm:$0xf]
      %v1504 = vld [vmem:[%s1491 + $0x48] sm:$0xf]
      %v1505 = vld [vmem:[%s1491 + $0x4c] sm:$0xf]
      %v1506 = vld [vmem:[%s1491 + $0x54] sm:$0xf]
      %v1507 = vld [vmem:[%s1491 + $0x58] sm:$0xf]
      %v1508 = vld [vmem:[%s1491 + $0x60] sm:$0xf]
      %v1509 = vld [vmem:[%s1491 + $0x64] sm:$0xf]
      %v1510 = vld [vmem:[%s1491 + $0x6c] sm:$0xf]
      %v1511 = vld [vmem:[%s1491 + $0x70] sm:$0xf]
      %v1512 = vld [vmem:[%s1491 + $0x78] sm:$0xf]
      %v1513 = vld [vmem:[%s1491 + $0x7c] sm:$0xf]
      %v1514 = vld [vmem:[%s1491 + $0x84] sm:$0xf]
      %v1515 = vld [vmem:[%s1491 + $0x88] sm:$0xf]
      %v1516 = vld [vmem:[%s1491 + $0x90] sm:$0xf]
      %v1517 = vld [vmem:[%s1491 + $0x94] sm:$0xf]
      %v1518 = vld [vmem:[%s1491 + $0x9c] sm:$0xf]
      %v1519 = vld [vmem:[%s1491 + $0xa0] sm:$0xf]
      %v1520 = vld [vmem:[%s1491 + $0xa8] sm:$0xf]
      %v1521 = vld [vmem:[%s1491 + $0xac] sm:$0xf]
      %v1522 = vld [vmem:[%s1491 + $0xb4] sm:$0xf]
      %v1523 = vld [vmem:[%s1491 + $0xb8] sm:$0xf]
      %s1524 = scalar_lea.vmem %s210, 48
      %v1525 = vld [vmem:[%s1524] sm:$0xf]
      %v1526 = vld [vmem:[%s1524 + $0x4] sm:$0xf]
      %v1527 = vld [vmem:[%s1524 + $0x8] sm:$0xf]
      %v1528 = vld [vmem:[%s1524 + $0xc] sm:$0xf]
      %v1561 = vunpack.c.l.b16 %v1492
      %v1562 = vunpack.c.l.b16 %v1493
      %v1563 = vunpack.c.l.b16 %v1494
      %v1564 = vunpack.c.l.b16 %v1495
      %v1565 = vunpack.c.l.b16 %v1496
      %v1566 = vunpack.c.l.b16 %v1497
      %v1567 = vunpack.c.l.b16 %v1498
      %v1568 = vunpack.c.l.b16 %v1499
      %v1569 = vunpack.c.l.b16 %v1500
      %v1570 = vunpack.c.l.b16 %v1501
      %v1571 = vunpack.c.l.b16 %v1502
      %v1572 = vunpack.c.l.b16 %v1503
      %v1573 = vunpack.c.l.b16 %v1504
      %v1574 = vunpack.c.l.b16 %v1505
      %v1575 = vunpack.c.l.b16 %v1506
      %v1576 = vunpack.c.l.b16 %v1507
      %v1577 = vunpack.c.l.b16 %v1508
      %v1578 = vunpack.c.l.b16 %v1509
      %v1579 = vunpack.c.l.b16 %v1510
      %v1580 = vunpack.c.l.b16 %v1511
      %v1581 = vunpack.c.l.b16 %v1512
      %v1582 = vunpack.c.l.b16 %v1513
      %v1583 = vunpack.c.l.b16 %v1514
      %v1584 = vunpack.c.l.b16 %v1515
      %v1585 = vunpack.c.l.b16 %v1516
      %v1586 = vunpack.c.l.b16 %v1517
      %v1587 = vunpack.c.l.b16 %v1518
      %v1588 = vunpack.c.l.b16 %v1519
      %v1589 = vunpack.c.l.b16 %v1520
      %v1590 = vunpack.c.l.b16 %v1521
      %v1591 = vunpack.c.l.b16 %v1522
      %v1592 = vunpack.c.l.b16 %v1523
      %v1593 = vpack.c.b16 %v1562, %v1561
      %v1594 = vpack.c.b16 %v1564, %v1563
      %v1595 = vpack.c.b16 %v1566, %v1565
      %v1596 = vpack.c.b16 %v1568, %v1567
      %v1597 = vpack.c.b16 %v1570, %v1569
      %v1598 = vpack.c.b16 %v1572, %v1571
      %v1599 = vpack.c.b16 %v1574, %v1573
      %v1600 = vpack.c.b16 %v1576, %v1575
      %v1601 = vpack.c.b16 %v1578, %v1577
      %v1602 = vpack.c.b16 %v1580, %v1579
      %v1603 = vpack.c.b16 %v1582, %v1581
      %v1604 = vpack.c.b16 %v1584, %v1583
      %v1605 = vpack.c.b16 %v1586, %v1585
      %v1606 = vpack.c.b16 %v1588, %v1587
      %v1607 = vpack.c.b16 %v1590, %v1589
      %v1608 = vpack.c.b16 %v1592, %v1591
      %v1613 = vunpack.c.l.b16 %v1525
      %v1614 = vunpack.c.l.b16 %v1526
      %v1615 = vunpack.c.l.b16 %v1527
      %v1616 = vunpack.c.l.b16 %v1528
      %v1617 = vpack.c.b16 %v1614, %v1613
      %v1618 = vpack.c.b16 %v1616, %v1615
      %v1622 = vsel %vm727, %v1593, 0
      %v1625 = vsel %vm727, %v1594, 0
      %v1628 = vsel %vm727, %v1595, 0
      %v1631 = vsel %vm727, %v1596, 0
      %v1634 = vsel %vm727, %v1597, 0
      %v1637 = vsel %vm727, %v1598, 0
      %v1640 = vsel %vm727, %v1599, 0
      %v1643 = vsel %vm727, %v1600, 0
      %v1646 = vsel %vm727, %v1601, 0
      %v1649 = vsel %vm727, %v1602, 0
      %v1652 = vsel %vm727, %v1603, 0
      %v1655 = vsel %vm727, %v1604, 0
      %v1658 = vsel %vm727, %v1605, 0
      %v1661 = vsel %vm727, %v1606, 0
      %v1664 = vsel %vm727, %v1607, 0
      %v1667 = vsel %vm727, %v1608, 0
      %1669 = vmatpush.bf16.msra.mxu0 0
      %1670 = vmatpush.bf16.msra.mxu0 0
      %1671 = vmatpush.bf16.msra.mxu0 0
      %1672 = vmatpush.bf16.msra.mxu0 0
      %1673 = vmatpush.bf16.msra.mxu0 0
      %1674 = vmatpush.bf16.msra.mxu0 0
      %1675 = vmatpush.bf16.msra.mxu0 %v1618
      %1676 = vmatpush.bf16.msra.mxu0 %v1617
      %1677 = vmatmul.bf16.gmra.mxu0 %v1622
      %v1678 = vpop.f32.mrf.mxu0
      %v1679 = vadd.f32 0.0, %v1678
      %v1680 = vpop.f32.mrf.mxu0
      %v1681 = vadd.f32 0.0, %v1680
      %1682 = vmatmul.bf16.gmra.mxu0 %v1625
      %v1683 = vpop.f32.mrf.mxu0
      %v1684 = vadd.f32 0.0, %v1683
      %v1685 = vpop.f32.mrf.mxu0
      %v1686 = vadd.f32 0.0, %v1685
      %1687 = vmatmul.bf16.gmra.mxu0 %v1628
      %v1688 = vpop.f32.mrf.mxu0
      %v1689 = vadd.f32 0.0, %v1688
      %v1690 = vpop.f32.mrf.mxu0
      %v1691 = vadd.f32 0.0, %v1690
      %1692 = vmatmul.bf16.gmra.mxu0 %v1631
      %v1693 = vpop.f32.mrf.mxu0
      %v1694 = vadd.f32 0.0, %v1693
      %v1695 = vpop.f32.mrf.mxu0
      %v1696 = vadd.f32 0.0, %v1695
      %1697 = vmatmul.bf16.gmra.mxu0 %v1634
      %v1698 = vpop.f32.mrf.mxu0
      %v1699 = vadd.f32 0.0, %v1698
      %v1700 = vpop.f32.mrf.mxu0
      %v1701 = vadd.f32 0.0, %v1700
      %1702 = vmatmul.bf16.gmra.mxu0 %v1637
      %v1703 = vpop.f32.mrf.mxu0
      %v1704 = vadd.f32 0.0, %v1703
      %v1705 = vpop.f32.mrf.mxu0
      %v1706 = vadd.f32 0.0, %v1705
      %1707 = vmatmul.bf16.gmra.mxu0 %v1640
      %v1708 = vpop.f32.mrf.mxu0
      %v1709 = vadd.f32 0.0, %v1708
      %v1710 = vpop.f32.mrf.mxu0
      %v1711 = vadd.f32 0.0, %v1710
      %1712 = vmatmul.bf16.gmra.mxu0 %v1643
      %v1713 = vpop.f32.mrf.mxu0
      %v1714 = vadd.f32 0.0, %v1713
      %v1715 = vpop.f32.mrf.mxu0
      %v1716 = vadd.f32 0.0, %v1715
      %1717 = vmatmul.bf16.gmra.mxu0 %v1646
      %v1718 = vpop.f32.mrf.mxu0
      %v1719 = vadd.f32 0.0, %v1718
      %v1720 = vpop.f32.mrf.mxu0
      %v1721 = vadd.f32 0.0, %v1720
      %1722 = vmatmul.bf16.gmra.mxu0 %v1649
      %v1723 = vpop.f32.mrf.mxu0
      %v1724 = vadd.f32 0.0, %v1723
      %v1725 = vpop.f32.mrf.mxu0
      %v1726 = vadd.f32 0.0, %v1725
      %1727 = vmatmul.bf16.gmra.mxu0 %v1652
      %v1728 = vpop.f32.mrf.mxu0
      %v1729 = vadd.f32 0.0, %v1728
      %v1730 = vpop.f32.mrf.mxu0
      %v1731 = vadd.f32 0.0, %v1730
      %1732 = vmatmul.bf16.gmra.mxu0 %v1655
      %v1733 = vpop.f32.mrf.mxu0
      %v1734 = vadd.f32 0.0, %v1733
      %v1735 = vpop.f32.mrf.mxu0
      %v1736 = vadd.f32 0.0, %v1735
      %1737 = vmatmul.bf16.gmra.mxu0 %v1658
      %v1738 = vpop.f32.mrf.mxu0
      %v1739 = vadd.f32 0.0, %v1738
      %v1740 = vpop.f32.mrf.mxu0
      %v1741 = vadd.f32 0.0, %v1740
      %1742 = vmatmul.bf16.gmra.mxu0 %v1661
      %v1743 = vpop.f32.mrf.mxu0
      %v1744 = vadd.f32 0.0, %v1743
      %v1745 = vpop.f32.mrf.mxu0
      %v1746 = vadd.f32 0.0, %v1745
      %1747 = vmatmul.bf16.gmra.mxu0 %v1664
      %v1748 = vpop.f32.mrf.mxu0
      %v1749 = vadd.f32 0.0, %v1748
      %v1750 = vpop.f32.mrf.mxu0
      %v1751 = vadd.f32 0.0, %v1750
      %1752 = vmatmul.bf16.gmra.mxu0 %v1667
      %v1753 = vpop.f32.mrf.mxu0
      %v1754 = vadd.f32 0.0, %v1753
      %v1755 = vpop.f32.mrf.mxu0
      %v1756 = vadd.f32 0.0, %v1755
      %1757 = vdwg.mxu0
      %v1758 = vadd.f32 %v1459, %v1679
      %v1759 = vadd.f32 %v1460, %v1681
      %v1760 = vadd.f32 %v1461, %v1684
      %v1761 = vadd.f32 %v1462, %v1686
      %v1762 = vadd.f32 %v1463, %v1689
      %v1763 = vadd.f32 %v1464, %v1691
      %v1764 = vadd.f32 %v1465, %v1694
      %v1765 = vadd.f32 %v1466, %v1696
      %v1766 = vadd.f32 %v1467, %v1699
      %v1767 = vadd.f32 %v1468, %v1701
      %v1768 = vadd.f32 %v1469, %v1704
      %v1769 = vadd.f32 %v1470, %v1706
      %v1770 = vadd.f32 %v1471, %v1709
      %v1771 = vadd.f32 %v1472, %v1711
      %v1772 = vadd.f32 %v1473, %v1714
      %v1773 = vadd.f32 %v1474, %v1716
      %v1774 = vadd.f32 %v1475, %v1719
      %v1775 = vadd.f32 %v1476, %v1721
      %v1776 = vadd.f32 %v1477, %v1724
      %v1777 = vadd.f32 %v1478, %v1726
      %v1778 = vadd.f32 %v1479, %v1729
      %v1779 = vadd.f32 %v1480, %v1731
      %v1780 = vadd.f32 %v1481, %v1734
      %v1781 = vadd.f32 %v1482, %v1736
      %v1782 = vadd.f32 %v1483, %v1739
      %v1783 = vadd.f32 %v1484, %v1741
      %v1784 = vadd.f32 %v1485, %v1744
      %v1785 = vadd.f32 %v1486, %v1746
      %v1786 = vadd.f32 %v1487, %v1749
      %v1787 = vadd.f32 %v1488, %v1751
      %v1788 = vadd.f32 %v1489, %v1754
      %v1789 = vadd.f32 %v1490, %v1756
      %v1790 = vld [vmem:[%s1491] sm:$0xf]
      %v1791 = vld [vmem:[%s1491 + $0x4] sm:$0xf]
      %v1792 = vld [vmem:[%s1491 + $0x8] sm:$0x1]
      %v1793 = vld [vmem:[%s1491 + $0xc] sm:$0xf]
      %v1794 = vld [vmem:[%s1491 + $0x10] sm:$0xf]
      %v1795 = vld [vmem:[%s1491 + $0x14] sm:$0x1]
      %v1796 = vld [vmem:[%s1491 + $0x18] sm:$0xf]
      %v1797 = vld [vmem:[%s1491 + $0x1c] sm:$0xf]
      %v1798 = vld [vmem:[%s1491 + $0x20] sm:$0x1]
      %v1799 = vld [vmem:[%s1491 + $0x24] sm:$0xf]
      %v1800 = vld [vmem:[%s1491 + $0x28] sm:$0xf]
      %v1801 = vld [vmem:[%s1491 + $0x2c] sm:$0x1]
      %v1802 = vld [vmem:[%s1491 + $0x30] sm:$0xf]
      %v1803 = vld [vmem:[%s1491 + $0x34] sm:$0xf]
      %v1804 = vld [vmem:[%s1491 + $0x38] sm:$0x1]
      %v1805 = vld [vmem:[%s1491 + $0x3c] sm:$0xf]
      %v1806 = vld [vmem:[%s1491 + $0x40] sm:$0xf]
      %v1807 = vld [vmem:[%s1491 + $0x44] sm:$0x1]
      %v1808 = vld [vmem:[%s1491 + $0x48] sm:$0xf]
      %v1809 = vld [vmem:[%s1491 + $0x4c] sm:$0xf]
      %v1810 = vld [vmem:[%s1491 + $0x50] sm:$0x1]
      %v1811 = vld [vmem:[%s1491 + $0x54] sm:$0xf]
      %v1812 = vld [vmem:[%s1491 + $0x58] sm:$0xf]
      %v1813 = vld [vmem:[%s1491 + $0x5c] sm:$0x1]
      %v1814 = vld [vmem:[%s1491 + $0x60] sm:$0xf]
      %v1815 = vld [vmem:[%s1491 + $0x64] sm:$0xf]
      %v1816 = vld [vmem:[%s1491 + $0x68] sm:$0x1]
      %v1817 = vld [vmem:[%s1491 + $0x6c] sm:$0xf]
      %v1818 = vld [vmem:[%s1491 + $0x70] sm:$0xf]
      %v1819 = vld [vmem:[%s1491 + $0x74] sm:$0x1]
      %v1820 = vld [vmem:[%s1491 + $0x78] sm:$0xf]
      %v1821 = vld [vmem:[%s1491 + $0x7c] sm:$0xf]
      %v1822 = vld [vmem:[%s1491 + $0x80] sm:$0x1]
      %v1823 = vld [vmem:[%s1491 + $0x84] sm:$0xf]
      %v1824 = vld [vmem:[%s1491 + $0x88] sm:$0xf]
      %v1825 = vld [vmem:[%s1491 + $0x8c] sm:$0x1]
      %v1826 = vld [vmem:[%s1491 + $0x90] sm:$0xf]
      %v1827 = vld [vmem:[%s1491 + $0x94] sm:$0xf]
      %v1828 = vld [vmem:[%s1491 + $0x98] sm:$0x1]
      %v1829 = vld [vmem:[%s1491 + $0x9c] sm:$0xf]
      %v1830 = vld [vmem:[%s1491 + $0xa0] sm:$0xf]
      %v1831 = vld [vmem:[%s1491 + $0xa4] sm:$0x1]
      %v1832 = vld [vmem:[%s1491 + $0xa8] sm:$0xf]
      %v1833 = vld [vmem:[%s1491 + $0xac] sm:$0xf]
      %v1834 = vld [vmem:[%s1491 + $0xb0] sm:$0x1]
      %v1835 = vld [vmem:[%s1491 + $0xb4] sm:$0xf]
      %v1836 = vld [vmem:[%s1491 + $0xb8] sm:$0xf]
      %v1837 = vld [vmem:[%s1491 + $0xbc] sm:$0x1]
      %v1839 = vshrl.u32 %v1790, 16
      %v1841 = vrot.slane %v1839, 4
      %v1842 = vshll.u32 %v1790, 16
      %v1844 = vrot.slane %v1842, 5
      %v1845 = vor.u32 %v1841, %v1844
      %v1846 = vrot.slane %v1845, 4
      %v1848 = vshll.u32 %v1791, 16
      %v1850 = vrot.slane %v1848, 5
      %v1851 = vsel %vm277, %v1846, %v1850
      %v1852 = vshrl.u32 %v1791, 16
      %v1854 = vrot.slane %v1852, 4
      %v1855 = vor.u32 %v1854, %v1850
      %v1856 = vrot.slane %v1855, 4
      %v1858 = vshll.u32 %v1792, 16
      %v1860 = vrot.slane %v1858, 5
      %v1861 = vsel %vm277, %v1856, %v1860
      %v1863 = vshrl.u32 %v1793, 16
      %v1865 = vrot.slane %v1863, 4
      %v1866 = vshll.u32 %v1793, 16
      %v1868 = vrot.slane %v1866, 5
      %v1869 = vor.u32 %v1865, %v1868
      %v1870 = vrot.slane %v1869, 4
      %v1872 = vshll.u32 %v1794, 16
      %v1874 = vrot.slane %v1872, 5
      %v1875 = vsel %vm277, %v1870, %v1874
      %v1876 = vshrl.u32 %v1794, 16
      %v1878 = vrot.slane %v1876, 4
      %v1879 = vor.u32 %v1878, %v1874
      %v1880 = vrot.slane %v1879, 4
      %v1882 = vshll.u32 %v1795, 16
      %v1884 = vrot.slane %v1882, 5
      %v1885 = vsel %vm277, %v1880, %v1884
      %v1887 = vshrl.u32 %v1796, 16
      %v1889 = vrot.slane %v1887, 4
      %v1890 = vshll.u32 %v1796, 16
      %v1892 = vrot.slane %v1890, 5
      %v1893 = vor.u32 %v1889, %v1892
      %v1894 = vrot.slane %v1893, 4
      %v1896 = vshll.u32 %v1797, 16
      %v1898 = vrot.slane %v1896, 5
      %v1899 = vsel %vm277, %v1894, %v1898
      %v1900 = vshrl.u32 %v1797, 16
      %v1902 = vrot.slane %v1900, 4
      %v1903 = vor.u32 %v1902, %v1898
      %v1904 = vrot.slane %v1903, 4
      %v1906 = vshll.u32 %v1798, 16
      %v1908 = vrot.slane %v1906, 5
      %v1909 = vsel %vm277, %v1904, %v1908
      %v1911 = vshrl.u32 %v1799, 16
      %v1913 = vrot.slane %v1911, 4
      %v1914 = vshll.u32 %v1799, 16
      %v1916 = vrot.slane %v1914, 5
      %v1917 = vor.u32 %v1913, %v1916
      %v1918 = vrot.slane %v1917, 4
      %v1920 = vshll.u32 %v1800, 16
      %v1922 = vrot.slane %v1920, 5
      %v1923 = vsel %vm277, %v1918, %v1922
      %v1924 = vshrl.u32 %v1800, 16
      %v1926 = vrot.slane %v1924, 4
      %v1927 = vor.u32 %v1926, %v1922
      %v1928 = vrot.slane %v1927, 4
      %v1930 = vshll.u32 %v1801, 16
      %v1932 = vrot.slane %v1930, 5
      %v1933 = vsel %vm277, %v1928, %v1932
      %v1935 = vshrl.u32 %v1802, 16
      %v1937 = vrot.slane %v1935, 4
      %v1938 = vshll.u32 %v1802, 16
      %v1940 = vrot.slane %v1938, 5
      %v1941 = vor.u32 %v1937, %v1940
      %v1942 = vrot.slane %v1941, 4
      %v1944 = vshll.u32 %v1803, 16
      %v1946 = vrot.slane %v1944, 5
      %v1947 = vsel %vm277, %v1942, %v1946
      %v1948 = vshrl.u32 %v1803, 16
      %v1950 = vrot.slane %v1948, 4
      %v1951 = vor.u32 %v1950, %v1946
      %v1952 = vrot.slane %v1951, 4
      %v1954 = vshll.u32 %v1804, 16
      %v1956 = vrot.slane %v1954, 5
      %v1957 = vsel %vm277, %v1952, %v1956
      %v1959 = vshrl.u32 %v1805, 16
      %v1961 = vrot.slane %v1959, 4
      %v1962 = vshll.u32 %v1805, 16
      %v1964 = vrot.slane %v1962, 5
      %v1965 = vor.u32 %v1961, %v1964
      %v1966 = vrot.slane %v1965, 4
      %v1968 = vshll.u32 %v1806, 16
      %v1970 = vrot.slane %v1968, 5
      %v1971 = vsel %vm277, %v1966, %v1970
      %v1972 = vshrl.u32 %v1806, 16
      %v1974 = vrot.slane %v1972, 4
      %v1975 = vor.u32 %v1974, %v1970
      %v1976 = vrot.slane %v1975, 4
      %v1978 = vshll.u32 %v1807, 16
      %v1980 = vrot.slane %v1978, 5
      %v1981 = vsel %vm277, %v1976, %v1980
      %v1983 = vshrl.u32 %v1808, 16
      %v1985 = vrot.slane %v1983, 4
      %v1986 = vshll.u32 %v1808, 16
      %v1988 = vrot.slane %v1986, 5
      %v1989 = vor.u32 %v1985, %v1988
      %v1990 = vrot.slane %v1989, 4
      %v1992 = vshll.u32 %v1809, 16
      %v1994 = vrot.slane %v1992, 5
      %v1995 = vsel %vm277, %v1990, %v1994
      %v1996 = vshrl.u32 %v1809, 16
      %v1998 = vrot.slane %v1996, 4
      %v1999 = vor.u32 %v1998, %v1994
      %v2000 = vrot.slane %v1999, 4
      %v2002 = vshll.u32 %v1810, 16
      %v2004 = vrot.slane %v2002, 5
      %v2005 = vsel %vm277, %v2000, %v2004
      %v2007 = vshrl.u32 %v1811, 16
      %v2009 = vrot.slane %v2007, 4
      %v2010 = vshll.u32 %v1811, 16
      %v2012 = vrot.slane %v2010, 5
      %v2013 = vor.u32 %v2009, %v2012
      %v2014 = vrot.slane %v2013, 4
      %v2016 = vshll.u32 %v1812, 16
      %v2018 = vrot.slane %v2016, 5
      %v2019 = vsel %vm277, %v2014, %v2018
      %v2020 = vshrl.u32 %v1812, 16
      %v2022 = vrot.slane %v2020, 4
      %v2023 = vor.u32 %v2022, %v2018
      %v2024 = vrot.slane %v2023, 4
      %v2026 = vshll.u32 %v1813, 16
      %v2028 = vrot.slane %v2026, 5
      %v2029 = vsel %vm277, %v2024, %v2028
      %v2031 = vshrl.u32 %v1814, 16
      %v2033 = vrot.slane %v2031, 4
      %v2034 = vshll.u32 %v1814, 16
      %v2036 = vrot.slane %v2034, 5
      %v2037 = vor.u32 %v2033, %v2036
      %v2038 = vrot.slane %v2037, 4
      %v2040 = vshll.u32 %v1815, 16
      %v2042 = vrot.slane %v2040, 5
      %v2043 = vsel %vm277, %v2038, %v2042
      %v2044 = vshrl.u32 %v1815, 16
      %v2046 = vrot.slane %v2044, 4
      %v2047 = vor.u32 %v2046, %v2042
      %v2048 = vrot.slane %v2047, 4
      %v2050 = vshll.u32 %v1816, 16
      %v2052 = vrot.slane %v2050, 5
      %v2053 = vsel %vm277, %v2048, %v2052
      %v2055 = vshrl.u32 %v1817, 16
      %v2057 = vrot.slane %v2055, 4
      %v2058 = vshll.u32 %v1817, 16
      %v2060 = vrot.slane %v2058, 5
      %v2061 = vor.u32 %v2057, %v2060
      %v2062 = vrot.slane %v2061, 4
      %v2064 = vshll.u32 %v1818, 16
      %v2066 = vrot.slane %v2064, 5
      %v2067 = vsel %vm277, %v2062, %v2066
      %v2068 = vshrl.u32 %v1818, 16
      %v2070 = vrot.slane %v2068, 4
      %v2071 = vor.u32 %v2070, %v2066
      %v2072 = vrot.slane %v2071, 4
      %v2074 = vshll.u32 %v1819, 16
      %v2076 = vrot.slane %v2074, 5
      %v2077 = vsel %vm277, %v2072, %v2076
      %v2079 = vshrl.u32 %v1820, 16
      %v2081 = vrot.slane %v2079, 4
      %v2082 = vshll.u32 %v1820, 16
      %v2084 = vrot.slane %v2082, 5
      %v2085 = vor.u32 %v2081, %v2084
      %v2086 = vrot.slane %v2085, 4
      %v2088 = vshll.u32 %v1821, 16
      %v2090 = vrot.slane %v2088, 5
      %v2091 = vsel %vm277, %v2086, %v2090
      %v2092 = vshrl.u32 %v1821, 16
      %v2094 = vrot.slane %v2092, 4
      %v2095 = vor.u32 %v2094, %v2090
      %v2096 = vrot.slane %v2095, 4
      %v2098 = vshll.u32 %v1822, 16
      %v2100 = vrot.slane %v2098, 5
      %v2101 = vsel %vm277, %v2096, %v2100
      %v2103 = vshrl.u32 %v1823, 16
      %v2105 = vrot.slane %v2103, 4
      %v2106 = vshll.u32 %v1823, 16
      %v2108 = vrot.slane %v2106, 5
      %v2109 = vor.u32 %v2105, %v2108
      %v2110 = vrot.slane %v2109, 4
      %v2112 = vshll.u32 %v1824, 16
      %v2114 = vrot.slane %v2112, 5
      %v2115 = vsel %vm277, %v2110, %v2114
      %v2116 = vshrl.u32 %v1824, 16
      %v2118 = vrot.slane %v2116, 4
      %v2119 = vor.u32 %v2118, %v2114
      %v2120 = vrot.slane %v2119, 4
      %v2122 = vshll.u32 %v1825, 16
      %v2124 = vrot.slane %v2122, 5
      %v2125 = vsel %vm277, %v2120, %v2124
      %v2127 = vshrl.u32 %v1826, 16
      %v2129 = vrot.slane %v2127, 4
      %v2130 = vshll.u32 %v1826, 16
      %v2132 = vrot.slane %v2130, 5
      %v2133 = vor.u32 %v2129, %v2132
      %v2134 = vrot.slane %v2133, 4
      %v2136 = vshll.u32 %v1827, 16
      %v2138 = vrot.slane %v2136, 5
      %v2139 = vsel %vm277, %v2134, %v2138
      %v2140 = vshrl.u32 %v1827, 16
      %v2142 = vrot.slane %v2140, 4
      %v2143 = vor.u32 %v2142, %v2138
      %v2144 = vrot.slane %v2143, 4
      %v2146 = vshll.u32 %v1828, 16
      %v2148 = vrot.slane %v2146, 5
      %v2149 = vsel %vm277, %v2144, %v2148
      %v2151 = vshrl.u32 %v1829, 16
      %v2153 = vrot.slane %v2151, 4
      %v2154 = vshll.u32 %v1829, 16
      %v2156 = vrot.slane %v2154, 5
      %v2157 = vor.u32 %v2153, %v2156
      %v2158 = vrot.slane %v2157, 4
      %v2160 = vshll.u32 %v1830, 16
      %v2162 = vrot.slane %v2160, 5
      %v2163 = vsel %vm277, %v2158, %v2162
      %v2164 = vshrl.u32 %v1830, 16
      %v2166 = vrot.slane %v2164, 4
      %v2167 = vor.u32 %v2166, %v2162
      %v2168 = vrot.slane %v2167, 4
      %v2170 = vshll.u32 %v1831, 16
      %v2172 = vrot.slane %v2170, 5
      %v2173 = vsel %vm277, %v2168, %v2172
      %v2175 = vshrl.u32 %v1832, 16
      %v2177 = vrot.slane %v2175, 4
      %v2178 = vshll.u32 %v1832, 16
      %v2180 = vrot.slane %v2178, 5
      %v2181 = vor.u32 %v2177, %v2180
      %v2182 = vrot.slane %v2181, 4
      %v2184 = vshll.u32 %v1833, 16
      %v2186 = vrot.slane %v2184, 5
      %v2187 = vsel %vm277, %v2182, %v2186
      %v2188 = vshrl.u32 %v1833, 16
      %v2190 = vrot.slane %v2188, 4
      %v2191 = vor.u32 %v2190, %v2186
      %v2192 = vrot.slane %v2191, 4
      %v2194 = vshll.u32 %v1834, 16
      %v2196 = vrot.slane %v2194, 5
      %v2197 = vsel %vm277, %v2192, %v2196
      %v2199 = vshrl.u32 %v1835, 16
      %v2201 = vrot.slane %v2199, 4
      %v2202 = vshll.u32 %v1835, 16
      %v2204 = vrot.slane %v2202, 5
      %v2205 = vor.u32 %v2201, %v2204
      %v2206 = vrot.slane %v2205, 4
      %v2208 = vshll.u32 %v1836, 16
      %v2210 = vrot.slane %v2208, 5
      %v2211 = vsel %vm277, %v2206, %v2210
      %v2212 = vshrl.u32 %v1836, 16
      %v2214 = vrot.slane %v2212, 4
      %v2215 = vor.u32 %v2214, %v2210
      %v2216 = vrot.slane %v2215, 4
      %v2218 = vshll.u32 %v1837, 16
      %v2220 = vrot.slane %v2218, 5
      %v2221 = vsel %vm277, %v2216, %v2220
      %s2222 = scalar_lea.vmem %s210, 64
      %v2223 = vld [vmem:[%s2222] sm:$0xf]
      %v2224 = vld [vmem:[%s2222 + $0x4] sm:$0xf]
      %v2225 = vld [vmem:[%s2222 + $0x8] sm:$0xf]
      %v2226 = vld [vmem:[%s2222 + $0xc] sm:$0xf]
      %v2227 = vunpack.c.l.b16 %v1851
      %v2228 = vunpack.c.l.b16 %v1861
      %v2229 = vunpack.c.l.b16 %v1875
      %v2230 = vunpack.c.l.b16 %v1885
      %v2231 = vunpack.c.l.b16 %v1899
      %v2232 = vunpack.c.l.b16 %v1909
      %v2233 = vunpack.c.l.b16 %v1923
      %v2234 = vunpack.c.l.b16 %v1933
      %v2235 = vunpack.c.l.b16 %v1947
      %v2236 = vunpack.c.l.b16 %v1957
      %v2237 = vunpack.c.l.b16 %v1971
      %v2238 = vunpack.c.l.b16 %v1981
      %v2239 = vunpack.c.l.b16 %v1995
      %v2240 = vunpack.c.l.b16 %v2005
      %v2241 = vunpack.c.l.b16 %v2019
      %v2242 = vunpack.c.l.b16 %v2029
      %v2243 = vunpack.c.l.b16 %v2043
      %v2244 = vunpack.c.l.b16 %v2053
      %v2245 = vunpack.c.l.b16 %v2067
      %v2246 = vunpack.c.l.b16 %v2077
      %v2247 = vunpack.c.l.b16 %v2091
      %v2248 = vunpack.c.l.b16 %v2101
      %v2249 = vunpack.c.l.b16 %v2115
      %v2250 = vunpack.c.l.b16 %v2125
      %v2251 = vunpack.c.l.b16 %v2139
      %v2252 = vunpack.c.l.b16 %v2149
      %v2253 = vunpack.c.l.b16 %v2163
      %v2254 = vunpack.c.l.b16 %v2173
      %v2255 = vunpack.c.l.b16 %v2187
      %v2256 = vunpack.c.l.b16 %v2197
      %v2257 = vunpack.c.l.b16 %v2211
      %v2258 = vunpack.c.l.b16 %v2221
      %v2259 = vpack.c.b16 %v2228, %v2227
      %v2260 = vpack.c.b16 %v2230, %v2229
      %v2261 = vpack.c.b16 %v2232, %v2231
      %v2262 = vpack.c.b16 %v2234, %v2233
      %v2263 = vpack.c.b16 %v2236, %v2235
      %v2264 = vpack.c.b16 %v2238, %v2237
      %v2265 = vpack.c.b16 %v2240, %v2239
      %v2266 = vpack.c.b16 %v2242, %v2241
      %v2267 = vpack.c.b16 %v2244, %v2243
      %v2268 = vpack.c.b16 %v2246, %v2245
      %v2269 = vpack.c.b16 %v2248, %v2247
      %v2270 = vpack.c.b16 %v2250, %v2249
      %v2271 = vpack.c.b16 %v2252, %v2251
      %v2272 = vpack.c.b16 %v2254, %v2253
      %v2273 = vpack.c.b16 %v2256, %v2255
      %v2274 = vpack.c.b16 %v2258, %v2257
      %v2279 = vunpack.c.l.b16 %v2223
      %v2280 = vunpack.c.l.b16 %v2224
      %v2281 = vunpack.c.l.b16 %v2225
      %v2282 = vunpack.c.l.b16 %v2226
      %v2283 = vpack.c.b16 %v2280, %v2279
      %v2284 = vpack.c.b16 %v2282, %v2281
      %v2288 = vsel %vm727, %v2259, 0
      %v2291 = vsel %vm727, %v2260, 0
      %v2294 = vsel %vm727, %v2261, 0
      %v2297 = vsel %vm727, %v2262, 0
      %v2300 = vsel %vm727, %v2263, 0
      %v2303 = vsel %vm727, %v2264, 0
      %v2306 = vsel %vm727, %v2265, 0
      %v2309 = vsel %vm727, %v2266, 0
      %v2312 = vsel %vm727, %v2267, 0
      %v2315 = vsel %vm727, %v2268, 0
      %v2318 = vsel %vm727, %v2269, 0
      %v2321 = vsel %vm727, %v2270, 0
      %v2324 = vsel %vm727, %v2271, 0
      %v2327 = vsel %vm727, %v2272, 0
      %v2330 = vsel %vm727, %v2273, 0
      %v2333 = vsel %vm727, %v2274, 0
      %2335 = vmatpush.bf16.msra.mxu0 0
      %2336 = vmatpush.bf16.msra.mxu0 0
      %2337 = vmatpush.bf16.msra.mxu0 0
      %2338 = vmatpush.bf16.msra.mxu0 0
      %2339 = vmatpush.bf16.msra.mxu0 0
      %2340 = vmatpush.bf16.msra.mxu0 0
      %2341 = vmatpush.bf16.msra.mxu0 %v2284
      %2342 = vmatpush.bf16.msra.mxu0 %v2283
      %2343 = vmatmul.bf16.gmra.mxu0 %v2288
      %v2344 = vpop.f32.mrf.mxu0
      %v2345 = vadd.f32 0.0, %v2344
      %v2346 = vpop.f32.mrf.mxu0
      %v2347 = vadd.f32 0.0, %v2346
      %2348 = vmatmul.bf16.gmra.mxu0 %v2291
      %v2349 = vpop.f32.mrf.mxu0
      %v2350 = vadd.f32 0.0, %v2349
      %v2351 = vpop.f32.mrf.mxu0
      %v2352 = vadd.f32 0.0, %v2351
      %2353 = vmatmul.bf16.gmra.mxu0 %v2294
      %v2354 = vpop.f32.mrf.mxu0
      %v2355 = vadd.f32 0.0, %v2354
      %v2356 = vpop.f32.mrf.mxu0
      %v2357 = vadd.f32 0.0, %v2356
      %2358 = vmatmul.bf16.gmra.mxu0 %v2297
      %v2359 = vpop.f32.mrf.mxu0
      %v2360 = vadd.f32 0.0, %v2359
      %v2361 = vpop.f32.mrf.mxu0
      %v2362 = vadd.f32 0.0, %v2361
      %2363 = vmatmul.bf16.gmra.mxu0 %v2300
      %v2364 = vpop.f32.mrf.mxu0
      %v2365 = vadd.f32 0.0, %v2364
      %v2366 = vpop.f32.mrf.mxu0
      %v2367 = vadd.f32 0.0, %v2366
      %2368 = vmatmul.bf16.gmra.mxu0 %v2303
      %v2369 = vpop.f32.mrf.mxu0
      %v2370 = vadd.f32 0.0, %v2369
      %v2371 = vpop.f32.mrf.mxu0
      %v2372 = vadd.f32 0.0, %v2371
      %2373 = vmatmul.bf16.gmra.mxu0 %v2306
      %v2374 = vpop.f32.mrf.mxu0
      %v2375 = vadd.f32 0.0, %v2374
      %v2376 = vpop.f32.mrf.mxu0
      %v2377 = vadd.f32 0.0, %v2376
      %2378 = vmatmul.bf16.gmra.mxu0 %v2309
      %v2379 = vpop.f32.mrf.mxu0
      %v2380 = vadd.f32 0.0, %v2379
      %v2381 = vpop.f32.mrf.mxu0
      %v2382 = vadd.f32 0.0, %v2381
      %2383 = vmatmul.bf16.gmra.mxu0 %v2312
      %v2384 = vpop.f32.mrf.mxu0
      %v2385 = vadd.f32 0.0, %v2384
      %v2386 = vpop.f32.mrf.mxu0
      %v2387 = vadd.f32 0.0, %v2386
      %2388 = vmatmul.bf16.gmra.mxu0 %v2315
      %v2389 = vpop.f32.mrf.mxu0
      %v2390 = vadd.f32 0.0, %v2389
      %v2391 = vpop.f32.mrf.mxu0
      %v2392 = vadd.f32 0.0, %v2391
      %2393 = vmatmul.bf16.gmra.mxu0 %v2318
      %v2394 = vpop.f32.mrf.mxu0
      %v2395 = vadd.f32 0.0, %v2394
      %v2396 = vpop.f32.mrf.mxu0
      %v2397 = vadd.f32 0.0, %v2396
      %2398 = vmatmul.bf16.gmra.mxu0 %v2321
      %v2399 = vpop.f32.mrf.mxu0
      %v2400 = vadd.f32 0.0, %v2399
      %v2401 = vpop.f32.mrf.mxu0
      %v2402 = vadd.f32 0.0, %v2401
      %2403 = vmatmul.bf16.gmra.mxu0 %v2324
      %v2404 = vpop.f32.mrf.mxu0
      %v2405 = vadd.f32 0.0, %v2404
      %v2406 = vpop.f32.mrf.mxu0
      %v2407 = vadd.f32 0.0, %v2406
      %2408 = vmatmul.bf16.gmra.mxu0 %v2327
      %v2409 = vpop.f32.mrf.mxu0
      %v2410 = vadd.f32 0.0, %v2409
      %v2411 = vpop.f32.mrf.mxu0
      %v2412 = vadd.f32 0.0, %v2411
      %2413 = vmatmul.bf16.gmra.mxu0 %v2330
      %v2414 = vpop.f32.mrf.mxu0
      %v2415 = vadd.f32 0.0, %v2414
      %v2416 = vpop.f32.mrf.mxu0
      %v2417 = vadd.f32 0.0, %v2416
      %2418 = vmatmul.bf16.gmra.mxu0 %v2333
      %v2419 = vpop.f32.mrf.mxu0
      %v2420 = vadd.f32 0.0, %v2419
      %v2421 = vpop.f32.mrf.mxu0
      %v2422 = vadd.f32 0.0, %v2421
      %2423 = vdwg.mxu0
      %v2424 = vadd.f32 %v1758, %v2345
      %v2425 = vadd.f32 %v1759, %v2347
      %v2426 = vadd.f32 %v1760, %v2350
      %v2427 = vadd.f32 %v1761, %v2352
      %v2428 = vadd.f32 %v1762, %v2355
      %v2429 = vadd.f32 %v1763, %v2357
      %v2430 = vadd.f32 %v1764, %v2360
      %v2431 = vadd.f32 %v1765, %v2362
      %v2432 = vadd.f32 %v1766, %v2365
      %v2433 = vadd.f32 %v1767, %v2367
      %v2434 = vadd.f32 %v1768, %v2370
      %v2435 = vadd.f32 %v1769, %v2372
      %v2436 = vadd.f32 %v1770, %v2375
      %v2437 = vadd.f32 %v1771, %v2377
      %v2438 = vadd.f32 %v1772, %v2380
      %v2439 = vadd.f32 %v1773, %v2382
      %v2440 = vadd.f32 %v1774, %v2385
      %v2441 = vadd.f32 %v1775, %v2387
      %v2442 = vadd.f32 %v1776, %v2390
      %v2443 = vadd.f32 %v1777, %v2392
      %v2444 = vadd.f32 %v1778, %v2395
      %v2445 = vadd.f32 %v1779, %v2397
      %v2446 = vadd.f32 %v1780, %v2400
      %v2447 = vadd.f32 %v1781, %v2402
      %v2448 = vadd.f32 %v1782, %v2405
      %v2449 = vadd.f32 %v1783, %v2407
      %v2450 = vadd.f32 %v1784, %v2410
      %v2451 = vadd.f32 %v1785, %v2412
      %v2452 = vadd.f32 %v1786, %v2415
      %v2453 = vadd.f32 %v1787, %v2417
      %v2454 = vadd.f32 %v1788, %v2420
      %v2455 = vadd.f32 %v1789, %v2422
      %v2456 = vld [vmem:[%s1491] sm:$0xe]
      %v2457 = vld [vmem:[%s1491 + $0xc] sm:$0xe]
      %v2458 = vld [vmem:[%s1491 + $0x18] sm:$0xe]
      %v2459 = vld [vmem:[%s1491 + $0x24] sm:$0xe]
      %v2460 = vld [vmem:[%s1491 + $0x30] sm:$0xe]
      %v2461 = vld [vmem:[%s1491 + $0x3c] sm:$0xe]
      %v2462 = vld [vmem:[%s1491 + $0x48] sm:$0xe]
      %v2463 = vld [vmem:[%s1491 + $0x54] sm:$0xe]
      %v2464 = vld [vmem:[%s1491 + $0x60] sm:$0xe]
      %v2465 = vld [vmem:[%s1491 + $0x6c] sm:$0xe]
      %v2466 = vld [vmem:[%s1491 + $0x78] sm:$0xe]
      %v2467 = vld [vmem:[%s1491 + $0x84] sm:$0xe]
      %v2468 = vld [vmem:[%s1491 + $0x90] sm:$0xe]
      %v2469 = vld [vmem:[%s1491 + $0x9c] sm:$0xe]
      %v2470 = vld [vmem:[%s1491 + $0xa8] sm:$0xe]
      %v2471 = vld [vmem:[%s1491 + $0xb4] sm:$0xe]
      %v2520 = vrot.slane %v2456, 5
      %v2521 = vrot.slane %v2520, 4
      %v2522 = vrot.slane %v1791, 5
      %v2523 = vsel %vm1144, %v2521, %v2522
      %v2524 = vrot.slane %v2522, 4
      %v2525 = vrot.slane %v1792, 5
      %v2526 = vsel %vm1144, %v2524, %v2525
      %v2527 = vrot.slane %v2457, 5
      %v2528 = vrot.slane %v2527, 4
      %v2529 = vrot.slane %v1794, 5
      %v2530 = vsel %vm1144, %v2528, %v2529
      %v2531 = vrot.slane %v2529, 4
      %v2532 = vrot.slane %v1795, 5
      %v2533 = vsel %vm1144, %v2531, %v2532
      %v2534 = vrot.slane %v2458, 5
      %v2535 = vrot.slane %v2534, 4
      %v2536 = vrot.slane %v1797, 5
      %v2537 = vsel %vm1144, %v2535, %v2536
      %v2538 = vrot.slane %v2536, 4
      %v2539 = vrot.slane %v1798, 5
      %v2540 = vsel %vm1144, %v2538, %v2539
      %v2541 = vrot.slane %v2459, 5
      %v2542 = vrot.slane %v2541, 4
      %v2543 = vrot.slane %v1800, 5
      %v2544 = vsel %vm1144, %v2542, %v2543
      %v2545 = vrot.slane %v2543, 4
      %v2546 = vrot.slane %v1801, 5
      %v2547 = vsel %vm1144, %v2545, %v2546
      %v2548 = vrot.slane %v2460, 5
      %v2549 = vrot.slane %v2548, 4
      %v2550 = vrot.slane %v1803, 5
      %v2551 = vsel %vm1144, %v2549, %v2550
      %v2552 = vrot.slane %v2550, 4
      %v2553 = vrot.slane %v1804, 5
      %v2554 = vsel %vm1144, %v2552, %v2553
      %v2555 = vrot.slane %v2461, 5
      %v2556 = vrot.slane %v2555, 4
      %v2557 = vrot.slane %v1806, 5
      %v2558 = vsel %vm1144, %v2556, %v2557
      %v2559 = vrot.slane %v2557, 4
      %v2560 = vrot.slane %v1807, 5
      %v2561 = vsel %vm1144, %v2559, %v2560
      %v2562 = vrot.slane %v2462, 5
      %v2563 = vrot.slane %v2562, 4
      %v2564 = vrot.slane %v1809, 5
      %v2565 = vsel %vm1144, %v2563, %v2564
      %v2566 = vrot.slane %v2564, 4
      %v2567 = vrot.slane %v1810, 5
      %v2568 = vsel %vm1144, %v2566, %v2567
      %v2569 = vrot.slane %v2463, 5
      %v2570 = vrot.slane %v2569, 4
      %v2571 = vrot.slane %v1812, 5
      %v2572 = vsel %vm1144, %v2570, %v2571
      %v2573 = vrot.slane %v2571, 4
      %v2574 = vrot.slane %v1813, 5
      %v2575 = vsel %vm1144, %v2573, %v2574
      %v2576 = vrot.slane %v2464, 5
      %v2577 = vrot.slane %v2576, 4
      %v2578 = vrot.slane %v1815, 5
      %v2579 = vsel %vm1144, %v2577, %v2578
      %v2580 = vrot.slane %v2578, 4
      %v2581 = vrot.slane %v1816, 5
      %v2582 = vsel %vm1144, %v2580, %v2581
      %v2583 = vrot.slane %v2465, 5
      %v2584 = vrot.slane %v2583, 4
      %v2585 = vrot.slane %v1818, 5
      %v2586 = vsel %vm1144, %v2584, %v2585
      %v2587 = vrot.slane %v2585, 4
      %v2588 = vrot.slane %v1819, 5
      %v2589 = vsel %vm1144, %v2587, %v2588
      %v2590 = vrot.slane %v2466, 5
      %v2591 = vrot.slane %v2590, 4
      %v2592 = vrot.slane %v1821, 5
      %v2593 = vsel %vm1144, %v2591, %v2592
      %v2594 = vrot.slane %v2592, 4
      %v2595 = vrot.slane %v1822, 5
      %v2596 = vsel %vm1144, %v2594, %v2595
      %v2597 = vrot.slane %v2467, 5
      %v2598 = vrot.slane %v2597, 4
      %v2599 = vrot.slane %v1824, 5
      %v2600 = vsel %vm1144, %v2598, %v2599
      %v2601 = vrot.slane %v2599, 4
      %v2602 = vrot.slane %v1825, 5
      %v2603 = vsel %vm1144, %v2601, %v2602
      %v2604 = vrot.slane %v2468, 5
      %v2605 = vrot.slane %v2604, 4
      %v2606 = vrot.slane %v1827, 5
      %v2607 = vsel %vm1144, %v2605, %v2606
      %v2608 = vrot.slane %v2606, 4
      %v2609 = vrot.slane %v1828, 5
      %v2610 = vsel %vm1144, %v2608, %v2609
      %v2611 = vrot.slane %v2469, 5
      %v2612 = vrot.slane %v2611, 4
      %v2613 = vrot.slane %v1830, 5
      %v2614 = vsel %vm1144, %v2612, %v2613
      %v2615 = vrot.slane %v2613, 4
      %v2616 = vrot.slane %v1831, 5
      %v2617 = vsel %vm1144, %v2615, %v2616
      %v2618 = vrot.slane %v2470, 5
      %v2619 = vrot.slane %v2618, 4
      %v2620 = vrot.slane %v1833, 5
      %v2621 = vsel %vm1144, %v2619, %v2620
      %v2622 = vrot.slane %v2620, 4
      %v2623 = vrot.slane %v1834, 5
      %v2624 = vsel %vm1144, %v2622, %v2623
      %v2625 = vrot.slane %v2471, 5
      %v2626 = vrot.slane %v2625, 4
      %v2627 = vrot.slane %v1836, 5
      %v2628 = vsel %vm1144, %v2626, %v2627
      %v2629 = vrot.slane %v2627, 4
      %v2630 = vrot.slane %v1837, 5
      %v2631 = vsel %vm1144, %v2629, %v2630
      %s2632 = scalar_lea.vmem %s210, 80
      %v2633 = vld [vmem:[%s2632] sm:$0xf]
      %v2634 = vld [vmem:[%s2632 + $0x4] sm:$0xf]
      %v2635 = vld [vmem:[%s2632 + $0x8] sm:$0xf]
      %v2636 = vld [vmem:[%s2632 + $0xc] sm:$0xf]
      %v2637 = vunpack.c.l.b16 %v2523
      %v2638 = vunpack.c.l.b16 %v2526
      %v2639 = vunpack.c.l.b16 %v2530
      %v2640 = vunpack.c.l.b16 %v2533
      %v2641 = vunpack.c.l.b16 %v2537
      %v2642 = vunpack.c.l.b16 %v2540
      %v2643 = vunpack.c.l.b16 %v2544
      %v2644 = vunpack.c.l.b16 %v2547
      %v2645 = vunpack.c.l.b16 %v2551
      %v2646 = vunpack.c.l.b16 %v2554
      %v2647 = vunpack.c.l.b16 %v2558
      %v2648 = vunpack.c.l.b16 %v2561
      %v2649 = vunpack.c.l.b16 %v2565
      %v2650 = vunpack.c.l.b16 %v2568
      %v2651 = vunpack.c.l.b16 %v2572
      %v2652 = vunpack.c.l.b16 %v2575
      %v2653 = vunpack.c.l.b16 %v2579
      %v2654 = vunpack.c.l.b16 %v2582
      %v2655 = vunpack.c.l.b16 %v2586
      %v2656 = vunpack.c.l.b16 %v2589
      %v2657 = vunpack.c.l.b16 %v2593
      %v2658 = vunpack.c.l.b16 %v2596
      %v2659 = vunpack.c.l.b16 %v2600
      %v2660 = vunpack.c.l.b16 %v2603
      %v2661 = vunpack.c.l.b16 %v2607
      %v2662 = vunpack.c.l.b16 %v2610
      %v2663 = vunpack.c.l.b16 %v2614
      %v2664 = vunpack.c.l.b16 %v2617
      %v2665 = vunpack.c.l.b16 %v2621
      %v2666 = vunpack.c.l.b16 %v2624
      %v2667 = vunpack.c.l.b16 %v2628
      %v2668 = vunpack.c.l.b16 %v2631
      %v2669 = vpack.c.b16 %v2638, %v2637
      %v2670 = vpack.c.b16 %v2640, %v2639
      %v2671 = vpack.c.b16 %v2642, %v2641
      %v2672 = vpack.c.b16 %v2644, %v2643
      %v2673 = vpack.c.b16 %v2646, %v2645
      %v2674 = vpack.c.b16 %v2648, %v2647
      %v2675 = vpack.c.b16 %v2650, %v2649
      %v2676 = vpack.c.b16 %v2652, %v2651
      %v2677 = vpack.c.b16 %v2654, %v2653
      %v2678 = vpack.c.b16 %v2656, %v2655
      %v2679 = vpack.c.b16 %v2658, %v2657
      %v2680 = vpack.c.b16 %v2660, %v2659
      %v2681 = vpack.c.b16 %v2662, %v2661
      %v2682 = vpack.c.b16 %v2664, %v2663
      %v2683 = vpack.c.b16 %v2666, %v2665
      %v2684 = vpack.c.b16 %v2668, %v2667
      %v2689 = vunpack.c.l.b16 %v2633
      %v2690 = vunpack.c.l.b16 %v2634
      %v2691 = vunpack.c.l.b16 %v2635
      %v2692 = vunpack.c.l.b16 %v2636
      %v2693 = vpack.c.b16 %v2690, %v2689
      %v2694 = vpack.c.b16 %v2692, %v2691
      %v2698 = vsel %vm727, %v2669, 0
      %v2701 = vsel %vm727, %v2670, 0
      %v2704 = vsel %vm727, %v2671, 0
      %v2707 = vsel %vm727, %v2672, 0
      %v2710 = vsel %vm727, %v2673, 0
      %v2713 = vsel %vm727, %v2674, 0
      %v2716 = vsel %vm727, %v2675, 0
      %v2719 = vsel %vm727, %v2676, 0
      %v2722 = vsel %vm727, %v2677, 0
      %v2725 = vsel %vm727, %v2678, 0
      %v2728 = vsel %vm727, %v2679, 0
      %v2731 = vsel %vm727, %v2680, 0
      %v2734 = vsel %vm727, %v2681, 0
      %v2737 = vsel %vm727, %v2682, 0
      %v2740 = vsel %vm727, %v2683, 0
      %v2743 = vsel %vm727, %v2684, 0
      %2745 = vmatpush.bf16.msra.mxu0 0
      %2746 = vmatpush.bf16.msra.mxu0 0
      %2747 = vmatpush.bf16.msra.mxu0 0
      %2748 = vmatpush.bf16.msra.mxu0 0
      %2749 = vmatpush.bf16.msra.mxu0 0
      %2750 = vmatpush.bf16.msra.mxu0 0
      %2751 = vmatpush.bf16.msra.mxu0 %v2694
      %2752 = vmatpush.bf16.msra.mxu0 %v2693
      %2753 = vmatmul.bf16.gmra.mxu0 %v2698
      %v2754 = vpop.f32.mrf.mxu0
      %v2755 = vadd.f32 0.0, %v2754
      %v2756 = vpop.f32.mrf.mxu0
      %v2757 = vadd.f32 0.0, %v2756
      %2758 = vmatmul.bf16.gmra.mxu0 %v2701
      %v2759 = vpop.f32.mrf.mxu0
      %v2760 = vadd.f32 0.0, %v2759
      %v2761 = vpop.f32.mrf.mxu0
      %v2762 = vadd.f32 0.0, %v2761
      %2763 = vmatmul.bf16.gmra.mxu0 %v2704
      %v2764 = vpop.f32.mrf.mxu0
      %v2765 = vadd.f32 0.0, %v2764
      %v2766 = vpop.f32.mrf.mxu0
      %v2767 = vadd.f32 0.0, %v2766
      %2768 = vmatmul.bf16.gmra.mxu0 %v2707
      %v2769 = vpop.f32.mrf.mxu0
      %v2770 = vadd.f32 0.0, %v2769
      %v2771 = vpop.f32.mrf.mxu0
      %v2772 = vadd.f32 0.0, %v2771
      %2773 = vmatmul.bf16.gmra.mxu0 %v2710
      %v2774 = vpop.f32.mrf.mxu0
      %v2775 = vadd.f32 0.0, %v2774
      %v2776 = vpop.f32.mrf.mxu0
      %v2777 = vadd.f32 0.0, %v2776
      %2778 = vmatmul.bf16.gmra.mxu0 %v2713
      %v2779 = vpop.f32.mrf.mxu0
      %v2780 = vadd.f32 0.0, %v2779
      %v2781 = vpop.f32.mrf.mxu0
      %v2782 = vadd.f32 0.0, %v2781
      %2783 = vmatmul.bf16.gmra.mxu0 %v2716
      %v2784 = vpop.f32.mrf.mxu0
      %v2785 = vadd.f32 0.0, %v2784
      %v2786 = vpop.f32.mrf.mxu0
      %v2787 = vadd.f32 0.0, %v2786
      %2788 = vmatmul.bf16.gmra.mxu0 %v2719
      %v2789 = vpop.f32.mrf.mxu0
      %v2790 = vadd.f32 0.0, %v2789
      %v2791 = vpop.f32.mrf.mxu0
      %v2792 = vadd.f32 0.0, %v2791
      %2793 = vmatmul.bf16.gmra.mxu0 %v2722
      %v2794 = vpop.f32.mrf.mxu0
      %v2795 = vadd.f32 0.0, %v2794
      %v2796 = vpop.f32.mrf.mxu0
      %v2797 = vadd.f32 0.0, %v2796
      %2798 = vmatmul.bf16.gmra.mxu0 %v2725
      %v2799 = vpop.f32.mrf.mxu0
      %v2800 = vadd.f32 0.0, %v2799
      %v2801 = vpop.f32.mrf.mxu0
      %v2802 = vadd.f32 0.0, %v2801
      %2803 = vmatmul.bf16.gmra.mxu0 %v2728
      %v2804 = vpop.f32.mrf.mxu0
      %v2805 = vadd.f32 0.0, %v2804
      %v2806 = vpop.f32.mrf.mxu0
      %v2807 = vadd.f32 0.0, %v2806
      %2808 = vmatmul.bf16.gmra.mxu0 %v2731
      %v2809 = vpop.f32.mrf.mxu0
      %v2810 = vadd.f32 0.0, %v2809
      %v2811 = vpop.f32.mrf.mxu0
      %v2812 = vadd.f32 0.0, %v2811
      %2813 = vmatmul.bf16.gmra.mxu0 %v2734
      %v2814 = vpop.f32.mrf.mxu0
      %v2815 = vadd.f32 0.0, %v2814
      %v2816 = vpop.f32.mrf.mxu0
      %v2817 = vadd.f32 0.0, %v2816
      %2818 = vmatmul.bf16.gmra.mxu0 %v2737
      %v2819 = vpop.f32.mrf.mxu0
      %v2820 = vadd.f32 0.0, %v2819
      %v2821 = vpop.f32.mrf.mxu0
      %v2822 = vadd.f32 0.0, %v2821
      %2823 = vmatmul.bf16.gmra.mxu0 %v2740
      %v2824 = vpop.f32.mrf.mxu0
      %v2825 = vadd.f32 0.0, %v2824
      %v2826 = vpop.f32.mrf.mxu0
      %v2827 = vadd.f32 0.0, %v2826
      %2828 = vmatmul.bf16.gmra.mxu0 %v2743
      %v2829 = vpop.f32.mrf.mxu0
      %v2830 = vadd.f32 0.0, %v2829
      %v2831 = vpop.f32.mrf.mxu0
      %v2832 = vadd.f32 0.0, %v2831
      %2833 = vdwg.mxu0
      %v2834 = vadd.f32 %v2424, %v2755
      %v2835 = vadd.f32 %v2425, %v2757
      %v2836 = vadd.f32 %v2426, %v2760
      %v2837 = vadd.f32 %v2427, %v2762
      %v2838 = vadd.f32 %v2428, %v2765
      %v2839 = vadd.f32 %v2429, %v2767
      %v2840 = vadd.f32 %v2430, %v2770
      %v2841 = vadd.f32 %v2431, %v2772
      %v2842 = vadd.f32 %v2432, %v2775
      %v2843 = vadd.f32 %v2433, %v2777
      %v2844 = vadd.f32 %v2434, %v2780
      %v2845 = vadd.f32 %v2435, %v2782
      %v2846 = vadd.f32 %v2436, %v2785
      %v2847 = vadd.f32 %v2437, %v2787
      %v2848 = vadd.f32 %v2438, %v2790
      %v2849 = vadd.f32 %v2439, %v2792
      %v2850 = vadd.f32 %v2440, %v2795
      %v2851 = vadd.f32 %v2441, %v2797
      %v2852 = vadd.f32 %v2442, %v2800
      %v2853 = vadd.f32 %v2443, %v2802
      %v2854 = vadd.f32 %v2444, %v2805
      %v2855 = vadd.f32 %v2445, %v2807
      %v2856 = vadd.f32 %v2446, %v2810
      %v2857 = vadd.f32 %v2447, %v2812
      %v2858 = vadd.f32 %v2448, %v2815
      %v2859 = vadd.f32 %v2449, %v2817
      %v2860 = vadd.f32 %v2450, %v2820
      %v2861 = vadd.f32 %v2451, %v2822
      %v2862 = vadd.f32 %v2452, %v2825
      %v2863 = vadd.f32 %v2453, %v2827
      %v2864 = vadd.f32 %v2454, %v2830
      %v2865 = vadd.f32 %v2455, %v2832
      %s2866 = scalar_lea.vmem %s206, 24
      %v2867 = vld [vmem:[%s2866] sm:$0xf]
      %v2868 = vld [vmem:[%s2866 + $0x4] sm:$0xf]
      %v2869 = vld [vmem:[%s2866 + $0xc] sm:$0xf]
      %v2870 = vld [vmem:[%s2866 + $0x10] sm:$0xf]
      %v2871 = vld [vmem:[%s2866 + $0x18] sm:$0xf]
      %v2872 = vld [vmem:[%s2866 + $0x1c] sm:$0xf]
      %v2873 = vld [vmem:[%s2866 + $0x24] sm:$0xf]
      %v2874 = vld [vmem:[%s2866 + $0x28] sm:$0xf]
      %v2875 = vld [vmem:[%s2866 + $0x30] sm:$0xf]
      %v2876 = vld [vmem:[%s2866 + $0x34] sm:$0xf]
      %v2877 = vld [vmem:[%s2866 + $0x3c] sm:$0xf]
      %v2878 = vld [vmem:[%s2866 + $0x40] sm:$0xf]
      %v2879 = vld [vmem:[%s2866 + $0x48] sm:$0xf]
      %v2880 = vld [vmem:[%s2866 + $0x4c] sm:$0xf]
      %v2881 = vld [vmem:[%s2866 + $0x54] sm:$0xf]
      %v2882 = vld [vmem:[%s2866 + $0x58] sm:$0xf]
      %v2883 = vld [vmem:[%s2866 + $0x60] sm:$0xf]
      %v2884 = vld [vmem:[%s2866 + $0x64] sm:$0xf]
      %v2885 = vld [vmem:[%s2866 + $0x6c] sm:$0xf]
      %v2886 = vld [vmem:[%s2866 + $0x70] sm:$0xf]
      %v2887 = vld [vmem:[%s2866 + $0x78] sm:$0xf]
      %v2888 = vld [vmem:[%s2866 + $0x7c] sm:$0xf]
      %v2889 = vld [vmem:[%s2866 + $0x84] sm:$0xf]
      %v2890 = vld [vmem:[%s2866 + $0x88] sm:$0xf]
      %v2891 = vld [vmem:[%s2866 + $0x90] sm:$0xf]
      %v2892 = vld [vmem:[%s2866 + $0x94] sm:$0xf]
      %v2893 = vld [vmem:[%s2866 + $0x9c] sm:$0xf]
      %v2894 = vld [vmem:[%s2866 + $0xa0] sm:$0xf]
      %v2895 = vld [vmem:[%s2866 + $0xa8] sm:$0xf]
      %v2896 = vld [vmem:[%s2866 + $0xac] sm:$0xf]
      %v2897 = vld [vmem:[%s2866 + $0xb4] sm:$0xf]
      %v2898 = vld [vmem:[%s2866 + $0xb8] sm:$0xf]
      %s2899 = scalar_lea.vmem %s210, 96
      %v2900 = vld [vmem:[%s2899] sm:$0xf]
      %v2901 = vld [vmem:[%s2899 + $0x4] sm:$0xf]
      %v2902 = vld [vmem:[%s2899 + $0x8] sm:$0xf]
      %v2903 = vld [vmem:[%s2899 + $0xc] sm:$0xf]
      %v2936 = vunpack.c.l.b16 %v2867
      %v2937 = vunpack.c.l.b16 %v2868
      %v2938 = vunpack.c.l.b16 %v2869
      %v2939 = vunpack.c.l.b16 %v2870
      %v2940 = vunpack.c.l.b16 %v2871
      %v2941 = vunpack.c.l.b16 %v2872
      %v2942 = vunpack.c.l.b16 %v2873
      %v2943 = vunpack.c.l.b16 %v2874
      %v2944 = vunpack.c.l.b16 %v2875
      %v2945 = vunpack.c.l.b16 %v2876
      %v2946 = vunpack.c.l.b16 %v2877
      %v2947 = vunpack.c.l.b16 %v2878
      %v2948 = vunpack.c.l.b16 %v2879
      %v2949 = vunpack.c.l.b16 %v2880
      %v2950 = vunpack.c.l.b16 %v2881
      %v2951 = vunpack.c.l.b16 %v2882
      %v2952 = vunpack.c.l.b16 %v2883
      %v2953 = vunpack.c.l.b16 %v2884
      %v2954 = vunpack.c.l.b16 %v2885
      %v2955 = vunpack.c.l.b16 %v2886
      %v2956 = vunpack.c.l.b16 %v2887
      %v2957 = vunpack.c.l.b16 %v2888
      %v2958 = vunpack.c.l.b16 %v2889
      %v2959 = vunpack.c.l.b16 %v2890
      %v2960 = vunpack.c.l.b16 %v2891
      %v2961 = vunpack.c.l.b16 %v2892
      %v2962 = vunpack.c.l.b16 %v2893
      %v2963 = vunpack.c.l.b16 %v2894
      %v2964 = vunpack.c.l.b16 %v2895
      %v2965 = vunpack.c.l.b16 %v2896
      %v2966 = vunpack.c.l.b16 %v2897
      %v2967 = vunpack.c.l.b16 %v2898
      %v2968 = vpack.c.b16 %v2937, %v2936
      %v2969 = vpack.c.b16 %v2939, %v2938
      %v2970 = vpack.c.b16 %v2941, %v2940
      %v2971 = vpack.c.b16 %v2943, %v2942
      %v2972 = vpack.c.b16 %v2945, %v2944
      %v2973 = vpack.c.b16 %v2947, %v2946
      %v2974 = vpack.c.b16 %v2949, %v2948
      %v2975 = vpack.c.b16 %v2951, %v2950
      %v2976 = vpack.c.b16 %v2953, %v2952
      %v2977 = vpack.c.b16 %v2955, %v2954
      %v2978 = vpack.c.b16 %v2957, %v2956
      %v2979 = vpack.c.b16 %v2959, %v2958
      %v2980 = vpack.c.b16 %v2961, %v2960
      %v2981 = vpack.c.b16 %v2963, %v2962
      %v2982 = vpack.c.b16 %v2965, %v2964
      %v2983 = vpack.c.b16 %v2967, %v2966
      %v2988 = vunpack.c.l.b16 %v2900
      %v2989 = vunpack.c.l.b16 %v2901
      %v2990 = vunpack.c.l.b16 %v2902
      %v2991 = vunpack.c.l.b16 %v2903
      %v2992 = vpack.c.b16 %v2989, %v2988
      %v2993 = vpack.c.b16 %v2991, %v2990
      %v2997 = vsel %vm727, %v2968, 0
      %v3000 = vsel %vm727, %v2969, 0
      %v3003 = vsel %vm727, %v2970, 0
      %v3006 = vsel %vm727, %v2971, 0
      %v3009 = vsel %vm727, %v2972, 0
      %v3012 = vsel %vm727, %v2973, 0
      %v3015 = vsel %vm727, %v2974, 0
      %v3018 = vsel %vm727, %v2975, 0
      %v3021 = vsel %vm727, %v2976, 0
      %v3024 = vsel %vm727, %v2977, 0
      %v3027 = vsel %vm727, %v2978, 0
      %v3030 = vsel %vm727, %v2979, 0
      %v3033 = vsel %vm727, %v2980, 0
      %v3036 = vsel %vm727, %v2981, 0
      %v3039 = vsel %vm727, %v2982, 0
      %v3042 = vsel %vm727, %v2983, 0
      %3044 = vmatpush.bf16.msra.mxu0 0
      %3045 = vmatpush.bf16.msra.mxu0 0
      %3046 = vmatpush.bf16.msra.mxu0 0
      %3047 = vmatpush.bf16.msra.mxu0 0
      %3048 = vmatpush.bf16.msra.mxu0 0
      %3049 = vmatpush.bf16.msra.mxu0 0
      %3050 = vmatpush.bf16.msra.mxu0 %v2993
      %3051 = vmatpush.bf16.msra.mxu0 %v2992
      %3052 = vmatmul.bf16.gmra.mxu0 %v2997
      %v3053 = vpop.f32.mrf.mxu0
      %v3054 = vadd.f32 0.0, %v3053
      %v3055 = vpop.f32.mrf.mxu0
      %v3056 = vadd.f32 0.0, %v3055
      %3057 = vmatmul.bf16.gmra.mxu0 %v3000
      %v3058 = vpop.f32.mrf.mxu0
      %v3059 = vadd.f32 0.0, %v3058
      %v3060 = vpop.f32.mrf.mxu0
      %v3061 = vadd.f32 0.0, %v3060
      %3062 = vmatmul.bf16.gmra.mxu0 %v3003
      %v3063 = vpop.f32.mrf.mxu0
      %v3064 = vadd.f32 0.0, %v3063
      %v3065 = vpop.f32.mrf.mxu0
      %v3066 = vadd.f32 0.0, %v3065
      %3067 = vmatmul.bf16.gmra.mxu0 %v3006
      %v3068 = vpop.f32.mrf.mxu0
      %v3069 = vadd.f32 0.0, %v3068
      %v3070 = vpop.f32.mrf.mxu0
      %v3071 = vadd.f32 0.0, %v3070
      %3072 = vmatmul.bf16.gmra.mxu0 %v3009
      %v3073 = vpop.f32.mrf.mxu0
      %v3074 = vadd.f32 0.0, %v3073
      %v3075 = vpop.f32.mrf.mxu0
      %v3076 = vadd.f32 0.0, %v3075
      %3077 = vmatmul.bf16.gmra.mxu0 %v3012
      %v3078 = vpop.f32.mrf.mxu0
      %v3079 = vadd.f32 0.0, %v3078
      %v3080 = vpop.f32.mrf.mxu0
      %v3081 = vadd.f32 0.0, %v3080
      %3082 = vmatmul.bf16.gmra.mxu0 %v3015
      %v3083 = vpop.f32.mrf.mxu0
      %v3084 = vadd.f32 0.0, %v3083
      %v3085 = vpop.f32.mrf.mxu0
      %v3086 = vadd.f32 0.0, %v3085
      %3087 = vmatmul.bf16.gmra.mxu0 %v3018
      %v3088 = vpop.f32.mrf.mxu0
      %v3089 = vadd.f32 0.0, %v3088
      %v3090 = vpop.f32.mrf.mxu0
      %v3091 = vadd.f32 0.0, %v3090
      %3092 = vmatmul.bf16.gmra.mxu0 %v3021
      %v3093 = vpop.f32.mrf.mxu0
      %v3094 = vadd.f32 0.0, %v3093
      %v3095 = vpop.f32.mrf.mxu0
      %v3096 = vadd.f32 0.0, %v3095
      %3097 = vmatmul.bf16.gmra.mxu0 %v3024
      %v3098 = vpop.f32.mrf.mxu0
      %v3099 = vadd.f32 0.0, %v3098
      %v3100 = vpop.f32.mrf.mxu0
      %v3101 = vadd.f32 0.0, %v3100
      %3102 = vmatmul.bf16.gmra.mxu0 %v3027
      %v3103 = vpop.f32.mrf.mxu0
      %v3104 = vadd.f32 0.0, %v3103
      %v3105 = vpop.f32.mrf.mxu0
      %v3106 = vadd.f32 0.0, %v3105
      %3107 = vmatmul.bf16.gmra.mxu0 %v3030
      %v3108 = vpop.f32.mrf.mxu0
      %v3109 = vadd.f32 0.0, %v3108
      %v3110 = vpop.f32.mrf.mxu0
      %v3111 = vadd.f32 0.0, %v3110
      %3112 = vmatmul.bf16.gmra.mxu0 %v3033
      %v3113 = vpop.f32.mrf.mxu0
      %v3114 = vadd.f32 0.0, %v3113
      %v3115 = vpop.f32.mrf.mxu0
      %v3116 = vadd.f32 0.0, %v3115
      %3117 = vmatmul.bf16.gmra.mxu0 %v3036
      %v3118 = vpop.f32.mrf.mxu0
      %v3119 = vadd.f32 0.0, %v3118
      %v3120 = vpop.f32.mrf.mxu0
      %v3121 = vadd.f32 0.0, %v3120
      %3122 = vmatmul.bf16.gmra.mxu0 %v3039
      %v3123 = vpop.f32.mrf.mxu0
      %v3124 = vadd.f32 0.0, %v3123
      %v3125 = vpop.f32.mrf.mxu0
      %v3126 = vadd.f32 0.0, %v3125
      %3127 = vmatmul.bf16.gmra.mxu0 %v3042
      %v3128 = vpop.f32.mrf.mxu0
      %v3129 = vadd.f32 0.0, %v3128
      %v3130 = vpop.f32.mrf.mxu0
      %v3131 = vadd.f32 0.0, %v3130
      %3132 = vdwg.mxu0
      %v3133 = vadd.f32 %v2834, %v3054
      %v3134 = vadd.f32 %v2835, %v3056
      %v3135 = vadd.f32 %v2836, %v3059
      %v3136 = vadd.f32 %v2837, %v3061
      %v3137 = vadd.f32 %v2838, %v3064
      %v3138 = vadd.f32 %v2839, %v3066
      %v3139 = vadd.f32 %v2840, %v3069
      %v3140 = vadd.f32 %v2841, %v3071
      %v3141 = vadd.f32 %v2842, %v3074
      %v3142 = vadd.f32 %v2843, %v3076
      %v3143 = vadd.f32 %v2844, %v3079
      %v3144 = vadd.f32 %v2845, %v3081
      %v3145 = vadd.f32 %v2846, %v3084
      %v3146 = vadd.f32 %v2847, %v3086
      %v3147 = vadd.f32 %v2848, %v3089
      %v3148 = vadd.f32 %v2849, %v3091
      %v3149 = vadd.f32 %v2850, %v3094
      %v3150 = vadd.f32 %v2851, %v3096
      %v3151 = vadd.f32 %v2852, %v3099
      %v3152 = vadd.f32 %v2853, %v3101
      %v3153 = vadd.f32 %v2854, %v3104
      %v3154 = vadd.f32 %v2855, %v3106
      %v3155 = vadd.f32 %v2856, %v3109
      %v3156 = vadd.f32 %v2857, %v3111
      %v3157 = vadd.f32 %v2858, %v3114
      %v3158 = vadd.f32 %v2859, %v3116
      %v3159 = vadd.f32 %v2860, %v3119
      %v3160 = vadd.f32 %v2861, %v3121
      %v3161 = vadd.f32 %v2862, %v3124
      %v3162 = vadd.f32 %v2863, %v3126
      %v3163 = vadd.f32 %v2864, %v3129
      %v3164 = vadd.f32 %v2865, %v3131
      %v3165 = vld [vmem:[%s2866] sm:$0xf]
      %v3166 = vld [vmem:[%s2866 + $0x4] sm:$0xf]
      %v3167 = vld [vmem:[%s2866 + $0x8] sm:$0x1]
      %v3168 = vld [vmem:[%s2866 + $0xc] sm:$0xf]
      %v3169 = vld [vmem:[%s2866 + $0x10] sm:$0xf]
      %v3170 = vld [vmem:[%s2866 + $0x14] sm:$0x1]
      %v3171 = vld [vmem:[%s2866 + $0x18] sm:$0xf]
      %v3172 = vld [vmem:[%s2866 + $0x1c] sm:$0xf]
      %v3173 = vld [vmem:[%s2866 + $0x20] sm:$0x1]
      %v3174 = vld [vmem:[%s2866 + $0x24] sm:$0xf]
      %v3175 = vld [vmem:[%s2866 + $0x28] sm:$0xf]
      %v3176 = vld [vmem:[%s2866 + $0x2c] sm:$0x1]
      %v3177 = vld [vmem:[%s2866 + $0x30] sm:$0xf]
      %v3178 = vld [vmem:[%s2866 + $0x34] sm:$0xf]
      %v3179 = vld [vmem:[%s2866 + $0x38] sm:$0x1]
      %v3180 = vld [vmem:[%s2866 + $0x3c] sm:$0xf]
      %v3181 = vld [vmem:[%s2866 + $0x40] sm:$0xf]
      %v3182 = vld [vmem:[%s2866 + $0x44] sm:$0x1]
      %v3183 = vld [vmem:[%s2866 + $0x48] sm:$0xf]
      %v3184 = vld [vmem:[%s2866 + $0x4c] sm:$0xf]
      %v3185 = vld [vmem:[%s2866 + $0x50] sm:$0x1]
      %v3186 = vld [vmem:[%s2866 + $0x54] sm:$0xf]
      %v3187 = vld [vmem:[%s2866 + $0x58] sm:$0xf]
      %v3188 = vld [vmem:[%s2866 + $0x5c] sm:$0x1]
      %v3189 = vld [vmem:[%s2866 + $0x60] sm:$0xf]
      %v3190 = vld [vmem:[%s2866 + $0x64] sm:$0xf]
      %v3191 = vld [vmem:[%s2866 + $0x68] sm:$0x1]
      %v3192 = vld [vmem:[%s2866 + $0x6c] sm:$0xf]
      %v3193 = vld [vmem:[%s2866 + $0x70] sm:$0xf]
      %v3194 = vld [vmem:[%s2866 + $0x74] sm:$0x1]
      %v3195 = vld [vmem:[%s2866 + $0x78] sm:$0xf]
      %v3196 = vld [vmem:[%s2866 + $0x7c] sm:$0xf]
      %v3197 = vld [vmem:[%s2866 + $0x80] sm:$0x1]
      %v3198 = vld [vmem:[%s2866 + $0x84] sm:$0xf]
      %v3199 = vld [vmem:[%s2866 + $0x88] sm:$0xf]
      %v3200 = vld [vmem:[%s2866 + $0x8c] sm:$0x1]
      %v3201 = vld [vmem:[%s2866 + $0x90] sm:$0xf]
      %v3202 = vld [vmem:[%s2866 + $0x94] sm:$0xf]
      %v3203 = vld [vmem:[%s2866 + $0x98] sm:$0x1]
      %v3204 = vld [vmem:[%s2866 + $0x9c] sm:$0xf]
      %v3205 = vld [vmem:[%s2866 + $0xa0] sm:$0xf]
      %v3206 = vld [vmem:[%s2866 + $0xa4] sm:$0x1]
      %v3207 = vld [vmem:[%s2866 + $0xa8] sm:$0xf]
      %v3208 = vld [vmem:[%s2866 + $0xac] sm:$0xf]
      %v3209 = vld [vmem:[%s2866 + $0xb0] sm:$0x1]
      %v3210 = vld [vmem:[%s2866 + $0xb4] sm:$0xf]
      %v3211 = vld [vmem:[%s2866 + $0xb8] sm:$0xf]
      %v3212 = vld [vmem:[%s2866 + $0xbc] sm:$0x1]
      %v3214 = vshrl.u32 %v3165, 16
      %v3216 = vrot.slane %v3214, 4
      %v3217 = vshll.u32 %v3165, 16
      %v3219 = vrot.slane %v3217, 5
      %v3220 = vor.u32 %v3216, %v3219
      %v3221 = vrot.slane %v3220, 4
      %v3223 = vshll.u32 %v3166, 16
      %v3225 = vrot.slane %v3223, 5
      %v3226 = vsel %vm277, %v3221, %v3225
      %v3227 = vshrl.u32 %v3166, 16
      %v3229 = vrot.slane %v3227, 4
      %v3230 = vor.u32 %v3229, %v3225
      %v3231 = vrot.slane %v3230, 4
      %v3233 = vshll.u32 %v3167, 16
      %v3235 = vrot.slane %v3233, 5
      %v3236 = vsel %vm277, %v3231, %v3235
      %v3238 = vshrl.u32 %v3168, 16
      %v3240 = vrot.slane %v3238, 4
      %v3241 = vshll.u32 %v3168, 16
      %v3243 = vrot.slane %v3241, 5
      %v3244 = vor.u32 %v3240, %v3243
      %v3245 = vrot.slane %v3244, 4
      %v3247 = vshll.u32 %v3169, 16
      %v3249 = vrot.slane %v3247, 5
      %v3250 = vsel %vm277, %v3245, %v3249
      %v3251 = vshrl.u32 %v3169, 16
      %v3253 = vrot.slane %v3251, 4
      %v3254 = vor.u32 %v3253, %v3249
      %v3255 = vrot.slane %v3254, 4
      %v3257 = vshll.u32 %v3170, 16
      %v3259 = vrot.slane %v3257, 5
      %v3260 = vsel %vm277, %v3255, %v3259
      %v3262 = vshrl.u32 %v3171, 16
      %v3264 = vrot.slane %v3262, 4
      %v3265 = vshll.u32 %v3171, 16
      %v3267 = vrot.slane %v3265, 5
      %v3268 = vor.u32 %v3264, %v3267
      %v3269 = vrot.slane %v3268, 4
      %v3271 = vshll.u32 %v3172, 16
      %v3273 = vrot.slane %v3271, 5
      %v3274 = vsel %vm277, %v3269, %v3273
      %v3275 = vshrl.u32 %v3172, 16
      %v3277 = vrot.slane %v3275, 4
      %v3278 = vor.u32 %v3277, %v3273
      %v3279 = vrot.slane %v3278, 4
      %v3281 = vshll.u32 %v3173, 16
      %v3283 = vrot.slane %v3281, 5
      %v3284 = vsel %vm277, %v3279, %v3283
      %v3286 = vshrl.u32 %v3174, 16
      %v3288 = vrot.slane %v3286, 4
      %v3289 = vshll.u32 %v3174, 16
      %v3291 = vrot.slane %v3289, 5
      %v3292 = vor.u32 %v3288, %v3291
      %v3293 = vrot.slane %v3292, 4
      %v3295 = vshll.u32 %v3175, 16
      %v3297 = vrot.slane %v3295, 5
      %v3298 = vsel %vm277, %v3293, %v3297
      %v3299 = vshrl.u32 %v3175, 16
      %v3301 = vrot.slane %v3299, 4
      %v3302 = vor.u32 %v3301, %v3297
      %v3303 = vrot.slane %v3302, 4
      %v3305 = vshll.u32 %v3176, 16
      %v3307 = vrot.slane %v3305, 5
      %v3308 = vsel %vm277, %v3303, %v3307
      %v3310 = vshrl.u32 %v3177, 16
      %v3312 = vrot.slane %v3310, 4
      %v3313 = vshll.u32 %v3177, 16
      %v3315 = vrot.slane %v3313, 5
      %v3316 = vor.u32 %v3312, %v3315
      %v3317 = vrot.slane %v3316, 4
      %v3319 = vshll.u32 %v3178, 16
      %v3321 = vrot.slane %v3319, 5
      %v3322 = vsel %vm277, %v3317, %v3321
      %v3323 = vshrl.u32 %v3178, 16
      %v3325 = vrot.slane %v3323, 4
      %v3326 = vor.u32 %v3325, %v3321
      %v3327 = vrot.slane %v3326, 4
      %v3329 = vshll.u32 %v3179, 16
      %v3331 = vrot.slane %v3329, 5
      %v3332 = vsel %vm277, %v3327, %v3331
      %v3334 = vshrl.u32 %v3180, 16
      %v3336 = vrot.slane %v3334, 4
      %v3337 = vshll.u32 %v3180, 16
      %v3339 = vrot.slane %v3337, 5
      %v3340 = vor.u32 %v3336, %v3339
      %v3341 = vrot.slane %v3340, 4
      %v3343 = vshll.u32 %v3181, 16
      %v3345 = vrot.slane %v3343, 5
      %v3346 = vsel %vm277, %v3341, %v3345
      %v3347 = vshrl.u32 %v3181, 16
      %v3349 = vrot.slane %v3347, 4
      %v3350 = vor.u32 %v3349, %v3345
      %v3351 = vrot.slane %v3350, 4
      %v3353 = vshll.u32 %v3182, 16
      %v3355 = vrot.slane %v3353, 5
      %v3356 = vsel %vm277, %v3351, %v3355
      %v3358 = vshrl.u32 %v3183, 16
      %v3360 = vrot.slane %v3358, 4
      %v3361 = vshll.u32 %v3183, 16
      %v3363 = vrot.slane %v3361, 5
      %v3364 = vor.u32 %v3360, %v3363
      %v3365 = vrot.slane %v3364, 4
      %v3367 = vshll.u32 %v3184, 16
      %v3369 = vrot.slane %v3367, 5
      %v3370 = vsel %vm277, %v3365, %v3369
      %v3371 = vshrl.u32 %v3184, 16
      %v3373 = vrot.slane %v3371, 4
      %v3374 = vor.u32 %v3373, %v3369
      %v3375 = vrot.slane %v3374, 4
      %v3377 = vshll.u32 %v3185, 16
      %v3379 = vrot.slane %v3377, 5
      %v3380 = vsel %vm277, %v3375, %v3379
      %v3382 = vshrl.u32 %v3186, 16
      %v3384 = vrot.slane %v3382, 4
      %v3385 = vshll.u32 %v3186, 16
      %v3387 = vrot.slane %v3385, 5
      %v3388 = vor.u32 %v3384, %v3387
      %v3389 = vrot.slane %v3388, 4
      %v3391 = vshll.u32 %v3187, 16
      %v3393 = vrot.slane %v3391, 5
      %v3394 = vsel %vm277, %v3389, %v3393
      %v3395 = vshrl.u32 %v3187, 16
      %v3397 = vrot.slane %v3395, 4
      %v3398 = vor.u32 %v3397, %v3393
      %v3399 = vrot.slane %v3398, 4
      %v3401 = vshll.u32 %v3188, 16
      %v3403 = vrot.slane %v3401, 5
      %v3404 = vsel %vm277, %v3399, %v3403
      %v3406 = vshrl.u32 %v3189, 16
      %v3408 = vrot.slane %v3406, 4
      %v3409 = vshll.u32 %v3189, 16
      %v3411 = vrot.slane %v3409, 5
      %v3412 = vor.u32 %v3408, %v3411
      %v3413 = vrot.slane %v3412, 4
      %v3415 = vshll.u32 %v3190, 16
      %v3417 = vrot.slane %v3415, 5
      %v3418 = vsel %vm277, %v3413, %v3417
      %v3419 = vshrl.u32 %v3190, 16
      %v3421 = vrot.slane %v3419, 4
      %v3422 = vor.u32 %v3421, %v3417
      %v3423 = vrot.slane %v3422, 4
      %v3425 = vshll.u32 %v3191, 16
      %v3427 = vrot.slane %v3425, 5
      %v3428 = vsel %vm277, %v3423, %v3427
      %v3430 = vshrl.u32 %v3192, 16
      %v3432 = vrot.slane %v3430, 4
      %v3433 = vshll.u32 %v3192, 16
      %v3435 = vrot.slane %v3433, 5
      %v3436 = vor.u32 %v3432, %v3435
      %v3437 = vrot.slane %v3436, 4
      %v3439 = vshll.u32 %v3193, 16
      %v3441 = vrot.slane %v3439, 5
      %v3442 = vsel %vm277, %v3437, %v3441
      %v3443 = vshrl.u32 %v3193, 16
      %v3445 = vrot.slane %v3443, 4
      %v3446 = vor.u32 %v3445, %v3441
      %v3447 = vrot.slane %v3446, 4
      %v3449 = vshll.u32 %v3194, 16
      %v3451 = vrot.slane %v3449, 5
      %v3452 = vsel %vm277, %v3447, %v3451
      %v3454 = vshrl.u32 %v3195, 16
      %v3456 = vrot.slane %v3454, 4
      %v3457 = vshll.u32 %v3195, 16
      %v3459 = vrot.slane %v3457, 5
      %v3460 = vor.u32 %v3456, %v3459
      %v3461 = vrot.slane %v3460, 4
      %v3463 = vshll.u32 %v3196, 16
      %v3465 = vrot.slane %v3463, 5
      %v3466 = vsel %vm277, %v3461, %v3465
      %v3467 = vshrl.u32 %v3196, 16
      %v3469 = vrot.slane %v3467, 4
      %v3470 = vor.u32 %v3469, %v3465
      %v3471 = vrot.slane %v3470, 4
      %v3473 = vshll.u32 %v3197, 16
      %v3475 = vrot.slane %v3473, 5
      %v3476 = vsel %vm277, %v3471, %v3475
      %v3478 = vshrl.u32 %v3198, 16
      %v3480 = vrot.slane %v3478, 4
      %v3481 = vshll.u32 %v3198, 16
      %v3483 = vrot.slane %v3481, 5
      %v3484 = vor.u32 %v3480, %v3483
      %v3485 = vrot.slane %v3484, 4
      %v3487 = vshll.u32 %v3199, 16
      %v3489 = vrot.slane %v3487, 5
      %v3490 = vsel %vm277, %v3485, %v3489
      %v3491 = vshrl.u32 %v3199, 16
      %v3493 = vrot.slane %v3491, 4
      %v3494 = vor.u32 %v3493, %v3489
      %v3495 = vrot.slane %v3494, 4
      %v3497 = vshll.u32 %v3200, 16
      %v3499 = vrot.slane %v3497, 5
      %v3500 = vsel %vm277, %v3495, %v3499
      %v3502 = vshrl.u32 %v3201, 16
      %v3504 = vrot.slane %v3502, 4
      %v3505 = vshll.u32 %v3201, 16
      %v3507 = vrot.slane %v3505, 5
      %v3508 = vor.u32 %v3504, %v3507
      %v3509 = vrot.slane %v3508, 4
      %v3511 = vshll.u32 %v3202, 16
      %v3513 = vrot.slane %v3511, 5
      %v3514 = vsel %vm277, %v3509, %v3513
      %v3515 = vshrl.u32 %v3202, 16
      %v3517 = vrot.slane %v3515, 4
      %v3518 = vor.u32 %v3517, %v3513
      %v3519 = vrot.slane %v3518, 4
      %v3521 = vshll.u32 %v3203, 16
      %v3523 = vrot.slane %v3521, 5
      %v3524 = vsel %vm277, %v3519, %v3523
      %v3526 = vshrl.u32 %v3204, 16
      %v3528 = vrot.slane %v3526, 4
      %v3529 = vshll.u32 %v3204, 16
      %v3531 = vrot.slane %v3529, 5
      %v3532 = vor.u32 %v3528, %v3531
      %v3533 = vrot.slane %v3532, 4
      %v3535 = vshll.u32 %v3205, 16
      %v3537 = vrot.slane %v3535, 5
      %v3538 = vsel %vm277, %v3533, %v3537
      %v3539 = vshrl.u32 %v3205, 16
      %v3541 = vrot.slane %v3539, 4
      %v3542 = vor.u32 %v3541, %v3537
      %v3543 = vrot.slane %v3542, 4
      %v3545 = vshll.u32 %v3206, 16
      %v3547 = vrot.slane %v3545, 5
      %v3548 = vsel %vm277, %v3543, %v3547
      %v3550 = vshrl.u32 %v3207, 16
      %v3552 = vrot.slane %v3550, 4
      %v3553 = vshll.u32 %v3207, 16
      %v3555 = vrot.slane %v3553, 5
      %v3556 = vor.u32 %v3552, %v3555
      %v3557 = vrot.slane %v3556, 4
      %v3559 = vshll.u32 %v3208, 16
      %v3561 = vrot.slane %v3559, 5
      %v3562 = vsel %vm277, %v3557, %v3561
      %v3563 = vshrl.u32 %v3208, 16
      %v3565 = vrot.slane %v3563, 4
      %v3566 = vor.u32 %v3565, %v3561
      %v3567 = vrot.slane %v3566, 4
      %v3569 = vshll.u32 %v3209, 16
      %v3571 = vrot.slane %v3569, 5
      %v3572 = vsel %vm277, %v3567, %v3571
      %v3574 = vshrl.u32 %v3210, 16
      %v3576 = vrot.slane %v3574, 4
      %v3577 = vshll.u32 %v3210, 16
      %v3579 = vrot.slane %v3577, 5
      %v3580 = vor.u32 %v3576, %v3579
      %v3581 = vrot.slane %v3580, 4
      %v3583 = vshll.u32 %v3211, 16
      %v3585 = vrot.slane %v3583, 5
      %v3586 = vsel %vm277, %v3581, %v3585
      %v3587 = vshrl.u32 %v3211, 16
      %v3589 = vrot.slane %v3587, 4
      %v3590 = vor.u32 %v3589, %v3585
      %v3591 = vrot.slane %v3590, 4
      %v3593 = vshll.u32 %v3212, 16
      %v3595 = vrot.slane %v3593, 5
      %v3596 = vsel %vm277, %v3591, %v3595
      %s3597 = scalar_lea.vmem %s210, 112
      %v3598 = vld [vmem:[%s3597] sm:$0xf]
      %v3599 = vld [vmem:[%s3597 + $0x4] sm:$0xf]
      %v3600 = vld [vmem:[%s3597 + $0x8] sm:$0xf]
      %v3601 = vld [vmem:[%s3597 + $0xc] sm:$0xf]
      %v3602 = vunpack.c.l.b16 %v3226
      %v3603 = vunpack.c.l.b16 %v3236
      %v3604 = vunpack.c.l.b16 %v3250
      %v3605 = vunpack.c.l.b16 %v3260
      %v3606 = vunpack.c.l.b16 %v3274
      %v3607 = vunpack.c.l.b16 %v3284
      %v3608 = vunpack.c.l.b16 %v3298
      %v3609 = vunpack.c.l.b16 %v3308
      %v3610 = vunpack.c.l.b16 %v3322
      %v3611 = vunpack.c.l.b16 %v3332
      %v3612 = vunpack.c.l.b16 %v3346
      %v3613 = vunpack.c.l.b16 %v3356
      %v3614 = vunpack.c.l.b16 %v3370
      %v3615 = vunpack.c.l.b16 %v3380
      %v3616 = vunpack.c.l.b16 %v3394
      %v3617 = vunpack.c.l.b16 %v3404
      %v3618 = vunpack.c.l.b16 %v3418
      %v3619 = vunpack.c.l.b16 %v3428
      %v3620 = vunpack.c.l.b16 %v3442
      %v3621 = vunpack.c.l.b16 %v3452
      %v3622 = vunpack.c.l.b16 %v3466
      %v3623 = vunpack.c.l.b16 %v3476
      %v3624 = vunpack.c.l.b16 %v3490
      %v3625 = vunpack.c.l.b16 %v3500
      %v3626 = vunpack.c.l.b16 %v3514
      %v3627 = vunpack.c.l.b16 %v3524
      %v3628 = vunpack.c.l.b16 %v3538
      %v3629 = vunpack.c.l.b16 %v3548
      %v3630 = vunpack.c.l.b16 %v3562
      %v3631 = vunpack.c.l.b16 %v3572
      %v3632 = vunpack.c.l.b16 %v3586
      %v3633 = vunpack.c.l.b16 %v3596
      %v3634 = vpack.c.b16 %v3603, %v3602
      %v3635 = vpack.c.b16 %v3605, %v3604
      %v3636 = vpack.c.b16 %v3607, %v3606
      %v3637 = vpack.c.b16 %v3609, %v3608
      %v3638 = vpack.c.b16 %v3611, %v3610
      %v3639 = vpack.c.b16 %v3613, %v3612
      %v3640 = vpack.c.b16 %v3615, %v3614
      %v3641 = vpack.c.b16 %v3617, %v3616
      %v3642 = vpack.c.b16 %v3619, %v3618
      %v3643 = vpack.c.b16 %v3621, %v3620
      %v3644 = vpack.c.b16 %v3623, %v3622
      %v3645 = vpack.c.b16 %v3625, %v3624
      %v3646 = vpack.c.b16 %v3627, %v3626
      %v3647 = vpack.c.b16 %v3629, %v3628
      %v3648 = vpack.c.b16 %v3631, %v3630
      %v3649 = vpack.c.b16 %v3633, %v3632
      %v3654 = vunpack.c.l.b16 %v3598
      %v3655 = vunpack.c.l.b16 %v3599
      %v3656 = vunpack.c.l.b16 %v3600
      %v3657 = vunpack.c.l.b16 %v3601
      %v3658 = vpack.c.b16 %v3655, %v3654
      %v3659 = vpack.c.b16 %v3657, %v3656
      %v3663 = vsel %vm727, %v3634, 0
      %v3666 = vsel %vm727, %v3635, 0
      %v3669 = vsel %vm727, %v3636, 0
      %v3672 = vsel %vm727, %v3637, 0
      %v3675 = vsel %vm727, %v3638, 0
      %v3678 = vsel %vm727, %v3639, 0
      %v3681 = vsel %vm727, %v3640, 0
      %v3684 = vsel %vm727, %v3641, 0
      %v3687 = vsel %vm727, %v3642, 0
      %v3690 = vsel %vm727, %v3643, 0
      %v3693 = vsel %vm727, %v3644, 0
      %v3696 = vsel %vm727, %v3645, 0
      %v3699 = vsel %vm727, %v3646, 0
      %v3702 = vsel %vm727, %v3647, 0
      %v3705 = vsel %vm727, %v3648, 0
      %v3708 = vsel %vm727, %v3649, 0
      %3710 = vmatpush.bf16.msra.mxu0 0
      %3711 = vmatpush.bf16.msra.mxu0 0
      %3712 = vmatpush.bf16.msra.mxu0 0
      %3713 = vmatpush.bf16.msra.mxu0 0
      %3714 = vmatpush.bf16.msra.mxu0 0
      %3715 = vmatpush.bf16.msra.mxu0 0
      %3716 = vmatpush.bf16.msra.mxu0 %v3659
      %3717 = vmatpush.bf16.msra.mxu0 %v3658
      %3718 = vmatmul.bf16.gmra.mxu0 %v3663
      %v3719 = vpop.f32.mrf.mxu0
      %v3720 = vadd.f32 0.0, %v3719
      %v3721 = vpop.f32.mrf.mxu0
      %v3722 = vadd.f32 0.0, %v3721
      %3723 = vmatmul.bf16.gmra.mxu0 %v3666
      %v3724 = vpop.f32.mrf.mxu0
      %v3725 = vadd.f32 0.0, %v3724
      %v3726 = vpop.f32.mrf.mxu0
      %v3727 = vadd.f32 0.0, %v3726
      %3728 = vmatmul.bf16.gmra.mxu0 %v3669
      %v3729 = vpop.f32.mrf.mxu0
      %v3730 = vadd.f32 0.0, %v3729
      %v3731 = vpop.f32.mrf.mxu0
      %v3732 = vadd.f32 0.0, %v3731
      %3733 = vmatmul.bf16.gmra.mxu0 %v3672
      %v3734 = vpop.f32.mrf.mxu0
      %v3735 = vadd.f32 0.0, %v3734
      %v3736 = vpop.f32.mrf.mxu0
      %v3737 = vadd.f32 0.0, %v3736
      %3738 = vmatmul.bf16.gmra.mxu0 %v3675
      %v3739 = vpop.f32.mrf.mxu0
      %v3740 = vadd.f32 0.0, %v3739
      %v3741 = vpop.f32.mrf.mxu0
      %v3742 = vadd.f32 0.0, %v3741
      %3743 = vmatmul.bf16.gmra.mxu0 %v3678
      %v3744 = vpop.f32.mrf.mxu0
      %v3745 = vadd.f32 0.0, %v3744
      %v3746 = vpop.f32.mrf.mxu0
      %v3747 = vadd.f32 0.0, %v3746
      %3748 = vmatmul.bf16.gmra.mxu0 %v3681
      %v3749 = vpop.f32.mrf.mxu0
      %v3750 = vadd.f32 0.0, %v3749
      %v3751 = vpop.f32.mrf.mxu0
      %v3752 = vadd.f32 0.0, %v3751
      %3753 = vmatmul.bf16.gmra.mxu0 %v3684
      %v3754 = vpop.f32.mrf.mxu0
      %v3755 = vadd.f32 0.0, %v3754
      %v3756 = vpop.f32.mrf.mxu0
      %v3757 = vadd.f32 0.0, %v3756
      %3758 = vmatmul.bf16.gmra.mxu0 %v3687
      %v3759 = vpop.f32.mrf.mxu0
      %v3760 = vadd.f32 0.0, %v3759
      %v3761 = vpop.f32.mrf.mxu0
      %v3762 = vadd.f32 0.0, %v3761
      %3763 = vmatmul.bf16.gmra.mxu0 %v3690
      %v3764 = vpop.f32.mrf.mxu0
      %v3765 = vadd.f32 0.0, %v3764
      %v3766 = vpop.f32.mrf.mxu0
      %v3767 = vadd.f32 0.0, %v3766
      %3768 = vmatmul.bf16.gmra.mxu0 %v3693
      %v3769 = vpop.f32.mrf.mxu0
      %v3770 = vadd.f32 0.0, %v3769
      %v3771 = vpop.f32.mrf.mxu0
      %v3772 = vadd.f32 0.0, %v3771
      %3773 = vmatmul.bf16.gmra.mxu0 %v3696
      %v3774 = vpop.f32.mrf.mxu0
      %v3775 = vadd.f32 0.0, %v3774
      %v3776 = vpop.f32.mrf.mxu0
      %v3777 = vadd.f32 0.0, %v3776
      %3778 = vmatmul.bf16.gmra.mxu0 %v3699
      %v3779 = vpop.f32.mrf.mxu0
      %v3780 = vadd.f32 0.0, %v3779
      %v3781 = vpop.f32.mrf.mxu0
      %v3782 = vadd.f32 0.0, %v3781
      %3783 = vmatmul.bf16.gmra.mxu0 %v3702
      %v3784 = vpop.f32.mrf.mxu0
      %v3785 = vadd.f32 0.0, %v3784
      %v3786 = vpop.f32.mrf.mxu0
      %v3787 = vadd.f32 0.0, %v3786
      %3788 = vmatmul.bf16.gmra.mxu0 %v3705
      %v3789 = vpop.f32.mrf.mxu0
      %v3790 = vadd.f32 0.0, %v3789
      %v3791 = vpop.f32.mrf.mxu0
      %v3792 = vadd.f32 0.0, %v3791
      %3793 = vmatmul.bf16.gmra.mxu0 %v3708
      %v3794 = vpop.f32.mrf.mxu0
      %v3795 = vadd.f32 0.0, %v3794
      %v3796 = vpop.f32.mrf.mxu0
      %v3797 = vadd.f32 0.0, %v3796
      %3798 = vdwg.mxu0
      %v3799 = vadd.f32 %v3133, %v3720
      %v3800 = vadd.f32 %v3134, %v3722
      %v3801 = vadd.f32 %v3135, %v3725
      %v3802 = vadd.f32 %v3136, %v3727
      %v3803 = vadd.f32 %v3137, %v3730
      %v3804 = vadd.f32 %v3138, %v3732
      %v3805 = vadd.f32 %v3139, %v3735
      %v3806 = vadd.f32 %v3140, %v3737
      %v3807 = vadd.f32 %v3141, %v3740
      %v3808 = vadd.f32 %v3142, %v3742
      %v3809 = vadd.f32 %v3143, %v3745
      %v3810 = vadd.f32 %v3144, %v3747
      %v3811 = vadd.f32 %v3145, %v3750
      %v3812 = vadd.f32 %v3146, %v3752
      %v3813 = vadd.f32 %v3147, %v3755
      %v3814 = vadd.f32 %v3148, %v3757
      %v3815 = vadd.f32 %v3149, %v3760
      %v3816 = vadd.f32 %v3150, %v3762
      %v3817 = vadd.f32 %v3151, %v3765
      %v3818 = vadd.f32 %v3152, %v3767
      %v3819 = vadd.f32 %v3153, %v3770
      %v3820 = vadd.f32 %v3154, %v3772
      %v3821 = vadd.f32 %v3155, %v3775
      %v3822 = vadd.f32 %v3156, %v3777
      %v3823 = vadd.f32 %v3157, %v3780
      %v3824 = vadd.f32 %v3158, %v3782
      %v3825 = vadd.f32 %v3159, %v3785
      %v3826 = vadd.f32 %v3160, %v3787
      %v3827 = vadd.f32 %v3161, %v3790
      %v3828 = vadd.f32 %v3162, %v3792
      %v3829 = vadd.f32 %v3163, %v3795
      %v3830 = vadd.f32 %v3164, %v3797
      %v3831 = vld [vmem:[%s2866] sm:$0xe]
      %v3832 = vld [vmem:[%s2866 + $0xc] sm:$0xe]
      %v3833 = vld [vmem:[%s2866 + $0x18] sm:$0xe]
      %v3834 = vld [vmem:[%s2866 + $0x24] sm:$0xe]
      %v3835 = vld [vmem:[%s2866 + $0x30] sm:$0xe]
      %v3836 = vld [vmem:[%s2866 + $0x3c] sm:$0xe]
      %v3837 = vld [vmem:[%s2866 + $0x48] sm:$0xe]
      %v3838 = vld [vmem:[%s2866 + $0x54] sm:$0xe]
      %v3839 = vld [vmem:[%s2866 + $0x60] sm:$0xe]
      %v3840 = vld [vmem:[%s2866 + $0x6c] sm:$0xe]
      %v3841 = vld [vmem:[%s2866 + $0x78] sm:$0xe]
      %v3842 = vld [vmem:[%s2866 + $0x84] sm:$0xe]
      %v3843 = vld [vmem:[%s2866 + $0x90] sm:$0xe]
      %v3844 = vld [vmem:[%s2866 + $0x9c] sm:$0xe]
      %v3845 = vld [vmem:[%s2866 + $0xa8] sm:$0xe]
      %v3846 = vld [vmem:[%s2866 + $0xb4] sm:$0xe]
      %v3895 = vrot.slane %v3831, 5
      %v3896 = vrot.slane %v3895, 4
      %v3897 = vrot.slane %v3166, 5
      %v3898 = vsel %vm1144, %v3896, %v3897
      %v3899 = vrot.slane %v3897, 4
      %v3900 = vrot.slane %v3167, 5
      %v3901 = vsel %vm1144, %v3899, %v3900
      %v3902 = vrot.slane %v3832, 5
      %v3903 = vrot.slane %v3902, 4
      %v3904 = vrot.slane %v3169, 5
      %v3905 = vsel %vm1144, %v3903, %v3904
      %v3906 = vrot.slane %v3904, 4
      %v3907 = vrot.slane %v3170, 5
      %v3908 = vsel %vm1144, %v3906, %v3907
      %v3909 = vrot.slane %v3833, 5
      %v3910 = vrot.slane %v3909, 4
      %v3911 = vrot.slane %v3172, 5
      %v3912 = vsel %vm1144, %v3910, %v3911
      %v3913 = vrot.slane %v3911, 4
      %v3914 = vrot.slane %v3173, 5
      %v3915 = vsel %vm1144, %v3913, %v3914
      %v3916 = vrot.slane %v3834, 5
      %v3917 = vrot.slane %v3916, 4
      %v3918 = vrot.slane %v3175, 5
      %v3919 = vsel %vm1144, %v3917, %v3918
      %v3920 = vrot.slane %v3918, 4
      %v3921 = vrot.slane %v3176, 5
      %v3922 = vsel %vm1144, %v3920, %v3921
      %v3923 = vrot.slane %v3835, 5
      %v3924 = vrot.slane %v3923, 4
      %v3925 = vrot.slane %v3178, 5
      %v3926 = vsel %vm1144, %v3924, %v3925
      %v3927 = vrot.slane %v3925, 4
      %v3928 = vrot.slane %v3179, 5
      %v3929 = vsel %vm1144, %v3927, %v3928
      %v3930 = vrot.slane %v3836, 5
      %v3931 = vrot.slane %v3930, 4
      %v3932 = vrot.slane %v3181, 5
      %v3933 = vsel %vm1144, %v3931, %v3932
      %v3934 = vrot.slane %v3932, 4
      %v3935 = vrot.slane %v3182, 5
      %v3936 = vsel %vm1144, %v3934, %v3935
      %v3937 = vrot.slane %v3837, 5
      %v3938 = vrot.slane %v3937, 4
      %v3939 = vrot.slane %v3184, 5
      %v3940 = vsel %vm1144, %v3938, %v3939
      %v3941 = vrot.slane %v3939, 4
      %v3942 = vrot.slane %v3185, 5
      %v3943 = vsel %vm1144, %v3941, %v3942
      %v3944 = vrot.slane %v3838, 5
      %v3945 = vrot.slane %v3944, 4
      %v3946 = vrot.slane %v3187, 5
      %v3947 = vsel %vm1144, %v3945, %v3946
      %v3948 = vrot.slane %v3946, 4
      %v3949 = vrot.slane %v3188, 5
      %v3950 = vsel %vm1144, %v3948, %v3949
      %v3951 = vrot.slane %v3839, 5
      %v3952 = vrot.slane %v3951, 4
      %v3953 = vrot.slane %v3190, 5
      %v3954 = vsel %vm1144, %v3952, %v3953
      %v3955 = vrot.slane %v3953, 4
      %v3956 = vrot.slane %v3191, 5
      %v3957 = vsel %vm1144, %v3955, %v3956
      %v3958 = vrot.slane %v3840, 5
      %v3959 = vrot.slane %v3958, 4
      %v3960 = vrot.slane %v3193, 5
      %v3961 = vsel %vm1144, %v3959, %v3960
      %v3962 = vrot.slane %v3960, 4
      %v3963 = vrot.slane %v3194, 5
      %v3964 = vsel %vm1144, %v3962, %v3963
      %v3965 = vrot.slane %v3841, 5
      %v3966 = vrot.slane %v3965, 4
      %v3967 = vrot.slane %v3196, 5
      %v3968 = vsel %vm1144, %v3966, %v3967
      %v3969 = vrot.slane %v3967, 4
      %v3970 = vrot.slane %v3197, 5
      %v3971 = vsel %vm1144, %v3969, %v3970
      %v3972 = vrot.slane %v3842, 5
      %v3973 = vrot.slane %v3972, 4
      %v3974 = vrot.slane %v3199, 5
      %v3975 = vsel %vm1144, %v3973, %v3974
      %v3976 = vrot.slane %v3974, 4
      %v3977 = vrot.slane %v3200, 5
      %v3978 = vsel %vm1144, %v3976, %v3977
      %v3979 = vrot.slane %v3843, 5
      %v3980 = vrot.slane %v3979, 4
      %v3981 = vrot.slane %v3202, 5
      %v3982 = vsel %vm1144, %v3980, %v3981
      %v3983 = vrot.slane %v3981, 4
      %v3984 = vrot.slane %v3203, 5
      %v3985 = vsel %vm1144, %v3983, %v3984
      %v3986 = vrot.slane %v3844, 5
      %v3987 = vrot.slane %v3986, 4
      %v3988 = vrot.slane %v3205, 5
      %v3989 = vsel %vm1144, %v3987, %v3988
      %v3990 = vrot.slane %v3988, 4
      %v3991 = vrot.slane %v3206, 5
      %v3992 = vsel %vm1144, %v3990, %v3991
      %v3993 = vrot.slane %v3845, 5
      %v3994 = vrot.slane %v3993, 4
      %v3995 = vrot.slane %v3208, 5
      %v3996 = vsel %vm1144, %v3994, %v3995
      %v3997 = vrot.slane %v3995, 4
      %v3998 = vrot.slane %v3209, 5
      %v3999 = vsel %vm1144, %v3997, %v3998
      %v4000 = vrot.slane %v3846, 5
      %v4001 = vrot.slane %v4000, 4
      %v4002 = vrot.slane %v3211, 5
      %v4003 = vsel %vm1144, %v4001, %v4002
      %v4004 = vrot.slane %v4002, 4
      %v4005 = vrot.slane %v3212, 5
      %v4006 = vsel %vm1144, %v4004, %v4005
      %s4007 = scalar_lea.vmem %s210, 128
      %v4008 = vld [vmem:[%s4007] sm:$0xf]
      %v4009 = vld [vmem:[%s4007 + $0x4] sm:$0xf]
      %v4010 = vld [vmem:[%s4007 + $0x8] sm:$0xf]
      %v4011 = vld [vmem:[%s4007 + $0xc] sm:$0xf]
      %v4012 = vunpack.c.l.b16 %v3898
      %v4013 = vunpack.c.l.b16 %v3901
      %v4014 = vunpack.c.l.b16 %v3905
      %v4015 = vunpack.c.l.b16 %v3908
      %v4016 = vunpack.c.l.b16 %v3912
      %v4017 = vunpack.c.l.b16 %v3915
      %v4018 = vunpack.c.l.b16 %v3919
      %v4019 = vunpack.c.l.b16 %v3922
      %v4020 = vunpack.c.l.b16 %v3926
      %v4021 = vunpack.c.l.b16 %v3929
      %v4022 = vunpack.c.l.b16 %v3933
      %v4023 = vunpack.c.l.b16 %v3936
      %v4024 = vunpack.c.l.b16 %v3940
      %v4025 = vunpack.c.l.b16 %v3943
      %v4026 = vunpack.c.l.b16 %v3947
      %v4027 = vunpack.c.l.b16 %v3950
      %v4028 = vunpack.c.l.b16 %v3954
      %v4029 = vunpack.c.l.b16 %v3957
      %v4030 = vunpack.c.l.b16 %v3961
      %v4031 = vunpack.c.l.b16 %v3964
      %v4032 = vunpack.c.l.b16 %v3968
      %v4033 = vunpack.c.l.b16 %v3971
      %v4034 = vunpack.c.l.b16 %v3975
      %v4035 = vunpack.c.l.b16 %v3978
      %v4036 = vunpack.c.l.b16 %v3982
      %v4037 = vunpack.c.l.b16 %v3985
      %v4038 = vunpack.c.l.b16 %v3989
      %v4039 = vunpack.c.l.b16 %v3992
      %v4040 = vunpack.c.l.b16 %v3996
      %v4041 = vunpack.c.l.b16 %v3999
      %v4042 = vunpack.c.l.b16 %v4003
      %v4043 = vunpack.c.l.b16 %v4006
      %v4044 = vpack.c.b16 %v4013, %v4012
      %v4045 = vpack.c.b16 %v4015, %v4014
      %v4046 = vpack.c.b16 %v4017, %v4016
      %v4047 = vpack.c.b16 %v4019, %v4018
      %v4048 = vpack.c.b16 %v4021, %v4020
      %v4049 = vpack.c.b16 %v4023, %v4022
      %v4050 = vpack.c.b16 %v4025, %v4024
      %v4051 = vpack.c.b16 %v4027, %v4026
      %v4052 = vpack.c.b16 %v4029, %v4028
      %v4053 = vpack.c.b16 %v4031, %v4030
      %v4054 = vpack.c.b16 %v4033, %v4032
      %v4055 = vpack.c.b16 %v4035, %v4034
      %v4056 = vpack.c.b16 %v4037, %v4036
      %v4057 = vpack.c.b16 %v4039, %v4038
      %v4058 = vpack.c.b16 %v4041, %v4040
      %v4059 = vpack.c.b16 %v4043, %v4042
      %v4064 = vunpack.c.l.b16 %v4008
      %v4065 = vunpack.c.l.b16 %v4009
      %v4066 = vunpack.c.l.b16 %v4010
      %v4067 = vunpack.c.l.b16 %v4011
      %v4068 = vpack.c.b16 %v4065, %v4064
      %v4069 = vpack.c.b16 %v4067, %v4066
      %v4073 = vsel %vm727, %v4044, 0
      %v4076 = vsel %vm727, %v4045, 0
      %v4079 = vsel %vm727, %v4046, 0
      %v4082 = vsel %vm727, %v4047, 0
      %v4085 = vsel %vm727, %v4048, 0
      %v4088 = vsel %vm727, %v4049, 0
      %v4091 = vsel %vm727, %v4050, 0
      %v4094 = vsel %vm727, %v4051, 0
      %v4097 = vsel %vm727, %v4052, 0
      %v4100 = vsel %vm727, %v4053, 0
      %v4103 = vsel %vm727, %v4054, 0
      %v4106 = vsel %vm727, %v4055, 0
      %v4109 = vsel %vm727, %v4056, 0
      %v4112 = vsel %vm727, %v4057, 0
      %v4115 = vsel %vm727, %v4058, 0
      %v4118 = vsel %vm727, %v4059, 0
      %4120 = vmatpush.bf16.msra.mxu0 0
      %4121 = vmatpush.bf16.msra.mxu0 0
      %4122 = vmatpush.bf16.msra.mxu0 0
      %4123 = vmatpush.bf16.msra.mxu0 0
      %4124 = vmatpush.bf16.msra.mxu0 0
      %4125 = vmatpush.bf16.msra.mxu0 0
      %4126 = vmatpush.bf16.msra.mxu0 %v4069
      %4127 = vmatpush.bf16.msra.mxu0 %v4068
      %4128 = vmatmul.bf16.gmra.mxu0 %v4073
      %v4129 = vpop.f32.mrf.mxu0
      %v4130 = vadd.f32 0.0, %v4129
      %v4131 = vpop.f32.mrf.mxu0
      %v4132 = vadd.f32 0.0, %v4131
      %4133 = vmatmul.bf16.gmra.mxu0 %v4076
      %v4134 = vpop.f32.mrf.mxu0
      %v4135 = vadd.f32 0.0, %v4134
      %v4136 = vpop.f32.mrf.mxu0
      %v4137 = vadd.f32 0.0, %v4136
      %4138 = vmatmul.bf16.gmra.mxu0 %v4079
      %v4139 = vpop.f32.mrf.mxu0
      %v4140 = vadd.f32 0.0, %v4139
      %v4141 = vpop.f32.mrf.mxu0
      %v4142 = vadd.f32 0.0, %v4141
      %4143 = vmatmul.bf16.gmra.mxu0 %v4082
      %v4144 = vpop.f32.mrf.mxu0
      %v4145 = vadd.f32 0.0, %v4144
      %v4146 = vpop.f32.mrf.mxu0
      %v4147 = vadd.f32 0.0, %v4146
      %4148 = vmatmul.bf16.gmra.mxu0 %v4085
      %v4149 = vpop.f32.mrf.mxu0
      %v4150 = vadd.f32 0.0, %v4149
      %v4151 = vpop.f32.mrf.mxu0
      %v4152 = vadd.f32 0.0, %v4151
      %4153 = vmatmul.bf16.gmra.mxu0 %v4088
      %v4154 = vpop.f32.mrf.mxu0
      %v4155 = vadd.f32 0.0, %v4154
      %v4156 = vpop.f32.mrf.mxu0
      %v4157 = vadd.f32 0.0, %v4156
      %4158 = vmatmul.bf16.gmra.mxu0 %v4091
      %v4159 = vpop.f32.mrf.mxu0
      %v4160 = vadd.f32 0.0, %v4159
      %v4161 = vpop.f32.mrf.mxu0
      %v4162 = vadd.f32 0.0, %v4161
      %4163 = vmatmul.bf16.gmra.mxu0 %v4094
      %v4164 = vpop.f32.mrf.mxu0
      %v4165 = vadd.f32 0.0, %v4164
      %v4166 = vpop.f32.mrf.mxu0
      %v4167 = vadd.f32 0.0, %v4166
      %4168 = vmatmul.bf16.gmra.mxu0 %v4097
      %v4169 = vpop.f32.mrf.mxu0
      %v4170 = vadd.f32 0.0, %v4169
      %v4171 = vpop.f32.mrf.mxu0
      %v4172 = vadd.f32 0.0, %v4171
      %4173 = vmatmul.bf16.gmra.mxu0 %v4100
      %v4174 = vpop.f32.mrf.mxu0
      %v4175 = vadd.f32 0.0, %v4174
      %v4176 = vpop.f32.mrf.mxu0
      %v4177 = vadd.f32 0.0, %v4176
      %4178 = vmatmul.bf16.gmra.mxu0 %v4103
      %v4179 = vpop.f32.mrf.mxu0
      %v4180 = vadd.f32 0.0, %v4179
      %v4181 = vpop.f32.mrf.mxu0
      %v4182 = vadd.f32 0.0, %v4181
      %4183 = vmatmul.bf16.gmra.mxu0 %v4106
      %v4184 = vpop.f32.mrf.mxu0
      %v4185 = vadd.f32 0.0, %v4184
      %v4186 = vpop.f32.mrf.mxu0
      %v4187 = vadd.f32 0.0, %v4186
      %4188 = vmatmul.bf16.gmra.mxu0 %v4109
      %v4189 = vpop.f32.mrf.mxu0
      %v4190 = vadd.f32 0.0, %v4189
      %v4191 = vpop.f32.mrf.mxu0
      %v4192 = vadd.f32 0.0, %v4191
      %4193 = vmatmul.bf16.gmra.mxu0 %v4112
      %v4194 = vpop.f32.mrf.mxu0
      %v4195 = vadd.f32 0.0, %v4194
      %v4196 = vpop.f32.mrf.mxu0
      %v4197 = vadd.f32 0.0, %v4196
      %4198 = vmatmul.bf16.gmra.mxu0 %v4115
      %v4199 = vpop.f32.mrf.mxu0
      %v4200 = vadd.f32 0.0, %v4199
      %v4201 = vpop.f32.mrf.mxu0
      %v4202 = vadd.f32 0.0, %v4201
      %4203 = vmatmul.bf16.gmra.mxu0 %v4118
      %v4204 = vpop.f32.mrf.mxu0
      %v4205 = vadd.f32 0.0, %v4204
      %v4206 = vpop.f32.mrf.mxu0
      %v4207 = vadd.f32 0.0, %v4206
      %4208 = vdwg.mxu0
      %v4209 = vadd.f32 %v3799, %v4130
      %v4210 = vadd.f32 %v3800, %v4132
      %v4211 = vadd.f32 %v3801, %v4135
      %v4212 = vadd.f32 %v3802, %v4137
      %v4213 = vadd.f32 %v3803, %v4140
      %v4214 = vadd.f32 %v3804, %v4142
      %v4215 = vadd.f32 %v3805, %v4145
      %v4216 = vadd.f32 %v3806, %v4147
      %v4217 = vadd.f32 %v3807, %v4150
      %v4218 = vadd.f32 %v3808, %v4152
      %v4219 = vadd.f32 %v3809, %v4155
      %v4220 = vadd.f32 %v3810, %v4157
      %v4221 = vadd.f32 %v3811, %v4160
      %v4222 = vadd.f32 %v3812, %v4162
      %v4223 = vadd.f32 %v3813, %v4165
      %v4224 = vadd.f32 %v3814, %v4167
      %v4225 = vadd.f32 %v3815, %v4170
      %v4226 = vadd.f32 %v3816, %v4172
      %v4227 = vadd.f32 %v3817, %v4175
      %v4228 = vadd.f32 %v3818, %v4177
      %v4229 = vadd.f32 %v3819, %v4180
      %v4230 = vadd.f32 %v3820, %v4182
      %v4231 = vadd.f32 %v3821, %v4185
      %v4232 = vadd.f32 %v3822, %v4187
      %v4233 = vadd.f32 %v3823, %v4190
      %v4234 = vadd.f32 %v3824, %v4192
      %v4235 = vadd.f32 %v3825, %v4195
      %v4236 = vadd.f32 %v3826, %v4197
      %v4237 = vadd.f32 %v3827, %v4200
      %v4238 = vadd.f32 %v3828, %v4202
      %v4239 = vadd.f32 %v3829, %v4205
      %v4240 = vadd.f32 %v3830, %v4207
      %v4241 = vld [vmem:[%s213] sm:$0x1]
      %v4243 = vperm.slane %v4241, 0
      %v4245 = vadd.f32 %v4209, %v4243
      %v4246 = vadd.f32 %v4210, %v4243
      %v4247 = vadd.f32 %v4211, %v4243
      %v4248 = vadd.f32 %v4212, %v4243
      %v4249 = vadd.f32 %v4213, %v4243
      %v4250 = vadd.f32 %v4214, %v4243
      %v4251 = vadd.f32 %v4215, %v4243
      %v4252 = vadd.f32 %v4216, %v4243
      %v4253 = vadd.f32 %v4217, %v4243
      %v4254 = vadd.f32 %v4218, %v4243
      %v4255 = vadd.f32 %v4219, %v4243
      %v4256 = vadd.f32 %v4220, %v4243
      %v4257 = vadd.f32 %v4221, %v4243
      %v4258 = vadd.f32 %v4222, %v4243
      %v4259 = vadd.f32 %v4223, %v4243
      %v4260 = vadd.f32 %v4224, %v4243
      %v4261 = vadd.f32 %v4225, %v4243
      %v4262 = vadd.f32 %v4226, %v4243
      %v4263 = vadd.f32 %v4227, %v4243
      %v4264 = vadd.f32 %v4228, %v4243
      %v4265 = vadd.f32 %v4229, %v4243
      %v4266 = vadd.f32 %v4230, %v4243
      %v4267 = vadd.f32 %v4231, %v4243
      %v4268 = vadd.f32 %v4232, %v4243
      %v4269 = vadd.f32 %v4233, %v4243
      %v4270 = vadd.f32 %v4234, %v4243
      %v4271 = vadd.f32 %v4235, %v4243
      %v4272 = vadd.f32 %v4236, %v4243
      %v4273 = vadd.f32 %v4237, %v4243
      %v4274 = vadd.f32 %v4238, %v4243
      %v4275 = vadd.f32 %v4239, %v4243
      %v4276 = vadd.f32 %v4240, %v4243
      %v4277 = vsel %vm727, %v4245, 0.0
      %v4278 = vsel %vm727, %v4246, 0.0
      %v4279 = vadd.f32 %v4277, %v4278
      %v4280 = vsel %vm727, %v4247, 0.0
      %v4281 = vadd.f32 %v4279, %v4280
      %v4282 = vsel %vm727, %v4248, 0.0
      %v4283 = vadd.f32 %v4281, %v4282
      %v4284 = vsel %vm727, %v4249, 0.0
      %v4285 = vadd.f32 %v4283, %v4284
      %v4286 = vsel %vm727, %v4250, 0.0
      %v4287 = vadd.f32 %v4285, %v4286
      %v4288 = vsel %vm727, %v4251, 0.0
      %v4289 = vadd.f32 %v4287, %v4288
      %v4290 = vsel %vm727, %v4252, 0.0
      %v4291 = vadd.f32 %v4289, %v4290
      %v4292 = vsel %vm727, %v4253, 0.0
      %v4293 = vadd.f32 %v4291, %v4292
      %v4294 = vsel %vm727, %v4254, 0.0
      %v4295 = vadd.f32 %v4293, %v4294
      %v4296 = vsel %vm727, %v4255, 0.0
      %v4297 = vadd.f32 %v4295, %v4296
      %v4298 = vsel %vm727, %v4256, 0.0
      %v4299 = vadd.f32 %v4297, %v4298
      %v4300 = vsel %vm727, %v4257, 0.0
      %v4301 = vadd.f32 %v4299, %v4300
      %v4302 = vsel %vm727, %v4258, 0.0
      %v4303 = vadd.f32 %v4301, %v4302
      %v4304 = vsel %vm727, %v4259, 0.0
      %v4305 = vadd.f32 %v4303, %v4304
      %v4306 = vsel %vm727, %v4260, 0.0
      %v4307 = vadd.f32 %v4305, %v4306
      %v4308 = vsel %vm727, %v4261, 0.0
      %v4309 = vadd.f32 %v4307, %v4308
      %v4310 = vsel %vm727, %v4262, 0.0
      %v4311 = vadd.f32 %v4309, %v4310
      %v4312 = vsel %vm727, %v4263, 0.0
      %v4313 = vadd.f32 %v4311, %v4312
      %v4314 = vsel %vm727, %v4264, 0.0
      %v4315 = vadd.f32 %v4313, %v4314
      %v4316 = vsel %vm727, %v4265, 0.0
      %v4317 = vadd.f32 %v4315, %v4316
      %v4318 = vsel %vm727, %v4266, 0.0
      %v4319 = vadd.f32 %v4317, %v4318
      %v4320 = vsel %vm727, %v4267, 0.0
      %v4321 = vadd.f32 %v4319, %v4320
      %v4322 = vsel %vm727, %v4268, 0.0
      %v4323 = vadd.f32 %v4321, %v4322
      %v4324 = vsel %vm727, %v4269, 0.0
      %v4325 = vadd.f32 %v4323, %v4324
      %v4326 = vsel %vm727, %v4270, 0.0
      %v4327 = vadd.f32 %v4325, %v4326
      %v4328 = vsel %vm727, %v4271, 0.0
      %v4329 = vadd.f32 %v4327, %v4328
      %v4330 = vsel %vm727, %v4272, 0.0
      %v4331 = vadd.f32 %v4329, %v4330
      %v4332 = vsel %vm727, %v4273, 0.0
      %v4333 = vadd.f32 %v4331, %v4332
      %v4334 = vsel %vm727, %v4274, 0.0
      %v4335 = vadd.f32 %v4333, %v4334
      %v4336 = vsel %vm727, %v4275, 0.0
      %v4337 = vadd.f32 %v4335, %v4336
      %v4338 = vsel %vm727, %v4276, 0.0
      %v4339 = vadd.f32 %v4337, %v4338
      %v4340 = vrot.slane %v4339, 4
      %v4341 = vadd.f32 %v4339, %v4340
      %v4342 = vrot.slane %v4341, 2
      %v4343 = vadd.f32 %v4341, %v4342
      %v4344 = vrot.slane %v4343, 1
      %v4345 = vadd.f32 %v4343, %v4344
      %v4346 = vrcp.pop 256.0
      %v4347 = vmul.f32 256.0, %v4346
      %v4348 = vsub.f32 1.0, %v4347
      %v4349 = vmul.f32 %v4346, %v4348
      %v4350 = vadd.f32 %v4346, %v4349
      %vm4351 = vweird.f32 %v4346
      %v4352 = vsel %vm4351, %v4346, %v4350
      %v4353 = vmul.f32 %v4345, %v4352
      %v4354 = vsub.f32 %v4245, %v4353
      %v4355 = vsub.f32 %v4246, %v4353
      %v4356 = vsub.f32 %v4247, %v4353
      %v4357 = vsub.f32 %v4248, %v4353
      %v4358 = vsub.f32 %v4249, %v4353
      %v4359 = vsub.f32 %v4250, %v4353
      %v4360 = vsub.f32 %v4251, %v4353
      %v4361 = vsub.f32 %v4252, %v4353
      %v4362 = vsub.f32 %v4253, %v4353
      %v4363 = vsub.f32 %v4254, %v4353
      %v4364 = vsub.f32 %v4255, %v4353
      %v4365 = vsub.f32 %v4256, %v4353
      %v4366 = vsub.f32 %v4257, %v4353
      %v4367 = vsub.f32 %v4258, %v4353
      %v4368 = vsub.f32 %v4259, %v4353
      %v4369 = vsub.f32 %v4260, %v4353
      %v4370 = vsub.f32 %v4261, %v4353
      %v4371 = vsub.f32 %v4262, %v4353
      %v4372 = vsub.f32 %v4263, %v4353
      %v4373 = vsub.f32 %v4264, %v4353
      %v4374 = vsub.f32 %v4265, %v4353
      %v4375 = vsub.f32 %v4266, %v4353
      %v4376 = vsub.f32 %v4267, %v4353
      %v4377 = vsub.f32 %v4268, %v4353
      %v4378 = vsub.f32 %v4269, %v4353
      %v4379 = vsub.f32 %v4270, %v4353
      %v4380 = vsub.f32 %v4271, %v4353
      %v4381 = vsub.f32 %v4272, %v4353
      %v4382 = vsub.f32 %v4273, %v4353
      %v4383 = vsub.f32 %v4274, %v4353
      %v4384 = vsub.f32 %v4275, %v4353
      %v4385 = vsub.f32 %v4276, %v4353
      %v4386 = vmul.f32 %v4354, %v4354
      %v4387 = vmul.f32 %v4355, %v4355
      %v4388 = vmul.f32 %v4356, %v4356
      %v4389 = vmul.f32 %v4357, %v4357
      %v4390 = vmul.f32 %v4358, %v4358
      %v4391 = vmul.f32 %v4359, %v4359
      %v4392 = vmul.f32 %v4360, %v4360
      %v4393 = vmul.f32 %v4361, %v4361
      %v4394 = vmul.f32 %v4362, %v4362
      %v4395 = vmul.f32 %v4363, %v4363
      %v4396 = vmul.f32 %v4364, %v4364
      %v4397 = vmul.f32 %v4365, %v4365
      %v4398 = vmul.f32 %v4366, %v4366
      %v4399 = vmul.f32 %v4367, %v4367
      %v4400 = vmul.f32 %v4368, %v4368
      %v4401 = vmul.f32 %v4369, %v4369
      %v4402 = vmul.f32 %v4370, %v4370
      %v4403 = vmul.f32 %v4371, %v4371
      %v4404 = vmul.f32 %v4372, %v4372
      %v4405 = vmul.f32 %v4373, %v4373
      %v4406 = vmul.f32 %v4374, %v4374
      %v4407 = vmul.f32 %v4375, %v4375
      %v4408 = vmul.f32 %v4376, %v4376
      %v4409 = vmul.f32 %v4377, %v4377
      %v4410 = vmul.f32 %v4378, %v4378
      %v4411 = vmul.f32 %v4379, %v4379
      %v4412 = vmul.f32 %v4380, %v4380
      %v4413 = vmul.f32 %v4381, %v4381
      %v4414 = vmul.f32 %v4382, %v4382
      %v4415 = vmul.f32 %v4383, %v4383
      %v4416 = vmul.f32 %v4384, %v4384
      %v4417 = vmul.f32 %v4385, %v4385
      %v4418 = vsel %vm727, %v4386, 0.0
      %v4419 = vsel %vm727, %v4387, 0.0
      %v4420 = vadd.f32 %v4418, %v4419
      %v4421 = vsel %vm727, %v4388, 0.0
      %v4422 = vadd.f32 %v4420, %v4421
      %v4423 = vsel %vm727, %v4389, 0.0
      %v4424 = vadd.f32 %v4422, %v4423
      %v4425 = vsel %vm727, %v4390, 0.0
      %v4426 = vadd.f32 %v4424, %v4425
      %v4427 = vsel %vm727, %v4391, 0.0
      %v4428 = vadd.f32 %v4426, %v4427
      %v4429 = vsel %vm727, %v4392, 0.0
      %v4430 = vadd.f32 %v4428, %v4429
      %v4431 = vsel %vm727, %v4393, 0.0
      %v4432 = vadd.f32 %v4430, %v4431
      %v4433 = vsel %vm727, %v4394, 0.0
      %v4434 = vadd.f32 %v4432, %v4433
      %v4435 = vsel %vm727, %v4395, 0.0
      %v4436 = vadd.f32 %v4434, %v4435
      %v4437 = vsel %vm727, %v4396, 0.0
      %v4438 = vadd.f32 %v4436, %v4437
      %v4439 = vsel %vm727, %v4397, 0.0
      %v4440 = vadd.f32 %v4438, %v4439
      %v4441 = vsel %vm727, %v4398, 0.0
      %v4442 = vadd.f32 %v4440, %v4441
      %v4443 = vsel %vm727, %v4399, 0.0
      %v4444 = vadd.f32 %v4442, %v4443
      %v4445 = vsel %vm727, %v4400, 0.0
      %v4446 = vadd.f32 %v4444, %v4445
      %v4447 = vsel %vm727, %v4401, 0.0
      %v4448 = vadd.f32 %v4446, %v4447
      %v4449 = vsel %vm727, %v4402, 0.0
      %v4450 = vadd.f32 %v4448, %v4449
      %v4451 = vsel %vm727, %v4403, 0.0
      %v4452 = vadd.f32 %v4450, %v4451
      %v4453 = vsel %vm727, %v4404, 0.0
      %v4454 = vadd.f32 %v4452, %v4453
      %v4455 = vsel %vm727, %v4405, 0.0
      %v4456 = vadd.f32 %v4454, %v4455
      %v4457 = vsel %vm727, %v4406, 0.0
      %v4458 = vadd.f32 %v4456, %v4457
      %v4459 = vsel %vm727, %v4407, 0.0
      %v4460 = vadd.f32 %v4458, %v4459
      %v4461 = vsel %vm727, %v4408, 0.0
      %v4462 = vadd.f32 %v4460, %v4461
      %v4463 = vsel %vm727, %v4409, 0.0
      %v4464 = vadd.f32 %v4462, %v4463
      %v4465 = vsel %vm727, %v4410, 0.0
      %v4466 = vadd.f32 %v4464, %v4465
      %v4467 = vsel %vm727, %v4411, 0.0
      %v4468 = vadd.f32 %v4466, %v4467
      %v4469 = vsel %vm727, %v4412, 0.0
      %v4470 = vadd.f32 %v4468, %v4469
      %v4471 = vsel %vm727, %v4413, 0.0
      %v4472 = vadd.f32 %v4470, %v4471
      %v4473 = vsel %vm727, %v4414, 0.0
      %v4474 = vadd.f32 %v4472, %v4473
      %v4475 = vsel %vm727, %v4415, 0.0
      %v4476 = vadd.f32 %v4474, %v4475
      %v4477 = vsel %vm727, %v4416, 0.0
      %v4478 = vadd.f32 %v4476, %v4477
      %v4479 = vsel %vm727, %v4417, 0.0
      %v4480 = vadd.f32 %v4478, %v4479
      %v4481 = vrot.slane %v4480, 4
      %v4482 = vadd.f32 %v4480, %v4481
      %v4483 = vrot.slane %v4482, 2
      %v4484 = vadd.f32 %v4482, %v4483
      %v4485 = vrot.slane %v4484, 1
      %v4486 = vadd.f32 %v4484, %v4485
      %v4487 = vmul.f32 %v4486, %v4352
      %v4488 = vadd.f32 %v4487, 1e-05
      %v4489 = vrsqrt.pop %v4488
      %v4490 = vmul.f32 %v4489, %v4488
      %v4491 = vmul.f32 %v4490, %v4489
      %v4492 = vmul.f32 0.5, %v4491
      %v4493 = vsub.f32 1.5, %v4492
      %v4494 = vmul.f32 %v4489, %v4493
      %vm4495 = vweird.f32 %v4488
      %vm4496 = vweird.f32 %v4489
      %vm4497 = vmor %vm4495, %vm4496
      %v4498 = vsel %vm4497, %v4489, %v4494
      %v4499 = vmul.f32 %v4354, %v4498
      %v4500 = vmul.f32 %v4355, %v4498
      %v4501 = vmul.f32 %v4356, %v4498
      %v4502 = vmul.f32 %v4357, %v4498
      %v4503 = vmul.f32 %v4358, %v4498
      %v4504 = vmul.f32 %v4359, %v4498
      %v4505 = vmul.f32 %v4360, %v4498
      %v4506 = vmul.f32 %v4361, %v4498
      %v4507 = vmul.f32 %v4362, %v4498
      %v4508 = vmul.f32 %v4363, %v4498
      %v4509 = vmul.f32 %v4364, %v4498
      %v4510 = vmul.f32 %v4365, %v4498
      %v4511 = vmul.f32 %v4366, %v4498
      %v4512 = vmul.f32 %v4367, %v4498
      %v4513 = vmul.f32 %v4368, %v4498
      %v4514 = vmul.f32 %v4369, %v4498
      %v4515 = vmul.f32 %v4370, %v4498
      %v4516 = vmul.f32 %v4371, %v4498
      %v4517 = vmul.f32 %v4372, %v4498
      %v4518 = vmul.f32 %v4373, %v4498
      %v4519 = vmul.f32 %v4374, %v4498
      %v4520 = vmul.f32 %v4375, %v4498
      %v4521 = vmul.f32 %v4376, %v4498
      %v4522 = vmul.f32 %v4377, %v4498
      %v4523 = vmul.f32 %v4378, %v4498
      %v4524 = vmul.f32 %v4379, %v4498
      %v4525 = vmul.f32 %v4380, %v4498
      %v4526 = vmul.f32 %v4381, %v4498
      %v4527 = vmul.f32 %v4382, %v4498
      %v4528 = vmul.f32 %v4383, %v4498
      %v4529 = vmul.f32 %v4384, %v4498
      %v4530 = vmul.f32 %v4385, %v4498
      %v4531 = vmax.f32 %v4499, 0.0
      %v4532 = vmax.f32 %v4500, 0.0
      %v4533 = vmax.f32 %v4501, 0.0
      %v4534 = vmax.f32 %v4502, 0.0
      %v4535 = vmax.f32 %v4503, 0.0
      %v4536 = vmax.f32 %v4504, 0.0
      %v4537 = vmax.f32 %v4505, 0.0
      %v4538 = vmax.f32 %v4506, 0.0
      %v4539 = vmax.f32 %v4507, 0.0
      %v4540 = vmax.f32 %v4508, 0.0
      %v4541 = vmax.f32 %v4509, 0.0
      %v4542 = vmax.f32 %v4510, 0.0
      %v4543 = vmax.f32 %v4511, 0.0
      %v4544 = vmax.f32 %v4512, 0.0
      %v4545 = vmax.f32 %v4513, 0.0
      %v4546 = vmax.f32 %v4514, 0.0
      %v4547 = vmax.f32 %v4515, 0.0
      %v4548 = vmax.f32 %v4516, 0.0
      %v4549 = vmax.f32 %v4517, 0.0
      %v4550 = vmax.f32 %v4518, 0.0
      %v4551 = vmax.f32 %v4519, 0.0
      %v4552 = vmax.f32 %v4520, 0.0
      %v4553 = vmax.f32 %v4521, 0.0
      %v4554 = vmax.f32 %v4522, 0.0
      %v4555 = vmax.f32 %v4523, 0.0
      %v4556 = vmax.f32 %v4524, 0.0
      %v4557 = vmax.f32 %v4525, 0.0
      %v4558 = vmax.f32 %v4526, 0.0
      %v4559 = vmax.f32 %v4527, 0.0
      %v4560 = vmax.f32 %v4528, 0.0
      %v4561 = vmax.f32 %v4529, 0.0
      %v4562 = vmax.f32 %v4530, 0.0
      %v4563 = vpack.c.bf16 %v4531, %v4531
      %v4564 = vpack.c.bf16 %v4532, %v4532
      %v4565 = vpack.c.bf16 %v4533, %v4533
      %v4566 = vpack.c.bf16 %v4534, %v4534
      %v4567 = vpack.c.bf16 %v4535, %v4535
      %v4568 = vpack.c.bf16 %v4536, %v4536
      %v4569 = vpack.c.bf16 %v4537, %v4537
      %v4570 = vpack.c.bf16 %v4538, %v4538
      %v4571 = vpack.c.bf16 %v4539, %v4539
      %v4572 = vpack.c.bf16 %v4540, %v4540
      %v4573 = vpack.c.bf16 %v4541, %v4541
      %v4574 = vpack.c.bf16 %v4542, %v4542
      %v4575 = vpack.c.bf16 %v4543, %v4543
      %v4576 = vpack.c.bf16 %v4544, %v4544
      %v4577 = vpack.c.bf16 %v4545, %v4545
      %v4578 = vpack.c.bf16 %v4546, %v4546
      %v4579 = vpack.c.bf16 %v4547, %v4547
      %v4580 = vpack.c.bf16 %v4548, %v4548
      %v4581 = vpack.c.bf16 %v4549, %v4549
      %v4582 = vpack.c.bf16 %v4550, %v4550
      %v4583 = vpack.c.bf16 %v4551, %v4551
      %v4584 = vpack.c.bf16 %v4552, %v4552
      %v4585 = vpack.c.bf16 %v4553, %v4553
      %v4586 = vpack.c.bf16 %v4554, %v4554
      %v4587 = vpack.c.bf16 %v4555, %v4555
      %v4588 = vpack.c.bf16 %v4556, %v4556
      %v4589 = vpack.c.bf16 %v4557, %v4557
      %v4590 = vpack.c.bf16 %v4558, %v4558
      %v4591 = vpack.c.bf16 %v4559, %v4559
      %v4592 = vpack.c.bf16 %v4560, %v4560
      %v4593 = vpack.c.bf16 %v4561, %v4561
      %v4594 = vpack.c.bf16 %v4562, %v4562
      %vm4595 = vcmask 257024
      %4596 = vst.msk [vmem:[%s221] sm:$0xf] %vm4595, %v4563
      %4597 = vst.msk [vmem:[%s221 + $0x4] sm:$0xf] %vm4595, %v4564
      %4598 = vst.msk [vmem:[%s221 + $0x8] sm:$0xf] %vm4595, %v4565
      %4599 = vst.msk [vmem:[%s221 + $0xc] sm:$0xf] %vm4595, %v4566
      %4600 = vst.msk [vmem:[%s221 + $0x10] sm:$0xf] %vm4595, %v4567
      %4601 = vst.msk [vmem:[%s221 + $0x14] sm:$0xf] %vm4595, %v4568
      %4602 = vst.msk [vmem:[%s221 + $0x18] sm:$0xf] %vm4595, %v4569
      %4603 = vst.msk [vmem:[%s221 + $0x1c] sm:$0xf] %vm4595, %v4570
      %4604 = vst.msk [vmem:[%s221 + $0x20] sm:$0xf] %vm4595, %v4571
      %4605 = vst.msk [vmem:[%s221 + $0x24] sm:$0xf] %vm4595, %v4572
      %4606 = vst.msk [vmem:[%s221 + $0x28] sm:$0xf] %vm4595, %v4573
      %4607 = vst.msk [vmem:[%s221 + $0x2c] sm:$0xf] %vm4595, %v4574
      %4608 = vst.msk [vmem:[%s221 + $0x30] sm:$0xf] %vm4595, %v4575
      %4609 = vst.msk [vmem:[%s221 + $0x34] sm:$0xf] %vm4595, %v4576
      %4610 = vst.msk [vmem:[%s221 + $0x38] sm:$0xf] %vm4595, %v4577
      %4611 = vst.msk [vmem:[%s221 + $0x3c] sm:$0xf] %vm4595, %v4578
      %4612 = vst.msk [vmem:[%s221 + $0x40] sm:$0xf] %vm4595, %v4579
      %4613 = vst.msk [vmem:[%s221 + $0x44] sm:$0xf] %vm4595, %v4580
      %4614 = vst.msk [vmem:[%s221 + $0x48] sm:$0xf] %vm4595, %v4581
      %4615 = vst.msk [vmem:[%s221 + $0x4c] sm:$0xf] %vm4595, %v4582
      %4616 = vst.msk [vmem:[%s221 + $0x50] sm:$0xf] %vm4595, %v4583
      %4617 = vst.msk [vmem:[%s221 + $0x54] sm:$0xf] %vm4595, %v4584
      %4618 = vst.msk [vmem:[%s221 + $0x58] sm:$0xf] %vm4595, %v4585
      %4619 = vst.msk [vmem:[%s221 + $0x5c] sm:$0xf] %vm4595, %v4586
      %4620 = vst.msk [vmem:[%s221 + $0x60] sm:$0xf] %vm4595, %v4587
      %4621 = vst.msk [vmem:[%s221 + $0x64] sm:$0xf] %vm4595, %v4588
      %4622 = vst.msk [vmem:[%s221 + $0x68] sm:$0xf] %vm4595, %v4589
      %4623 = vst.msk [vmem:[%s221 + $0x6c] sm:$0xf] %vm4595, %v4590
      %4624 = vst.msk [vmem:[%s221 + $0x70] sm:$0xf] %vm4595, %v4591
      %4625 = vst.msk [vmem:[%s221 + $0x74] sm:$0xf] %vm4595, %v4592
      %4626 = vst.msk [vmem:[%s221 + $0x78] sm:$0xf] %vm4595, %v4593
      %4627 = vst.msk [vmem:[%s221 + $0x7c] sm:$0xf] %vm4595, %v4594
      %p4628 = scmp.lt.s32.totalorder %s18, 1
      %s4629 = scalar_select %p4628, %s18, 1
      %p4630 = scmp.lt.s32.totalorder %s19, 0
      %s4631 = scalar_select %p4630, %s19, 0
      %s4632 = smul.addr %s4629, 32
      %s4633 = sadd.s32 %s4631, %s4632
      %s4634 = smul.addr %s4633, 4
      %s4635 = scalar_lea.vmem %s3, %s4634
      // Predicated region
      $region33: #{resnet_block_forward.2} parent=31 // pred_check
        %p4636 = pneg %p124
      $region34: #{resnet_block_forward.2} parent=31 // pred_check_branch
        %4638 = sbr.rel (%p4636) target = $region36
      $region35: #{resnet_block_forward.2} parent=31 // pred_region
        _
      $region36: #{resnet_block_forward.2} parent=31 // pred_fallthru
        _
    $region32: #{resnet_block_forward.2} parent=5 // pred_fallthru
      _
    %p4639 = scmp.le.s32.totalorder 2, %s9
    // Predicated region
    $region37: #{resnet_block_forward.2} parent=5 // pred_check
      %p4640 = pneg %p4639
    $region38: #{resnet_block_forward.2} parent=5 // pred_check_branch
      %4642 = sbr.rel (%p4640) target = $region40
    $region39: #{resnet_block_forward.2} parent=5 // pred_region
      %s4643 = ssub.s32 %s9, 2
      // Predicated region
      $region41: #{resnet_block_forward.2} parent=39 // pred_check
        %p4644 = pneg %p130
      $region42: #{resnet_block_forward.2} parent=39 // pred_check_branch
        %4646 = sbr.rel (%p4644) target = $region44
      $region43: #{resnet_block_forward.2} parent=39 // pred_region
        %p4647 = scmp.lt.s32.totalorder %s20, 1
        %s4648 = scalar_select %p4647, %s20, 1
        %p4649 = scmp.lt.s32.totalorder %s21, 0
        %s4650 = scalar_select %p4649, %s21, 0
        %s4651 = smul.addr %s4648, 32
        %s4652 = sadd.s32 %s4650, %s4651
        %s4653 = smul.addr %s4652, 4
        %s4654 = scalar_lea.vmem %s3, %s4653
      $region44: #{resnet_block_forward.2} parent=39 // pred_fallthru
        _
    $region40: #{resnet_block_forward.2} parent=5 // pred_fallthru
      _
  $region6: #{resnet_block_forward.2} parent=0 // loop_footer
    %s13 = sadd.s32 1, %s9
  $region7: #{resnet_block_forward.2} parent=0 // loop_footer_branch
    %8 = sbr.rel target = $region3
  $region8: #{resnet_block_forward.2} parent=0 // loop_exit
    _

</llo_original>
